<compile_context>
chip_gen: v5e
topology: v5e:2x2
jax: 0.10.0
libtpu: 0.0.40
codegen_flags: <defaults>
</compile_context>

<pallas_src>
import functools

import jax
import jax.numpy as jnp
from jax.experimental import pallas as pl
from jax.experimental.pallas import tpu as pltpu

EPS = 1e-5
VMEM_LIMIT = 32 * 1024 * 1024   # <= physical / scoped VMEM on v5e, v6e and v7x


# ---------------------------------------------------------------------------
# Tile-size helpers
# ---------------------------------------------------------------------------
def _divisors(n):
    out = []
    i = 1
    while i * i <= n:
        if n % i == 0:
            out.append(i)
            out.append(n // i)
        i += 1
    return sorted(set(out))


def _pick_th(ho, wo, target_rows=1024):
    """H-rows of output per conv tile: largest divisor of ho with (th*wo)
    sublane aligned (or th == ho) and th*wo <= target_rows."""
    best = None
    for th in _divisors(ho):
        rows = th * wo
        if rows % 8 != 0 and th != ho:
            continue
        if rows <= target_rows:
            best = th if best is None else max(best, th)
    return best if best is not None else ho


def _pick_rb(hw, co, target_bytes=2 * 1024 * 1024):
    """Rows per block for the element-wise (BN / add / ReLU) passes."""
    target = max(8, target_bytes // (4 * co))
    best = None
    for d in _divisors(hw):
        if (d % 8 == 0 or d == hw) and d <= target:
            best = d if best is None else max(best, d)
    return best if best is not None else hw


def _cparams(n_axes):
    return pltpu.CompilerParams(
        dimension_semantics=("parallel",) * n_axes,
        vmem_limit_bytes=VMEM_LIMIT)


# ---------------------------------------------------------------------------
# Kernel 1: conv (im2col single matmul) + bias + per-tile BN statistics
# ---------------------------------------------------------------------------
def conv_stats_kernel(x_ref, w_ref, b_ref, y_ref, pss_ref, psq_ref, *scratch,
                      stride, ksize, pad, th, wo):
    """x_ref  : (1, H, W, Cin)       compute dtype (NHWC)
       w_ref  : (K*K*Cin, Co)        compute dtype (im2col-flattened HWIO)
       b_ref  : (1, Co)              f32
       y_ref  : (1, TH*Wo, Co)       f32  pre-BN conv output rows of this tile
       pss_ref: (1, 1, 1, Co)        f32  per-tile sum
       psq_ref: (1, 1, 1, Co)        f32  per-tile sum of squares
       scratch: [patch (TH*Wo, K*K*Cin)] if K>1, [+ halo (Hp, Wp, Cin)] if pad>0
    """
    t = pl.program_id(1)
    h_in, w_in, cin = x_ref.shape[1], x_ref.shape[2], x_ref.shape[3]
    s = stride
    rows = th * wo

    idx = 0
    patch_ref = None
    if ksize > 1:
        patch_ref = scratch[idx]
        idx += 1
    if pad > 0:
        xpad_ref = scratch[idx]
        idx += 1
        # Zero-filled halo built in VMEM (no padded activation copy in HBM).
        xpad_ref[...] = jnp.zeros_like(xpad_ref)
        xpad_ref[pad:pad + h_in, pad:pad + w_in, :] = x_ref[0]

    def tap(dy, dx):
        h0 = t * (th * s) + dy
        if pad > 0:
            if s == 1:
                v = xpad_ref[pl.ds(h0, th), pl.ds(dx, wo), :]
            else:
                v = xpad_ref[pl.ds(h0, th, stride=s), pl.ds(dx, wo, stride=s), :]
        else:
            if s == 1:
                v = x_ref[0, pl.ds(h0, th), pl.ds(dx, wo), :]
            else:
                v = x_ref[0, pl.ds(h0, th, stride=s), pl.ds(dx, wo, stride=s), :]
        return v.reshape(rows, cin)

    if ksize == 1:
        patch = tap(0, 0)
    else:
        j = 0
        for dy in range(ksize):
            for dx in range(ksize):
                patch_ref[:, j * cin:(j + 1) * cin] = tap(dy, dx)
                j += 1
        patch = patch_ref[...]

    # Single MXU matmul, contraction K*K*Cin, f32 accumulation.
    y = jnp.dot(patch, w_ref[...], preferred_element_type=jnp.float32)
    y = y + b_ref[...]
    y_ref[0] = y
    # Per-tile statistics for the (global) batch-norm second pass.
    pss_ref[0, 0] = jnp.sum(y, axis=0, keepdims=True)
    psq_ref[0, 0] = jnp.sum(y * y, axis=0, keepdims=True)


def conv2d_stats(x_nhwc, w_oihw, bias, *, stride, compute_dtype):
    n, h, w, cin = x_nhwc.shape
    co, cin2, kh, kw = w_oihw.shape
    assert cin2 == cin and kh == kw
    k = kh
    pad = (k - 1) // 2                       # matches Conv2d(padding=1) / 1x1(pad=0)
    ho = (h + 2 * pad - k) // stride + 1
    wo = (w + 2 * pad - k) // stride + 1
    th = _pick_th(ho, wo)
    ht = ho // th
    rows = th * wo

    # OIHW -> HWIO -> (K*K*Cin, Co); column order matches the im2col assembly.
    wmat = jnp.transpose(w_oihw, (2, 3, 1, 0)).reshape(k * k * cin, co)
    wmat = wmat.astype(compute_dtype)
    xin = x_nhwc.astype(compute_dtype)
    b2 = bias.reshape(1, co).astype(jnp.float32)

    scratch = []
    if k > 1:
        scratch.append(pltpu.VMEM((rows, k * k * cin), compute_dtype))
    if pad > 0:
        scratch.append(pltpu.VMEM((h + 2 * pad, w + 2 * pad, cin), compute_dtype))

    kern = functools.partial(conv_stats_kernel, stride=stride, ksize=k,
                             pad=pad, th=th, wo=wo)

    itemsize = jnp.dtype(compute_dtype).itemsize
    flops = 2 * n * ho * wo * k * k * cin * co
    bytes_accessed = (n * h * w * cin * itemsize + k * k * cin * co * itemsize
                      + n * ho * wo * co * 4 + 2 * n * ht * co * 4)

    y, pss, psq = pl.pallas_call(
        kern,
        grid=(n, ht),
        out_shape=(jax.ShapeDtypeStruct((n, ho * wo, co), jnp.float32),
                   jax.ShapeDtypeStruct((n, ht, 1, co), jnp.float32),
                   jax.ShapeDtypeStruct((n, ht, 1, co), jnp.float32)),
        in_specs=[pl.BlockSpec((1, h, w, cin), lambda b, t: (b, 0, 0, 0)),
                  pl.BlockSpec((k * k * cin, co), lambda b, t: (0, 0)),
                  pl.BlockSpec((1, co), lambda b, t: (0, 0))],
        out_specs=(pl.BlockSpec((1, rows, co), lambda b, t: (b, t, 0)),
                   pl.BlockSpec((1, 1, 1, co), lambda b, t: (b, t, 0, 0)),
                   pl.BlockSpec((1, 1, 1, co), lambda b, t: (b, t, 0, 0))),
        scratch_shapes=scratch,
        compiler_params=_cparams(2),
        cost_estimate=pl.CostEstimate(flops=int(flops), transcendentals=0,
                                      bytes_accessed=int(bytes_accessed)),
    )(xin, wmat, b2)
    return y, pss, psq, ho, wo


# ---------------------------------------------------------------------------
# BN finalize (tiny, plain JAX): global scale/shift from accumulated sums
# ---------------------------------------------------------------------------
def bn_scale_shift(pss, psq, count, gamma, beta):
    s = jnp.sum(pss, axis=(0, 1, 2))
    q = jnp.sum(psq, axis=(0, 1, 2))
    mean = s / count
    var = jnp.maximum(q / count - mean * mean, 0.0)      # biased batch variance
    scale = gamma.astype(jnp.float32) * jax.lax.rsqrt(var + EPS)
    shift = beta.astype(jnp.float32) - mean * scale
    return scale.reshape(1, -1), shift.reshape(1, -1)


# ---------------------------------------------------------------------------
# Kernel 2: BN (affine) + optional ReLU
# ---------------------------------------------------------------------------
def bn_act_kernel(y_ref, s_ref, t_ref, o_ref, *, relu):
    out = y_ref[0].astype(jnp.float32) * s_ref[...] + t_ref[...]
    if relu:
        out = jnp.maximum(out, 0.0)
    o_ref[0] = out.astype(o_ref.dtype)


def bn_act(y, scale, shift, *, relu, out_dtype):
    n, hw, co = y.shape
    rb = _pick_rb(hw, co)
    slab = pl.BlockSpec((1, rb, co), lambda b, j: (b, j, 0))
    vec = pl.BlockSpec((1, co), lambda b, j: (0, 0))
    return pl.pallas_call(
        functools.partial(bn_act_kernel, relu=relu),
        grid=(n, hw // rb),
        out_shape=jax.ShapeDtypeStruct((n, hw, co), out_dtype),
        in_specs=[slab, vec, vec],
        out_specs=pl.BlockSpec((1, rb, co), lambda b, j: (b, j, 0)),
        compiler_params=_cparams(2),
    )(y, scale, shift)


# ---------------------------------------------------------------------------
# Kernel 3: fused BN(main) + BN(shortcut) + residual add + ReLU
# ---------------------------------------------------------------------------
def bn_add_bn_relu_kernel(y_ref, sc_ref, s1_ref, t1_ref, s2_ref, t2_ref, o_ref):
    out = y_ref[0].astype(jnp.float32) * s1_ref[...] + t1_ref[...]
    out = out + sc_ref[0].astype(jnp.float32) * s2_ref[...] + t2_ref[...]
    o_ref[0] = jnp.maximum(out, 0.0).astype(o_ref.dtype)


def bn_add_bn_relu(y, sc, s1, t1, s2, t2):
    n, hw, co = y.shape
    rb = _pick_rb(hw, co)
    slab = pl.BlockSpec((1, rb, co), lambda b, j: (b, j, 0))
    vec = pl.BlockSpec((1, co), lambda b, j: (0, 0))
    return pl.pallas_call(
        bn_add_bn_relu_kernel,
        grid=(n, hw // rb),
        out_shape=jax.ShapeDtypeStruct((n, hw, co), jnp.float32),
        in_specs=[slab, slab, vec, vec, vec, vec],
        out_specs=pl.BlockSpec((1, rb, co), lambda b, j: (b, j, 0)),
        compiler_params=_cparams(2),
    )(y, sc, s1, t1, s2, t2)


# ---------------------------------------------------------------------------
# Residual block forward (NCHW in / NCHW out, like the PyTorch module)
# ---------------------------------------------------------------------------
def residual_block(x_nchw, params, *, stride=1, compute_dtype=jnp.bfloat16):
    x = jnp.transpose(x_nchw, (0, 2, 3, 1)).astype(jnp.float32)   # -> NHWC
    n, h, w, cin = x.shape
    co = params["conv1_w"].shape[0]

    # conv1 -> BN1 -> ReLU
    y1, ss1, sq1, ho, wo = conv2d_stats(x, params["conv1_w"], params["conv1_b"],
                                        stride=stride, compute_dtype=compute_dtype)
    cnt = n * ho * wo
    sc1, sh1 = bn_scale_shift(ss1, sq1, cnt, params["bn1_g"], params["bn1_b"])
    a1 = bn_act(y1, sc1, sh1, relu=True, out_dtype=compute_dtype)     # (n, ho*wo, co)

    # conv2 (BN2 folded into the final fused kernel)
    y2, ss2, sq2, _, _ = conv2d_stats(a1.reshape(n, ho, wo, co),
                                      params["conv2_w"], params["conv2_b"],
                                      stride=1, compute_dtype=compute_dtype)
    sc2, sh2 = bn_scale_shift(ss2, sq2, cnt, params["bn2_g"], params["bn2_b"])

    # shortcut branch
    if stride != 1 or cin != co:
        ysc, sss, sqs, _, _ = conv2d_stats(x, params["sc_w"], params["sc_b"],
                                           stride=stride, compute_dtype=compute_dtype)
        scs, shs = bn_scale_shift(sss, sqs, cnt, params["bnsc_g"], params["bnsc_b"])
        sc_slab = ysc                                                 # raw conv out
    else:
        sc_slab = x.reshape(n, h * w, cin)                            # identity
        scs = jnp.ones((1, co), jnp.float32)
        shs = jnp.zeros((1, co), jnp.float32)

    # BN2(y2) + BN_sc(shortcut) + add + ReLU, fused
    out = bn_add_bn_relu(y2, sc_slab, sc2, sh2, scs, shs)             # (n, ho*wo, co)
    return jnp.transpose(out.reshape(n, ho, wo, co), (0, 3, 1, 2))    # -> NCHW


# ---------------------------------------------------------------------------
# Pure-JAX reference (ground truth)
# ---------------------------------------------------------------------------
def ref_residual_block(x, params, *, stride=1):
    def conv(v, w_oihw, b, stride_, pad):
        y = jax.lax.conv_general_dilated(
            v, w_oihw, (stride_, stride_), [(pad, pad), (pad, pad)],
            dimension_numbers=("NCHW", "OIHW", "NCHW"),
            precision=jax.lax.Precision.HIGHEST)
        return y + b.reshape(1, -1, 1, 1)

    def bn(y, g, be):
        mu = jnp.mean(y, axis=(0, 2, 3), keepdims=True)
        var = jnp.mean((y - mu) ** 2, axis=(0, 2, 3), keepdims=True)
        return ((y - mu) * jax.lax.rsqrt(var + EPS) * g.reshape(1, -1, 1, 1)
                + be.reshape(1, -1, 1, 1))

    out = jax.nn.relu(bn(conv(x, params["conv1_w"], params["conv1_b"], stride, 1),
                         params["bn1_g"], params["bn1_b"]))
    out = bn(conv(out, params["conv2_w"], params["conv2_b"], 1, 1),
             params["bn2_g"], params["bn2_b"])

    cin, co = x.shape[1], params["conv1_w"].shape[0]
    if stride != 1 or cin != co:
        sc = bn(conv(x, params["sc_w"], params["sc_b"], stride, 0),
                params["bnsc_g"], params["bnsc_b"])
    else:
        sc = x
    return jax.nn.relu(out + sc)


# ---------------------------------------------------------------------------
# Deterministic parameter init + smoke test
# ---------------------------------------------------------------------------
def init_params(key, in_c, out_c):
    ks = jax.random.split(key, 12)
    return {
        "conv1_w": 0.1 * jax.random.normal(ks[0], (out_c, in_c, 3, 3), jnp.float32),
        "conv1_b": 0.1 * jax.random.normal(ks[1], (out_c,), jnp.float32),
        "bn1_g":   1.0 + 0.1 * jax.random.normal(ks[2], (out_c,), jnp.float32),
        "bn1_b":   0.1 * jax.random.normal(ks[3], (out_c,), jnp.float32),
        "conv2_w": 0.1 * jax.random.normal(ks[4], (out_c, out_c, 3, 3), jnp.float32),
        "conv2_b": 0.1 * jax.random.normal(ks[5], (out_c,), jnp.float32),
        "bn2_g":   1.0 + 0.1 * jax.random.normal(ks[6], (out_c,), jnp.float32),
        "bn2_b":   0.1 * jax.random.normal(ks[7], (out_c,), jnp.float32),
        "sc_w":    0.1 * jax.random.normal(ks[8], (out_c, in_c, 1, 1), jnp.float32),
        "sc_b":    0.1 * jax.random.normal(ks[9], (out_c,), jnp.float32),
        "bnsc_g":  1.0 + 0.1 * jax.random.normal(ks[10], (out_c,), jnp.float32),
        "bnsc_b":  0.1 * jax.random.normal(ks[11], (out_c,), jnp.float32),
    }


if __name__ == "__main__":
    key = jax.random.PRNGKey(0)

    configs = [
        dict(n=2, cin=8, co=16, h=16, w=16, stride=1),    # projection (1x1) shortcut
        dict(n=2, cin=16, co=16, h=16, w=16, stride=1),   # identity shortcut
    ]

    for cfg in configs:
        kx, kp, key = jax.random.split(key, 3)
        x = jax.random.normal(kx, (cfg["n"], cfg["cin"], cfg["h"], cfg["w"]),
                              jnp.float32)
        params = init_params(kp, cfg["cin"], cfg["co"])
        ref = ref_residual_block(x, params, stride=cfg["stride"])

        # f32 compute path: tight functional check of the kernel pipeline.
        run32 = jax.jit(functools.partial(residual_block, stride=cfg["stride"],
                                          compute_dtype=jnp.float32))
        out32 = jax.block_until_ready(run32(x, params))
        assert out32.shape == ref.shape
        assert jnp.allclose(out32, ref, atol=5e-3, rtol=5e-3), (
            float(jnp.max(jnp.abs(out32 - ref))))

        # bf16 MXU path (default): looser check (bf16 matmul operands).
        runbf = jax.jit(functools.partial(residual_block, stride=cfg["stride"],
                                          compute_dtype=jnp.bfloat16))
        outbf = jax.block_until_ready(runbf(x, params))
        assert outbf.shape == ref.shape
        assert jnp.allclose(outbf, ref, atol=5e-2, rtol=5e-2), (
            float(jnp.max(jnp.abs(outbf - ref))))

    print("KERNEL_OK")
</pallas_src>

<mosaic_0001>
module attributes {stable_mosaic.version = 11 : i64} {
  func.func @conv_stats_kernel(%arg0: i32, %arg1: i32, %arg2: memref<1x16x16x8xf32, #tpu.memory_space<vmem>>, %arg3: memref<72x16xf32, #tpu.memory_space<vmem>>, %arg4: memref<1x16xf32, #tpu.memory_space<vmem>>, %arg5: memref<1x256x16xf32, #tpu.memory_space<vmem>>, %arg6: memref<1x1x1x16xf32, #tpu.memory_space<vmem>>, %arg7: memref<1x1x1x16xf32, #tpu.memory_space<vmem>>, %arg8: memref<256x72xf32, #tpu.memory_space<vmem>>, %arg9: memref<18x18x8xf32, #tpu.memory_space<vmem>>) attributes {dimension_semantics = [#tpu.dimension_semantics<parallel>, #tpu.dimension_semantics<parallel>], iteration_bounds = array<i64: 2, 1>, scalar_prefetch = 0 : i64, scratch_operands = 2 : i64, tpu.core_type = #tpu.core_type<tc>, window_params = [{transform_indices = @transform_0, window_bounds = array<i64: 1, 16, 16, 8>}, {pipeline_mode = #tpu.pipeline_mode<synchronous>, transform_indices = @transform_1, window_bounds = array<i64: 72, 16>}, {pipeline_mode = #tpu.pipeline_mode<synchronous>, transform_indices = @transform_2, window_bounds = array<i64: 1, 16>}, {transform_indices = @transform_3, window_bounds = array<i64: 1, 256, 16>}, {transform_indices = @transform_4, window_bounds = array<i64: 1, 1, 1, 16>}, {transform_indices = @transform_5, window_bounds = array<i64: 1, 1, 1, 16>}]} {
    %cst = arith.constant 0.000000e+00 : f32
    %0 = vector.broadcast %cst : f32 to vector<18x18x8xf32>
    %c0 = arith.constant 0 : index
    %c0_0 = arith.constant 0 : index
    %c0_1 = arith.constant 0 : index
    %1 = vector.load %arg9[%c0, %c0_0, %c0_1] : memref<18x18x8xf32, #tpu.memory_space<vmem>>, vector<18x18x8xf32>
    tpu.vector_store %arg9[%c0, %c0_0, %c0_1], %0 {strides = array<i32>} : memref<18x18x8xf32, #tpu.memory_space<vmem>>, vector<18x18x8xf32>,
    %c0_2 = arith.constant 0 : index
    %c0_3 = arith.constant 0 : index
    %c0_4 = arith.constant 0 : index
    %c0_5 = arith.constant 0 : index
    %2 = vector.load %arg2[%c0_2, %c0_3, %c0_4, %c0_5] : memref<1x16x16x8xf32, #tpu.memory_space<vmem>>, vector<1x16x16x8xf32>
    %3 = vector.shape_cast %2 : vector<1x16x16x8xf32> to vector<16x16x8xf32>
    %c1 = arith.constant 1 : index
    %c1_6 = arith.constant 1 : index
    %c0_7 = arith.constant 0 : index
    %4 = vector.load %arg9[%c1, %c1_6, %c0_7] : memref<18x18x8xf32, #tpu.memory_space<vmem>>, vector<16x16x8xf32>
    tpu.vector_store %arg9[%c1, %c1_6, %c0_7], %3 {strides = array<i32>} : memref<18x18x8xf32, #tpu.memory_space<vmem>>, vector<16x16x8xf32>,
    %c16_i32 = arith.constant 16 : i32
    %5 = arith.muli %arg1, %c16_i32 : i32
    %c0_i32 = arith.constant 0 : i32
    %6 = arith.addi %5, %c0_i32 : i32
    %7 = arith.index_cast %6 : i32 to index
    %c0_8 = arith.constant 0 : index
    %c0_9 = arith.constant 0 : index
    %8 = vector.load %arg9[%7, %c0_8, %c0_9] : memref<18x18x8xf32, #tpu.memory_space<vmem>>, vector<16x16x8xf32>
    %9 = vector.shape_cast %8 : vector<16x16x8xf32> to vector<256x8xf32>
    %c0_10 = arith.constant 0 : index
    %c0_11 = arith.constant 0 : index
    %10 = vector.load %arg8[%c0_10, %c0_11] : memref<256x72xf32, #tpu.memory_space<vmem>>, vector<256x8xf32>
    tpu.vector_store %arg8[%c0_10, %c0_11], %9 {strides = array<i32>} : memref<256x72xf32, #tpu.memory_space<vmem>>, vector<256x8xf32>,
    %c16_i32_12 = arith.constant 16 : i32
    %11 = arith.muli %arg1, %c16_i32_12 : i32
    %c0_i32_13 = arith.constant 0 : i32
    %12 = arith.addi %11, %c0_i32_13 : i32
    %13 = arith.index_cast %12 : i32 to index
    %c1_14 = arith.constant 1 : index
    %c0_15 = arith.constant 0 : index
    %14 = vector.load %arg9[%13, %c1_14, %c0_15] : memref<18x18x8xf32, #tpu.memory_space<vmem>>, vector<16x16x8xf32>
    %15 = vector.shape_cast %14 : vector<16x16x8xf32> to vector<256x8xf32>
    %c0_16 = arith.constant 0 : index
    %c8 = arith.constant 8 : index
    %16 = vector.load %arg8[%c0_16, %c8] : memref<256x72xf32, #tpu.memory_space<vmem>>, vector<256x8xf32>
    tpu.vector_store %arg8[%c0_16, %c8], %15 {strides = array<i32>} : memref<256x72xf32, #tpu.memory_space<vmem>>, vector<256x8xf32>,
    %c16_i32_17 = arith.constant 16 : i32
    %17 = arith.muli %arg1, %c16_i32_17 : i32
    %c0_i32_18 = arith.constant 0 : i32
    %18 = arith.addi %17, %c0_i32_18 : i32
    %19 = arith.index_cast %18 : i32 to index
    %c2 = arith.constant 2 : index
    %c0_19 = arith.constant 0 : index
    %20 = vector.load %arg9[%19, %c2, %c0_19] : memref<18x18x8xf32, #tpu.memory_space<vmem>>, vector<16x16x8xf32>
    %21 = vector.shape_cast %20 : vector<16x16x8xf32> to vector<256x8xf32>
    %c0_20 = arith.constant 0 : index
    %c16 = arith.constant 16 : index
    %22 = vector.load %arg8[%c0_20, %c16] : memref<256x72xf32, #tpu.memory_space<vmem>>, vector<256x8xf32>
    tpu.vector_store %arg8[%c0_20, %c16], %21 {strides = array<i32>} : memref<256x72xf32, #tpu.memory_space<vmem>>, vector<256x8xf32>,
    %c16_i32_21 = arith.constant 16 : i32
    %23 = arith.muli %arg1, %c16_i32_21 : i32
    %c1_i32 = arith.constant 1 : i32
    %24 = arith.addi %23, %c1_i32 : i32
    %25 = arith.index_cast %24 : i32 to index
    %c0_22 = arith.constant 0 : index
    %c0_23 = arith.constant 0 : index
    %26 = vector.load %arg9[%25, %c0_22, %c0_23] : memref<18x18x8xf32, #tpu.memory_space<vmem>>, vector<16x16x8xf32>
    %27 = vector.shape_cast %26 : vector<16x16x8xf32> to vector<256x8xf32>
    %c0_24 = arith.constant 0 : index
    %c24 = arith.constant 24 : index
    %28 = vector.load %arg8[%c0_24, %c24] : memref<256x72xf32, #tpu.memory_space<vmem>>, vector<256x8xf32>
    tpu.vector_store %arg8[%c0_24, %c24], %27 {strides = array<i32>} : memref<256x72xf32, #tpu.memory_space<vmem>>, vector<256x8xf32>,
    %c16_i32_25 = arith.constant 16 : i32
    %29 = arith.muli %arg1, %c16_i32_25 : i32
    %c1_i32_26 = arith.constant 1 : i32
    %30 = arith.addi %29, %c1_i32_26 : i32
    %31 = arith.index_cast %30 : i32 to index
    %c1_27 = arith.constant 1 : index
    %c0_28 = arith.constant 0 : index
    %32 = vector.load %arg9[%31, %c1_27, %c0_28] : memref<18x18x8xf32, #tpu.memory_space<vmem>>, vector<16x16x8xf32>
    %33 = vector.shape_cast %32 : vector<16x16x8xf32> to vector<256x8xf32>
    %c0_29 = arith.constant 0 : index
    %c32 = arith.constant 32 : index
    %34 = vector.load %arg8[%c0_29, %c32] : memref<256x72xf32, #tpu.memory_space<vmem>>, vector<256x8xf32>
    tpu.vector_store %arg8[%c0_29, %c32], %33 {strides = array<i32>} : memref<256x72xf32, #tpu.memory_space<vmem>>, vector<256x8xf32>,
    %c16_i32_30 = arith.constant 16 : i32
    %35 = arith.muli %arg1, %c16_i32_30 : i32
    %c1_i32_31 = arith.constant 1 : i32
    %36 = arith.addi %35, %c1_i32_31 : i32
    %37 = arith.index_cast %36 : i32 to index
    %c2_32 = arith.constant 2 : index
    %c0_33 = arith.constant 0 : index
    %38 = vector.load %arg9[%37, %c2_32, %c0_33] : memref<18x18x8xf32, #tpu.memory_space<vmem>>, vector<16x16x8xf32>
    %39 = vector.shape_cast %38 : vector<16x16x8xf32> to vector<256x8xf32>
    %c0_34 = arith.constant 0 : index
    %c40 = arith.constant 40 : index
    %40 = vector.load %arg8[%c0_34, %c40] : memref<256x72xf32, #tpu.memory_space<vmem>>, vector<256x8xf32>
    tpu.vector_store %arg8[%c0_34, %c40], %39 {strides = array<i32>} : memref<256x72xf32, #tpu.memory_space<vmem>>, vector<256x8xf32>,
    %c16_i32_35 = arith.constant 16 : i32
    %41 = arith.muli %arg1, %c16_i32_35 : i32
    %c2_i32 = arith.constant 2 : i32
    %42 = arith.addi %41, %c2_i32 : i32
    %43 = arith.index_cast %42 : i32 to index
    %c0_36 = arith.constant 0 : index
    %c0_37 = arith.constant 0 : index
    %44 = vector.load %arg9[%43, %c0_36, %c0_37] : memref<18x18x8xf32, #tpu.memory_space<vmem>>, vector<16x16x8xf32>
    %45 = vector.shape_cast %44 : vector<16x16x8xf32> to vector<256x8xf32>
    %c0_38 = arith.constant 0 : index
    %c48 = arith.constant 48 : index
    %46 = vector.load %arg8[%c0_38, %c48] : memref<256x72xf32, #tpu.memory_space<vmem>>, vector<256x8xf32>
    tpu.vector_store %arg8[%c0_38, %c48], %45 {strides = array<i32>} : memref<256x72xf32, #tpu.memory_space<vmem>>, vector<256x8xf32>,
    %c16_i32_39 = arith.constant 16 : i32
    %47 = arith.muli %arg1, %c16_i32_39 : i32
    %c2_i32_40 = arith.constant 2 : i32
    %48 = arith.addi %47, %c2_i32_40 : i32
    %49 = arith.index_cast %48 : i32 to index
    %c1_41 = arith.constant 1 : index
    %c0_42 = arith.constant 0 : index
    %50 = vector.load %arg9[%49, %c1_41, %c0_42] : memref<18x18x8xf32, #tpu.memory_space<vmem>>, vector<16x16x8xf32>
    %51 = vector.shape_cast %50 : vector<16x16x8xf32> to vector<256x8xf32>
    %c0_43 = arith.constant 0 : index
    %c56 = arith.constant 56 : index
    %52 = vector.load %arg8[%c0_43, %c56] : memref<256x72xf32, #tpu.memory_space<vmem>>, vector<256x8xf32>
    tpu.vector_store %arg8[%c0_43, %c56], %51 {strides = array<i32>} : memref<256x72xf32, #tpu.memory_space<vmem>>, vector<256x8xf32>,
    %c16_i32_44 = arith.constant 16 : i32
    %53 = arith.muli %arg1, %c16_i32_44 : i32
    %c2_i32_45 = arith.constant 2 : i32
    %54 = arith.addi %53, %c2_i32_45 : i32
    %55 = arith.index_cast %54 : i32 to index
    %c2_46 = arith.constant 2 : index
    %c0_47 = arith.constant 0 : index
    %56 = vector.load %arg9[%55, %c2_46, %c0_47] : memref<18x18x8xf32, #tpu.memory_space<vmem>>, vector<16x16x8xf32>
    %57 = vector.shape_cast %56 : vector<16x16x8xf32> to vector<256x8xf32>
    %c0_48 = arith.constant 0 : index
    %c64 = arith.constant 64 : index
    %58 = vector.load %arg8[%c0_48, %c64] : memref<256x72xf32, #tpu.memory_space<vmem>>, vector<256x8xf32>
    tpu.vector_store %arg8[%c0_48, %c64], %57 {strides = array<i32>} : memref<256x72xf32, #tpu.memory_space<vmem>>, vector<256x8xf32>,
    %c0_49 = arith.constant 0 : index
    %c0_50 = arith.constant 0 : index
    %59 = vector.load %arg8[%c0_49, %c0_50] : memref<256x72xf32, #tpu.memory_space<vmem>>, vector<256x72xf32>
    %c0_51 = arith.constant 0 : index
    %c0_52 = arith.constant 0 : index
    %60 = vector.load %arg3[%c0_51, %c0_52] : memref<72x16xf32, #tpu.memory_space<vmem>>, vector<72x16xf32>
    %cst_53 = arith.constant dense<0.000000e+00> : vector<256x16xf32>
    %61 = tpu.matmul %59, %60, %cst_53 {dimension_numbers = #tpu.dot_dimension_numbers<[1], [0], [0], [1], [0, 0, 1, 1], [], []>} : vector<256x72xf32>, vector<72x16xf32>, vector<256x16xf32> -> vector<256x16xf32>
    %c0_54 = arith.constant 0 : index
    %c0_55 = arith.constant 0 : index
    %62 = vector.load %arg4[%c0_54, %c0_55] : memref<1x16xf32, #tpu.memory_space<vmem>>, vector<1x16xf32>
    %63 = vector.broadcast %62 : vector<1x16xf32> to vector<256x16xf32>
    %64 = arith.addf %61, %63 : vector<256x16xf32>
    %c0_56 = arith.constant 0 : index
    %c0_57 = arith.constant 0 : index
    %c0_58 = arith.constant 0 : index
    %65 = vector.load %arg5[%c0_56, %c0_57, %c0_58] : memref<1x256x16xf32, #tpu.memory_space<vmem>>, vector<1x256x16xf32>
    %66 = vector.shape_cast %65 : vector<1x256x16xf32> to vector<256x16xf32>
    %67 = vector.shape_cast %64 : vector<256x16xf32> to vector<1x256x16xf32>
    tpu.vector_store %arg5[%c0_56, %c0_57, %c0_58], %67 {strides = array<i32>} : memref<1x256x16xf32, #tpu.memory_space<vmem>>, vector<1x256x16xf32>,
    %cst_59 = arith.constant dense<0.000000e+00> : vector<16xf32>
    %68 = vector.multi_reduction <add>, %64, %cst_59 [0] : vector<256x16xf32> to vector<16xf32>
    %69 = vector.shape_cast %68 : vector<16xf32> to vector<1x16xf32>
    %c0_60 = arith.constant 0 : index
    %c0_61 = arith.constant 0 : index
    %c0_62 = arith.constant 0 : index
    %c0_63 = arith.constant 0 : index
    %70 = vector.load %arg6[%c0_60, %c0_61, %c0_62, %c0_63] : memref<1x1x1x16xf32, #tpu.memory_space<vmem>>, vector<1x1x1x16xf32>
    %71 = vector.shape_cast %70 : vector<1x1x1x16xf32> to vector<1x16xf32>
    %72 = vector.shape_cast %69 : vector<1x16xf32> to vector<1x1x1x16xf32>
    tpu.vector_store %arg6[%c0_60, %c0_61, %c0_62, %c0_63], %72 {strides = array<i32>} : memref<1x1x1x16xf32, #tpu.memory_space<vmem>>, vector<1x1x1x16xf32>,
    %73 = arith.mulf %64, %64 : vector<256x16xf32>
    %cst_64 = arith.constant dense<0.000000e+00> : vector<16xf32>
    %74 = vector.multi_reduction <add>, %73, %cst_64 [0] : vector<256x16xf32> to vector<16xf32>
    %75 = vector.shape_cast %74 : vector<16xf32> to vector<1x16xf32>
    %c0_65 = arith.constant 0 : index
    %c0_66 = arith.constant 0 : index
    %c0_67 = arith.constant 0 : index
    %c0_68 = arith.constant 0 : index
    %76 = vector.load %arg7[%c0_65, %c0_66, %c0_67, %c0_68] : memref<1x1x1x16xf32, #tpu.memory_space<vmem>>, vector<1x1x1x16xf32>
    %77 = vector.shape_cast %76 : vector<1x1x1x16xf32> to vector<1x16xf32>
    %78 = vector.shape_cast %75 : vector<1x16xf32> to vector<1x1x1x16xf32>
    tpu.vector_store %arg7[%c0_65, %c0_66, %c0_67, %c0_68], %78 {strides = array<i32>} : memref<1x1x1x16xf32, #tpu.memory_space<vmem>>, vector<1x1x1x16xf32>,
    return
  }
  func.func @transform_0(%arg0: i32, %arg1: i32) -> (i32, i32, i32, i32) {
    %c0_i32 = arith.constant 0 : i32
    %c0_i32_0 = arith.constant 0 : i32
    %c0_i32_1 = arith.constant 0 : i32
    %c0_i32_2 = arith.constant 0 : i32
    return %arg0, %c0_i32, %c0_i32_0, %c0_i32_1 : i32, i32, i32, i32
  }
  func.func @transform_1(%arg0: i32, %arg1: i32) -> (i32, i32) {
    %c0_i32 = arith.constant 0 : i32
    %c0_i32_0 = arith.constant 0 : i32
    %c0_i32_1 = arith.constant 0 : i32
    return %c0_i32, %c0_i32_0 : i32, i32
  }
  func.func @transform_2(%arg0: i32, %arg1: i32) -> (i32, i32) {
    %c0_i32 = arith.constant 0 : i32
    %c0_i32_0 = arith.constant 0 : i32
    %c0_i32_1 = arith.constant 0 : i32
    return %c0_i32, %c0_i32_0 : i32, i32
  }
  func.func @transform_3(%arg0: i32, %arg1: i32) -> (i32, i32, i32) {
    %c0_i32 = arith.constant 0 : i32
    %c0_i32_0 = arith.constant 0 : i32
    return %arg0, %arg1, %c0_i32 : i32, i32, i32
  }
  func.func @transform_4(%arg0: i32, %arg1: i32) -> (i32, i32, i32, i32) {
    %c0_i32 = arith.constant 0 : i32
    %c0_i32_0 = arith.constant 0 : i32
    %c0_i32_1 = arith.constant 0 : i32
    return %arg0, %arg1, %c0_i32, %c0_i32_0 : i32, i32, i32, i32
  }
  func.func @transform_5(%arg0: i32, %arg1: i32) -> (i32, i32, i32, i32) {
    %c0_i32 = arith.constant 0 : i32
    %c0_i32_0 = arith.constant 0 : i32
    %c0_i32_1 = arith.constant 0 : i32
    return %arg0, %arg1, %c0_i32, %c0_i32_0 : i32, i32, i32, i32
  }
}

module attributes {stable_mosaic.version = 11 : i64} {
  func.func @bn_act_kernel(%arg0: i32, %arg1: i32, %arg2: memref<1x256x16xf32, #tpu.memory_space<vmem>>, %arg3: memref<1x16xf32, #tpu.memory_space<vmem>>, %arg4: memref<1x16xf32, #tpu.memory_space<vmem>>, %arg5: memref<1x256x16xf32, #tpu.memory_space<vmem>>) attributes {dimension_semantics = [#tpu.dimension_semantics<parallel>, #tpu.dimension_semantics<parallel>], iteration_bounds = array<i64: 2, 1>, scalar_prefetch = 0 : i64, scratch_operands = 0 : i64, tpu.core_type = #tpu.core_type<tc>, window_params = [{transform_indices = @transform_0, window_bounds = array<i64: 1, 256, 16>}, {pipeline_mode = #tpu.pipeline_mode<synchronous>, transform_indices = @transform_1, window_bounds = array<i64: 1, 16>}, {pipeline_mode = #tpu.pipeline_mode<synchronous>, transform_indices = @transform_2, window_bounds = array<i64: 1, 16>}, {transform_indices = @transform_3, window_bounds = array<i64: 1, 256, 16>}]} {
    %c0 = arith.constant 0 : index
    %c0_0 = arith.constant 0 : index
    %c0_1 = arith.constant 0 : index
    %0 = vector.load %arg2[%c0, %c0_0, %c0_1] : memref<1x256x16xf32, #tpu.memory_space<vmem>>, vector<1x256x16xf32>
    %1 = vector.shape_cast %0 : vector<1x256x16xf32> to vector<256x16xf32>
    %c0_2 = arith.constant 0 : index
    %c0_3 = arith.constant 0 : index
    %2 = vector.load %arg3[%c0_2, %c0_3] : memref<1x16xf32, #tpu.memory_space<vmem>>, vector<1x16xf32>
    %3 = vector.broadcast %2 : vector<1x16xf32> to vector<256x16xf32>
    %4 = arith.mulf %1, %3 : vector<256x16xf32>
    %c0_4 = arith.constant 0 : index
    %c0_5 = arith.constant 0 : index
    %5 = vector.load %arg4[%c0_4, %c0_5] : memref<1x16xf32, #tpu.memory_space<vmem>>, vector<1x16xf32>
    %6 = vector.broadcast %5 : vector<1x16xf32> to vector<256x16xf32>
    %7 = arith.addf %4, %6 : vector<256x16xf32>
    %cst = arith.constant 0.000000e+00 : f32
    %8 = vector.broadcast %cst : f32 to vector<256x16xf32>
    %9 = arith.maximumf %7, %8 : vector<256x16xf32>
    %c0_6 = arith.constant 0 : index
    %c0_7 = arith.constant 0 : index
    %c0_8 = arith.constant 0 : index
    %10 = vector.load %arg5[%c0_6, %c0_7, %c0_8] : memref<1x256x16xf32, #tpu.memory_space<vmem>>, vector<1x256x16xf32>
    %11 = vector.shape_cast %10 : vector<1x256x16xf32> to vector<256x16xf32>
    %12 = vector.shape_cast %9 : vector<256x16xf32> to vector<1x256x16xf32>
    tpu.vector_store %arg5[%c0_6, %c0_7, %c0_8], %12 {strides = array<i32>} : memref<1x256x16xf32, #tpu.memory_space<vmem>>, vector<1x256x16xf32>,
    return
  }
  func.func @transform_0(%arg0: i32, %arg1: i32) -> (i32, i32, i32) {
    %c0_i32 = arith.constant 0 : i32
    %c0_i32_0 = arith.constant 0 : i32
    return %arg0, %arg1, %c0_i32 : i32, i32, i32
  }
  func.func @transform_1(%arg0: i32, %arg1: i32) -> (i32, i32) {
    %c0_i32 = arith.constant 0 : i32
    %c0_i32_0 = arith.constant 0 : i32
    %c0_i32_1 = arith.constant 0 : i32
    return %c0_i32, %c0_i32_0 : i32, i32
  }
  func.func @transform_2(%arg0: i32, %arg1: i32) -> (i32, i32) {
    %c0_i32 = arith.constant 0 : i32
    %c0_i32_0 = arith.constant 0 : i32
    %c0_i32_1 = arith.constant 0 : i32
    return %c0_i32, %c0_i32_0 : i32, i32
  }
  func.func @transform_3(%arg0: i32, %arg1: i32) -> (i32, i32, i32) {
    %c0_i32 = arith.constant 0 : i32
    %c0_i32_0 = arith.constant 0 : i32
    return %arg0, %arg1, %c0_i32 : i32, i32, i32
  }
}

module attributes {stable_mosaic.version = 11 : i64} {
  func.func @conv_stats_kernel(%arg0: i32, %arg1: i32, %arg2: memref<1x16x16x16xf32, #tpu.memory_space<vmem>>, %arg3: memref<144x16xf32, #tpu.memory_space<vmem>>, %arg4: memref<1x16xf32, #tpu.memory_space<vmem>>, %arg5: memref<1x256x16xf32, #tpu.memory_space<vmem>>, %arg6: memref<1x1x1x16xf32, #tpu.memory_space<vmem>>, %arg7: memref<1x1x1x16xf32, #tpu.memory_space<vmem>>, %arg8: memref<256x144xf32, #tpu.memory_space<vmem>>, %arg9: memref<18x18x16xf32, #tpu.memory_space<vmem>>) attributes {dimension_semantics = [#tpu.dimension_semantics<parallel>, #tpu.dimension_semantics<parallel>], iteration_bounds = array<i64: 2, 1>, scalar_prefetch = 0 : i64, scratch_operands = 2 : i64, tpu.core_type = #tpu.core_type<tc>, window_params = [{transform_indices = @transform_0, window_bounds = array<i64: 1, 16, 16, 16>}, {pipeline_mode = #tpu.pipeline_mode<synchronous>, transform_indices = @transform_1, window_bounds = array<i64: 144, 16>}, {pipeline_mode = #tpu.pipeline_mode<synchronous>, transform_indices = @transform_2, window_bounds = array<i64: 1, 16>}, {transform_indices = @transform_3, window_bounds = array<i64: 1, 256, 16>}, {transform_indices = @transform_4, window_bounds = array<i64: 1, 1, 1, 16>}, {transform_indices = @transform_5, window_bounds = array<i64: 1, 1, 1, 16>}]} {
    %cst = arith.constant 0.000000e+00 : f32
    %0 = vector.broadcast %cst : f32 to vector<18x18x16xf32>
    %c0 = arith.constant 0 : index
    %c0_0 = arith.constant 0 : index
    %c0_1 = arith.constant 0 : index
    %1 = vector.load %arg9[%c0, %c0_0, %c0_1] : memref<18x18x16xf32, #tpu.memory_space<vmem>>, vector<18x18x16xf32>
    tpu.vector_store %arg9[%c0, %c0_0, %c0_1], %0 {strides = array<i32>} : memref<18x18x16xf32, #tpu.memory_space<vmem>>, vector<18x18x16xf32>,
    %c0_2 = arith.constant 0 : index
    %c0_3 = arith.constant 0 : index
    %c0_4 = arith.constant 0 : index
    %c0_5 = arith.constant 0 : index
    %2 = vector.load %arg2[%c0_2, %c0_3, %c0_4, %c0_5] : memref<1x16x16x16xf32, #tpu.memory_space<vmem>>, vector<1x16x16x16xf32>
    %3 = vector.shape_cast %2 : vector<1x16x16x16xf32> to vector<16x16x16xf32>
    %c1 = arith.constant 1 : index
    %c1_6 = arith.constant 1 : index
    %c0_7 = arith.constant 0 : index
    %4 = vector.load %arg9[%c1, %c1_6, %c0_7] : memref<18x18x16xf32, #tpu.memory_space<vmem>>, vector<16x16x16xf32>
    tpu.vector_store %arg9[%c1, %c1_6, %c0_7], %3 {strides = array<i32>} : memref<18x18x16xf32, #tpu.memory_space<vmem>>, vector<16x16x16xf32>,
    %c16_i32 = arith.constant 16 : i32
    %5 = arith.muli %arg1, %c16_i32 : i32
    %c0_i32 = arith.constant 0 : i32
    %6 = arith.addi %5, %c0_i32 : i32
    %7 = arith.index_cast %6 : i32 to index
    %c0_8 = arith.constant 0 : index
    %c0_9 = arith.constant 0 : index
    %8 = vector.load %arg9[%7, %c0_8, %c0_9] : memref<18x18x16xf32, #tpu.memory_space<vmem>>, vector<16x16x16xf32>
    %9 = vector.shape_cast %8 : vector<16x16x16xf32> to vector<256x16xf32>
    %c0_10 = arith.constant 0 : index
    %c0_11 = arith.constant 0 : index
    %10 = vector.load %arg8[%c0_10, %c0_11] : memref<256x144xf32, #tpu.memory_space<vmem>>, vector<256x16xf32>
    tpu.vector_store %arg8[%c0_10, %c0_11], %9 {strides = array<i32>} : memref<256x144xf32, #tpu.memory_space<vmem>>, vector<256x16xf32>,
    %c16_i32_12 = arith.constant 16 : i32
    %11 = arith.muli %arg1, %c16_i32_12 : i32
    %c0_i32_13 = arith.constant 0 : i32
    %12 = arith.addi %11, %c0_i32_13 : i32
    %13 = arith.index_cast %12 : i32 to index
    %c1_14 = arith.constant 1 : index
    %c0_15 = arith.constant 0 : index
    %14 = vector.load %arg9[%13, %c1_14, %c0_15] : memref<18x18x16xf32, #tpu.memory_space<vmem>>, vector<16x16x16xf32>
    %15 = vector.shape_cast %14 : vector<16x16x16xf32> to vector<256x16xf32>
    %c0_16 = arith.constant 0 : index
    %c16 = arith.constant 16 : index
    %16 = vector.load %arg8[%c0_16, %c16] : memref<256x144xf32, #tpu.memory_space<vmem>>, vector<256x16xf32>
    tpu.vector_store %arg8[%c0_16, %c16], %15 {strides = array<i32>} : memref<256x144xf32, #tpu.memory_space<vmem>>, vector<256x16xf32>,
    %c16_i32_17 = arith.constant 16 : i32
    %17 = arith.muli %arg1, %c16_i32_17 : i32
    %c0_i32_18 = arith.constant 0 : i32
    %18 = arith.addi %17, %c0_i32_18 : i32
    %19 = arith.index_cast %18 : i32 to index
    %c2 = arith.constant 2 : index
    %c0_19 = arith.constant 0 : index
    %20 = vector.load %arg9[%19, %c2, %c0_19] : memref<18x18x16xf32, #tpu.memory_space<vmem>>, vector<16x16x16xf32>
    %21 = vector.shape_cast %20 : vector<16x16x16xf32> to vector<256x16xf32>
    %c0_20 = arith.constant 0 : index
    %c32 = arith.constant 32 : index
    %22 = vector.load %arg8[%c0_20, %c32] : memref<256x144xf32, #tpu.memory_space<vmem>>, vector<256x16xf32>
    tpu.vector_store %arg8[%c0_20, %c32], %21 {strides = array<i32>} : memref<256x144xf32, #tpu.memory_space<vmem>>, vector<256x16xf32>,
    %c16_i32_21 = arith.constant 16 : i32
    %23 = arith.muli %arg1, %c16_i32_21 : i32
    %c1_i32 = arith.constant 1 : i32
    %24 = arith.addi %23, %c1_i32 : i32
    %25 = arith.index_cast %24 : i32 to index
    %c0_22 = arith.constant 0 : index
    %c0_23 = arith.constant 0 : index
    %26 = vector.load %arg9[%25, %c0_22, %c0_23] : memref<18x18x16xf32, #tpu.memory_space<vmem>>, vector<16x16x16xf32>
    %27 = vector.shape_cast %26 : vector<16x16x16xf32> to vector<256x16xf32>
    %c0_24 = arith.constant 0 : index
    %c48 = arith.constant 48 : index
    %28 = vector.load %arg8[%c0_24, %c48] : memref<256x144xf32, #tpu.memory_space<vmem>>, vector<256x16xf32>
    tpu.vector_store %arg8[%c0_24, %c48], %27 {strides = array<i32>} : memref<256x144xf32, #tpu.memory_space<vmem>>, vector<256x16xf32>,
    %c16_i32_25 = arith.constant 16 : i32
    %29 = arith.muli %arg1, %c16_i32_25 : i32
    %c1_i32_26 = arith.constant 1 : i32
    %30 = arith.addi %29, %c1_i32_26 : i32
    %31 = arith.index_cast %30 : i32 to index
    %c1_27 = arith.constant 1 : index
    %c0_28 = arith.constant 0 : index
    %32 = vector.load %arg9[%31, %c1_27, %c0_28] : memref<18x18x16xf32, #tpu.memory_space<vmem>>, vector<16x16x16xf32>
    %33 = vector.shape_cast %32 : vector<16x16x16xf32> to vector<256x16xf32>
    %c0_29 = arith.constant 0 : index
    %c64 = arith.constant 64 : index
    %34 = vector.load %arg8[%c0_29, %c64] : memref<256x144xf32, #tpu.memory_space<vmem>>, vector<256x16xf32>
    tpu.vector_store %arg8[%c0_29, %c64], %33 {strides = array<i32>} : memref<256x144xf32, #tpu.memory_space<vmem>>, vector<256x16xf32>,
    %c16_i32_30 = arith.constant 16 : i32
    %35 = arith.muli %arg1, %c16_i32_30 : i32
    %c1_i32_31 = arith.constant 1 : i32
    %36 = arith.addi %35, %c1_i32_31 : i32
    %37 = arith.index_cast %36 : i32 to index
    %c2_32 = arith.constant 2 : index
    %c0_33 = arith.constant 0 : index
    %38 = vector.load %arg9[%37, %c2_32, %c0_33] : memref<18x18x16xf32, #tpu.memory_space<vmem>>, vector<16x16x16xf32>
    %39 = vector.shape_cast %38 : vector<16x16x16xf32> to vector<256x16xf32>
    %c0_34 = arith.constant 0 : index
    %c80 = arith.constant 80 : index
    %40 = vector.load %arg8[%c0_34, %c80] : memref<256x144xf32, #tpu.memory_space<vmem>>, vector<256x16xf32>
    tpu.vector_store %arg8[%c0_34, %c80], %39 {strides = array<i32>} : memref<256x144xf32, #tpu.memory_space<vmem>>, vector<256x16xf32>,
    %c16_i32_35 = arith.constant 16 : i32
    %41 = arith.muli %arg1, %c16_i32_35 : i32
    %c2_i32 = arith.constant 2 : i32
    %42 = arith.addi %41, %c2_i32 : i32
    %43 = arith.index_cast %42 : i32 to index
    %c0_36 = arith.constant 0 : index
    %c0_37 = arith.constant 0 : index
    %44 = vector.load %arg9[%43, %c0_36, %c0_37] : memref<18x18x16xf32, #tpu.memory_space<vmem>>, vector<16x16x16xf32>
    %45 = vector.shape_cast %44 : vector<16x16x16xf32> to vector<256x16xf32>
    %c0_38 = arith.constant 0 : index
    %c96 = arith.constant 96 : index
    %46 = vector.load %arg8[%c0_38, %c96] : memref<256x144xf32, #tpu.memory_space<vmem>>, vector<256x16xf32>
    tpu.vector_store %arg8[%c0_38, %c96], %45 {strides = array<i32>} : memref<256x144xf32, #tpu.memory_space<vmem>>, vector<256x16xf32>,
    %c16_i32_39 = arith.constant 16 : i32
    %47 = arith.muli %arg1, %c16_i32_39 : i32
    %c2_i32_40 = arith.constant 2 : i32
    %48 = arith.addi %47, %c2_i32_40 : i32
    %49 = arith.index_cast %48 : i32 to index
    %c1_41 = arith.constant 1 : index
    %c0_42 = arith.constant 0 : index
    %50 = vector.load %arg9[%49, %c1_41, %c0_42] : memref<18x18x16xf32, #tpu.memory_space<vmem>>, vector<16x16x16xf32>
    %51 = vector.shape_cast %50 : vector<16x16x16xf32> to vector<256x16xf32>
    %c0_43 = arith.constant 0 : index
    %c112 = arith.constant 112 : index
    %52 = vector.load %arg8[%c0_43, %c112] : memref<256x144xf32, #tpu.memory_space<vmem>>, vector<256x16xf32>
    tpu.vector_store %arg8[%c0_43, %c112], %51 {strides = array<i32>} : memref<256x144xf32, #tpu.memory_space<vmem>>, vector<256x16xf32>,
    %c16_i32_44 = arith.constant 16 : i32
    %53 = arith.muli %arg1, %c16_i32_44 : i32
    %c2_i32_45 = arith.constant 2 : i32
    %54 = arith.addi %53, %c2_i32_45 : i32
    %55 = arith.index_cast %54 : i32 to index
    %c2_46 = arith.constant 2 : index
    %c0_47 = arith.constant 0 : index
    %56 = vector.load %arg9[%55, %c2_46, %c0_47] : memref<18x18x16xf32, #tpu.memory_space<vmem>>, vector<16x16x16xf32>
    %57 = vector.shape_cast %56 : vector<16x16x16xf32> to vector<256x16xf32>
    %c0_48 = arith.constant 0 : index
    %c128 = arith.constant 128 : index
    %58 = vector.load %arg8[%c0_48, %c128] : memref<256x144xf32, #tpu.memory_space<vmem>>, vector<256x16xf32>
    tpu.vector_store %arg8[%c0_48, %c128], %57 {strides = array<i32>} : memref<256x144xf32, #tpu.memory_space<vmem>>, vector<256x16xf32>,
    %c0_49 = arith.constant 0 : index
    %c0_50 = arith.constant 0 : index
    %59 = vector.load %arg8[%c0_49, %c0_50] : memref<256x144xf32, #tpu.memory_space<vmem>>, vector<256x144xf32>
    %c0_51 = arith.constant 0 : index
    %c0_52 = arith.constant 0 : index
    %60 = vector.load %arg3[%c0_51, %c0_52] : memref<144x16xf32, #tpu.memory_space<vmem>>, vector<144x16xf32>
    %cst_53 = arith.constant dense<0.000000e+00> : vector<256x16xf32>
    %61 = tpu.matmul %59, %60, %cst_53 {dimension_numbers = #tpu.dot_dimension_numbers<[1], [0], [0], [1], [0, 0, 1, 1], [], []>} : vector<256x144xf32>, vector<144x16xf32>, vector<256x16xf32> -> vector<256x16xf32>
    %c0_54 = arith.constant 0 : index
    %c0_55 = arith.constant 0 : index
    %62 = vector.load %arg4[%c0_54, %c0_55] : memref<1x16xf32, #tpu.memory_space<vmem>>, vector<1x16xf32>
    %63 = vector.broadcast %62 : vector<1x16xf32> to vector<256x16xf32>
    %64 = arith.addf %61, %63 : vector<256x16xf32>
    %c0_56 = arith.constant 0 : index
    %c0_57 = arith.constant 0 : index
    %c0_58 = arith.constant 0 : index
    %65 = vector.load %arg5[%c0_56, %c0_57, %c0_58] : memref<1x256x16xf32, #tpu.memory_space<vmem>>, vector<1x256x16xf32>
    %66 = vector.shape_cast %65 : vector<1x256x16xf32> to vector<256x16xf32>
    %67 = vector.shape_cast %64 : vector<256x16xf32> to vector<1x256x16xf32>
    tpu.vector_store %arg5[%c0_56, %c0_57, %c0_58], %67 {strides = array<i32>} : memref<1x256x16xf32, #tpu.memory_space<vmem>>, vector<1x256x16xf32>,
    %cst_59 = arith.constant dense<0.000000e+00> : vector<16xf32>
    %68 = vector.multi_reduction <add>, %64, %cst_59 [0] : vector<256x16xf32> to vector<16xf32>
    %69 = vector.shape_cast %68 : vector<16xf32> to vector<1x16xf32>
    %c0_60 = arith.constant 0 : index
    %c0_61 = arith.constant 0 : index
    %c0_62 = arith.constant 0 : index
    %c0_63 = arith.constant 0 : index
    %70 = vector.load %arg6[%c0_60, %c0_61, %c0_62, %c0_63] : memref<1x1x1x16xf32, #tpu.memory_space<vmem>>, vector<1x1x1x16xf32>
    %71 = vector.shape_cast %70 : vector<1x1x1x16xf32> to vector<1x16xf32>
    %72 = vector.shape_cast %69 : vector<1x16xf32> to vector<1x1x1x16xf32>
    tpu.vector_store %arg6[%c0_60, %c0_61, %c0_62, %c0_63], %72 {strides = array<i32>} : memref<1x1x1x16xf32, #tpu.memory_space<vmem>>, vector<1x1x1x16xf32>,
    %73 = arith.mulf %64, %64 : vector<256x16xf32>
    %cst_64 = arith.constant dense<0.000000e+00> : vector<16xf32>
    %74 = vector.multi_reduction <add>, %73, %cst_64 [0] : vector<256x16xf32> to vector<16xf32>
    %75 = vector.shape_cast %74 : vector<16xf32> to vector<1x16xf32>
    %c0_65 = arith.constant 0 : index
    %c0_66 = arith.constant 0 : index
    %c0_67 = arith.constant 0 : index
    %c0_68 = arith.constant 0 : index
    %76 = vector.load %arg7[%c0_65, %c0_66, %c0_67, %c0_68] : memref<1x1x1x16xf32, #tpu.memory_space<vmem>>, vector<1x1x1x16xf32>
    %77 = vector.shape_cast %76 : vector<1x1x1x16xf32> to vector<1x16xf32>
    %78 = vector.shape_cast %75 : vector<1x16xf32> to vector<1x1x1x16xf32>
    tpu.vector_store %arg7[%c0_65, %c0_66, %c0_67, %c0_68], %78 {strides = array<i32>} : memref<1x1x1x16xf32, #tpu.memory_space<vmem>>, vector<1x1x1x16xf32>,
    return
  }
  func.func @transform_0(%arg0: i32, %arg1: i32) -> (i32, i32, i32, i32) {
    %c0_i32 = arith.constant 0 : i32
    %c0_i32_0 = arith.constant 0 : i32
    %c0_i32_1 = arith.constant 0 : i32
    %c0_i32_2 = arith.constant 0 : i32
    return %arg0, %c0_i32, %c0_i32_0, %c0_i32_1 : i32, i32, i32, i32
  }
  func.func @transform_1(%arg0: i32, %arg1: i32) -> (i32, i32) {
    %c0_i32 = arith.constant 0 : i32
    %c0_i32_0 = arith.constant 0 : i32
    %c0_i32_1 = arith.constant 0 : i32
    return %c0_i32, %c0_i32_0 : i32, i32
  }
  func.func @transform_2(%arg0: i32, %arg1: i32) -> (i32, i32) {
    %c0_i32 = arith.constant 0 : i32
    %c0_i32_0 = arith.constant 0 : i32
    %c0_i32_1 = arith.constant 0 : i32
    return %c0_i32, %c0_i32_0 : i32, i32
  }
  func.func @transform_3(%arg0: i32, %arg1: i32) -> (i32, i32, i32) {
    %c0_i32 = arith.constant 0 : i32
    %c0_i32_0 = arith.constant 0 : i32
    return %arg0, %arg1, %c0_i32 : i32, i32, i32
  }
  func.func @transform_4(%arg0: i32, %arg1: i32) -> (i32, i32, i32, i32) {
    %c0_i32 = arith.constant 0 : i32
    %c0_i32_0 = arith.constant 0 : i32
    %c0_i32_1 = arith.constant 0 : i32
    return %arg0, %arg1, %c0_i32, %c0_i32_0 : i32, i32, i32, i32
  }
  func.func @transform_5(%arg0: i32, %arg1: i32) -> (i32, i32, i32, i32) {
    %c0_i32 = arith.constant 0 : i32
    %c0_i32_0 = arith.constant 0 : i32
    %c0_i32_1 = arith.constant 0 : i32
    return %arg0, %arg1, %c0_i32, %c0_i32_0 : i32, i32, i32, i32
  }
}

module attributes {stable_mosaic.version = 11 : i64} {
  func.func @conv_stats_kernel(%arg0: i32, %arg1: i32, %arg2: memref<1x16x16x8xf32, #tpu.memory_space<vmem>>, %arg3: memref<8x16xf32, #tpu.memory_space<vmem>>, %arg4: memref<1x16xf32, #tpu.memory_space<vmem>>, %arg5: memref<1x256x16xf32, #tpu.memory_space<vmem>>, %arg6: memref<1x1x1x16xf32, #tpu.memory_space<vmem>>, %arg7: memref<1x1x1x16xf32, #tpu.memory_space<vmem>>) attributes {dimension_semantics = [#tpu.dimension_semantics<parallel>, #tpu.dimension_semantics<parallel>], iteration_bounds = array<i64: 2, 1>, scalar_prefetch = 0 : i64, scratch_operands = 0 : i64, tpu.core_type = #tpu.core_type<tc>, window_params = [{transform_indices = @transform_0, window_bounds = array<i64: 1, 16, 16, 8>}, {pipeline_mode = #tpu.pipeline_mode<synchronous>, transform_indices = @transform_1, window_bounds = array<i64: 8, 16>}, {pipeline_mode = #tpu.pipeline_mode<synchronous>, transform_indices = @transform_2, window_bounds = array<i64: 1, 16>}, {transform_indices = @transform_3, window_bounds = array<i64: 1, 256, 16>}, {transform_indices = @transform_4, window_bounds = array<i64: 1, 1, 1, 16>}, {transform_indices = @transform_5, window_bounds = array<i64: 1, 1, 1, 16>}]} {
    %c16_i32 = arith.constant 16 : i32
    %0 = arith.muli %arg1, %c16_i32 : i32
    %c0_i32 = arith.constant 0 : i32
    %1 = arith.addi %0, %c0_i32 : i32
    %c0 = arith.constant 0 : index
    %2 = arith.index_cast %1 : i32 to index
    %c0_0 = arith.constant 0 : index
    %c0_1 = arith.constant 0 : index
    %3 = vector.load %arg2[%c0, %2, %c0_0, %c0_1] : memref<1x16x16x8xf32, #tpu.memory_space<vmem>>, vector<1x16x16x8xf32>
    %4 = vector.shape_cast %3 : vector<1x16x16x8xf32> to vector<16x16x8xf32>
    %5 = vector.shape_cast %4 : vector<16x16x8xf32> to vector<256x8xf32>
    %c0_2 = arith.constant 0 : index
    %c0_3 = arith.constant 0 : index
    %6 = vector.load %arg3[%c0_2, %c0_3] : memref<8x16xf32, #tpu.memory_space<vmem>>, vector<8x16xf32>
    %cst = arith.constant dense<0.000000e+00> : vector<256x16xf32>
    %7 = tpu.matmul %5, %6, %cst {dimension_numbers = #tpu.dot_dimension_numbers<[1], [0], [0], [1], [0, 0, 1, 1], [], []>} : vector<256x8xf32>, vector<8x16xf32>, vector<256x16xf32> -> vector<256x16xf32>
    %c0_4 = arith.constant 0 : index
    %c0_5 = arith.constant 0 : index
    %8 = vector.load %arg4[%c0_4, %c0_5] : memref<1x16xf32, #tpu.memory_space<vmem>>, vector<1x16xf32>
    %9 = vector.broadcast %8 : vector<1x16xf32> to vector<256x16xf32>
    %10 = arith.addf %7, %9 : vector<256x16xf32>
    %c0_6 = arith.constant 0 : index
    %c0_7 = arith.constant 0 : index
    %c0_8 = arith.constant 0 : index
    %11 = vector.load %arg5[%c0_6, %c0_7, %c0_8] : memref<1x256x16xf32, #tpu.memory_space<vmem>>, vector<1x256x16xf32>
    %12 = vector.shape_cast %11 : vector<1x256x16xf32> to vector<256x16xf32>
    %13 = vector.shape_cast %10 : vector<256x16xf32> to vector<1x256x16xf32>
    tpu.vector_store %arg5[%c0_6, %c0_7, %c0_8], %13 {strides = array<i32>} : memref<1x256x16xf32, #tpu.memory_space<vmem>>, vector<1x256x16xf32>,
    %cst_9 = arith.constant dense<0.000000e+00> : vector<16xf32>
    %14 = vector.multi_reduction <add>, %10, %cst_9 [0] : vector<256x16xf32> to vector<16xf32>
    %15 = vector.shape_cast %14 : vector<16xf32> to vector<1x16xf32>
    %c0_10 = arith.constant 0 : index
    %c0_11 = arith.constant 0 : index
    %c0_12 = arith.constant 0 : index
    %c0_13 = arith.constant 0 : index
    %16 = vector.load %arg6[%c0_10, %c0_11, %c0_12, %c0_13] : memref<1x1x1x16xf32, #tpu.memory_space<vmem>>, vector<1x1x1x16xf32>
    %17 = vector.shape_cast %16 : vector<1x1x1x16xf32> to vector<1x16xf32>
    %18 = vector.shape_cast %15 : vector<1x16xf32> to vector<1x1x1x16xf32>
    tpu.vector_store %arg6[%c0_10, %c0_11, %c0_12, %c0_13], %18 {strides = array<i32>} : memref<1x1x1x16xf32, #tpu.memory_space<vmem>>, vector<1x1x1x16xf32>,
    %19 = arith.mulf %10, %10 : vector<256x16xf32>
    %cst_14 = arith.constant dense<0.000000e+00> : vector<16xf32>
    %20 = vector.multi_reduction <add>, %19, %cst_14 [0] : vector<256x16xf32> to vector<16xf32>
    %21 = vector.shape_cast %20 : vector<16xf32> to vector<1x16xf32>
    %c0_15 = arith.constant 0 : index
    %c0_16 = arith.constant 0 : index
    %c0_17 = arith.constant 0 : index
    %c0_18 = arith.constant 0 : index
    %22 = vector.load %arg7[%c0_15, %c0_16, %c0_17, %c0_18] : memref<1x1x1x16xf32, #tpu.memory_space<vmem>>, vector<1x1x1x16xf32>
    %23 = vector.shape_cast %22 : vector<1x1x1x16xf32> to vector<1x16xf32>
    %24 = vector.shape_cast %21 : vector<1x16xf32> to vector<1x1x1x16xf32>
    tpu.vector_store %arg7[%c0_15, %c0_16, %c0_17, %c0_18], %24 {strides = array<i32>} : memref<1x1x1x16xf32, #tpu.memory_space<vmem>>, vector<1x1x1x16xf32>,
    return
  }
  func.func @transform_0(%arg0: i32, %arg1: i32) -> (i32, i32, i32, i32) {
    %c0_i32 = arith.constant 0 : i32
    %c0_i32_0 = arith.constant 0 : i32
    %c0_i32_1 = arith.constant 0 : i32
    %c0_i32_2 = arith.constant 0 : i32
    return %arg0, %c0_i32, %c0_i32_0, %c0_i32_1 : i32, i32, i32, i32
  }
  func.func @transform_1(%arg0: i32, %arg1: i32) -> (i32, i32) {
    %c0_i32 = arith.constant 0 : i32
    %c0_i32_0 = arith.constant 0 : i32
    %c0_i32_1 = arith.constant 0 : i32
    return %c0_i32, %c0_i32_0 : i32, i32
  }
  func.func @transform_2(%arg0: i32, %arg1: i32) -> (i32, i32) {
    %c0_i32 = arith.constant 0 : i32
    %c0_i32_0 = arith.constant 0 : i32
    %c0_i32_1 = arith.constant 0 : i32
    return %c0_i32, %c0_i32_0 : i32, i32
  }
  func.func @transform_3(%arg0: i32, %arg1: i32) -> (i32, i32, i32) {
    %c0_i32 = arith.constant 0 : i32
    %c0_i32_0 = arith.constant 0 : i32
    return %arg0, %arg1, %c0_i32 : i32, i32, i32
  }
  func.func @transform_4(%arg0: i32, %arg1: i32) -> (i32, i32, i32, i32) {
    %c0_i32 = arith.constant 0 : i32
    %c0_i32_0 = arith.constant 0 : i32
    %c0_i32_1 = arith.constant 0 : i32
    return %arg0, %arg1, %c0_i32, %c0_i32_0 : i32, i32, i32, i32
  }
  func.func @transform_5(%arg0: i32, %arg1: i32) -> (i32, i32, i32, i32) {
    %c0_i32 = arith.constant 0 : i32
    %c0_i32_0 = arith.constant 0 : i32
    %c0_i32_1 = arith.constant 0 : i32
    return %arg0, %arg1, %c0_i32, %c0_i32_0 : i32, i32, i32, i32
  }
}

module attributes {stable_mosaic.version = 11 : i64} {
  func.func @bn_add_bn_relu_kernel(%arg0: i32, %arg1: i32, %arg2: memref<1x256x16xf32, #tpu.memory_space<vmem>>, %arg3: memref<1x256x16xf32, #tpu.memory_space<vmem>>, %arg4: memref<1x16xf32, #tpu.memory_space<vmem>>, %arg5: memref<1x16xf32, #tpu.memory_space<vmem>>, %arg6: memref<1x16xf32, #tpu.memory_space<vmem>>, %arg7: memref<1x16xf32, #tpu.memory_space<vmem>>, %arg8: memref<1x256x16xf32, #tpu.memory_space<vmem>>) attributes {dimension_semantics = [#tpu.dimension_semantics<parallel>, #tpu.dimension_semantics<parallel>], iteration_bounds = array<i64: 2, 1>, scalar_prefetch = 0 : i64, scratch_operands = 0 : i64, tpu.core_type = #tpu.core_type<tc>, window_params = [{transform_indices = @transform_0, window_bounds = array<i64: 1, 256, 16>}, {transform_indices = @transform_1, window_bounds = array<i64: 1, 256, 16>}, {pipeline_mode = #tpu.pipeline_mode<synchronous>, transform_indices = @transform_2, window_bounds = array<i64: 1, 16>}, {pipeline_mode = #tpu.pipeline_mode<synchronous>, transform_indices = @transform_3, window_bounds = array<i64: 1, 16>}, {pipeline_mode = #tpu.pipeline_mode<synchronous>, transform_indices = @transform_4, window_bounds = array<i64: 1, 16>}, {pipeline_mode = #tpu.pipeline_mode<synchronous>, transform_indices = @transform_5, window_bounds = array<i64: 1, 16>}, {transform_indices = @transform_6, window_bounds = array<i64: 1, 256, 16>}]} {
    %c0 = arith.constant 0 : index
    %c0_0 = arith.constant 0 : index
    %c0_1 = arith.constant 0 : index
    %0 = vector.load %arg2[%c0, %c0_0, %c0_1] : memref<1x256x16xf32, #tpu.memory_space<vmem>>, vector<1x256x16xf32>
    %1 = vector.shape_cast %0 : vector<1x256x16xf32> to vector<256x16xf32>
    %c0_2 = arith.constant 0 : index
    %c0_3 = arith.constant 0 : index
    %2 = vector.load %arg4[%c0_2, %c0_3] : memref<1x16xf32, #tpu.memory_space<vmem>>, vector<1x16xf32>
    %3 = vector.broadcast %2 : vector<1x16xf32> to vector<256x16xf32>
    %4 = arith.mulf %1, %3 : vector<256x16xf32>
    %c0_4 = arith.constant 0 : index
    %c0_5 = arith.constant 0 : index
    %5 = vector.load %arg5[%c0_4, %c0_5] : memref<1x16xf32, #tpu.memory_space<vmem>>, vector<1x16xf32>
    %6 = vector.broadcast %5 : vector<1x16xf32> to vector<256x16xf32>
    %7 = arith.addf %4, %6 : vector<256x16xf32>
    %c0_6 = arith.constant 0 : index
    %c0_7 = arith.constant 0 : index
    %c0_8 = arith.constant 0 : index
    %8 = vector.load %arg3[%c0_6, %c0_7, %c0_8] : memref<1x256x16xf32, #tpu.memory_space<vmem>>, vector<1x256x16xf32>
    %9 = vector.shape_cast %8 : vector<1x256x16xf32> to vector<256x16xf32>
    %c0_9 = arith.constant 0 : index
    %c0_10 = arith.constant 0 : index
    %10 = vector.load %arg6[%c0_9, %c0_10] : memref<1x16xf32, #tpu.memory_space<vmem>>, vector<1x16xf32>
    %11 = vector.broadcast %10 : vector<1x16xf32> to vector<256x16xf32>
    %12 = arith.mulf %9, %11 : vector<256x16xf32>
    %13 = arith.addf %7, %12 : vector<256x16xf32>
    %c0_11 = arith.constant 0 : index
    %c0_12 = arith.constant 0 : index
    %14 = vector.load %arg7[%c0_11, %c0_12] : memref<1x16xf32, #tpu.memory_space<vmem>>, vector<1x16xf32>
    %15 = vector.broadcast %14 : vector<1x16xf32> to vector<256x16xf32>
    %16 = arith.addf %13, %15 : vector<256x16xf32>
    %cst = arith.constant 0.000000e+00 : f32
    %17 = vector.broadcast %cst : f32 to vector<256x16xf32>
    %18 = arith.maximumf %16, %17 : vector<256x16xf32>
    %c0_13 = arith.constant 0 : index
    %c0_14 = arith.constant 0 : index
    %c0_15 = arith.constant 0 : index
    %19 = vector.load %arg8[%c0_13, %c0_14, %c0_15] : memref<1x256x16xf32, #tpu.memory_space<vmem>>, vector<1x256x16xf32>
    %20 = vector.shape_cast %19 : vector<1x256x16xf32> to vector<256x16xf32>
    %21 = vector.shape_cast %18 : vector<256x16xf32> to vector<1x256x16xf32>
    tpu.vector_store %arg8[%c0_13, %c0_14, %c0_15], %21 {strides = array<i32>} : memref<1x256x16xf32, #tpu.memory_space<vmem>>, vector<1x256x16xf32>,
    return
  }
  func.func @transform_0(%arg0: i32, %arg1: i32) -> (i32, i32, i32) {
    %c0_i32 = arith.constant 0 : i32
    %c0_i32_0 = arith.constant 0 : i32
    return %arg0, %arg1, %c0_i32 : i32, i32, i32
  }
  func.func @transform_1(%arg0: i32, %arg1: i32) -> (i32, i32, i32) {
    %c0_i32 = arith.constant 0 : i32
    %c0_i32_0 = arith.constant 0 : i32
    return %arg0, %arg1, %c0_i32 : i32, i32, i32
  }
  func.func @transform_2(%arg0: i32, %arg1: i32) -> (i32, i32) {
    %c0_i32 = arith.constant 0 : i32
    %c0_i32_0 = arith.constant 0 : i32
    %c0_i32_1 = arith.constant 0 : i32
    return %c0_i32, %c0_i32_0 : i32, i32
  }
  func.func @transform_3(%arg0: i32, %arg1: i32) -> (i32, i32) {
    %c0_i32 = arith.constant 0 : i32
    %c0_i32_0 = arith.constant 0 : i32
    %c0_i32_1 = arith.constant 0 : i32
    return %c0_i32, %c0_i32_0 : i32, i32
  }
  func.func @transform_4(%arg0: i32, %arg1: i32) -> (i32, i32) {
    %c0_i32 = arith.constant 0 : i32
    %c0_i32_0 = arith.constant 0 : i32
    %c0_i32_1 = arith.constant 0 : i32
    return %c0_i32, %c0_i32_0 : i32, i32
  }
  func.func @transform_5(%arg0: i32, %arg1: i32) -> (i32, i32) {
    %c0_i32 = arith.constant 0 : i32
    %c0_i32_0 = arith.constant 0 : i32
    %c0_i32_1 = arith.constant 0 : i32
    return %c0_i32, %c0_i32_0 : i32, i32
  }
  func.func @transform_6(%arg0: i32, %arg1: i32) -> (i32, i32, i32) {
    %c0_i32 = arith.constant 0 : i32
    %c0_i32_0 = arith.constant 0 : i32
    return %arg0, %arg1, %c0_i32 : i32, i32, i32
  }
}

</mosaic_0001>

<llo_original>
// kernel: residual_block.6
$region0: #{residual_block.6}
  #allocation0 [shape = 'u32[]', space=smem, size = 0x4, offset = 0x4, fixed_abs, tag = 'smem constant byte address 0x4 - core index']
  #allocation1 [shape = 'u32[72,128]{1,0:T(1,128)}', space=vmem, size = 0x9000, scoped, tag = 'internal scratch']
  %s0 = inlined_call_operand.vmem [shape: f32[2,256,16], index: 0, kind: input, shape index: {}]
  %s1 = inlined_call_operand.vmem [shape: f32[1,16], index: 1, kind: input, shape index: {}]
  %s2 = inlined_call_operand.vmem [shape: f32[1,16], index: 2, kind: input, shape index: {}]
  %s3 = inlined_call_operand.vmem [shape: f32[2,256,16], index: 3, kind: output, shape index: {}]
  %s4 = sld [smem:[#allocation0]]
  $region45: #{residual_block.6} parent=0
    _
  %s6 = ssub.s32 1, %s4
  %s7 = scalar_select 0, %s6, %s4
  loop: start=0, step=1, limit=4
  $region2: #{residual_block.6} parent=0 // loop_pre_header
    _
  $region3: #{residual_block.6} parent=0 // loop_header
    %s9 = sphi 0, %s13
    %p10 = scmp.ge.s32.totalorder %s9, 4
    %s16 = sphi 0, %s28
    %s17 = sphi 0, %s24
    %s18 = sphi 0, %s16
    %s19 = sphi 0, %s17
    %s20 = sphi 0, %s18
    %s21 = sphi 0, %s19
    %s33 = sphi 0, %s35
    %s36 = sphi 0, %s33
    %s37 = sphi 0, %s36
    %s53 = sphi 0, %s37
    %s57 = sphi 0, %s57
    %s59 = sphi 0, %s57
    %s60 = sphi 0, %s59
    %s74 = sphi 0, %s60
    %s78 = sphi 0, %s78
    %s80 = sphi 0, %s78
    %s81 = sphi 0, %s80
    %s95 = sphi 0, %s81
    %s103 = sphi 0, %s105
    %s106 = sphi 0, %s103
    %s107 = sphi 0, %s106
    %s123 = sphi 0, %s107
  $region4: #{residual_block.6} parent=0 // loop_header_branch
    %12 = sbr.rel (%p10) target = $region8
  $region5: #{residual_block.6} parent=0 // loop_body
    %s14 = ssub.s32 %s9, 1
    %s15 = ssub.s32 %s9, 2
    %s22 = sadd.s32 1, %s17
    %p23 = scmp.ge.s32.totalorder %s22, 1
    %s24 = scalar_select %p23, 0, %s22
    %s25 = sadd.s32 1, %s16
    %s26 = scalar_select %p23, %s25, %s16
    %p27 = scmp.ge.s32.totalorder %s26, 2
    %s28 = scalar_select %p27, 0, %s26
    %s29 = ssub.s32 %s16, %s28
    %s30 = ssub.s32 %s17, %s24
    %s31 = sor.u32 %s29, %s30
    %p32 = scmp.eq.s32.totalorder %s31, 0
    %s34 = sadd.s32 %s33, 1
    %s35 = scalar_select %p32, %s33, %s34
    %p38 = pneg %p32
    %p39 = scmp.eq.s32.totalorder %s9, 1
    %p40 = por %p38, %p39
    %p41 = scmp.ne.s32.totalorder %s33, %s36
    %p42 = scmp.eq.s32.totalorder %s9, 0
    %p43 = por %p41, %p42
    %p44 = scmp.ne.s32.totalorder %s33, %s36
    %p45 = scmp.eq.s32.totalorder %s14, 1
    %p46 = por %p44, %p45
    %p47 = scmp.ne.s32.totalorder %s36, %s37
    %p48 = scmp.eq.s32.totalorder %s14, 0
    %p49 = por %p47, %p48
    %p50 = scmp.ne.s32.totalorder %s36, %s37
    %p51 = scmp.eq.s32.totalorder %s15, 1
    %p52 = por %p50, %p51
    %p54 = scmp.ne.s32.totalorder %s37, %s53
    %p55 = scmp.eq.s32.totalorder %s15, 0
    %p56 = por %p54, %p55
    %s58 = sadd.s32 %s57, 1
    %p61 = scmp.eq.s32.totalorder %s9, 1
    %p62 = scmp.ne.s32.totalorder %s57, %s59
    %p63 = scmp.eq.s32.totalorder %s9, 0
    %p64 = por %p62, %p63
    %p65 = scmp.ne.s32.totalorder %s57, %s59
    %p66 = scmp.eq.s32.totalorder %s14, 1
    %p67 = por %p65, %p66
    %p68 = scmp.ne.s32.totalorder %s59, %s60
    %p69 = scmp.eq.s32.totalorder %s14, 0
    %p70 = por %p68, %p69
    %p71 = scmp.ne.s32.totalorder %s59, %s60
    %p72 = scmp.eq.s32.totalorder %s15, 1
    %p73 = por %p71, %p72
    %p75 = scmp.ne.s32.totalorder %s60, %s74
    %p76 = scmp.eq.s32.totalorder %s15, 0
    %p77 = por %p75, %p76
    %s79 = sadd.s32 %s78, 1
    %p82 = scmp.eq.s32.totalorder %s9, 1
    %p83 = scmp.ne.s32.totalorder %s78, %s80
    %p84 = scmp.eq.s32.totalorder %s9, 0
    %p85 = por %p83, %p84
    %p86 = scmp.ne.s32.totalorder %s78, %s80
    %p87 = scmp.eq.s32.totalorder %s14, 1
    %p88 = por %p86, %p87
    %p89 = scmp.ne.s32.totalorder %s80, %s81
    %p90 = scmp.eq.s32.totalorder %s14, 0
    %p91 = por %p89, %p90
    %p92 = scmp.ne.s32.totalorder %s80, %s81
    %p93 = scmp.eq.s32.totalorder %s15, 1
    %p94 = por %p92, %p93
    %p96 = scmp.ne.s32.totalorder %s81, %s95
    %p97 = scmp.eq.s32.totalorder %s15, 0
    %p98 = por %p96, %p97
    %s99 = ssub.s32 %s16, %s28
    %s100 = ssub.s32 %s17, %s24
    %s101 = sor.u32 %s99, %s100
    %p102 = scmp.eq.s32.totalorder %s101, 0
    %s104 = sadd.s32 %s103, 1
    %s105 = scalar_select %p102, %s103, %s104
    %p108 = pneg %p102
    %p109 = scmp.eq.s32.totalorder %s9, 1
    %p110 = por %p108, %p109
    %p111 = scmp.ne.s32.totalorder %s103, %s106
    %p112 = scmp.eq.s32.totalorder %s9, 0
    %p113 = por %p111, %p112
    %p114 = scmp.ne.s32.totalorder %s103, %s106
    %p115 = scmp.eq.s32.totalorder %s14, 1
    %p116 = por %p114, %p115
    %p117 = scmp.ne.s32.totalorder %s106, %s107
    %p118 = scmp.eq.s32.totalorder %s14, 0
    %p119 = por %p117, %p118
    %p120 = scmp.ne.s32.totalorder %s106, %s107
    %p121 = scmp.eq.s32.totalorder %s15, 1
    %p122 = por %p120, %p121
    %p124 = scmp.ne.s32.totalorder %s107, %s123
    %p125 = scmp.eq.s32.totalorder %s15, 0
    %p126 = por %p124, %p125
    %p127 = scmp.le.s32.totalorder 1, %s9
    %p128 = scmp.lt.s32.totalorder %s9, 3
    %p129 = pnand %p127, %p128
    %p130 = pneg %p129
    // Predicated region
    $region9: #{residual_block.6} parent=5 // pred_check
      _
    $region10: #{residual_block.6} parent=5 // pred_check_branch
      %132 = sbr.rel (%p129) target = $region12
    $region11: #{residual_block.6} parent=5 // pred_region
      %s133 = ssub.s32 %s9, 1
      // Predicated region
      $region13: #{residual_block.6} parent=11 // pred_check
        %p134 = pneg %p70
      $region14: #{residual_block.6} parent=11 // pred_check_branch
        %136 = sbr.rel (%p134) target = $region16
      $region15: #{residual_block.6} parent=11 // pred_region
        _
      $region16: #{residual_block.6} parent=11 // pred_fallthru
        _
      // Predicated region
      $region17: #{residual_block.6} parent=11 // pred_check
        %p137 = pneg %p91
      $region18: #{residual_block.6} parent=11 // pred_check_branch
        %139 = sbr.rel (%p137) target = $region20
      $region19: #{residual_block.6} parent=11 // pred_region
        _
      $region20: #{residual_block.6} parent=11 // pred_fallthru
        _
    $region12: #{residual_block.6} parent=5 // pred_fallthru
      _
    %p140 = scmp.lt.s32.totalorder %s9, 2
    // Predicated region
    $region21: #{residual_block.6} parent=5 // pred_check
      %p141 = pneg %p140
    $region22: #{residual_block.6} parent=5 // pred_check_branch
      %143 = sbr.rel (%p141) target = $region24
    $region23: #{residual_block.6} parent=5 // pred_region
      // Predicated region
      $region25: #{residual_block.6} parent=23 // pred_check
        %p144 = pneg %p43
      $region26: #{residual_block.6} parent=23 // pred_check_branch
        %146 = sbr.rel (%p144) target = $region28
      $region27: #{residual_block.6} parent=23 // pred_region
        %s147 = smul.u32 32, %s17
        %p148 = scmp.lt.s32.totalorder %s16, 1
        %s149 = scalar_select %p148, %s16, 1
        %p150 = scmp.lt.s32.totalorder %s147, 31
        %s151 = scalar_select %p150, %s147, 31
        %s152 = smul.addr %s149, 32
        %s153 = sadd.s32 %s151, %s152
        %s154 = smul.addr %s153, 8
        %s155 = scalar_lea.vmem %s0, %s154
        %s156 = smul.u32 32, %s17
      $region28: #{residual_block.6} parent=23 // pred_fallthru
        _
    $region24: #{residual_block.6} parent=5 // pred_fallthru
      _
    %p157 = scmp.le.s32.totalorder 1, %s9
    %p158 = scmp.lt.s32.totalorder %s9, 3
    %p159 = pnand %p157, %p158
    %p160 = pneg %p159
    // Predicated region
    $region29: #{residual_block.6} parent=5 // pred_check
      _
    $region30: #{residual_block.6} parent=5 // pred_check_branch
      %162 = sbr.rel (%p159) target = $region32
    $region31: #{residual_block.6} parent=5 // pred_region
      %s163 = ssub.s32 %s9, 1
      %s164 = smul.u32 32, %s19
      %p165 = scmp.lt.s32.totalorder %s18, 1
      %s166 = scalar_select %p165, %s18, 1
      %p167 = scmp.lt.s32.totalorder %s164, 31
      %s168 = scalar_select %p167, %s164, 31
      %s169 = smul.addr %s166, 32
      %s170 = sadd.s32 %s168, %s169
      %s171 = smul.addr %s170, 8
      %s172 = scalar_lea.vmem %s0, %s171
      %p173 = pneg %p49
      %p174 = pneg %p46
      %p175 = pneg %p70
      %p176 = pneg %p67
      %p177 = pneg %p91
      %p178 = pneg %p88
      %p179 = pneg %p119
      %p180 = pneg %p116
      %s181 = smul.u32 32, %s19
      %p182 = scmp.lt.s32.totalorder %s18, 1
      %s183 = scalar_select %p182, %s18, 1
      %p184 = scmp.lt.s32.totalorder %s181, 31
      %s185 = scalar_select %p184, %s181, 31
      %s186 = smul.addr %s183, 32
      %s187 = sadd.s32 %s185, %s186
      %s188 = smul.addr %s187, 8
      %s189 = scalar_lea.vmem %s3, %s188
      %s190 = smul.u32 32, %s19
      %p191 = scmp.lt.s32.totalorder %s18, 1
      %s192 = scalar_select %p191, %s18, 1
      %p193 = scmp.lt.s32.totalorder %s190, 31
      %s194 = scalar_select %p193, %s190, 31
      %s195 = smul.addr %s192, 32
      %s196 = sadd.s32 %s194, %s195
      %s197 = smul.addr %s196, 8
      %s198 = scalar_lea.vmem %s0, %s197
      %s199 = smul.u32 32, %s19
      %s200 = smul.u32 32, %s19
      %p201 = scmp.lt.s32.totalorder %s18, 1
      %s202 = scalar_select %p201, %s18, 1
      %p203 = scmp.lt.s32.totalorder %s200, 31
      %s204 = scalar_select %p203, %s200, 31
      %s205 = smul.addr %s202, 32
      %s206 = sadd.s32 %s204, %s205
      %s207 = smul.addr %s206, 8
      %s208 = scalar_lea.vmem %s3, %s207
      %s209 = smul.u32 32, %s19
      %v210 = vld [vmem:[%s198] sm:$0xff]
      %v211 = vld [vmem:[%s198 + $0x8] sm:$0xff]
      %v212 = vld [vmem:[%s198 + $0x10] sm:$0xff]
      %v213 = vld [vmem:[%s198 + $0x18] sm:$0xff]
      %v214 = vld [vmem:[%s198 + $0x20] sm:$0xff]
      %v215 = vld [vmem:[%s198 + $0x28] sm:$0xff]
      %v216 = vld [vmem:[%s198 + $0x30] sm:$0xff]
      %v217 = vld [vmem:[%s198 + $0x38] sm:$0xff]
      %v218 = vld [vmem:[%s198 + $0x40] sm:$0xff]
      %v219 = vld [vmem:[%s198 + $0x48] sm:$0xff]
      %v220 = vld [vmem:[%s198 + $0x50] sm:$0xff]
      %v221 = vld [vmem:[%s198 + $0x58] sm:$0xff]
      %v222 = vld [vmem:[%s198 + $0x60] sm:$0xff]
      %v223 = vld [vmem:[%s198 + $0x68] sm:$0xff]
      %v224 = vld [vmem:[%s198 + $0x70] sm:$0xff]
      %v225 = vld [vmem:[%s198 + $0x78] sm:$0xff]
      %v226 = vld [vmem:[%s198 + $0x80] sm:$0xff]
      %v227 = vld [vmem:[%s198 + $0x88] sm:$0xff]
      %v228 = vld [vmem:[%s198 + $0x90] sm:$0xff]
      %v229 = vld [vmem:[%s198 + $0x98] sm:$0xff]
      %v230 = vld [vmem:[%s198 + $0xa0] sm:$0xff]
      %v231 = vld [vmem:[%s198 + $0xa8] sm:$0xff]
      %v232 = vld [vmem:[%s198 + $0xb0] sm:$0xff]
      %v233 = vld [vmem:[%s198 + $0xb8] sm:$0xff]
      %v234 = vld [vmem:[%s198 + $0xc0] sm:$0xff]
      %v235 = vld [vmem:[%s198 + $0xc8] sm:$0xff]
      %v236 = vld [vmem:[%s198 + $0xd0] sm:$0xff]
      %v237 = vld [vmem:[%s198 + $0xd8] sm:$0xff]
      %v238 = vld [vmem:[%s198 + $0xe0] sm:$0xff]
      %v239 = vld [vmem:[%s198 + $0xe8] sm:$0xff]
      %v240 = vld [vmem:[%s198 + $0xf0] sm:$0xff]
      %v241 = vld [vmem:[%s198 + $0xf8] sm:$0xff]
      %v242 = vld [vmem:[%s1] sm:$0x1]
      %v244 = vperm.slane %v242, 0
      %v246 = vmul.f32 %v210, %v244
      %v247 = vmul.f32 %v211, %v244
      %v248 = vmul.f32 %v212, %v244
      %v249 = vmul.f32 %v213, %v244
      %v250 = vmul.f32 %v214, %v244
      %v251 = vmul.f32 %v215, %v244
      %v252 = vmul.f32 %v216, %v244
      %v253 = vmul.f32 %v217, %v244
      %v254 = vmul.f32 %v218, %v244
      %v255 = vmul.f32 %v219, %v244
      %v256 = vmul.f32 %v220, %v244
      %v257 = vmul.f32 %v221, %v244
      %v258 = vmul.f32 %v222, %v244
      %v259 = vmul.f32 %v223, %v244
      %v260 = vmul.f32 %v224, %v244
      %v261 = vmul.f32 %v225, %v244
      %v262 = vmul.f32 %v226, %v244
      %v263 = vmul.f32 %v227, %v244
      %v264 = vmul.f32 %v228, %v244
      %v265 = vmul.f32 %v229, %v244
      %v266 = vmul.f32 %v230, %v244
      %v267 = vmul.f32 %v231, %v244
      %v268 = vmul.f32 %v232, %v244
      %v269 = vmul.f32 %v233, %v244
      %v270 = vmul.f32 %v234, %v244
      %v271 = vmul.f32 %v235, %v244
      %v272 = vmul.f32 %v236, %v244
      %v273 = vmul.f32 %v237, %v244
      %v274 = vmul.f32 %v238, %v244
      %v275 = vmul.f32 %v239, %v244
      %v276 = vmul.f32 %v240, %v244
      %v277 = vmul.f32 %v241, %v244
      %v278 = vld [vmem:[%s2] sm:$0x1]
      %v280 = vperm.slane %v278, 0
      %v282 = vadd.f32 %v246, %v280
      %v283 = vadd.f32 %v247, %v280
      %v284 = vadd.f32 %v248, %v280
      %v285 = vadd.f32 %v249, %v280
      %v286 = vadd.f32 %v250, %v280
      %v287 = vadd.f32 %v251, %v280
      %v288 = vadd.f32 %v252, %v280
      %v289 = vadd.f32 %v253, %v280
      %v290 = vadd.f32 %v254, %v280
      %v291 = vadd.f32 %v255, %v280
      %v292 = vadd.f32 %v256, %v280
      %v293 = vadd.f32 %v257, %v280
      %v294 = vadd.f32 %v258, %v280
      %v295 = vadd.f32 %v259, %v280
      %v296 = vadd.f32 %v260, %v280
      %v297 = vadd.f32 %v261, %v280
      %v298 = vadd.f32 %v262, %v280
      %v299 = vadd.f32 %v263, %v280
      %v300 = vadd.f32 %v264, %v280
      %v301 = vadd.f32 %v265, %v280
      %v302 = vadd.f32 %v266, %v280
      %v303 = vadd.f32 %v267, %v280
      %v304 = vadd.f32 %v268, %v280
      %v305 = vadd.f32 %v269, %v280
      %v306 = vadd.f32 %v270, %v280
      %v307 = vadd.f32 %v271, %v280
      %v308 = vadd.f32 %v272, %v280
      %v309 = vadd.f32 %v273, %v280
      %v310 = vadd.f32 %v274, %v280
      %v311 = vadd.f32 %v275, %v280
      %v312 = vadd.f32 %v276, %v280
      %v313 = vadd.f32 %v277, %v280
      %v314 = vmax.f32 %v282, 0.0
      %v315 = vmax.f32 %v283, 0.0
      %v316 = vmax.f32 %v284, 0.0
      %v317 = vmax.f32 %v285, 0.0
      %v318 = vmax.f32 %v286, 0.0
      %v319 = vmax.f32 %v287, 0.0
      %v320 = vmax.f32 %v288, 0.0
      %v321 = vmax.f32 %v289, 0.0
      %v322 = vmax.f32 %v290, 0.0
      %v323 = vmax.f32 %v291, 0.0
      %v324 = vmax.f32 %v292, 0.0
      %v325 = vmax.f32 %v293, 0.0
      %v326 = vmax.f32 %v294, 0.0
      %v327 = vmax.f32 %v295, 0.0
      %v328 = vmax.f32 %v296, 0.0
      %v329 = vmax.f32 %v297, 0.0
      %v330 = vmax.f32 %v298, 0.0
      %v331 = vmax.f32 %v299, 0.0
      %v332 = vmax.f32 %v300, 0.0
      %v333 = vmax.f32 %v301, 0.0
      %v334 = vmax.f32 %v302, 0.0
      %v335 = vmax.f32 %v303, 0.0
      %v336 = vmax.f32 %v304, 0.0
      %v337 = vmax.f32 %v305, 0.0
      %v338 = vmax.f32 %v306, 0.0
      %v339 = vmax.f32 %v307, 0.0
      %v340 = vmax.f32 %v308, 0.0
      %v341 = vmax.f32 %v309, 0.0
      %v342 = vmax.f32 %v310, 0.0
      %v343 = vmax.f32 %v311, 0.0
      %v344 = vmax.f32 %v312, 0.0
      %v345 = vmax.f32 %v313, 0.0
      %vm346 = vcmask 130048
      %347 = vst.msk [vmem:[%s208] sm:$0xff] %vm346, %v314
      %348 = vst.msk [vmem:[%s208 + $0x8] sm:$0xff] %vm346, %v315
      %349 = vst.msk [vmem:[%s208 + $0x10] sm:$0xff] %vm346, %v316
      %350 = vst.msk [vmem:[%s208 + $0x18] sm:$0xff] %vm346, %v317
      %351 = vst.msk [vmem:[%s208 + $0x20] sm:$0xff] %vm346, %v318
      %352 = vst.msk [vmem:[%s208 + $0x28] sm:$0xff] %vm346, %v319
      %353 = vst.msk [vmem:[%s208 + $0x30] sm:$0xff] %vm346, %v320
      %354 = vst.msk [vmem:[%s208 + $0x38] sm:$0xff] %vm346, %v321
      %355 = vst.msk [vmem:[%s208 + $0x40] sm:$0xff] %vm346, %v322
      %356 = vst.msk [vmem:[%s208 + $0x48] sm:$0xff] %vm346, %v323
      %357 = vst.msk [vmem:[%s208 + $0x50] sm:$0xff] %vm346, %v324
      %358 = vst.msk [vmem:[%s208 + $0x58] sm:$0xff] %vm346, %v325
      %359 = vst.msk [vmem:[%s208 + $0x60] sm:$0xff] %vm346, %v326
      %360 = vst.msk [vmem:[%s208 + $0x68] sm:$0xff] %vm346, %v327
      %361 = vst.msk [vmem:[%s208 + $0x70] sm:$0xff] %vm346, %v328
      %362 = vst.msk [vmem:[%s208 + $0x78] sm:$0xff] %vm346, %v329
      %363 = vst.msk [vmem:[%s208 + $0x80] sm:$0xff] %vm346, %v330
      %364 = vst.msk [vmem:[%s208 + $0x88] sm:$0xff] %vm346, %v331
      %365 = vst.msk [vmem:[%s208 + $0x90] sm:$0xff] %vm346, %v332
      %366 = vst.msk [vmem:[%s208 + $0x98] sm:$0xff] %vm346, %v333
      %367 = vst.msk [vmem:[%s208 + $0xa0] sm:$0xff] %vm346, %v334
      %368 = vst.msk [vmem:[%s208 + $0xa8] sm:$0xff] %vm346, %v335
      %369 = vst.msk [vmem:[%s208 + $0xb0] sm:$0xff] %vm346, %v336
      %370 = vst.msk [vmem:[%s208 + $0xb8] sm:$0xff] %vm346, %v337
      %371 = vst.msk [vmem:[%s208 + $0xc0] sm:$0xff] %vm346, %v338
      %372 = vst.msk [vmem:[%s208 + $0xc8] sm:$0xff] %vm346, %v339
      %373 = vst.msk [vmem:[%s208 + $0xd0] sm:$0xff] %vm346, %v340
      %374 = vst.msk [vmem:[%s208 + $0xd8] sm:$0xff] %vm346, %v341
      %375 = vst.msk [vmem:[%s208 + $0xe0] sm:$0xff] %vm346, %v342
      %376 = vst.msk [vmem:[%s208 + $0xe8] sm:$0xff] %vm346, %v343
      %377 = vst.msk [vmem:[%s208 + $0xf0] sm:$0xff] %vm346, %v344
      %378 = vst.msk [vmem:[%s208 + $0xf8] sm:$0xff] %vm346, %v345
      %s379 = smul.u32 32, %s19
      %p380 = scmp.lt.s32.totalorder %s18, 1
      %s381 = scalar_select %p380, %s18, 1
      %p382 = scmp.lt.s32.totalorder %s379, 31
      %s383 = scalar_select %p382, %s379, 31
      %s384 = smul.addr %s381, 32
      %s385 = sadd.s32 %s383, %s384
      %s386 = smul.addr %s385, 8
      %s387 = scalar_lea.vmem %s3, %s386
      // Predicated region
      $region33: #{residual_block.6} parent=31 // pred_check
        %p388 = pneg %p116
      $region34: #{residual_block.6} parent=31 // pred_check_branch
        %390 = sbr.rel (%p388) target = $region36
      $region35: #{residual_block.6} parent=31 // pred_region
        %s391 = smul.u32 32, %s19
      $region36: #{residual_block.6} parent=31 // pred_fallthru
        _
    $region32: #{residual_block.6} parent=5 // pred_fallthru
      _
    %p392 = scmp.le.s32.totalorder 2, %s9
    // Predicated region
    $region37: #{residual_block.6} parent=5 // pred_check
      %p393 = pneg %p392
    $region38: #{residual_block.6} parent=5 // pred_check_branch
      %395 = sbr.rel (%p393) target = $region40
    $region39: #{residual_block.6} parent=5 // pred_region
      %s396 = ssub.s32 %s9, 2
      // Predicated region
      $region41: #{residual_block.6} parent=39 // pred_check
        %p397 = pneg %p122
      $region42: #{residual_block.6} parent=39 // pred_check_branch
        %399 = sbr.rel (%p397) target = $region44
      $region43: #{residual_block.6} parent=39 // pred_region
        %s400 = smul.u32 32, %s21
        %p401 = scmp.lt.s32.totalorder %s20, 1
        %s402 = scalar_select %p401, %s20, 1
        %p403 = scmp.lt.s32.totalorder %s400, 31
        %s404 = scalar_select %p403, %s400, 31
        %s405 = smul.addr %s402, 32
        %s406 = sadd.s32 %s404, %s405
        %s407 = smul.addr %s406, 8
        %s408 = scalar_lea.vmem %s3, %s407
      $region44: #{residual_block.6} parent=39 // pred_fallthru
        _
    $region40: #{residual_block.6} parent=5 // pred_fallthru
      _
  $region6: #{residual_block.6} parent=0 // loop_footer
    %s13 = sadd.s32 1, %s9
  $region7: #{residual_block.6} parent=0 // loop_footer_branch
    %8 = sbr.rel target = $region3
  $region8: #{residual_block.6} parent=0 // loop_exit
    _

// kernel: residual_block.8
$region0: #{residual_block.8}
  #allocation0 [shape = 'u32[]', space=smem, size = 0x4, offset = 0x4, fixed_abs, tag = 'smem constant byte address 0x4 - core index']
  #allocation1 [shape = 'u32[72,128]{1,0:T(1,128)}', space=vmem, size = 0x9000, scoped, tag = 'internal scratch']
  %s0 = inlined_call_operand.vmem [shape: f32[2,16,16,8], index: 0, kind: input, shape index: {}]
  %s1 = inlined_call_operand.vmem [shape: f32[8,16], index: 1, kind: input, shape index: {}]
  %s2 = inlined_call_operand.vmem [shape: f32[1,16], index: 2, kind: input, shape index: {}]
  %s3 = inlined_call_operand.vmem [shape: f32[2,256,16], index: 3, kind: output, shape index: {0}]
  %s4 = inlined_call_operand.vmem [shape: f32[2,1,1,16], index: 4, kind: output, shape index: {1}]
  %s5 = inlined_call_operand.vmem [shape: f32[2,1,1,16], index: 5, kind: output, shape index: {2}]
  %6 = xla_tuple %s3, %s4, %s5
  %s7 = sld [smem:[#allocation0]]
  $region61: #{residual_block.8} parent=0
    _
  %s9 = ssub.s32 1, %s7
  %s10 = scalar_select 0, %s9, %s7
  loop: start=0, step=1, limit=4
  $region2: #{residual_block.8} parent=0 // loop_pre_header
    _
  $region3: #{residual_block.8} parent=0 // loop_header
    %s12 = sphi 0, %s16
    %p13 = scmp.ge.s32.totalorder %s12, 4
    %s19 = sphi 0, %s31
    %s20 = sphi 0, %s27
    %s21 = sphi 0, %s19
    %s22 = sphi 0, %s20
    %s23 = sphi 0, %s21
    %s24 = sphi 0, %s22
    %s34 = sphi 0, %s36
    %s37 = sphi 0, %s34
    %s38 = sphi 0, %s37
    %s54 = sphi 0, %s38
    %s58 = sphi 0, %s58
    %s60 = sphi 0, %s58
    %s61 = sphi 0, %s60
    %s75 = sphi 0, %s61
    %s79 = sphi 0, %s79
    %s81 = sphi 0, %s79
    %s82 = sphi 0, %s81
    %s96 = sphi 0, %s82
    %s104 = sphi 0, %s106
    %s107 = sphi 0, %s104
    %s108 = sphi 0, %s107
    %s124 = sphi 0, %s108
    %s132 = sphi 0, %s134
    %s135 = sphi 0, %s132
    %s136 = sphi 0, %s135
    %s152 = sphi 0, %s136
    %s160 = sphi 0, %s162
    %s163 = sphi 0, %s160
    %s164 = sphi 0, %s163
    %s180 = sphi 0, %s164
  $region4: #{residual_block.8} parent=0 // loop_header_branch
    %15 = sbr.rel (%p13) target = $region8
  $region5: #{residual_block.8} parent=0 // loop_body
    %s17 = ssub.s32 %s12, 1
    %s18 = ssub.s32 %s12, 2
    %s25 = sadd.s32 1, %s20
    %p26 = scmp.ge.s32.totalorder %s25, 1
    %s27 = scalar_select %p26, 0, %s25
    %s28 = sadd.s32 1, %s19
    %s29 = scalar_select %p26, %s28, %s19
    %p30 = scmp.ge.s32.totalorder %s29, 2
    %s31 = scalar_select %p30, 0, %s29
    %s32 = ssub.s32 %s19, %s31
    %p33 = scmp.eq.s32.totalorder %s32, 0
    %s35 = sadd.s32 %s34, 1
    %s36 = scalar_select %p33, %s34, %s35
    %p39 = pneg %p33
    %p40 = scmp.eq.s32.totalorder %s12, 1
    %p41 = por %p39, %p40
    %p42 = scmp.ne.s32.totalorder %s34, %s37
    %p43 = scmp.eq.s32.totalorder %s12, 0
    %p44 = por %p42, %p43
    %p45 = scmp.ne.s32.totalorder %s34, %s37
    %p46 = scmp.eq.s32.totalorder %s17, 1
    %p47 = por %p45, %p46
    %p48 = scmp.ne.s32.totalorder %s37, %s38
    %p49 = scmp.eq.s32.totalorder %s17, 0
    %p50 = por %p48, %p49
    %p51 = scmp.ne.s32.totalorder %s37, %s38
    %p52 = scmp.eq.s32.totalorder %s18, 1
    %p53 = por %p51, %p52
    %p55 = scmp.ne.s32.totalorder %s38, %s54
    %p56 = scmp.eq.s32.totalorder %s18, 0
    %p57 = por %p55, %p56
    %s59 = sadd.s32 %s58, 1
    %p62 = scmp.eq.s32.totalorder %s12, 1
    %p63 = scmp.ne.s32.totalorder %s58, %s60
    %p64 = scmp.eq.s32.totalorder %s12, 0
    %p65 = por %p63, %p64
    %p66 = scmp.ne.s32.totalorder %s58, %s60
    %p67 = scmp.eq.s32.totalorder %s17, 1
    %p68 = por %p66, %p67
    %p69 = scmp.ne.s32.totalorder %s60, %s61
    %p70 = scmp.eq.s32.totalorder %s17, 0
    %p71 = por %p69, %p70
    %p72 = scmp.ne.s32.totalorder %s60, %s61
    %p73 = scmp.eq.s32.totalorder %s18, 1
    %p74 = por %p72, %p73
    %p76 = scmp.ne.s32.totalorder %s61, %s75
    %p77 = scmp.eq.s32.totalorder %s18, 0
    %p78 = por %p76, %p77
    %s80 = sadd.s32 %s79, 1
    %p83 = scmp.eq.s32.totalorder %s12, 1
    %p84 = scmp.ne.s32.totalorder %s79, %s81
    %p85 = scmp.eq.s32.totalorder %s12, 0
    %p86 = por %p84, %p85
    %p87 = scmp.ne.s32.totalorder %s79, %s81
    %p88 = scmp.eq.s32.totalorder %s17, 1
    %p89 = por %p87, %p88
    %p90 = scmp.ne.s32.totalorder %s81, %s82
    %p91 = scmp.eq.s32.totalorder %s17, 0
    %p92 = por %p90, %p91
    %p93 = scmp.ne.s32.totalorder %s81, %s82
    %p94 = scmp.eq.s32.totalorder %s18, 1
    %p95 = por %p93, %p94
    %p97 = scmp.ne.s32.totalorder %s82, %s96
    %p98 = scmp.eq.s32.totalorder %s18, 0
    %p99 = por %p97, %p98
    %s100 = ssub.s32 %s19, %s31
    %s101 = ssub.s32 %s20, %s27
    %s102 = sor.u32 %s100, %s101
    %p103 = scmp.eq.s32.totalorder %s102, 0
    %s105 = sadd.s32 %s104, 1
    %s106 = scalar_select %p103, %s104, %s105
    %p109 = pneg %p103
    %p110 = scmp.eq.s32.totalorder %s12, 1
    %p111 = por %p109, %p110
    %p112 = scmp.ne.s32.totalorder %s104, %s107
    %p113 = scmp.eq.s32.totalorder %s12, 0
    %p114 = por %p112, %p113
    %p115 = scmp.ne.s32.totalorder %s104, %s107
    %p116 = scmp.eq.s32.totalorder %s17, 1
    %p117 = por %p115, %p116
    %p118 = scmp.ne.s32.totalorder %s107, %s108
    %p119 = scmp.eq.s32.totalorder %s17, 0
    %p120 = por %p118, %p119
    %p121 = scmp.ne.s32.totalorder %s107, %s108
    %p122 = scmp.eq.s32.totalorder %s18, 1
    %p123 = por %p121, %p122
    %p125 = scmp.ne.s32.totalorder %s108, %s124
    %p126 = scmp.eq.s32.totalorder %s18, 0
    %p127 = por %p125, %p126
    %s128 = ssub.s32 %s19, %s31
    %s129 = ssub.s32 %s20, %s27
    %s130 = sor.u32 %s128, %s129
    %p131 = scmp.eq.s32.totalorder %s130, 0
    %s133 = sadd.s32 %s132, 1
    %s134 = scalar_select %p131, %s132, %s133
    %p137 = pneg %p131
    %p138 = scmp.eq.s32.totalorder %s12, 1
    %p139 = por %p137, %p138
    %p140 = scmp.ne.s32.totalorder %s132, %s135
    %p141 = scmp.eq.s32.totalorder %s12, 0
    %p142 = por %p140, %p141
    %p143 = scmp.ne.s32.totalorder %s132, %s135
    %p144 = scmp.eq.s32.totalorder %s17, 1
    %p145 = por %p143, %p144
    %p146 = scmp.ne.s32.totalorder %s135, %s136
    %p147 = scmp.eq.s32.totalorder %s17, 0
    %p148 = por %p146, %p147
    %p149 = scmp.ne.s32.totalorder %s135, %s136
    %p150 = scmp.eq.s32.totalorder %s18, 1
    %p151 = por %p149, %p150
    %p153 = scmp.ne.s32.totalorder %s136, %s152
    %p154 = scmp.eq.s32.totalorder %s18, 0
    %p155 = por %p153, %p154
    %s156 = ssub.s32 %s19, %s31
    %s157 = ssub.s32 %s20, %s27
    %s158 = sor.u32 %s156, %s157
    %p159 = scmp.eq.s32.totalorder %s158, 0
    %s161 = sadd.s32 %s160, 1
    %s162 = scalar_select %p159, %s160, %s161
    %p165 = pneg %p159
    %p166 = scmp.eq.s32.totalorder %s12, 1
    %p167 = por %p165, %p166
    %p168 = scmp.ne.s32.totalorder %s160, %s163
    %p169 = scmp.eq.s32.totalorder %s12, 0
    %p170 = por %p168, %p169
    %p171 = scmp.ne.s32.totalorder %s160, %s163
    %p172 = scmp.eq.s32.totalorder %s17, 1
    %p173 = por %p171, %p172
    %p174 = scmp.ne.s32.totalorder %s163, %s164
    %p175 = scmp.eq.s32.totalorder %s17, 0
    %p176 = por %p174, %p175
    %p177 = scmp.ne.s32.totalorder %s163, %s164
    %p178 = scmp.eq.s32.totalorder %s18, 1
    %p179 = por %p177, %p178
    %p181 = scmp.ne.s32.totalorder %s164, %s180
    %p182 = scmp.eq.s32.totalorder %s18, 0
    %p183 = por %p181, %p182
    %p184 = scmp.le.s32.totalorder 1, %s12
    %p185 = scmp.lt.s32.totalorder %s12, 3
    %p186 = pnand %p184, %p185
    %p187 = pneg %p186
    // Predicated region
    $region9: #{residual_block.8} parent=5 // pred_check
      _
    $region10: #{residual_block.8} parent=5 // pred_check_branch
      %189 = sbr.rel (%p186) target = $region12
    $region11: #{residual_block.8} parent=5 // pred_region
      %s190 = ssub.s32 %s12, 1
      // Predicated region
      $region13: #{residual_block.8} parent=11 // pred_check
        %p191 = pneg %p71
      $region14: #{residual_block.8} parent=11 // pred_check_branch
        %193 = sbr.rel (%p191) target = $region16
      $region15: #{residual_block.8} parent=11 // pred_region
        _
      $region16: #{residual_block.8} parent=11 // pred_fallthru
        _
      // Predicated region
      $region17: #{residual_block.8} parent=11 // pred_check
        %p194 = pneg %p92
      $region18: #{residual_block.8} parent=11 // pred_check_branch
        %196 = sbr.rel (%p194) target = $region20
      $region19: #{residual_block.8} parent=11 // pred_region
        _
      $region20: #{residual_block.8} parent=11 // pred_fallthru
        _
    $region12: #{residual_block.8} parent=5 // pred_fallthru
      _
    %p197 = scmp.lt.s32.totalorder %s12, 2
    // Predicated region
    $region21: #{residual_block.8} parent=5 // pred_check
      %p198 = pneg %p197
    $region22: #{residual_block.8} parent=5 // pred_check_branch
      %200 = sbr.rel (%p198) target = $region24
    $region23: #{residual_block.8} parent=5 // pred_region
      // Predicated region
      $region25: #{residual_block.8} parent=23 // pred_check
        %p201 = pneg %p44
      $region26: #{residual_block.8} parent=23 // pred_check_branch
        %203 = sbr.rel (%p201) target = $region28
      $region27: #{residual_block.8} parent=23 // pred_region
        %p204 = scmp.lt.s32.totalorder %s19, 1
        %s205 = scalar_select %p204, %s19, 1
        %s206 = smul.addr %s205, 32
        %s207 = smul.addr %s206, 8
        %s208 = scalar_lea.vmem %s0, %s207
      $region28: #{residual_block.8} parent=23 // pred_fallthru
        _
    $region24: #{residual_block.8} parent=5 // pred_fallthru
      _
    %p209 = scmp.le.s32.totalorder 1, %s12
    %p210 = scmp.lt.s32.totalorder %s12, 3
    %p211 = pnand %p209, %p210
    %p212 = pneg %p211
    // Predicated region
    $region29: #{residual_block.8} parent=5 // pred_check
      _
    $region30: #{residual_block.8} parent=5 // pred_check_branch
      %214 = sbr.rel (%p211) target = $region32
    $region31: #{residual_block.8} parent=5 // pred_region
      %s215 = ssub.s32 %s12, 1
      %p216 = scmp.lt.s32.totalorder %s21, 1
      %s217 = scalar_select %p216, %s21, 1
      %s218 = smul.addr %s217, 32
      %s219 = smul.addr %s218, 8
      %s220 = scalar_lea.vmem %s0, %s219
      %p221 = pneg %p50
      %p222 = pneg %p47
      %p223 = pneg %p71
      %p224 = pneg %p68
      %p225 = pneg %p92
      %p226 = pneg %p89
      %p227 = pneg %p120
      %p228 = pneg %p117
      %s229 = smul.u32 32, %s22
      %p230 = scmp.lt.s32.totalorder %s21, 1
      %s231 = scalar_select %p230, %s21, 1
      %p232 = scmp.lt.s32.totalorder %s229, 31
      %s233 = scalar_select %p232, %s229, 31
      %s234 = smul.addr %s231, 32
      %s235 = sadd.s32 %s233, %s234
      %s236 = smul.addr %s235, 8
      %s237 = scalar_lea.vmem %s3, %s236
      %p238 = pneg %p148
      %p239 = pneg %p145
      %p240 = scmp.lt.s32.totalorder %s21, 1
      %s241 = scalar_select %p240, %s21, 1
      %p242 = scmp.lt.s32.totalorder %s22, 0
      %s243 = scalar_select %p242, %s22, 0
      %s244 = sadd.s32 %s243, %s241
      %s245 = scalar_lea.vmem %s4, %s244
      %p246 = pneg %p176
      %p247 = pneg %p173
      %p248 = scmp.lt.s32.totalorder %s21, 1
      %s249 = scalar_select %p248, %s21, 1
      %p250 = scmp.lt.s32.totalorder %s22, 0
      %s251 = scalar_select %p250, %s22, 0
      %s252 = sadd.s32 %s251, %s249
      %s253 = scalar_lea.vmem %s5, %s252
      %p254 = scmp.lt.s32.totalorder %s21, 1
      %s255 = scalar_select %p254, %s21, 1
      %s256 = smul.addr %s255, 32
      %s257 = smul.addr %s256, 8
      %s258 = scalar_lea.vmem %s0, %s257
      %s259 = smul.u32 32, %s22
      %p260 = scmp.lt.s32.totalorder %s21, 1
      %s261 = scalar_select %p260, %s21, 1
      %p262 = scmp.lt.s32.totalorder %s259, 31
      %s263 = scalar_select %p262, %s259, 31
      %s264 = smul.addr %s261, 32
      %s265 = sadd.s32 %s263, %s264
      %s266 = smul.addr %s265, 8
      %s267 = scalar_lea.vmem %s3, %s266
      %s268 = smul.u32 32, %s22
      %p269 = scmp.lt.s32.totalorder %s21, 1
      %s270 = scalar_select %p269, %s21, 1
      %p271 = scmp.lt.s32.totalorder %s22, 0
      %s272 = scalar_select %p271, %s22, 0
      %s273 = sadd.s32 %s272, %s270
      %s274 = scalar_lea.vmem %s4, %s273
      %p275 = scmp.lt.s32.totalorder %s21, 1
      %s276 = scalar_select %p275, %s21, 1
      %p277 = scmp.lt.s32.totalorder %s22, 0
      %s278 = scalar_select %p277, %s22, 0
      %s279 = sadd.s32 %s278, %s276
      %s280 = scalar_lea.vmem %s5, %s279
      %s281 = smul.u32 %s22, 16
      %s282 = smul.u32 %s281, 16
      %s283 = scalar_lea.vmem %s258, %s282
      %v284 = vld [vmem:[%s283] sm:$0xff]
      %v285 = vld [vmem:[%s283 + $0x8] sm:$0xff]
      %v286 = vld [vmem:[%s283 + $0x10] sm:$0xff]
      %v287 = vld [vmem:[%s283 + $0x18] sm:$0xff]
      %v288 = vld [vmem:[%s283 + $0x20] sm:$0xff]
      %v289 = vld [vmem:[%s283 + $0x28] sm:$0xff]
      %v290 = vld [vmem:[%s283 + $0x30] sm:$0xff]
      %v291 = vld [vmem:[%s283 + $0x38] sm:$0xff]
      %v292 = vld [vmem:[%s283 + $0x40] sm:$0xff]
      %v293 = vld [vmem:[%s283 + $0x48] sm:$0xff]
      %v294 = vld [vmem:[%s283 + $0x50] sm:$0xff]
      %v295 = vld [vmem:[%s283 + $0x58] sm:$0xff]
      %v296 = vld [vmem:[%s283 + $0x60] sm:$0xff]
      %v297 = vld [vmem:[%s283 + $0x68] sm:$0xff]
      %v298 = vld [vmem:[%s283 + $0x70] sm:$0xff]
      %v299 = vld [vmem:[%s283 + $0x78] sm:$0xff]
      %v300 = vld [vmem:[%s283 + $0x80] sm:$0xff]
      %v301 = vld [vmem:[%s283 + $0x88] sm:$0xff]
      %v302 = vld [vmem:[%s283 + $0x90] sm:$0xff]
      %v303 = vld [vmem:[%s283 + $0x98] sm:$0xff]
      %v304 = vld [vmem:[%s283 + $0xa0] sm:$0xff]
      %v305 = vld [vmem:[%s283 + $0xa8] sm:$0xff]
      %v306 = vld [vmem:[%s283 + $0xb0] sm:$0xff]
      %v307 = vld [vmem:[%s283 + $0xb8] sm:$0xff]
      %v308 = vld [vmem:[%s283 + $0xc0] sm:$0xff]
      %v309 = vld [vmem:[%s283 + $0xc8] sm:$0xff]
      %v310 = vld [vmem:[%s283 + $0xd0] sm:$0xff]
      %v311 = vld [vmem:[%s283 + $0xd8] sm:$0xff]
      %v312 = vld [vmem:[%s283 + $0xe0] sm:$0xff]
      %v313 = vld [vmem:[%s283 + $0xe8] sm:$0xff]
      %v314 = vld [vmem:[%s283 + $0xf0] sm:$0xff]
      %v315 = vld [vmem:[%s283 + $0xf8] sm:$0xff]
      %v316 = vld [vmem:[%s1] sm:$0xff]
      %v317 = vld [vmem:[%s2] sm:$0x1]
      %v319 = vperm.slane %v317, 0
      %vm321 = vcmask 64512
      %v323 = vsel %vm321, %v284, 0
      %v326 = vsel %vm321, %v285, 0
      %v329 = vsel %vm321, %v286, 0
      %v332 = vsel %vm321, %v287, 0
      %v335 = vsel %vm321, %v288, 0
      %v338 = vsel %vm321, %v289, 0
      %v341 = vsel %vm321, %v290, 0
      %v344 = vsel %vm321, %v291, 0
      %v347 = vsel %vm321, %v292, 0
      %v350 = vsel %vm321, %v293, 0
      %v353 = vsel %vm321, %v294, 0
      %v356 = vsel %vm321, %v295, 0
      %v359 = vsel %vm321, %v296, 0
      %v362 = vsel %vm321, %v297, 0
      %v365 = vsel %vm321, %v298, 0
      %v368 = vsel %vm321, %v299, 0
      %v371 = vsel %vm321, %v300, 0
      %v374 = vsel %vm321, %v301, 0
      %v377 = vsel %vm321, %v302, 0
      %v380 = vsel %vm321, %v303, 0
      %v383 = vsel %vm321, %v304, 0
      %v386 = vsel %vm321, %v305, 0
      %v389 = vsel %vm321, %v306, 0
      %v392 = vsel %vm321, %v307, 0
      %v395 = vsel %vm321, %v308, 0
      %v398 = vsel %vm321, %v309, 0
      %v401 = vsel %vm321, %v310, 0
      %v404 = vsel %vm321, %v311, 0
      %v407 = vsel %vm321, %v312, 0
      %v410 = vsel %vm321, %v313, 0
      %v413 = vsel %vm321, %v314, 0
      %v416 = vsel %vm321, %v315, 0
      %418 = vmatpush.msra.mxu0 0.0
      %419 = vmatpush.msra.mxu0 0.0
      %420 = vmatpush.msra.mxu0 0.0
      %421 = vmatpush.msra.mxu0 0.0
      %422 = vmatpush.msra.mxu0 0.0
      %423 = vmatpush.msra.mxu0 0.0
      %424 = vmatpush.msra.mxu0 0.0
      %425 = vmatpush.msra.mxu0 0.0
      %426 = vmatpush.msra.mxu0 0.0
      %427 = vmatpush.msra.mxu0 0.0
      %428 = vmatpush.msra.mxu0 0.0
      %429 = vmatpush.msra.mxu0 0.0
      %430 = vmatpush.msra.mxu0 0.0
      %431 = vmatpush.msra.mxu0 0.0
      %432 = vmatpush.msra.mxu0 0.0
      %433 = vmatpush.msra.mxu0 %v316
      %434 = vmatmul.f32.gmra.mxu0 %v323
      %v435 = vpop.f32.mrf.mxu0
      %v436 = vadd.f32 %v319, %v435
      %437 = vmatmul.f32.gmra.mxu0 %v326
      %v438 = vpop.f32.mrf.mxu0
      %v439 = vadd.f32 %v319, %v438
      %440 = vmatmul.f32.gmra.mxu0 %v329
      %v441 = vpop.f32.mrf.mxu0
      %v442 = vadd.f32 %v319, %v441
      %443 = vmatmul.f32.gmra.mxu0 %v332
      %v444 = vpop.f32.mrf.mxu0
      %v445 = vadd.f32 %v319, %v444
      %446 = vmatmul.f32.gmra.mxu0 %v335
      %v447 = vpop.f32.mrf.mxu0
      %v448 = vadd.f32 %v319, %v447
      %449 = vmatmul.f32.gmra.mxu0 %v338
      %v450 = vpop.f32.mrf.mxu0
      %v451 = vadd.f32 %v319, %v450
      %452 = vmatmul.f32.gmra.mxu0 %v341
      %v453 = vpop.f32.mrf.mxu0
      %v454 = vadd.f32 %v319, %v453
      %455 = vmatmul.f32.gmra.mxu0 %v344
      %v456 = vpop.f32.mrf.mxu0
      %v457 = vadd.f32 %v319, %v456
      %458 = vmatmul.f32.gmra.mxu0 %v347
      %v459 = vpop.f32.mrf.mxu0
      %v460 = vadd.f32 %v319, %v459
      %461 = vmatmul.f32.gmra.mxu0 %v350
      %v462 = vpop.f32.mrf.mxu0
      %v463 = vadd.f32 %v319, %v462
      %464 = vmatmul.f32.gmra.mxu0 %v353
      %v465 = vpop.f32.mrf.mxu0
      %v466 = vadd.f32 %v319, %v465
      %467 = vmatmul.f32.gmra.mxu0 %v356
      %v468 = vpop.f32.mrf.mxu0
      %v469 = vadd.f32 %v319, %v468
      %470 = vmatmul.f32.gmra.mxu0 %v359
      %v471 = vpop.f32.mrf.mxu0
      %v472 = vadd.f32 %v319, %v471
      %473 = vmatmul.f32.gmra.mxu0 %v362
      %v474 = vpop.f32.mrf.mxu0
      %v475 = vadd.f32 %v319, %v474
      %476 = vmatmul.f32.gmra.mxu0 %v365
      %v477 = vpop.f32.mrf.mxu0
      %v478 = vadd.f32 %v319, %v477
      %479 = vmatmul.f32.gmra.mxu0 %v368
      %v480 = vpop.f32.mrf.mxu0
      %v481 = vadd.f32 %v319, %v480
      %482 = vmatmul.f32.gmra.mxu0 %v371
      %v483 = vpop.f32.mrf.mxu0
      %v484 = vadd.f32 %v319, %v483
      %485 = vmatmul.f32.gmra.mxu0 %v374
      %v486 = vpop.f32.mrf.mxu0
      %v487 = vadd.f32 %v319, %v486
      %488 = vmatmul.f32.gmra.mxu0 %v377
      %v489 = vpop.f32.mrf.mxu0
      %v490 = vadd.f32 %v319, %v489
      %491 = vmatmul.f32.gmra.mxu0 %v380
      %v492 = vpop.f32.mrf.mxu0
      %v493 = vadd.f32 %v319, %v492
      %494 = vmatmul.f32.gmra.mxu0 %v383
      %v495 = vpop.f32.mrf.mxu0
      %v496 = vadd.f32 %v319, %v495
      %497 = vmatmul.f32.gmra.mxu0 %v386
      %v498 = vpop.f32.mrf.mxu0
      %v499 = vadd.f32 %v319, %v498
      %500 = vmatmul.f32.gmra.mxu0 %v389
      %v501 = vpop.f32.mrf.mxu0
      %v502 = vadd.f32 %v319, %v501
      %503 = vmatmul.f32.gmra.mxu0 %v392
      %v504 = vpop.f32.mrf.mxu0
      %v505 = vadd.f32 %v319, %v504
      %506 = vmatmul.f32.gmra.mxu0 %v395
      %v507 = vpop.f32.mrf.mxu0
      %v508 = vadd.f32 %v319, %v507
      %509 = vmatmul.f32.gmra.mxu0 %v398
      %v510 = vpop.f32.mrf.mxu0
      %v511 = vadd.f32 %v319, %v510
      %512 = vmatmul.f32.gmra.mxu0 %v401
      %v513 = vpop.f32.mrf.mxu0
      %v514 = vadd.f32 %v319, %v513
      %515 = vmatmul.f32.gmra.mxu0 %v404
      %v516 = vpop.f32.mrf.mxu0
      %v517 = vadd.f32 %v319, %v516
      %518 = vmatmul.f32.gmra.mxu0 %v407
      %v519 = vpop.f32.mrf.mxu0
      %v520 = vadd.f32 %v319, %v519
      %521 = vmatmul.f32.gmra.mxu0 %v410
      %v522 = vpop.f32.mrf.mxu0
      %v523 = vadd.f32 %v319, %v522
      %524 = vmatmul.f32.gmra.mxu0 %v413
      %v525 = vpop.f32.mrf.mxu0
      %v526 = vadd.f32 %v319, %v525
      %527 = vmatmul.f32.gmra.mxu0 %v416
      %v528 = vpop.f32.mrf.mxu0
      %v529 = vadd.f32 %v319, %v528
      %530 = vdwg.mxu0
      %vm531 = vcmask 130048
      %532 = vst.msk [vmem:[%s267] sm:$0xff] %vm531, %v436
      %533 = vst.msk [vmem:[%s267 + $0x8] sm:$0xff] %vm531, %v439
      %534 = vst.msk [vmem:[%s267 + $0x10] sm:$0xff] %vm531, %v442
      %535 = vst.msk [vmem:[%s267 + $0x18] sm:$0xff] %vm531, %v445
      %536 = vst.msk [vmem:[%s267 + $0x20] sm:$0xff] %vm531, %v448
      %537 = vst.msk [vmem:[%s267 + $0x28] sm:$0xff] %vm531, %v451
      %538 = vst.msk [vmem:[%s267 + $0x30] sm:$0xff] %vm531, %v454
      %539 = vst.msk [vmem:[%s267 + $0x38] sm:$0xff] %vm531, %v457
      %540 = vst.msk [vmem:[%s267 + $0x40] sm:$0xff] %vm531, %v460
      %541 = vst.msk [vmem:[%s267 + $0x48] sm:$0xff] %vm531, %v463
      %542 = vst.msk [vmem:[%s267 + $0x50] sm:$0xff] %vm531, %v466
      %543 = vst.msk [vmem:[%s267 + $0x58] sm:$0xff] %vm531, %v469
      %544 = vst.msk [vmem:[%s267 + $0x60] sm:$0xff] %vm531, %v472
      %545 = vst.msk [vmem:[%s267 + $0x68] sm:$0xff] %vm531, %v475
      %546 = vst.msk [vmem:[%s267 + $0x70] sm:$0xff] %vm531, %v478
      %547 = vst.msk [vmem:[%s267 + $0x78] sm:$0xff] %vm531, %v481
      %548 = vst.msk [vmem:[%s267 + $0x80] sm:$0xff] %vm531, %v484
      %549 = vst.msk [vmem:[%s267 + $0x88] sm:$0xff] %vm531, %v487
      %550 = vst.msk [vmem:[%s267 + $0x90] sm:$0xff] %vm531, %v490
      %551 = vst.msk [vmem:[%s267 + $0x98] sm:$0xff] %vm531, %v493
      %552 = vst.msk [vmem:[%s267 + $0xa0] sm:$0xff] %vm531, %v496
      %553 = vst.msk [vmem:[%s267 + $0xa8] sm:$0xff] %vm531, %v499
      %554 = vst.msk [vmem:[%s267 + $0xb0] sm:$0xff] %vm531, %v502
      %555 = vst.msk [vmem:[%s267 + $0xb8] sm:$0xff] %vm531, %v505
      %556 = vst.msk [vmem:[%s267 + $0xc0] sm:$0xff] %vm531, %v508
      %557 = vst.msk [vmem:[%s267 + $0xc8] sm:$0xff] %vm531, %v511
      %558 = vst.msk [vmem:[%s267 + $0xd0] sm:$0xff] %vm531, %v514
      %559 = vst.msk [vmem:[%s267 + $0xd8] sm:$0xff] %vm531, %v517
      %560 = vst.msk [vmem:[%s267 + $0xe0] sm:$0xff] %vm531, %v520
      %561 = vst.msk [vmem:[%s267 + $0xe8] sm:$0xff] %vm531, %v523
      %562 = vst.msk [vmem:[%s267 + $0xf0] sm:$0xff] %vm531, %v526
      %563 = vst.msk [vmem:[%s267 + $0xf8] sm:$0xff] %vm531, %v529
      %v564 = vsel %vm531, %v436, 0.0
      %v565 = vsel %vm531, %v439, 0.0
      %v566 = vadd.f32 %v564, %v565
      %v567 = vsel %vm531, %v442, 0.0
      %v568 = vadd.f32 %v566, %v567
      %v569 = vsel %vm531, %v445, 0.0
      %v570 = vadd.f32 %v568, %v569
      %v571 = vsel %vm531, %v448, 0.0
      %v572 = vadd.f32 %v570, %v571
      %v573 = vsel %vm531, %v451, 0.0
      %v574 = vadd.f32 %v572, %v573
      %v575 = vsel %vm531, %v454, 0.0
      %v576 = vadd.f32 %v574, %v575
      %v577 = vsel %vm531, %v457, 0.0
      %v578 = vadd.f32 %v576, %v577
      %v579 = vsel %vm531, %v460, 0.0
      %v580 = vadd.f32 %v578, %v579
      %v581 = vsel %vm531, %v463, 0.0
      %v582 = vadd.f32 %v580, %v581
      %v583 = vsel %vm531, %v466, 0.0
      %v584 = vadd.f32 %v582, %v583
      %v585 = vsel %vm531, %v469, 0.0
      %v586 = vadd.f32 %v584, %v585
      %v587 = vsel %vm531, %v472, 0.0
      %v588 = vadd.f32 %v586, %v587
      %v589 = vsel %vm531, %v475, 0.0
      %v590 = vadd.f32 %v588, %v589
      %v591 = vsel %vm531, %v478, 0.0
      %v592 = vadd.f32 %v590, %v591
      %v593 = vsel %vm531, %v481, 0.0
      %v594 = vadd.f32 %v592, %v593
      %v595 = vsel %vm531, %v484, 0.0
      %v596 = vadd.f32 %v594, %v595
      %v597 = vsel %vm531, %v487, 0.0
      %v598 = vadd.f32 %v596, %v597
      %v599 = vsel %vm531, %v490, 0.0
      %v600 = vadd.f32 %v598, %v599
      %v601 = vsel %vm531, %v493, 0.0
      %v602 = vadd.f32 %v600, %v601
      %v603 = vsel %vm531, %v496, 0.0
      %v604 = vadd.f32 %v602, %v603
      %v605 = vsel %vm531, %v499, 0.0
      %v606 = vadd.f32 %v604, %v605
      %v607 = vsel %vm531, %v502, 0.0
      %v608 = vadd.f32 %v606, %v607
      %v609 = vsel %vm531, %v505, 0.0
      %v610 = vadd.f32 %v608, %v609
      %v611 = vsel %vm531, %v508, 0.0
      %v612 = vadd.f32 %v610, %v611
      %v613 = vsel %vm531, %v511, 0.0
      %v614 = vadd.f32 %v612, %v613
      %v615 = vsel %vm531, %v514, 0.0
      %v616 = vadd.f32 %v614, %v615
      %v617 = vsel %vm531, %v517, 0.0
      %v618 = vadd.f32 %v616, %v617
      %v619 = vsel %vm531, %v520, 0.0
      %v620 = vadd.f32 %v618, %v619
      %v621 = vsel %vm531, %v523, 0.0
      %v622 = vadd.f32 %v620, %v621
      %v623 = vsel %vm531, %v526, 0.0
      %v624 = vadd.f32 %v622, %v623
      %v625 = vsel %vm531, %v529, 0.0
      %v626 = vadd.f32 %v624, %v625
      %v627 = vrot.slane %v626, 4
      %v628 = vadd.f32 %v626, %v627
      %v629 = vrot.slane %v628, 2
      %v630 = vadd.f32 %v628, %v629
      %v631 = vrot.slane %v630, 1
      %v632 = vadd.f32 %v630, %v631
      %vm633 = vcmask 122880
      %634 = vst.msk [vmem:[%s274] sm:$0x1] %vm633, %v632
      %v635 = vmul.f32 %v436, %v436
      %v636 = vmul.f32 %v439, %v439
      %v637 = vmul.f32 %v442, %v442
      %v638 = vmul.f32 %v445, %v445
      %v639 = vmul.f32 %v448, %v448
      %v640 = vmul.f32 %v451, %v451
      %v641 = vmul.f32 %v454, %v454
      %v642 = vmul.f32 %v457, %v457
      %v643 = vmul.f32 %v460, %v460
      %v644 = vmul.f32 %v463, %v463
      %v645 = vmul.f32 %v466, %v466
      %v646 = vmul.f32 %v469, %v469
      %v647 = vmul.f32 %v472, %v472
      %v648 = vmul.f32 %v475, %v475
      %v649 = vmul.f32 %v478, %v478
      %v650 = vmul.f32 %v481, %v481
      %v651 = vmul.f32 %v484, %v484
      %v652 = vmul.f32 %v487, %v487
      %v653 = vmul.f32 %v490, %v490
      %v654 = vmul.f32 %v493, %v493
      %v655 = vmul.f32 %v496, %v496
      %v656 = vmul.f32 %v499, %v499
      %v657 = vmul.f32 %v502, %v502
      %v658 = vmul.f32 %v505, %v505
      %v659 = vmul.f32 %v508, %v508
      %v660 = vmul.f32 %v511, %v511
      %v661 = vmul.f32 %v514, %v514
      %v662 = vmul.f32 %v517, %v517
      %v663 = vmul.f32 %v520, %v520
      %v664 = vmul.f32 %v523, %v523
      %v665 = vmul.f32 %v526, %v526
      %v666 = vmul.f32 %v529, %v529
      %v667 = vsel %vm531, %v635, 0.0
      %v668 = vsel %vm531, %v636, 0.0
      %v669 = vadd.f32 %v667, %v668
      %v670 = vsel %vm531, %v637, 0.0
      %v671 = vadd.f32 %v669, %v670
      %v672 = vsel %vm531, %v638, 0.0
      %v673 = vadd.f32 %v671, %v672
      %v674 = vsel %vm531, %v639, 0.0
      %v675 = vadd.f32 %v673, %v674
      %v676 = vsel %vm531, %v640, 0.0
      %v677 = vadd.f32 %v675, %v676
      %v678 = vsel %vm531, %v641, 0.0
      %v679 = vadd.f32 %v677, %v678
      %v680 = vsel %vm531, %v642, 0.0
      %v681 = vadd.f32 %v679, %v680
      %v682 = vsel %vm531, %v643, 0.0
      %v683 = vadd.f32 %v681, %v682
      %v684 = vsel %vm531, %v644, 0.0
      %v685 = vadd.f32 %v683, %v684
      %v686 = vsel %vm531, %v645, 0.0
      %v687 = vadd.f32 %v685, %v686
      %v688 = vsel %vm531, %v646, 0.0
      %v689 = vadd.f32 %v687, %v688
      %v690 = vsel %vm531, %v647, 0.0
      %v691 = vadd.f32 %v689, %v690
      %v692 = vsel %vm531, %v648, 0.0
      %v693 = vadd.f32 %v691, %v692
      %v694 = vsel %vm531, %v649, 0.0
      %v695 = vadd.f32 %v693, %v694
      %v696 = vsel %vm531, %v650, 0.0
      %v697 = vadd.f32 %v695, %v696
      %v698 = vsel %vm531, %v651, 0.0
      %v699 = vadd.f32 %v697, %v698
      %v700 = vsel %vm531, %v652, 0.0
      %v701 = vadd.f32 %v699, %v700
      %v702 = vsel %vm531, %v653, 0.0
      %v703 = vadd.f32 %v701, %v702
      %v704 = vsel %vm531, %v654, 0.0
      %v705 = vadd.f32 %v703, %v704
      %v706 = vsel %vm531, %v655, 0.0
      %v707 = vadd.f32 %v705, %v706
      %v708 = vsel %vm531, %v656, 0.0
      %v709 = vadd.f32 %v707, %v708
      %v710 = vsel %vm531, %v657, 0.0
      %v711 = vadd.f32 %v709, %v710
      %v712 = vsel %vm531, %v658, 0.0
      %v713 = vadd.f32 %v711, %v712
      %v714 = vsel %vm531, %v659, 0.0
      %v715 = vadd.f32 %v713, %v714
      %v716 = vsel %vm531, %v660, 0.0
      %v717 = vadd.f32 %v715, %v716
      %v718 = vsel %vm531, %v661, 0.0
      %v719 = vadd.f32 %v717, %v718
      %v720 = vsel %vm531, %v662, 0.0
      %v721 = vadd.f32 %v719, %v720
      %v722 = vsel %vm531, %v663, 0.0
      %v723 = vadd.f32 %v721, %v722
      %v724 = vsel %vm531, %v664, 0.0
      %v725 = vadd.f32 %v723, %v724
      %v726 = vsel %vm531, %v665, 0.0
      %v727 = vadd.f32 %v725, %v726
      %v728 = vsel %vm531, %v666, 0.0
      %v729 = vadd.f32 %v727, %v728
      %v730 = vrot.slane %v729, 4
      %v731 = vadd.f32 %v729, %v730
      %v732 = vrot.slane %v731, 2
      %v733 = vadd.f32 %v731, %v732
      %v734 = vrot.slane %v733, 1
      %v735 = vadd.f32 %v733, %v734
      %736 = vst.msk [vmem:[%s280] sm:$0x1] %vm633, %v735
      %s737 = smul.u32 32, %s22
      %p738 = scmp.lt.s32.totalorder %s21, 1
      %s739 = scalar_select %p738, %s21, 1
      %p740 = scmp.lt.s32.totalorder %s737, 31
      %s741 = scalar_select %p740, %s737, 31
      %s742 = smul.addr %s739, 32
      %s743 = sadd.s32 %s741, %s742
      %s744 = smul.addr %s743, 8
      %s745 = scalar_lea.vmem %s3, %s744
      %p746 = scmp.lt.s32.totalorder %s21, 1
      %s747 = scalar_select %p746, %s21, 1
      %p748 = scmp.lt.s32.totalorder %s22, 0
      %s749 = scalar_select %p748, %s22, 0
      %s750 = sadd.s32 %s749, %s747
      %s751 = scalar_lea.vmem %s4, %s750
      %p752 = scmp.lt.s32.totalorder %s21, 1
      %s753 = scalar_select %p752, %s21, 1
      %p754 = scmp.lt.s32.totalorder %s22, 0
      %s755 = scalar_select %p754, %s22, 0
      %s756 = sadd.s32 %s755, %s753
      %s757 = scalar_lea.vmem %s5, %s756
      // Predicated region
      $region33: #{residual_block.8} parent=31 // pred_check
        %p758 = pneg %p117
      $region34: #{residual_block.8} parent=31 // pred_check_branch
        %760 = sbr.rel (%p758) target = $region36
      $region35: #{residual_block.8} parent=31 // pred_region
        %s761 = smul.u32 32, %s22
      $region36: #{residual_block.8} parent=31 // pred_fallthru
        _
      // Predicated region
      $region37: #{residual_block.8} parent=31 // pred_check
        %p762 = pneg %p145
      $region38: #{residual_block.8} parent=31 // pred_check_branch
        %764 = sbr.rel (%p762) target = $region40
      $region39: #{residual_block.8} parent=31 // pred_region
        _
      $region40: #{residual_block.8} parent=31 // pred_fallthru
        _
      // Predicated region
      $region41: #{residual_block.8} parent=31 // pred_check
        %p765 = pneg %p173
      $region42: #{residual_block.8} parent=31 // pred_check_branch
        %767 = sbr.rel (%p765) target = $region44
      $region43: #{residual_block.8} parent=31 // pred_region
        _
      $region44: #{residual_block.8} parent=31 // pred_fallthru
        _
    $region32: #{residual_block.8} parent=5 // pred_fallthru
      _
    %p768 = scmp.le.s32.totalorder 2, %s12
    // Predicated region
    $region45: #{residual_block.8} parent=5 // pred_check
      %p769 = pneg %p768
    $region46: #{residual_block.8} parent=5 // pred_check_branch
      %771 = sbr.rel (%p769) target = $region48
    $region47: #{residual_block.8} parent=5 // pred_region
      %s772 = ssub.s32 %s12, 2
      // Predicated region
      $region49: #{residual_block.8} parent=47 // pred_check
        %p773 = pneg %p123
      $region50: #{residual_block.8} parent=47 // pred_check_branch
        %775 = sbr.rel (%p773) target = $region52
      $region51: #{residual_block.8} parent=47 // pred_region
        %s776 = smul.u32 32, %s24
        %p777 = scmp.lt.s32.totalorder %s23, 1
        %s778 = scalar_select %p777, %s23, 1
        %p779 = scmp.lt.s32.totalorder %s776, 31
        %s780 = scalar_select %p779, %s776, 31
        %s781 = smul.addr %s778, 32
        %s782 = sadd.s32 %s780, %s781
        %s783 = smul.addr %s782, 8
        %s784 = scalar_lea.vmem %s3, %s783
      $region52: #{residual_block.8} parent=47 // pred_fallthru
        _
      // Predicated region
      $region53: #{residual_block.8} parent=47 // pred_check
        %p785 = pneg %p151
      $region54: #{residual_block.8} parent=47 // pred_check_branch
        %787 = sbr.rel (%p785) target = $region56
      $region55: #{residual_block.8} parent=47 // pred_region
        %p788 = scmp.lt.s32.totalorder %s23, 1
        %s789 = scalar_select %p788, %s23, 1
        %p790 = scmp.lt.s32.totalorder %s24, 0
        %s791 = scalar_select %p790, %s24, 0
        %s792 = sadd.s32 %s791, %s789
        %s793 = scalar_lea.vmem %s4, %s792
      $region56: #{residual_block.8} parent=47 // pred_fallthru
        _
      // Predicated region
      $region57: #{residual_block.8} parent=47 // pred_check
        %p794 = pneg %p179
      $region58: #{residual_block.8} parent=47 // pred_check_branch
        %796 = sbr.rel (%p794) target = $region60
      $region59: #{residual_block.8} parent=47 // pred_region
        %p797 = scmp.lt.s32.totalorder %s23, 1
        %s798 = scalar_select %p797, %s23, 1
        %p799 = scmp.lt.s32.totalorder %s24, 0
        %s800 = scalar_select %p799, %s24, 0
        %s801 = sadd.s32 %s800, %s798
        %s802 = scalar_lea.vmem %s5, %s801
      $region60: #{residual_block.8} parent=47 // pred_fallthru
        _
    $region48: #{residual_block.8} parent=5 // pred_fallthru
      _
  $region6: #{residual_block.8} parent=0 // loop_footer
    %s16 = sadd.s32 1, %s12
  $region7: #{residual_block.8} parent=0 // loop_footer_branch
    %11 = sbr.rel target = $region3
  $region8: #{residual_block.8} parent=0 // loop_exit
    _

// kernel: residual_block.5
$region0: #{residual_block.5}
  #allocation0 [shape = 'u32[]', space=smem, size = 0x4, offset = 0x4, fixed_abs, tag = 'smem constant byte address 0x4 - core index']
  #allocation1 [shape = 'u32[72,128]{1,0:T(1,128)}', space=vmem, size = 0x9000, scoped, tag = 'internal scratch']
  #allocation2 [shape = 'f32[256,72]{1,0:T(8,128)}', space=vmem, size = 0x20000, scoped, tag = 'scratch operand']
  #allocation3 [shape = 'f32[18,18,8]{2,1,0:T(8,128)}', space=vmem, size = 0x36000, scoped, tag = 'scratch operand']
  %s0 = inlined_call_operand.vmem [shape: f32[2,16,16,8], index: 0, kind: input, shape index: {}]
  %s1 = inlined_call_operand.vmem [shape: f32[72,16], index: 1, kind: input, shape index: {}]
  %s2 = inlined_call_operand.vmem [shape: f32[1,16], index: 2, kind: input, shape index: {}]
  %s3 = inlined_call_operand.vmem [shape: f32[2,256,16], index: 3, kind: output, shape index: {0}]
  %s4 = inlined_call_operand.vmem [shape: f32[2,1,1,16], index: 4, kind: output, shape index: {1}]
  %s5 = inlined_call_operand.vmem [shape: f32[2,1,1,16], index: 5, kind: output, shape index: {2}]
  %6 = xla_tuple %s3, %s4, %s5
  %s7 = sld [smem:[#allocation0]]
  $region61: #{residual_block.5} parent=0
    _
  %s9 = ssub.s32 1, %s7
  %s10 = scalar_select 0, %s9, %s7
  loop: start=0, step=1, limit=4
  $region2: #{residual_block.5} parent=0 // loop_pre_header
    _
  $region3: #{residual_block.5} parent=0 // loop_header
    %s12 = sphi 0, %s16
    %p13 = scmp.ge.s32.totalorder %s12, 4
    %s19 = sphi 0, %s31
    %s20 = sphi 0, %s27
    %s21 = sphi 0, %s19
    %s22 = sphi 0, %s20
    %s23 = sphi 0, %s21
    %s24 = sphi 0, %s22
    %s34 = sphi 0, %s36
    %s37 = sphi 0, %s34
    %s38 = sphi 0, %s37
    %s54 = sphi 0, %s38
    %s58 = sphi 0, %s58
    %s60 = sphi 0, %s58
    %s61 = sphi 0, %s60
    %s75 = sphi 0, %s61
    %s79 = sphi 0, %s79
    %s81 = sphi 0, %s79
    %s82 = sphi 0, %s81
    %s96 = sphi 0, %s82
    %s104 = sphi 0, %s106
    %s107 = sphi 0, %s104
    %s108 = sphi 0, %s107
    %s124 = sphi 0, %s108
    %s132 = sphi 0, %s134
    %s135 = sphi 0, %s132
    %s136 = sphi 0, %s135
    %s152 = sphi 0, %s136
    %s160 = sphi 0, %s162
    %s163 = sphi 0, %s160
    %s164 = sphi 0, %s163
    %s180 = sphi 0, %s164
  $region4: #{residual_block.5} parent=0 // loop_header_branch
    %15 = sbr.rel (%p13) target = $region8
  $region5: #{residual_block.5} parent=0 // loop_body
    %s17 = ssub.s32 %s12, 1
    %s18 = ssub.s32 %s12, 2
    %s25 = sadd.s32 1, %s20
    %p26 = scmp.ge.s32.totalorder %s25, 1
    %s27 = scalar_select %p26, 0, %s25
    %s28 = sadd.s32 1, %s19
    %s29 = scalar_select %p26, %s28, %s19
    %p30 = scmp.ge.s32.totalorder %s29, 2
    %s31 = scalar_select %p30, 0, %s29
    %s32 = ssub.s32 %s19, %s31
    %p33 = scmp.eq.s32.totalorder %s32, 0
    %s35 = sadd.s32 %s34, 1
    %s36 = scalar_select %p33, %s34, %s35
    %p39 = pneg %p33
    %p40 = scmp.eq.s32.totalorder %s12, 1
    %p41 = por %p39, %p40
    %p42 = scmp.ne.s32.totalorder %s34, %s37
    %p43 = scmp.eq.s32.totalorder %s12, 0
    %p44 = por %p42, %p43
    %p45 = scmp.ne.s32.totalorder %s34, %s37
    %p46 = scmp.eq.s32.totalorder %s17, 1
    %p47 = por %p45, %p46
    %p48 = scmp.ne.s32.totalorder %s37, %s38
    %p49 = scmp.eq.s32.totalorder %s17, 0
    %p50 = por %p48, %p49
    %p51 = scmp.ne.s32.totalorder %s37, %s38
    %p52 = scmp.eq.s32.totalorder %s18, 1
    %p53 = por %p51, %p52
    %p55 = scmp.ne.s32.totalorder %s38, %s54
    %p56 = scmp.eq.s32.totalorder %s18, 0
    %p57 = por %p55, %p56
    %s59 = sadd.s32 %s58, 1
    %p62 = scmp.eq.s32.totalorder %s12, 1
    %p63 = scmp.ne.s32.totalorder %s58, %s60
    %p64 = scmp.eq.s32.totalorder %s12, 0
    %p65 = por %p63, %p64
    %p66 = scmp.ne.s32.totalorder %s58, %s60
    %p67 = scmp.eq.s32.totalorder %s17, 1
    %p68 = por %p66, %p67
    %p69 = scmp.ne.s32.totalorder %s60, %s61
    %p70 = scmp.eq.s32.totalorder %s17, 0
    %p71 = por %p69, %p70
    %p72 = scmp.ne.s32.totalorder %s60, %s61
    %p73 = scmp.eq.s32.totalorder %s18, 1
    %p74 = por %p72, %p73
    %p76 = scmp.ne.s32.totalorder %s61, %s75
    %p77 = scmp.eq.s32.totalorder %s18, 0
    %p78 = por %p76, %p77
    %s80 = sadd.s32 %s79, 1
    %p83 = scmp.eq.s32.totalorder %s12, 1
    %p84 = scmp.ne.s32.totalorder %s79, %s81
    %p85 = scmp.eq.s32.totalorder %s12, 0
    %p86 = por %p84, %p85
    %p87 = scmp.ne.s32.totalorder %s79, %s81
    %p88 = scmp.eq.s32.totalorder %s17, 1
    %p89 = por %p87, %p88
    %p90 = scmp.ne.s32.totalorder %s81, %s82
    %p91 = scmp.eq.s32.totalorder %s17, 0
    %p92 = por %p90, %p91
    %p93 = scmp.ne.s32.totalorder %s81, %s82
    %p94 = scmp.eq.s32.totalorder %s18, 1
    %p95 = por %p93, %p94
    %p97 = scmp.ne.s32.totalorder %s82, %s96
    %p98 = scmp.eq.s32.totalorder %s18, 0
    %p99 = por %p97, %p98
    %s100 = ssub.s32 %s19, %s31
    %s101 = ssub.s32 %s20, %s27
    %s102 = sor.u32 %s100, %s101
    %p103 = scmp.eq.s32.totalorder %s102, 0
    %s105 = sadd.s32 %s104, 1
    %s106 = scalar_select %p103, %s104, %s105
    %p109 = pneg %p103
    %p110 = scmp.eq.s32.totalorder %s12, 1
    %p111 = por %p109, %p110
    %p112 = scmp.ne.s32.totalorder %s104, %s107
    %p113 = scmp.eq.s32.totalorder %s12, 0
    %p114 = por %p112, %p113
    %p115 = scmp.ne.s32.totalorder %s104, %s107
    %p116 = scmp.eq.s32.totalorder %s17, 1
    %p117 = por %p115, %p116
    %p118 = scmp.ne.s32.totalorder %s107, %s108
    %p119 = scmp.eq.s32.totalorder %s17, 0
    %p120 = por %p118, %p119
    %p121 = scmp.ne.s32.totalorder %s107, %s108
    %p122 = scmp.eq.s32.totalorder %s18, 1
    %p123 = por %p121, %p122
    %p125 = scmp.ne.s32.totalorder %s108, %s124
    %p126 = scmp.eq.s32.totalorder %s18, 0
    %p127 = por %p125, %p126
    %s128 = ssub.s32 %s19, %s31
    %s129 = ssub.s32 %s20, %s27
    %s130 = sor.u32 %s128, %s129
    %p131 = scmp.eq.s32.totalorder %s130, 0
    %s133 = sadd.s32 %s132, 1
    %s134 = scalar_select %p131, %s132, %s133
    %p137 = pneg %p131
    %p138 = scmp.eq.s32.totalorder %s12, 1
    %p139 = por %p137, %p138
    %p140 = scmp.ne.s32.totalorder %s132, %s135
    %p141 = scmp.eq.s32.totalorder %s12, 0
    %p142 = por %p140, %p141
    %p143 = scmp.ne.s32.totalorder %s132, %s135
    %p144 = scmp.eq.s32.totalorder %s17, 1
    %p145 = por %p143, %p144
    %p146 = scmp.ne.s32.totalorder %s135, %s136
    %p147 = scmp.eq.s32.totalorder %s17, 0
    %p148 = por %p146, %p147
    %p149 = scmp.ne.s32.totalorder %s135, %s136
    %p150 = scmp.eq.s32.totalorder %s18, 1
    %p151 = por %p149, %p150
    %p153 = scmp.ne.s32.totalorder %s136, %s152
    %p154 = scmp.eq.s32.totalorder %s18, 0
    %p155 = por %p153, %p154
    %s156 = ssub.s32 %s19, %s31
    %s157 = ssub.s32 %s20, %s27
    %s158 = sor.u32 %s156, %s157
    %p159 = scmp.eq.s32.totalorder %s158, 0
    %s161 = sadd.s32 %s160, 1
    %s162 = scalar_select %p159, %s160, %s161
    %p165 = pneg %p159
    %p166 = scmp.eq.s32.totalorder %s12, 1
    %p167 = por %p165, %p166
    %p168 = scmp.ne.s32.totalorder %s160, %s163
    %p169 = scmp.eq.s32.totalorder %s12, 0
    %p170 = por %p168, %p169
    %p171 = scmp.ne.s32.totalorder %s160, %s163
    %p172 = scmp.eq.s32.totalorder %s17, 1
    %p173 = por %p171, %p172
    %p174 = scmp.ne.s32.totalorder %s163, %s164
    %p175 = scmp.eq.s32.totalorder %s17, 0
    %p176 = por %p174, %p175
    %p177 = scmp.ne.s32.totalorder %s163, %s164
    %p178 = scmp.eq.s32.totalorder %s18, 1
    %p179 = por %p177, %p178
    %p181 = scmp.ne.s32.totalorder %s164, %s180
    %p182 = scmp.eq.s32.totalorder %s18, 0
    %p183 = por %p181, %p182
    %p184 = scmp.le.s32.totalorder 1, %s12
    %p185 = scmp.lt.s32.totalorder %s12, 3
    %p186 = pnand %p184, %p185
    %p187 = pneg %p186
    // Predicated region
    $region9: #{residual_block.5} parent=5 // pred_check
      _
    $region10: #{residual_block.5} parent=5 // pred_check_branch
      %189 = sbr.rel (%p186) target = $region12
    $region11: #{residual_block.5} parent=5 // pred_region
      %s190 = ssub.s32 %s12, 1
      // Predicated region
      $region13: #{residual_block.5} parent=11 // pred_check
        %p191 = pneg %p71
      $region14: #{residual_block.5} parent=11 // pred_check_branch
        %193 = sbr.rel (%p191) target = $region16
      $region15: #{residual_block.5} parent=11 // pred_region
        _
      $region16: #{residual_block.5} parent=11 // pred_fallthru
        _
      // Predicated region
      $region17: #{residual_block.5} parent=11 // pred_check
        %p194 = pneg %p92
      $region18: #{residual_block.5} parent=11 // pred_check_branch
        %196 = sbr.rel (%p194) target = $region20
      $region19: #{residual_block.5} parent=11 // pred_region
        _
      $region20: #{residual_block.5} parent=11 // pred_fallthru
        _
    $region12: #{residual_block.5} parent=5 // pred_fallthru
      _
    %p197 = scmp.lt.s32.totalorder %s12, 2
    // Predicated region
    $region21: #{residual_block.5} parent=5 // pred_check
      %p198 = pneg %p197
    $region22: #{residual_block.5} parent=5 // pred_check_branch
      %200 = sbr.rel (%p198) target = $region24
    $region23: #{residual_block.5} parent=5 // pred_region
      // Predicated region
      $region25: #{residual_block.5} parent=23 // pred_check
        %p201 = pneg %p44
      $region26: #{residual_block.5} parent=23 // pred_check_branch
        %203 = sbr.rel (%p201) target = $region28
      $region27: #{residual_block.5} parent=23 // pred_region
        %p204 = scmp.lt.s32.totalorder %s19, 1
        %s205 = scalar_select %p204, %s19, 1
        %s206 = smul.addr %s205, 32
        %s207 = smul.addr %s206, 8
        %s208 = scalar_lea.vmem %s0, %s207
      $region28: #{residual_block.5} parent=23 // pred_fallthru
        _
    $region24: #{residual_block.5} parent=5 // pred_fallthru
      _
    %p209 = scmp.le.s32.totalorder 1, %s12
    %p210 = scmp.lt.s32.totalorder %s12, 3
    %p211 = pnand %p209, %p210
    %p212 = pneg %p211
    // Predicated region
    $region29: #{residual_block.5} parent=5 // pred_check
      _
    $region30: #{residual_block.5} parent=5 // pred_check_branch
      %214 = sbr.rel (%p211) target = $region32
    $region31: #{residual_block.5} parent=5 // pred_region
      %s215 = ssub.s32 %s12, 1
      %p216 = scmp.lt.s32.totalorder %s21, 1
      %s217 = scalar_select %p216, %s21, 1
      %s218 = smul.addr %s217, 32
      %s219 = smul.addr %s218, 8
      %s220 = scalar_lea.vmem %s0, %s219
      %p221 = pneg %p50
      %p222 = pneg %p47
      %p223 = pneg %p71
      %p224 = pneg %p68
      %p225 = pneg %p92
      %p226 = pneg %p89
      %p227 = pneg %p120
      %p228 = pneg %p117
      %s229 = smul.u32 32, %s22
      %p230 = scmp.lt.s32.totalorder %s21, 1
      %s231 = scalar_select %p230, %s21, 1
      %p232 = scmp.lt.s32.totalorder %s229, 31
      %s233 = scalar_select %p232, %s229, 31
      %s234 = smul.addr %s231, 32
      %s235 = sadd.s32 %s233, %s234
      %s236 = smul.addr %s235, 8
      %s237 = scalar_lea.vmem %s3, %s236
      %p238 = pneg %p148
      %p239 = pneg %p145
      %p240 = scmp.lt.s32.totalorder %s21, 1
      %s241 = scalar_select %p240, %s21, 1
      %p242 = scmp.lt.s32.totalorder %s22, 0
      %s243 = scalar_select %p242, %s22, 0
      %s244 = sadd.s32 %s243, %s241
      %s245 = scalar_lea.vmem %s4, %s244
      %p246 = pneg %p176
      %p247 = pneg %p173
      %p248 = scmp.lt.s32.totalorder %s21, 1
      %s249 = scalar_select %p248, %s21, 1
      %p250 = scmp.lt.s32.totalorder %s22, 0
      %s251 = scalar_select %p250, %s22, 0
      %s252 = sadd.s32 %s251, %s249
      %s253 = scalar_lea.vmem %s5, %s252
      %p254 = scmp.lt.s32.totalorder %s21, 1
      %s255 = scalar_select %p254, %s21, 1
      %s256 = smul.addr %s255, 32
      %s257 = smul.addr %s256, 8
      %s258 = scalar_lea.vmem %s0, %s257
      %s259 = smul.u32 32, %s22
      %p260 = scmp.lt.s32.totalorder %s21, 1
      %s261 = scalar_select %p260, %s21, 1
      %p262 = scmp.lt.s32.totalorder %s259, 31
      %s263 = scalar_select %p262, %s259, 31
      %s264 = smul.addr %s261, 32
      %s265 = sadd.s32 %s263, %s264
      %s266 = smul.addr %s265, 8
      %s267 = scalar_lea.vmem %s3, %s266
      %s268 = smul.u32 32, %s22
      %p269 = scmp.lt.s32.totalorder %s21, 1
      %s270 = scalar_select %p269, %s21, 1
      %p271 = scmp.lt.s32.totalorder %s22, 0
      %s272 = scalar_select %p271, %s22, 0
      %s273 = sadd.s32 %s272, %s270
      %s274 = scalar_lea.vmem %s4, %s273
      %p275 = scmp.lt.s32.totalorder %s21, 1
      %s276 = scalar_select %p275, %s21, 1
      %p277 = scmp.lt.s32.totalorder %s22, 0
      %s278 = scalar_select %p277, %s22, 0
      %s279 = sadd.s32 %s278, %s276
      %s280 = scalar_lea.vmem %s5, %s279
      %vm281 = vcmask 64512
      %282 = vst.msk [vmem:[#allocation3] sm:$0xff] %vm281, 0.0
      %283 = vst.msk [vmem:[#allocation3 + $0x8] sm:$0xff] %vm281, 0.0
      %vm284 = vcmask 58368
      %285 = vst.msk [vmem:[#allocation3 + $0x10] sm:$0x3] %vm284, 0.0
      %286 = vst.msk [vmem:[#allocation3 + $0x18] sm:$0xff] %vm281, 0.0
      %287 = vst.msk [vmem:[#allocation3 + $0x20] sm:$0xff] %vm281, 0.0
      %288 = vst.msk [vmem:[#allocation3 + $0x28] sm:$0x3] %vm284, 0.0
      %289 = vst.msk [vmem:[#allocation3 + $0x30] sm:$0xff] %vm281, 0.0
      %290 = vst.msk [vmem:[#allocation3 + $0x38] sm:$0xff] %vm281, 0.0
      %291 = vst.msk [vmem:[#allocation3 + $0x40] sm:$0x3] %vm284, 0.0
      %292 = vst.msk [vmem:[#allocation3 + $0x48] sm:$0xff] %vm281, 0.0
      %293 = vst.msk [vmem:[#allocation3 + $0x50] sm:$0xff] %vm281, 0.0
      %294 = vst.msk [vmem:[#allocation3 + $0x58] sm:$0x3] %vm284, 0.0
      %295 = vst.msk [vmem:[#allocation3 + $0x60] sm:$0xff] %vm281, 0.0
      %296 = vst.msk [vmem:[#allocation3 + $0x68] sm:$0xff] %vm281, 0.0
      %297 = vst.msk [vmem:[#allocation3 + $0x70] sm:$0x3] %vm284, 0.0
      %298 = vst.msk [vmem:[#allocation3 + $0x78] sm:$0xff] %vm281, 0.0
      %299 = vst.msk [vmem:[#allocation3 + $0x80] sm:$0xff] %vm281, 0.0
      %300 = vst.msk [vmem:[#allocation3 + $0x88] sm:$0x3] %vm284, 0.0
      %301 = vst.msk [vmem:[#allocation3 + $0x90] sm:$0xff] %vm281, 0.0
      %302 = vst.msk [vmem:[#allocation3 + $0x98] sm:$0xff] %vm281, 0.0
      %303 = vst.msk [vmem:[#allocation3 + $0xa0] sm:$0x3] %vm284, 0.0
      %304 = vst.msk [vmem:[#allocation3 + $0xa8] sm:$0xff] %vm281, 0.0
      %305 = vst.msk [vmem:[#allocation3 + $0xb0] sm:$0xff] %vm281, 0.0
      %306 = vst.msk [vmem:[#allocation3 + $0xb8] sm:$0x3] %vm284, 0.0
      %307 = vst.msk [vmem:[#allocation3 + $0xc0] sm:$0xff] %vm281, 0.0
      %308 = vst.msk [vmem:[#allocation3 + $0xc8] sm:$0xff] %vm281, 0.0
      %309 = vst.msk [vmem:[#allocation3 + $0xd0] sm:$0x3] %vm284, 0.0
      %310 = vst.msk [vmem:[#allocation3 + $0xd8] sm:$0xff] %vm281, 0.0
      %311 = vst.msk [vmem:[#allocation3 + $0xe0] sm:$0xff] %vm281, 0.0
      %312 = vst.msk [vmem:[#allocation3 + $0xe8] sm:$0x3] %vm284, 0.0
      %313 = vst.msk [vmem:[#allocation3 + $0xf0] sm:$0xff] %vm281, 0.0
      %314 = vst.msk [vmem:[#allocation3 + $0xf8] sm:$0xff] %vm281, 0.0
      %315 = vst.msk [vmem:[#allocation3 + $0x100] sm:$0x3] %vm284, 0.0
      %316 = vst.msk [vmem:[#allocation3 + $0x108] sm:$0xff] %vm281, 0.0
      %317 = vst.msk [vmem:[#allocation3 + $0x110] sm:$0xff] %vm281, 0.0
      %318 = vst.msk [vmem:[#allocation3 + $0x118] sm:$0x3] %vm284, 0.0
      %319 = vst.msk [vmem:[#allocation3 + $0x120] sm:$0xff] %vm281, 0.0
      %320 = vst.msk [vmem:[#allocation3 + $0x128] sm:$0xff] %vm281, 0.0
      %321 = vst.msk [vmem:[#allocation3 + $0x130] sm:$0x3] %vm284, 0.0
      %322 = vst.msk [vmem:[#allocation3 + $0x138] sm:$0xff] %vm281, 0.0
      %323 = vst.msk [vmem:[#allocation3 + $0x140] sm:$0xff] %vm281, 0.0
      %324 = vst.msk [vmem:[#allocation3 + $0x148] sm:$0x3] %vm284, 0.0
      %325 = vst.msk [vmem:[#allocation3 + $0x150] sm:$0xff] %vm281, 0.0
      %326 = vst.msk [vmem:[#allocation3 + $0x158] sm:$0xff] %vm281, 0.0
      %327 = vst.msk [vmem:[#allocation3 + $0x160] sm:$0x3] %vm284, 0.0
      %328 = vst.msk [vmem:[#allocation3 + $0x168] sm:$0xff] %vm281, 0.0
      %329 = vst.msk [vmem:[#allocation3 + $0x170] sm:$0xff] %vm281, 0.0
      %330 = vst.msk [vmem:[#allocation3 + $0x178] sm:$0x3] %vm284, 0.0
      %331 = vst.msk [vmem:[#allocation3 + $0x180] sm:$0xff] %vm281, 0.0
      %332 = vst.msk [vmem:[#allocation3 + $0x188] sm:$0xff] %vm281, 0.0
      %333 = vst.msk [vmem:[#allocation3 + $0x190] sm:$0x3] %vm284, 0.0
      %334 = vst.msk [vmem:[#allocation3 + $0x198] sm:$0xff] %vm281, 0.0
      %335 = vst.msk [vmem:[#allocation3 + $0x1a0] sm:$0xff] %vm281, 0.0
      %336 = vst.msk [vmem:[#allocation3 + $0x1a8] sm:$0x3] %vm284, 0.0
      %v337 = vld [vmem:[%s258] sm:$0xff]
      %v338 = vld [vmem:[%s258 + $0x8] sm:$0xff]
      %v339 = vld [vmem:[%s258 + $0x10] sm:$0xff]
      %v340 = vld [vmem:[%s258 + $0x18] sm:$0xff]
      %v341 = vld [vmem:[%s258 + $0x20] sm:$0xff]
      %v342 = vld [vmem:[%s258 + $0x28] sm:$0xff]
      %v343 = vld [vmem:[%s258 + $0x30] sm:$0xff]
      %v344 = vld [vmem:[%s258 + $0x38] sm:$0xff]
      %v345 = vld [vmem:[%s258 + $0x40] sm:$0xff]
      %v346 = vld [vmem:[%s258 + $0x48] sm:$0xff]
      %v347 = vld [vmem:[%s258 + $0x50] sm:$0xff]
      %v348 = vld [vmem:[%s258 + $0x58] sm:$0xff]
      %v349 = vld [vmem:[%s258 + $0x60] sm:$0xff]
      %v350 = vld [vmem:[%s258 + $0x68] sm:$0xff]
      %v351 = vld [vmem:[%s258 + $0x70] sm:$0xff]
      %v352 = vld [vmem:[%s258 + $0x78] sm:$0xff]
      %v353 = vld [vmem:[%s258 + $0x80] sm:$0xff]
      %v354 = vld [vmem:[%s258 + $0x88] sm:$0xff]
      %v355 = vld [vmem:[%s258 + $0x90] sm:$0xff]
      %v356 = vld [vmem:[%s258 + $0x98] sm:$0xff]
      %v357 = vld [vmem:[%s258 + $0xa0] sm:$0xff]
      %v358 = vld [vmem:[%s258 + $0xa8] sm:$0xff]
      %v359 = vld [vmem:[%s258 + $0xb0] sm:$0xff]
      %v360 = vld [vmem:[%s258 + $0xb8] sm:$0xff]
      %v361 = vld [vmem:[%s258 + $0xc0] sm:$0xff]
      %v362 = vld [vmem:[%s258 + $0xc8] sm:$0xff]
      %v363 = vld [vmem:[%s258 + $0xd0] sm:$0xff]
      %v364 = vld [vmem:[%s258 + $0xd8] sm:$0xff]
      %v365 = vld [vmem:[%s258 + $0xe0] sm:$0xff]
      %v366 = vld [vmem:[%s258 + $0xe8] sm:$0xff]
      %v367 = vld [vmem:[%s258 + $0xf0] sm:$0xff]
      %v368 = vld [vmem:[%s258 + $0xf8] sm:$0xff]
      %s369 = scalar_lea.vmem [#allocation3], 24
      %370 = vst.msk [vmem:[%s369 + $0x1] sm:$0xff] %vm281, %v337
      %371 = vst.msk [vmem:[%s369 + $0x9] sm:$0xff] %vm281, %v338
      %372 = vst.msk [vmem:[%s369 + $0x19] sm:$0xff] %vm281, %v339
      %373 = vst.msk [vmem:[%s369 + $0x21] sm:$0xff] %vm281, %v340
      %374 = vst.msk [vmem:[%s369 + $0x31] sm:$0xff] %vm281, %v341
      %375 = vst.msk [vmem:[%s369 + $0x39] sm:$0xff] %vm281, %v342
      %376 = vst.msk [vmem:[%s369 + $0x49] sm:$0xff] %vm281, %v343
      %377 = vst.msk [vmem:[%s369 + $0x51] sm:$0xff] %vm281, %v344
      %378 = vst.msk [vmem:[%s369 + $0x61] sm:$0xff] %vm281, %v345
      %379 = vst.msk [vmem:[%s369 + $0x69] sm:$0xff] %vm281, %v346
      %380 = vst.msk [vmem:[%s369 + $0x79] sm:$0xff] %vm281, %v347
      %381 = vst.msk [vmem:[%s369 + $0x81] sm:$0xff] %vm281, %v348
      %382 = vst.msk [vmem:[%s369 + $0x91] sm:$0xff] %vm281, %v349
      %383 = vst.msk [vmem:[%s369 + $0x99] sm:$0xff] %vm281, %v350
      %384 = vst.msk [vmem:[%s369 + $0xa9] sm:$0xff] %vm281, %v351
      %385 = vst.msk [vmem:[%s369 + $0xb1] sm:$0xff] %vm281, %v352
      %386 = vst.msk [vmem:[%s369 + $0xc1] sm:$0xff] %vm281, %v353
      %387 = vst.msk [vmem:[%s369 + $0xc9] sm:$0xff] %vm281, %v354
      %388 = vst.msk [vmem:[%s369 + $0xd9] sm:$0xff] %vm281, %v355
      %389 = vst.msk [vmem:[%s369 + $0xe1] sm:$0xff] %vm281, %v356
      %390 = vst.msk [vmem:[%s369 + $0xf1] sm:$0xff] %vm281, %v357
      %391 = vst.msk [vmem:[%s369 + $0xf9] sm:$0xff] %vm281, %v358
      %392 = vst.msk [vmem:[%s369 + $0x109] sm:$0xff] %vm281, %v359
      %393 = vst.msk [vmem:[%s369 + $0x111] sm:$0xff] %vm281, %v360
      %394 = vst.msk [vmem:[%s369 + $0x121] sm:$0xff] %vm281, %v361
      %395 = vst.msk [vmem:[%s369 + $0x129] sm:$0xff] %vm281, %v362
      %396 = vst.msk [vmem:[%s369 + $0x139] sm:$0xff] %vm281, %v363
      %397 = vst.msk [vmem:[%s369 + $0x141] sm:$0xff] %vm281, %v364
      %398 = vst.msk [vmem:[%s369 + $0x151] sm:$0xff] %vm281, %v365
      %399 = vst.msk [vmem:[%s369 + $0x159] sm:$0xff] %vm281, %v366
      %400 = vst.msk [vmem:[%s369 + $0x169] sm:$0xff] %vm281, %v367
      %401 = vst.msk [vmem:[%s369 + $0x171] sm:$0xff] %vm281, %v368
      %s402 = smul.u32 %s22, 16
      %s403 = smul.u32 %s402, 24
      %s404 = scalar_lea.vmem [#allocation3], %s403
      %v405 = vld [vmem:[%s404] sm:$0xff]
      %v406 = vld [vmem:[%s404 + $0x8] sm:$0xff]
      %v407 = vld [vmem:[%s404 + $0x18] sm:$0xff]
      %v408 = vld [vmem:[%s404 + $0x20] sm:$0xff]
      %v409 = vld [vmem:[%s404 + $0x30] sm:$0xff]
      %v410 = vld [vmem:[%s404 + $0x38] sm:$0xff]
      %v411 = vld [vmem:[%s404 + $0x48] sm:$0xff]
      %v412 = vld [vmem:[%s404 + $0x50] sm:$0xff]
      %v413 = vld [vmem:[%s404 + $0x60] sm:$0xff]
      %v414 = vld [vmem:[%s404 + $0x68] sm:$0xff]
      %v415 = vld [vmem:[%s404 + $0x78] sm:$0xff]
      %v416 = vld [vmem:[%s404 + $0x80] sm:$0xff]
      %v417 = vld [vmem:[%s404 + $0x90] sm:$0xff]
      %v418 = vld [vmem:[%s404 + $0x98] sm:$0xff]
      %v419 = vld [vmem:[%s404 + $0xa8] sm:$0xff]
      %v420 = vld [vmem:[%s404 + $0xb0] sm:$0xff]
      %v421 = vld [vmem:[%s404 + $0xc0] sm:$0xff]
      %v422 = vld [vmem:[%s404 + $0xc8] sm:$0xff]
      %v423 = vld [vmem:[%s404 + $0xd8] sm:$0xff]
      %v424 = vld [vmem:[%s404 + $0xe0] sm:$0xff]
      %v425 = vld [vmem:[%s404 + $0xf0] sm:$0xff]
      %v426 = vld [vmem:[%s404 + $0xf8] sm:$0xff]
      %v427 = vld [vmem:[%s404 + $0x108] sm:$0xff]
      %v428 = vld [vmem:[%s404 + $0x110] sm:$0xff]
      %v429 = vld [vmem:[%s404 + $0x120] sm:$0xff]
      %v430 = vld [vmem:[%s404 + $0x128] sm:$0xff]
      %v431 = vld [vmem:[%s404 + $0x138] sm:$0xff]
      %v432 = vld [vmem:[%s404 + $0x140] sm:$0xff]
      %v433 = vld [vmem:[%s404 + $0x150] sm:$0xff]
      %v434 = vld [vmem:[%s404 + $0x158] sm:$0xff]
      %v435 = vld [vmem:[%s404 + $0x168] sm:$0xff]
      %v436 = vld [vmem:[%s404 + $0x170] sm:$0xff]
      %437 = vst.msk [vmem:[#allocation2] sm:$0xff] %vm281, %v405
      %438 = vst.msk [vmem:[#allocation2 + $0x8] sm:$0xff] %vm281, %v406
      %439 = vst.msk [vmem:[#allocation2 + $0x10] sm:$0xff] %vm281, %v407
      %440 = vst.msk [vmem:[#allocation2 + $0x18] sm:$0xff] %vm281, %v408
      %441 = vst.msk [vmem:[#allocation2 + $0x20] sm:$0xff] %vm281, %v409
      %442 = vst.msk [vmem:[#allocation2 + $0x28] sm:$0xff] %vm281, %v410
      %443 = vst.msk [vmem:[#allocation2 + $0x30] sm:$0xff] %vm281, %v411
      %444 = vst.msk [vmem:[#allocation2 + $0x38] sm:$0xff] %vm281, %v412
      %445 = vst.msk [vmem:[#allocation2 + $0x40] sm:$0xff] %vm281, %v413
      %446 = vst.msk [vmem:[#allocation2 + $0x48] sm:$0xff] %vm281, %v414
      %447 = vst.msk [vmem:[#allocation2 + $0x50] sm:$0xff] %vm281, %v415
      %448 = vst.msk [vmem:[#allocation2 + $0x58] sm:$0xff] %vm281, %v416
      %449 = vst.msk [vmem:[#allocation2 + $0x60] sm:$0xff] %vm281, %v417
      %450 = vst.msk [vmem:[#allocation2 + $0x68] sm:$0xff] %vm281, %v418
      %451 = vst.msk [vmem:[#allocation2 + $0x70] sm:$0xff] %vm281, %v419
      %452 = vst.msk [vmem:[#allocation2 + $0x78] sm:$0xff] %vm281, %v420
      %453 = vst.msk [vmem:[#allocation2 + $0x80] sm:$0xff] %vm281, %v421
      %454 = vst.msk [vmem:[#allocation2 + $0x88] sm:$0xff] %vm281, %v422
      %455 = vst.msk [vmem:[#allocation2 + $0x90] sm:$0xff] %vm281, %v423
      %456 = vst.msk [vmem:[#allocation2 + $0x98] sm:$0xff] %vm281, %v424
      %457 = vst.msk [vmem:[#allocation2 + $0xa0] sm:$0xff] %vm281, %v425
      %458 = vst.msk [vmem:[#allocation2 + $0xa8] sm:$0xff] %vm281, %v426
      %459 = vst.msk [vmem:[#allocation2 + $0xb0] sm:$0xff] %vm281, %v427
      %460 = vst.msk [vmem:[#allocation2 + $0xb8] sm:$0xff] %vm281, %v428
      %461 = vst.msk [vmem:[#allocation2 + $0xc0] sm:$0xff] %vm281, %v429
      %462 = vst.msk [vmem:[#allocation2 + $0xc8] sm:$0xff] %vm281, %v430
      %463 = vst.msk [vmem:[#allocation2 + $0xd0] sm:$0xff] %vm281, %v431
      %464 = vst.msk [vmem:[#allocation2 + $0xd8] sm:$0xff] %vm281, %v432
      %465 = vst.msk [vmem:[#allocation2 + $0xe0] sm:$0xff] %vm281, %v433
      %466 = vst.msk [vmem:[#allocation2 + $0xe8] sm:$0xff] %vm281, %v434
      %467 = vst.msk [vmem:[#allocation2 + $0xf0] sm:$0xff] %vm281, %v435
      %468 = vst.msk [vmem:[#allocation2 + $0xf8] sm:$0xff] %vm281, %v436
      %v469 = vld [vmem:[%s404 + $0x1] sm:$0xff]
      %v470 = vld [vmem:[%s404 + $0x9] sm:$0xff]
      %v471 = vld [vmem:[%s404 + $0x19] sm:$0xff]
      %v472 = vld [vmem:[%s404 + $0x21] sm:$0xff]
      %v473 = vld [vmem:[%s404 + $0x31] sm:$0xff]
      %v474 = vld [vmem:[%s404 + $0x39] sm:$0xff]
      %v475 = vld [vmem:[%s404 + $0x49] sm:$0xff]
      %v476 = vld [vmem:[%s404 + $0x51] sm:$0xff]
      %v477 = vld [vmem:[%s404 + $0x61] sm:$0xff]
      %v478 = vld [vmem:[%s404 + $0x69] sm:$0xff]
      %v479 = vld [vmem:[%s404 + $0x79] sm:$0xff]
      %v480 = vld [vmem:[%s404 + $0x81] sm:$0xff]
      %v481 = vld [vmem:[%s404 + $0x91] sm:$0xff]
      %v482 = vld [vmem:[%s404 + $0x99] sm:$0xff]
      %v483 = vld [vmem:[%s404 + $0xa9] sm:$0xff]
      %v484 = vld [vmem:[%s404 + $0xb1] sm:$0xff]
      %v485 = vld [vmem:[%s404 + $0xc1] sm:$0xff]
      %v486 = vld [vmem:[%s404 + $0xc9] sm:$0xff]
      %v487 = vld [vmem:[%s404 + $0xd9] sm:$0xff]
      %v488 = vld [vmem:[%s404 + $0xe1] sm:$0xff]
      %v489 = vld [vmem:[%s404 + $0xf1] sm:$0xff]
      %v490 = vld [vmem:[%s404 + $0xf9] sm:$0xff]
      %v491 = vld [vmem:[%s404 + $0x109] sm:$0xff]
      %v492 = vld [vmem:[%s404 + $0x111] sm:$0xff]
      %v493 = vld [vmem:[%s404 + $0x121] sm:$0xff]
      %v494 = vld [vmem:[%s404 + $0x129] sm:$0xff]
      %v495 = vld [vmem:[%s404 + $0x139] sm:$0xff]
      %v496 = vld [vmem:[%s404 + $0x141] sm:$0xff]
      %v497 = vld [vmem:[%s404 + $0x151] sm:$0xff]
      %v498 = vld [vmem:[%s404 + $0x159] sm:$0xff]
      %v499 = vld [vmem:[%s404 + $0x169] sm:$0xff]
      %v500 = vld [vmem:[%s404 + $0x171] sm:$0xff]
      %533 = vrot.lane.b32.xlu0 %v469, 8
      %v534 = vpop.permute.xlu0 %533
      %535 = vrot.lane.b32.xlu0 %v470, 8
      %v536 = vpop.permute.xlu0 %535
      %537 = vrot.lane.b32.xlu0 %v471, 8
      %v538 = vpop.permute.xlu0 %537
      %539 = vrot.lane.b32.xlu0 %v472, 8
      %v540 = vpop.permute.xlu0 %539
      %541 = vrot.lane.b32.xlu0 %v473, 8
      %v542 = vpop.permute.xlu0 %541
      %543 = vrot.lane.b32.xlu0 %v474, 8
      %v544 = vpop.permute.xlu0 %543
      %545 = vrot.lane.b32.xlu0 %v475, 8
      %v546 = vpop.permute.xlu0 %545
      %547 = vrot.lane.b32.xlu0 %v476, 8
      %v548 = vpop.permute.xlu0 %547
      %549 = vrot.lane.b32.xlu0 %v477, 8
      %v550 = vpop.permute.xlu0 %549
      %551 = vrot.lane.b32.xlu0 %v478, 8
      %v552 = vpop.permute.xlu0 %551
      %553 = vrot.lane.b32.xlu0 %v479, 8
      %v554 = vpop.permute.xlu0 %553
      %555 = vrot.lane.b32.xlu0 %v480, 8
      %v556 = vpop.permute.xlu0 %555
      %557 = vrot.lane.b32.xlu0 %v481, 8
      %v558 = vpop.permute.xlu0 %557
      %559 = vrot.lane.b32.xlu0 %v482, 8
      %v560 = vpop.permute.xlu0 %559
      %561 = vrot.lane.b32.xlu0 %v483, 8
      %v562 = vpop.permute.xlu0 %561
      %563 = vrot.lane.b32.xlu0 %v484, 8
      %v564 = vpop.permute.xlu0 %563
      %565 = vrot.lane.b32.xlu0 %v485, 8
      %v566 = vpop.permute.xlu0 %565
      %567 = vrot.lane.b32.xlu0 %v486, 8
      %v568 = vpop.permute.xlu0 %567
      %569 = vrot.lane.b32.xlu0 %v487, 8
      %v570 = vpop.permute.xlu0 %569
      %571 = vrot.lane.b32.xlu0 %v488, 8
      %v572 = vpop.permute.xlu0 %571
      %573 = vrot.lane.b32.xlu0 %v489, 8
      %v574 = vpop.permute.xlu0 %573
      %575 = vrot.lane.b32.xlu0 %v490, 8
      %v576 = vpop.permute.xlu0 %575
      %577 = vrot.lane.b32.xlu0 %v491, 8
      %v578 = vpop.permute.xlu0 %577
      %579 = vrot.lane.b32.xlu0 %v492, 8
      %v580 = vpop.permute.xlu0 %579
      %581 = vrot.lane.b32.xlu0 %v493, 8
      %v582 = vpop.permute.xlu0 %581
      %583 = vrot.lane.b32.xlu0 %v494, 8
      %v584 = vpop.permute.xlu0 %583
      %585 = vrot.lane.b32.xlu0 %v495, 8
      %v586 = vpop.permute.xlu0 %585
      %587 = vrot.lane.b32.xlu0 %v496, 8
      %v588 = vpop.permute.xlu0 %587
      %589 = vrot.lane.b32.xlu0 %v497, 8
      %v590 = vpop.permute.xlu0 %589
      %591 = vrot.lane.b32.xlu0 %v498, 8
      %v592 = vpop.permute.xlu0 %591
      %593 = vrot.lane.b32.xlu0 %v499, 8
      %v594 = vpop.permute.xlu0 %593
      %595 = vrot.lane.b32.xlu0 %v500, 8
      %v596 = vpop.permute.xlu0 %595
      %vm629 = vcmask 130112
      %630 = vst.msk [vmem:[#allocation2] sm:$0xff] %vm629, %v534
      %631 = vst.msk [vmem:[#allocation2 + $0x8] sm:$0xff] %vm629, %v536
      %632 = vst.msk [vmem:[#allocation2 + $0x10] sm:$0xff] %vm629, %v538
      %633 = vst.msk [vmem:[#allocation2 + $0x18] sm:$0xff] %vm629, %v540
      %634 = vst.msk [vmem:[#allocation2 + $0x20] sm:$0xff] %vm629, %v542
      %635 = vst.msk [vmem:[#allocation2 + $0x28] sm:$0xff] %vm629, %v544
      %636 = vst.msk [vmem:[#allocation2 + $0x30] sm:$0xff] %vm629, %v546
      %637 = vst.msk [vmem:[#allocation2 + $0x38] sm:$0xff] %vm629, %v548
      %638 = vst.msk [vmem:[#allocation2 + $0x40] sm:$0xff] %vm629, %v550
      %639 = vst.msk [vmem:[#allocation2 + $0x48] sm:$0xff] %vm629, %v552
      %640 = vst.msk [vmem:[#allocation2 + $0x50] sm:$0xff] %vm629, %v554
      %641 = vst.msk [vmem:[#allocation2 + $0x58] sm:$0xff] %vm629, %v556
      %642 = vst.msk [vmem:[#allocation2 + $0x60] sm:$0xff] %vm629, %v558
      %643 = vst.msk [vmem:[#allocation2 + $0x68] sm:$0xff] %vm629, %v560
      %644 = vst.msk [vmem:[#allocation2 + $0x70] sm:$0xff] %vm629, %v562
      %645 = vst.msk [vmem:[#allocation2 + $0x78] sm:$0xff] %vm629, %v564
      %646 = vst.msk [vmem:[#allocation2 + $0x80] sm:$0xff] %vm629, %v566
      %647 = vst.msk [vmem:[#allocation2 + $0x88] sm:$0xff] %vm629, %v568
      %648 = vst.msk [vmem:[#allocation2 + $0x90] sm:$0xff] %vm629, %v570
      %649 = vst.msk [vmem:[#allocation2 + $0x98] sm:$0xff] %vm629, %v572
      %650 = vst.msk [vmem:[#allocation2 + $0xa0] sm:$0xff] %vm629, %v574
      %651 = vst.msk [vmem:[#allocation2 + $0xa8] sm:$0xff] %vm629, %v576
      %652 = vst.msk [vmem:[#allocation2 + $0xb0] sm:$0xff] %vm629, %v578
      %653 = vst.msk [vmem:[#allocation2 + $0xb8] sm:$0xff] %vm629, %v580
      %654 = vst.msk [vmem:[#allocation2 + $0xc0] sm:$0xff] %vm629, %v582
      %655 = vst.msk [vmem:[#allocation2 + $0xc8] sm:$0xff] %vm629, %v584
      %656 = vst.msk [vmem:[#allocation2 + $0xd0] sm:$0xff] %vm629, %v586
      %657 = vst.msk [vmem:[#allocation2 + $0xd8] sm:$0xff] %vm629, %v588
      %658 = vst.msk [vmem:[#allocation2 + $0xe0] sm:$0xff] %vm629, %v590
      %659 = vst.msk [vmem:[#allocation2 + $0xe8] sm:$0xff] %vm629, %v592
      %660 = vst.msk [vmem:[#allocation2 + $0xf0] sm:$0xff] %vm629, %v594
      %661 = vst.msk [vmem:[#allocation2 + $0xf8] sm:$0xff] %vm629, %v596
      %v662 = vld [vmem:[%s404 + $0x2] sm:$0xff]
      %v663 = vld [vmem:[%s404 + $0xa] sm:$0xff]
      %v664 = vld [vmem:[%s404 + $0x1a] sm:$0xff]
      %v665 = vld [vmem:[%s404 + $0x22] sm:$0xff]
      %v666 = vld [vmem:[%s404 + $0x32] sm:$0xff]
      %v667 = vld [vmem:[%s404 + $0x3a] sm:$0xff]
      %v668 = vld [vmem:[%s404 + $0x4a] sm:$0xff]
      %v669 = vld [vmem:[%s404 + $0x52] sm:$0xff]
      %v670 = vld [vmem:[%s404 + $0x62] sm:$0xff]
      %v671 = vld [vmem:[%s404 + $0x6a] sm:$0xff]
      %v672 = vld [vmem:[%s404 + $0x7a] sm:$0xff]
      %v673 = vld [vmem:[%s404 + $0x82] sm:$0xff]
      %v674 = vld [vmem:[%s404 + $0x92] sm:$0xff]
      %v675 = vld [vmem:[%s404 + $0x9a] sm:$0xff]
      %v676 = vld [vmem:[%s404 + $0xaa] sm:$0xff]
      %v677 = vld [vmem:[%s404 + $0xb2] sm:$0xff]
      %v678 = vld [vmem:[%s404 + $0xc2] sm:$0xff]
      %v679 = vld [vmem:[%s404 + $0xca] sm:$0xff]
      %v680 = vld [vmem:[%s404 + $0xda] sm:$0xff]
      %v681 = vld [vmem:[%s404 + $0xe2] sm:$0xff]
      %v682 = vld [vmem:[%s404 + $0xf2] sm:$0xff]
      %v683 = vld [vmem:[%s404 + $0xfa] sm:$0xff]
      %v684 = vld [vmem:[%s404 + $0x10a] sm:$0xff]
      %v685 = vld [vmem:[%s404 + $0x112] sm:$0xff]
      %v686 = vld [vmem:[%s404 + $0x122] sm:$0xff]
      %v687 = vld [vmem:[%s404 + $0x12a] sm:$0xff]
      %v688 = vld [vmem:[%s404 + $0x13a] sm:$0xff]
      %v689 = vld [vmem:[%s404 + $0x142] sm:$0xff]
      %v690 = vld [vmem:[%s404 + $0x152] sm:$0xff]
      %v691 = vld [vmem:[%s404 + $0x15a] sm:$0xff]
      %v692 = vld [vmem:[%s404 + $0x16a] sm:$0xff]
      %v693 = vld [vmem:[%s404 + $0x172] sm:$0xff]
      %726 = vrot.lane.b32.xlu0 %v662, 16
      %v727 = vpop.permute.xlu0 %726
      %728 = vrot.lane.b32.xlu0 %v663, 16
      %v729 = vpop.permute.xlu0 %728
      %730 = vrot.lane.b32.xlu0 %v664, 16
      %v731 = vpop.permute.xlu0 %730
      %732 = vrot.lane.b32.xlu0 %v665, 16
      %v733 = vpop.permute.xlu0 %732
      %734 = vrot.lane.b32.xlu0 %v666, 16
      %v735 = vpop.permute.xlu0 %734
      %736 = vrot.lane.b32.xlu0 %v667, 16
      %v737 = vpop.permute.xlu0 %736
      %738 = vrot.lane.b32.xlu0 %v668, 16
      %v739 = vpop.permute.xlu0 %738
      %740 = vrot.lane.b32.xlu0 %v669, 16
      %v741 = vpop.permute.xlu0 %740
      %742 = vrot.lane.b32.xlu0 %v670, 16
      %v743 = vpop.permute.xlu0 %742
      %744 = vrot.lane.b32.xlu0 %v671, 16
      %v745 = vpop.permute.xlu0 %744
      %746 = vrot.lane.b32.xlu0 %v672, 16
      %v747 = vpop.permute.xlu0 %746
      %748 = vrot.lane.b32.xlu0 %v673, 16
      %v749 = vpop.permute.xlu0 %748
      %750 = vrot.lane.b32.xlu0 %v674, 16
      %v751 = vpop.permute.xlu0 %750
      %752 = vrot.lane.b32.xlu0 %v675, 16
      %v753 = vpop.permute.xlu0 %752
      %754 = vrot.lane.b32.xlu0 %v676, 16
      %v755 = vpop.permute.xlu0 %754
      %756 = vrot.lane.b32.xlu0 %v677, 16
      %v757 = vpop.permute.xlu0 %756
      %758 = vrot.lane.b32.xlu0 %v678, 16
      %v759 = vpop.permute.xlu0 %758
      %760 = vrot.lane.b32.xlu0 %v679, 16
      %v761 = vpop.permute.xlu0 %760
      %762 = vrot.lane.b32.xlu0 %v680, 16
      %v763 = vpop.permute.xlu0 %762
      %764 = vrot.lane.b32.xlu0 %v681, 16
      %v765 = vpop.permute.xlu0 %764
      %766 = vrot.lane.b32.xlu0 %v682, 16
      %v767 = vpop.permute.xlu0 %766
      %768 = vrot.lane.b32.xlu0 %v683, 16
      %v769 = vpop.permute.xlu0 %768
      %770 = vrot.lane.b32.xlu0 %v684, 16
      %v771 = vpop.permute.xlu0 %770
      %772 = vrot.lane.b32.xlu0 %v685, 16
      %v773 = vpop.permute.xlu0 %772
      %774 = vrot.lane.b32.xlu0 %v686, 16
      %v775 = vpop.permute.xlu0 %774
      %776 = vrot.lane.b32.xlu0 %v687, 16
      %v777 = vpop.permute.xlu0 %776
      %778 = vrot.lane.b32.xlu0 %v688, 16
      %v779 = vpop.permute.xlu0 %778
      %780 = vrot.lane.b32.xlu0 %v689, 16
      %v781 = vpop.permute.xlu0 %780
      %782 = vrot.lane.b32.xlu0 %v690, 16
      %v783 = vpop.permute.xlu0 %782
      %784 = vrot.lane.b32.xlu0 %v691, 16
      %v785 = vpop.permute.xlu0 %784
      %786 = vrot.lane.b32.xlu0 %v692, 16
      %v787 = vpop.permute.xlu0 %786
      %788 = vrot.lane.b32.xlu0 %v693, 16
      %v789 = vpop.permute.xlu0 %788
      %vm822 = vcmask 195712
      %823 = vst.msk [vmem:[#allocation2] sm:$0xff] %vm822, %v727
      %824 = vst.msk [vmem:[#allocation2 + $0x8] sm:$0xff] %vm822, %v729
      %825 = vst.msk [vmem:[#allocation2 + $0x10] sm:$0xff] %vm822, %v731
      %826 = vst.msk [vmem:[#allocation2 + $0x18] sm:$0xff] %vm822, %v733
      %827 = vst.msk [vmem:[#allocation2 + $0x20] sm:$0xff] %vm822, %v735
      %828 = vst.msk [vmem:[#allocation2 + $0x28] sm:$0xff] %vm822, %v737
      %829 = vst.msk [vmem:[#allocation2 + $0x30] sm:$0xff] %vm822, %v739
      %830 = vst.msk [vmem:[#allocation2 + $0x38] sm:$0xff] %vm822, %v741
      %831 = vst.msk [vmem:[#allocation2 + $0x40] sm:$0xff] %vm822, %v743
      %832 = vst.msk [vmem:[#allocation2 + $0x48] sm:$0xff] %vm822, %v745
      %833 = vst.msk [vmem:[#allocation2 + $0x50] sm:$0xff] %vm822, %v747
      %834 = vst.msk [vmem:[#allocation2 + $0x58] sm:$0xff] %vm822, %v749
      %835 = vst.msk [vmem:[#allocation2 + $0x60] sm:$0xff] %vm822, %v751
      %836 = vst.msk [vmem:[#allocation2 + $0x68] sm:$0xff] %vm822, %v753
      %837 = vst.msk [vmem:[#allocation2 + $0x70] sm:$0xff] %vm822, %v755
      %838 = vst.msk [vmem:[#allocation2 + $0x78] sm:$0xff] %vm822, %v757
      %839 = vst.msk [vmem:[#allocation2 + $0x80] sm:$0xff] %vm822, %v759
      %840 = vst.msk [vmem:[#allocation2 + $0x88] sm:$0xff] %vm822, %v761
      %841 = vst.msk [vmem:[#allocation2 + $0x90] sm:$0xff] %vm822, %v763
      %842 = vst.msk [vmem:[#allocation2 + $0x98] sm:$0xff] %vm822, %v765
      %843 = vst.msk [vmem:[#allocation2 + $0xa0] sm:$0xff] %vm822, %v767
      %844 = vst.msk [vmem:[#allocation2 + $0xa8] sm:$0xff] %vm822, %v769
      %845 = vst.msk [vmem:[#allocation2 + $0xb0] sm:$0xff] %vm822, %v771
      %846 = vst.msk [vmem:[#allocation2 + $0xb8] sm:$0xff] %vm822, %v773
      %847 = vst.msk [vmem:[#allocation2 + $0xc0] sm:$0xff] %vm822, %v775
      %848 = vst.msk [vmem:[#allocation2 + $0xc8] sm:$0xff] %vm822, %v777
      %849 = vst.msk [vmem:[#allocation2 + $0xd0] sm:$0xff] %vm822, %v779
      %850 = vst.msk [vmem:[#allocation2 + $0xd8] sm:$0xff] %vm822, %v781
      %851 = vst.msk [vmem:[#allocation2 + $0xe0] sm:$0xff] %vm822, %v783
      %852 = vst.msk [vmem:[#allocation2 + $0xe8] sm:$0xff] %vm822, %v785
      %853 = vst.msk [vmem:[#allocation2 + $0xf0] sm:$0xff] %vm822, %v787
      %854 = vst.msk [vmem:[#allocation2 + $0xf8] sm:$0xff] %vm822, %v789
      %s855 = sadd.s32 %s402, 1
      %s856 = smul.u32 %s855, 24
      %s857 = scalar_lea.vmem [#allocation3], %s856
      %v858 = vld [vmem:[%s857] sm:$0xff]
      %v859 = vld [vmem:[%s857 + $0x8] sm:$0xff]
      %v860 = vld [vmem:[%s857 + $0x18] sm:$0xff]
      %v861 = vld [vmem:[%s857 + $0x20] sm:$0xff]
      %v862 = vld [vmem:[%s857 + $0x30] sm:$0xff]
      %v863 = vld [vmem:[%s857 + $0x38] sm:$0xff]
      %v864 = vld [vmem:[%s857 + $0x48] sm:$0xff]
      %v865 = vld [vmem:[%s857 + $0x50] sm:$0xff]
      %v866 = vld [vmem:[%s857 + $0x60] sm:$0xff]
      %v867 = vld [vmem:[%s857 + $0x68] sm:$0xff]
      %v868 = vld [vmem:[%s857 + $0x78] sm:$0xff]
      %v869 = vld [vmem:[%s857 + $0x80] sm:$0xff]
      %v870 = vld [vmem:[%s857 + $0x90] sm:$0xff]
      %v871 = vld [vmem:[%s857 + $0x98] sm:$0xff]
      %v872 = vld [vmem:[%s857 + $0xa8] sm:$0xff]
      %v873 = vld [vmem:[%s857 + $0xb0] sm:$0xff]
      %v874 = vld [vmem:[%s857 + $0xc0] sm:$0xff]
      %v875 = vld [vmem:[%s857 + $0xc8] sm:$0xff]
      %v876 = vld [vmem:[%s857 + $0xd8] sm:$0xff]
      %v877 = vld [vmem:[%s857 + $0xe0] sm:$0xff]
      %v878 = vld [vmem:[%s857 + $0xf0] sm:$0xff]
      %v879 = vld [vmem:[%s857 + $0xf8] sm:$0xff]
      %v880 = vld [vmem:[%s857 + $0x108] sm:$0xff]
      %v881 = vld [vmem:[%s857 + $0x110] sm:$0xff]
      %v882 = vld [vmem:[%s857 + $0x120] sm:$0xff]
      %v883 = vld [vmem:[%s857 + $0x128] sm:$0xff]
      %v884 = vld [vmem:[%s857 + $0x138] sm:$0xff]
      %v885 = vld [vmem:[%s857 + $0x140] sm:$0xff]
      %v886 = vld [vmem:[%s857 + $0x150] sm:$0xff]
      %v887 = vld [vmem:[%s857 + $0x158] sm:$0xff]
      %v888 = vld [vmem:[%s857 + $0x168] sm:$0xff]
      %v889 = vld [vmem:[%s857 + $0x170] sm:$0xff]
      %922 = vrot.lane.b32.xlu0 %v858, 24
      %v923 = vpop.permute.xlu0 %922
      %924 = vrot.lane.b32.xlu0 %v859, 24
      %v925 = vpop.permute.xlu0 %924
      %926 = vrot.lane.b32.xlu0 %v860, 24
      %v927 = vpop.permute.xlu0 %926
      %928 = vrot.lane.b32.xlu0 %v861, 24
      %v929 = vpop.permute.xlu0 %928
      %930 = vrot.lane.b32.xlu0 %v862, 24
      %v931 = vpop.permute.xlu0 %930
      %932 = vrot.lane.b32.xlu0 %v863, 24
      %v933 = vpop.permute.xlu0 %932
      %934 = vrot.lane.b32.xlu0 %v864, 24
      %v935 = vpop.permute.xlu0 %934
      %936 = vrot.lane.b32.xlu0 %v865, 24
      %v937 = vpop.permute.xlu0 %936
      %938 = vrot.lane.b32.xlu0 %v866, 24
      %v939 = vpop.permute.xlu0 %938
      %940 = vrot.lane.b32.xlu0 %v867, 24
      %v941 = vpop.permute.xlu0 %940
      %942 = vrot.lane.b32.xlu0 %v868, 24
      %v943 = vpop.permute.xlu0 %942
      %944 = vrot.lane.b32.xlu0 %v869, 24
      %v945 = vpop.permute.xlu0 %944
      %946 = vrot.lane.b32.xlu0 %v870, 24
      %v947 = vpop.permute.xlu0 %946
      %948 = vrot.lane.b32.xlu0 %v871, 24
      %v949 = vpop.permute.xlu0 %948
      %950 = vrot.lane.b32.xlu0 %v872, 24
      %v951 = vpop.permute.xlu0 %950
      %952 = vrot.lane.b32.xlu0 %v873, 24
      %v953 = vpop.permute.xlu0 %952
      %954 = vrot.lane.b32.xlu0 %v874, 24
      %v955 = vpop.permute.xlu0 %954
      %956 = vrot.lane.b32.xlu0 %v875, 24
      %v957 = vpop.permute.xlu0 %956
      %958 = vrot.lane.b32.xlu0 %v876, 24
      %v959 = vpop.permute.xlu0 %958
      %960 = vrot.lane.b32.xlu0 %v877, 24
      %v961 = vpop.permute.xlu0 %960
      %962 = vrot.lane.b32.xlu0 %v878, 24
      %v963 = vpop.permute.xlu0 %962
      %964 = vrot.lane.b32.xlu0 %v879, 24
      %v965 = vpop.permute.xlu0 %964
      %966 = vrot.lane.b32.xlu0 %v880, 24
      %v967 = vpop.permute.xlu0 %966
      %968 = vrot.lane.b32.xlu0 %v881, 24
      %v969 = vpop.permute.xlu0 %968
      %970 = vrot.lane.b32.xlu0 %v882, 24
      %v971 = vpop.permute.xlu0 %970
      %972 = vrot.lane.b32.xlu0 %v883, 24
      %v973 = vpop.permute.xlu0 %972
      %974 = vrot.lane.b32.xlu0 %v884, 24
      %v975 = vpop.permute.xlu0 %974
      %976 = vrot.lane.b32.xlu0 %v885, 24
      %v977 = vpop.permute.xlu0 %976
      %978 = vrot.lane.b32.xlu0 %v886, 24
      %v979 = vpop.permute.xlu0 %978
      %980 = vrot.lane.b32.xlu0 %v887, 24
      %v981 = vpop.permute.xlu0 %980
      %982 = vrot.lane.b32.xlu0 %v888, 24
      %v983 = vpop.permute.xlu0 %982
      %984 = vrot.lane.b32.xlu0 %v889, 24
      %v985 = vpop.permute.xlu0 %984
      %vm1018 = vcmask 261312
      %1019 = vst.msk [vmem:[#allocation2] sm:$0xff] %vm1018, %v923
      %1020 = vst.msk [vmem:[#allocation2 + $0x8] sm:$0xff] %vm1018, %v925
      %1021 = vst.msk [vmem:[#allocation2 + $0x10] sm:$0xff] %vm1018, %v927
      %1022 = vst.msk [vmem:[#allocation2 + $0x18] sm:$0xff] %vm1018, %v929
      %1023 = vst.msk [vmem:[#allocation2 + $0x20] sm:$0xff] %vm1018, %v931
      %1024 = vst.msk [vmem:[#allocation2 + $0x28] sm:$0xff] %vm1018, %v933
      %1025 = vst.msk [vmem:[#allocation2 + $0x30] sm:$0xff] %vm1018, %v935
      %1026 = vst.msk [vmem:[#allocation2 + $0x38] sm:$0xff] %vm1018, %v937
      %1027 = vst.msk [vmem:[#allocation2 + $0x40] sm:$0xff] %vm1018, %v939
      %1028 = vst.msk [vmem:[#allocation2 + $0x48] sm:$0xff] %vm1018, %v941
      %1029 = vst.msk [vmem:[#allocation2 + $0x50] sm:$0xff] %vm1018, %v943
      %1030 = vst.msk [vmem:[#allocation2 + $0x58] sm:$0xff] %vm1018, %v945
      %1031 = vst.msk [vmem:[#allocation2 + $0x60] sm:$0xff] %vm1018, %v947
      %1032 = vst.msk [vmem:[#allocation2 + $0x68] sm:$0xff] %vm1018, %v949
      %1033 = vst.msk [vmem:[#allocation2 + $0x70] sm:$0xff] %vm1018, %v951
      %1034 = vst.msk [vmem:[#allocation2 + $0x78] sm:$0xff] %vm1018, %v953
      %1035 = vst.msk [vmem:[#allocation2 + $0x80] sm:$0xff] %vm1018, %v955
      %1036 = vst.msk [vmem:[#allocation2 + $0x88] sm:$0xff] %vm1018, %v957
      %1037 = vst.msk [vmem:[#allocation2 + $0x90] sm:$0xff] %vm1018, %v959
      %1038 = vst.msk [vmem:[#allocation2 + $0x98] sm:$0xff] %vm1018, %v961
      %1039 = vst.msk [vmem:[#allocation2 + $0xa0] sm:$0xff] %vm1018, %v963
      %1040 = vst.msk [vmem:[#allocation2 + $0xa8] sm:$0xff] %vm1018, %v965
      %1041 = vst.msk [vmem:[#allocation2 + $0xb0] sm:$0xff] %vm1018, %v967
      %1042 = vst.msk [vmem:[#allocation2 + $0xb8] sm:$0xff] %vm1018, %v969
      %1043 = vst.msk [vmem:[#allocation2 + $0xc0] sm:$0xff] %vm1018, %v971
      %1044 = vst.msk [vmem:[#allocation2 + $0xc8] sm:$0xff] %vm1018, %v973
      %1045 = vst.msk [vmem:[#allocation2 + $0xd0] sm:$0xff] %vm1018, %v975
      %1046 = vst.msk [vmem:[#allocation2 + $0xd8] sm:$0xff] %vm1018, %v977
      %1047 = vst.msk [vmem:[#allocation2 + $0xe0] sm:$0xff] %vm1018, %v979
      %1048 = vst.msk [vmem:[#allocation2 + $0xe8] sm:$0xff] %vm1018, %v981
      %1049 = vst.msk [vmem:[#allocation2 + $0xf0] sm:$0xff] %vm1018, %v983
      %1050 = vst.msk [vmem:[#allocation2 + $0xf8] sm:$0xff] %vm1018, %v985
      %v1051 = vld [vmem:[%s857 + $0x1] sm:$0xff]
      %v1052 = vld [vmem:[%s857 + $0x9] sm:$0xff]
      %v1053 = vld [vmem:[%s857 + $0x19] sm:$0xff]
      %v1054 = vld [vmem:[%s857 + $0x21] sm:$0xff]
      %v1055 = vld [vmem:[%s857 + $0x31] sm:$0xff]
      %v1056 = vld [vmem:[%s857 + $0x39] sm:$0xff]
      %v1057 = vld [vmem:[%s857 + $0x49] sm:$0xff]
      %v1058 = vld [vmem:[%s857 + $0x51] sm:$0xff]
      %v1059 = vld [vmem:[%s857 + $0x61] sm:$0xff]
      %v1060 = vld [vmem:[%s857 + $0x69] sm:$0xff]
      %v1061 = vld [vmem:[%s857 + $0x79] sm:$0xff]
      %v1062 = vld [vmem:[%s857 + $0x81] sm:$0xff]
      %v1063 = vld [vmem:[%s857 + $0x91] sm:$0xff]
      %v1064 = vld [vmem:[%s857 + $0x99] sm:$0xff]
      %v1065 = vld [vmem:[%s857 + $0xa9] sm:$0xff]
      %v1066 = vld [vmem:[%s857 + $0xb1] sm:$0xff]
      %v1067 = vld [vmem:[%s857 + $0xc1] sm:$0xff]
      %v1068 = vld [vmem:[%s857 + $0xc9] sm:$0xff]
      %v1069 = vld [vmem:[%s857 + $0xd9] sm:$0xff]
      %v1070 = vld [vmem:[%s857 + $0xe1] sm:$0xff]
      %v1071 = vld [vmem:[%s857 + $0xf1] sm:$0xff]
      %v1072 = vld [vmem:[%s857 + $0xf9] sm:$0xff]
      %v1073 = vld [vmem:[%s857 + $0x109] sm:$0xff]
      %v1074 = vld [vmem:[%s857 + $0x111] sm:$0xff]
      %v1075 = vld [vmem:[%s857 + $0x121] sm:$0xff]
      %v1076 = vld [vmem:[%s857 + $0x129] sm:$0xff]
      %v1077 = vld [vmem:[%s857 + $0x139] sm:$0xff]
      %v1078 = vld [vmem:[%s857 + $0x141] sm:$0xff]
      %v1079 = vld [vmem:[%s857 + $0x151] sm:$0xff]
      %v1080 = vld [vmem:[%s857 + $0x159] sm:$0xff]
      %v1081 = vld [vmem:[%s857 + $0x169] sm:$0xff]
      %v1082 = vld [vmem:[%s857 + $0x171] sm:$0xff]
      %1115 = vrot.lane.b32.xlu0 %v1051, 32
      %v1116 = vpop.permute.xlu0 %1115
      %1117 = vrot.lane.b32.xlu0 %v1052, 32
      %v1118 = vpop.permute.xlu0 %1117
      %1119 = vrot.lane.b32.xlu0 %v1053, 32
      %v1120 = vpop.permute.xlu0 %1119
      %1121 = vrot.lane.b32.xlu0 %v1054, 32
      %v1122 = vpop.permute.xlu0 %1121
      %1123 = vrot.lane.b32.xlu0 %v1055, 32
      %v1124 = vpop.permute.xlu0 %1123
      %1125 = vrot.lane.b32.xlu0 %v1056, 32
      %v1126 = vpop.permute.xlu0 %1125
      %1127 = vrot.lane.b32.xlu0 %v1057, 32
      %v1128 = vpop.permute.xlu0 %1127
      %1129 = vrot.lane.b32.xlu0 %v1058, 32
      %v1130 = vpop.permute.xlu0 %1129
      %1131 = vrot.lane.b32.xlu0 %v1059, 32
      %v1132 = vpop.permute.xlu0 %1131
      %1133 = vrot.lane.b32.xlu0 %v1060, 32
      %v1134 = vpop.permute.xlu0 %1133
      %1135 = vrot.lane.b32.xlu0 %v1061, 32
      %v1136 = vpop.permute.xlu0 %1135
      %1137 = vrot.lane.b32.xlu0 %v1062, 32
      %v1138 = vpop.permute.xlu0 %1137
      %1139 = vrot.lane.b32.xlu0 %v1063, 32
      %v1140 = vpop.permute.xlu0 %1139
      %1141 = vrot.lane.b32.xlu0 %v1064, 32
      %v1142 = vpop.permute.xlu0 %1141
      %1143 = vrot.lane.b32.xlu0 %v1065, 32
      %v1144 = vpop.permute.xlu0 %1143
      %1145 = vrot.lane.b32.xlu0 %v1066, 32
      %v1146 = vpop.permute.xlu0 %1145
      %1147 = vrot.lane.b32.xlu0 %v1067, 32
      %v1148 = vpop.permute.xlu0 %1147
      %1149 = vrot.lane.b32.xlu0 %v1068, 32
      %v1150 = vpop.permute.xlu0 %1149
      %1151 = vrot.lane.b32.xlu0 %v1069, 32
      %v1152 = vpop.permute.xlu0 %1151
      %1153 = vrot.lane.b32.xlu0 %v1070, 32
      %v1154 = vpop.permute.xlu0 %1153
      %1155 = vrot.lane.b32.xlu0 %v1071, 32
      %v1156 = vpop.permute.xlu0 %1155
      %1157 = vrot.lane.b32.xlu0 %v1072, 32
      %v1158 = vpop.permute.xlu0 %1157
      %1159 = vrot.lane.b32.xlu0 %v1073, 32
      %v1160 = vpop.permute.xlu0 %1159
      %1161 = vrot.lane.b32.xlu0 %v1074, 32
      %v1162 = vpop.permute.xlu0 %1161
      %1163 = vrot.lane.b32.xlu0 %v1075, 32
      %v1164 = vpop.permute.xlu0 %1163
      %1165 = vrot.lane.b32.xlu0 %v1076, 32
      %v1166 = vpop.permute.xlu0 %1165
      %1167 = vrot.lane.b32.xlu0 %v1077, 32
      %v1168 = vpop.permute.xlu0 %1167
      %1169 = vrot.lane.b32.xlu0 %v1078, 32
      %v1170 = vpop.permute.xlu0 %1169
      %1171 = vrot.lane.b32.xlu0 %v1079, 32
      %v1172 = vpop.permute.xlu0 %1171
      %1173 = vrot.lane.b32.xlu0 %v1080, 32
      %v1174 = vpop.permute.xlu0 %1173
      %1175 = vrot.lane.b32.xlu0 %v1081, 32
      %v1176 = vpop.permute.xlu0 %1175
      %1177 = vrot.lane.b32.xlu0 %v1082, 32
      %v1178 = vpop.permute.xlu0 %1177
      %vm1211 = vcmask 326912
      %1212 = vst.msk [vmem:[#allocation2] sm:$0xff] %vm1211, %v1116
      %1213 = vst.msk [vmem:[#allocation2 + $0x8] sm:$0xff] %vm1211, %v1118
      %1214 = vst.msk [vmem:[#allocation2 + $0x10] sm:$0xff] %vm1211, %v1120
      %1215 = vst.msk [vmem:[#allocation2 + $0x18] sm:$0xff] %vm1211, %v1122
      %1216 = vst.msk [vmem:[#allocation2 + $0x20] sm:$0xff] %vm1211, %v1124
      %1217 = vst.msk [vmem:[#allocation2 + $0x28] sm:$0xff] %vm1211, %v1126
      %1218 = vst.msk [vmem:[#allocation2 + $0x30] sm:$0xff] %vm1211, %v1128
      %1219 = vst.msk [vmem:[#allocation2 + $0x38] sm:$0xff] %vm1211, %v1130
      %1220 = vst.msk [vmem:[#allocation2 + $0x40] sm:$0xff] %vm1211, %v1132
      %1221 = vst.msk [vmem:[#allocation2 + $0x48] sm:$0xff] %vm1211, %v1134
      %1222 = vst.msk [vmem:[#allocation2 + $0x50] sm:$0xff] %vm1211, %v1136
      %1223 = vst.msk [vmem:[#allocation2 + $0x58] sm:$0xff] %vm1211, %v1138
      %1224 = vst.msk [vmem:[#allocation2 + $0x60] sm:$0xff] %vm1211, %v1140
      %1225 = vst.msk [vmem:[#allocation2 + $0x68] sm:$0xff] %vm1211, %v1142
      %1226 = vst.msk [vmem:[#allocation2 + $0x70] sm:$0xff] %vm1211, %v1144
      %1227 = vst.msk [vmem:[#allocation2 + $0x78] sm:$0xff] %vm1211, %v1146
      %1228 = vst.msk [vmem:[#allocation2 + $0x80] sm:$0xff] %vm1211, %v1148
      %1229 = vst.msk [vmem:[#allocation2 + $0x88] sm:$0xff] %vm1211, %v1150
      %1230 = vst.msk [vmem:[#allocation2 + $0x90] sm:$0xff] %vm1211, %v1152
      %1231 = vst.msk [vmem:[#allocation2 + $0x98] sm:$0xff] %vm1211, %v1154
      %1232 = vst.msk [vmem:[#allocation2 + $0xa0] sm:$0xff] %vm1211, %v1156
      %1233 = vst.msk [vmem:[#allocation2 + $0xa8] sm:$0xff] %vm1211, %v1158
      %1234 = vst.msk [vmem:[#allocation2 + $0xb0] sm:$0xff] %vm1211, %v1160
      %1235 = vst.msk [vmem:[#allocation2 + $0xb8] sm:$0xff] %vm1211, %v1162
      %1236 = vst.msk [vmem:[#allocation2 + $0xc0] sm:$0xff] %vm1211, %v1164
      %1237 = vst.msk [vmem:[#allocation2 + $0xc8] sm:$0xff] %vm1211, %v1166
      %1238 = vst.msk [vmem:[#allocation2 + $0xd0] sm:$0xff] %vm1211, %v1168
      %1239 = vst.msk [vmem:[#allocation2 + $0xd8] sm:$0xff] %vm1211, %v1170
      %1240 = vst.msk [vmem:[#allocation2 + $0xe0] sm:$0xff] %vm1211, %v1172
      %1241 = vst.msk [vmem:[#allocation2 + $0xe8] sm:$0xff] %vm1211, %v1174
      %1242 = vst.msk [vmem:[#allocation2 + $0xf0] sm:$0xff] %vm1211, %v1176
      %1243 = vst.msk [vmem:[#allocation2 + $0xf8] sm:$0xff] %vm1211, %v1178
      %v1244 = vld [vmem:[%s857 + $0x2] sm:$0xff]
      %v1245 = vld [vmem:[%s857 + $0xa] sm:$0xff]
      %v1246 = vld [vmem:[%s857 + $0x1a] sm:$0xff]
      %v1247 = vld [vmem:[%s857 + $0x22] sm:$0xff]
      %v1248 = vld [vmem:[%s857 + $0x32] sm:$0xff]
      %v1249 = vld [vmem:[%s857 + $0x3a] sm:$0xff]
      %v1250 = vld [vmem:[%s857 + $0x4a] sm:$0xff]
      %v1251 = vld [vmem:[%s857 + $0x52] sm:$0xff]
      %v1252 = vld [vmem:[%s857 + $0x62] sm:$0xff]
      %v1253 = vld [vmem:[%s857 + $0x6a] sm:$0xff]
      %v1254 = vld [vmem:[%s857 + $0x7a] sm:$0xff]
      %v1255 = vld [vmem:[%s857 + $0x82] sm:$0xff]
      %v1256 = vld [vmem:[%s857 + $0x92] sm:$0xff]
      %v1257 = vld [vmem:[%s857 + $0x9a] sm:$0xff]
      %v1258 = vld [vmem:[%s857 + $0xaa] sm:$0xff]
      %v1259 = vld [vmem:[%s857 + $0xb2] sm:$0xff]
      %v1260 = vld [vmem:[%s857 + $0xc2] sm:$0xff]
      %v1261 = vld [vmem:[%s857 + $0xca] sm:$0xff]
      %v1262 = vld [vmem:[%s857 + $0xda] sm:$0xff]
      %v1263 = vld [vmem:[%s857 + $0xe2] sm:$0xff]
      %v1264 = vld [vmem:[%s857 + $0xf2] sm:$0xff]
      %v1265 = vld [vmem:[%s857 + $0xfa] sm:$0xff]
      %v1266 = vld [vmem:[%s857 + $0x10a] sm:$0xff]
      %v1267 = vld [vmem:[%s857 + $0x112] sm:$0xff]
      %v1268 = vld [vmem:[%s857 + $0x122] sm:$0xff]
      %v1269 = vld [vmem:[%s857 + $0x12a] sm:$0xff]
      %v1270 = vld [vmem:[%s857 + $0x13a] sm:$0xff]
      %v1271 = vld [vmem:[%s857 + $0x142] sm:$0xff]
      %v1272 = vld [vmem:[%s857 + $0x152] sm:$0xff]
      %v1273 = vld [vmem:[%s857 + $0x15a] sm:$0xff]
      %v1274 = vld [vmem:[%s857 + $0x16a] sm:$0xff]
      %v1275 = vld [vmem:[%s857 + $0x172] sm:$0xff]
      %1308 = vrot.lane.b32.xlu0 %v1244, 40
      %v1309 = vpop.permute.xlu0 %1308
      %1310 = vrot.lane.b32.xlu0 %v1245, 40
      %v1311 = vpop.permute.xlu0 %1310
      %1312 = vrot.lane.b32.xlu0 %v1246, 40
      %v1313 = vpop.permute.xlu0 %1312
      %1314 = vrot.lane.b32.xlu0 %v1247, 40
      %v1315 = vpop.permute.xlu0 %1314
      %1316 = vrot.lane.b32.xlu0 %v1248, 40
      %v1317 = vpop.permute.xlu0 %1316
      %1318 = vrot.lane.b32.xlu0 %v1249, 40
      %v1319 = vpop.permute.xlu0 %1318
      %1320 = vrot.lane.b32.xlu0 %v1250, 40
      %v1321 = vpop.permute.xlu0 %1320
      %1322 = vrot.lane.b32.xlu0 %v1251, 40
      %v1323 = vpop.permute.xlu0 %1322
      %1324 = vrot.lane.b32.xlu0 %v1252, 40
      %v1325 = vpop.permute.xlu0 %1324
      %1326 = vrot.lane.b32.xlu0 %v1253, 40
      %v1327 = vpop.permute.xlu0 %1326
      %1328 = vrot.lane.b32.xlu0 %v1254, 40
      %v1329 = vpop.permute.xlu0 %1328
      %1330 = vrot.lane.b32.xlu0 %v1255, 40
      %v1331 = vpop.permute.xlu0 %1330
      %1332 = vrot.lane.b32.xlu0 %v1256, 40
      %v1333 = vpop.permute.xlu0 %1332
      %1334 = vrot.lane.b32.xlu0 %v1257, 40
      %v1335 = vpop.permute.xlu0 %1334
      %1336 = vrot.lane.b32.xlu0 %v1258, 40
      %v1337 = vpop.permute.xlu0 %1336
      %1338 = vrot.lane.b32.xlu0 %v1259, 40
      %v1339 = vpop.permute.xlu0 %1338
      %1340 = vrot.lane.b32.xlu0 %v1260, 40
      %v1341 = vpop.permute.xlu0 %1340
      %1342 = vrot.lane.b32.xlu0 %v1261, 40
      %v1343 = vpop.permute.xlu0 %1342
      %1344 = vrot.lane.b32.xlu0 %v1262, 40
      %v1345 = vpop.permute.xlu0 %1344
      %1346 = vrot.lane.b32.xlu0 %v1263, 40
      %v1347 = vpop.permute.xlu0 %1346
      %1348 = vrot.lane.b32.xlu0 %v1264, 40
      %v1349 = vpop.permute.xlu0 %1348
      %1350 = vrot.lane.b32.xlu0 %v1265, 40
      %v1351 = vpop.permute.xlu0 %1350
      %1352 = vrot.lane.b32.xlu0 %v1266, 40
      %v1353 = vpop.permute.xlu0 %1352
      %1354 = vrot.lane.b32.xlu0 %v1267, 40
      %v1355 = vpop.permute.xlu0 %1354
      %1356 = vrot.lane.b32.xlu0 %v1268, 40
      %v1357 = vpop.permute.xlu0 %1356
      %1358 = vrot.lane.b32.xlu0 %v1269, 40
      %v1359 = vpop.permute.xlu0 %1358
      %1360 = vrot.lane.b32.xlu0 %v1270, 40
      %v1361 = vpop.permute.xlu0 %1360
      %1362 = vrot.lane.b32.xlu0 %v1271, 40
      %v1363 = vpop.permute.xlu0 %1362
      %1364 = vrot.lane.b32.xlu0 %v1272, 40
      %v1365 = vpop.permute.xlu0 %1364
      %1366 = vrot.lane.b32.xlu0 %v1273, 40
      %v1367 = vpop.permute.xlu0 %1366
      %1368 = vrot.lane.b32.xlu0 %v1274, 40
      %v1369 = vpop.permute.xlu0 %1368
      %1370 = vrot.lane.b32.xlu0 %v1275, 40
      %v1371 = vpop.permute.xlu0 %1370
      %vm1404 = vcmask 392512
      %1405 = vst.msk [vmem:[#allocation2] sm:$0xff] %vm1404, %v1309
      %1406 = vst.msk [vmem:[#allocation2 + $0x8] sm:$0xff] %vm1404, %v1311
      %1407 = vst.msk [vmem:[#allocation2 + $0x10] sm:$0xff] %vm1404, %v1313
      %1408 = vst.msk [vmem:[#allocation2 + $0x18] sm:$0xff] %vm1404, %v1315
      %1409 = vst.msk [vmem:[#allocation2 + $0x20] sm:$0xff] %vm1404, %v1317
      %1410 = vst.msk [vmem:[#allocation2 + $0x28] sm:$0xff] %vm1404, %v1319
      %1411 = vst.msk [vmem:[#allocation2 + $0x30] sm:$0xff] %vm1404, %v1321
      %1412 = vst.msk [vmem:[#allocation2 + $0x38] sm:$0xff] %vm1404, %v1323
      %1413 = vst.msk [vmem:[#allocation2 + $0x40] sm:$0xff] %vm1404, %v1325
      %1414 = vst.msk [vmem:[#allocation2 + $0x48] sm:$0xff] %vm1404, %v1327
      %1415 = vst.msk [vmem:[#allocation2 + $0x50] sm:$0xff] %vm1404, %v1329
      %1416 = vst.msk [vmem:[#allocation2 + $0x58] sm:$0xff] %vm1404, %v1331
      %1417 = vst.msk [vmem:[#allocation2 + $0x60] sm:$0xff] %vm1404, %v1333
      %1418 = vst.msk [vmem:[#allocation2 + $0x68] sm:$0xff] %vm1404, %v1335
      %1419 = vst.msk [vmem:[#allocation2 + $0x70] sm:$0xff] %vm1404, %v1337
      %1420 = vst.msk [vmem:[#allocation2 + $0x78] sm:$0xff] %vm1404, %v1339
      %1421 = vst.msk [vmem:[#allocation2 + $0x80] sm:$0xff] %vm1404, %v1341
      %1422 = vst.msk [vmem:[#allocation2 + $0x88] sm:$0xff] %vm1404, %v1343
      %1423 = vst.msk [vmem:[#allocation2 + $0x90] sm:$0xff] %vm1404, %v1345
      %1424 = vst.msk [vmem:[#allocation2 + $0x98] sm:$0xff] %vm1404, %v1347
      %1425 = vst.msk [vmem:[#allocation2 + $0xa0] sm:$0xff] %vm1404, %v1349
      %1426 = vst.msk [vmem:[#allocation2 + $0xa8] sm:$0xff] %vm1404, %v1351
      %1427 = vst.msk [vmem:[#allocation2 + $0xb0] sm:$0xff] %vm1404, %v1353
      %1428 = vst.msk [vmem:[#allocation2 + $0xb8] sm:$0xff] %vm1404, %v1355
      %1429 = vst.msk [vmem:[#allocation2 + $0xc0] sm:$0xff] %vm1404, %v1357
      %1430 = vst.msk [vmem:[#allocation2 + $0xc8] sm:$0xff] %vm1404, %v1359
      %1431 = vst.msk [vmem:[#allocation2 + $0xd0] sm:$0xff] %vm1404, %v1361
      %1432 = vst.msk [vmem:[#allocation2 + $0xd8] sm:$0xff] %vm1404, %v1363
      %1433 = vst.msk [vmem:[#allocation2 + $0xe0] sm:$0xff] %vm1404, %v1365
      %1434 = vst.msk [vmem:[#allocation2 + $0xe8] sm:$0xff] %vm1404, %v1367
      %1435 = vst.msk [vmem:[#allocation2 + $0xf0] sm:$0xff] %vm1404, %v1369
      %1436 = vst.msk [vmem:[#allocation2 + $0xf8] sm:$0xff] %vm1404, %v1371
      %s1437 = sadd.s32 %s402, 2
      %s1438 = smul.u32 %s1437, 24
      %s1439 = scalar_lea.vmem [#allocation3], %s1438
      %v1440 = vld [vmem:[%s1439] sm:$0xff]
      %v1441 = vld [vmem:[%s1439 + $0x8] sm:$0xff]
      %v1442 = vld [vmem:[%s1439 + $0x18] sm:$0xff]
      %v1443 = vld [vmem:[%s1439 + $0x20] sm:$0xff]
      %v1444 = vld [vmem:[%s1439 + $0x30] sm:$0xff]
      %v1445 = vld [vmem:[%s1439 + $0x38] sm:$0xff]
      %v1446 = vld [vmem:[%s1439 + $0x48] sm:$0xff]
      %v1447 = vld [vmem:[%s1439 + $0x50] sm:$0xff]
      %v1448 = vld [vmem:[%s1439 + $0x60] sm:$0xff]
      %v1449 = vld [vmem:[%s1439 + $0x68] sm:$0xff]
      %v1450 = vld [vmem:[%s1439 + $0x78] sm:$0xff]
      %v1451 = vld [vmem:[%s1439 + $0x80] sm:$0xff]
      %v1452 = vld [vmem:[%s1439 + $0x90] sm:$0xff]
      %v1453 = vld [vmem:[%s1439 + $0x98] sm:$0xff]
      %v1454 = vld [vmem:[%s1439 + $0xa8] sm:$0xff]
      %v1455 = vld [vmem:[%s1439 + $0xb0] sm:$0xff]
      %v1456 = vld [vmem:[%s1439 + $0xc0] sm:$0xff]
      %v1457 = vld [vmem:[%s1439 + $0xc8] sm:$0xff]
      %v1458 = vld [vmem:[%s1439 + $0xd8] sm:$0xff]
      %v1459 = vld [vmem:[%s1439 + $0xe0] sm:$0xff]
      %v1460 = vld [vmem:[%s1439 + $0xf0] sm:$0xff]
      %v1461 = vld [vmem:[%s1439 + $0xf8] sm:$0xff]
      %v1462 = vld [vmem:[%s1439 + $0x108] sm:$0xff]
      %v1463 = vld [vmem:[%s1439 + $0x110] sm:$0xff]
      %v1464 = vld [vmem:[%s1439 + $0x120] sm:$0xff]
      %v1465 = vld [vmem:[%s1439 + $0x128] sm:$0xff]
      %v1466 = vld [vmem:[%s1439 + $0x138] sm:$0xff]
      %v1467 = vld [vmem:[%s1439 + $0x140] sm:$0xff]
      %v1468 = vld [vmem:[%s1439 + $0x150] sm:$0xff]
      %v1469 = vld [vmem:[%s1439 + $0x158] sm:$0xff]
      %v1470 = vld [vmem:[%s1439 + $0x168] sm:$0xff]
      %v1471 = vld [vmem:[%s1439 + $0x170] sm:$0xff]
      %1504 = vrot.lane.b32.xlu0 %v1440, 48
      %v1505 = vpop.permute.xlu0 %1504
      %1506 = vrot.lane.b32.xlu0 %v1441, 48
      %v1507 = vpop.permute.xlu0 %1506
      %1508 = vrot.lane.b32.xlu0 %v1442, 48
      %v1509 = vpop.permute.xlu0 %1508
      %1510 = vrot.lane.b32.xlu0 %v1443, 48
      %v1511 = vpop.permute.xlu0 %1510
      %1512 = vrot.lane.b32.xlu0 %v1444, 48
      %v1513 = vpop.permute.xlu0 %1512
      %1514 = vrot.lane.b32.xlu0 %v1445, 48
      %v1515 = vpop.permute.xlu0 %1514
      %1516 = vrot.lane.b32.xlu0 %v1446, 48
      %v1517 = vpop.permute.xlu0 %1516
      %1518 = vrot.lane.b32.xlu0 %v1447, 48
      %v1519 = vpop.permute.xlu0 %1518
      %1520 = vrot.lane.b32.xlu0 %v1448, 48
      %v1521 = vpop.permute.xlu0 %1520
      %1522 = vrot.lane.b32.xlu0 %v1449, 48
      %v1523 = vpop.permute.xlu0 %1522
      %1524 = vrot.lane.b32.xlu0 %v1450, 48
      %v1525 = vpop.permute.xlu0 %1524
      %1526 = vrot.lane.b32.xlu0 %v1451, 48
      %v1527 = vpop.permute.xlu0 %1526
      %1528 = vrot.lane.b32.xlu0 %v1452, 48
      %v1529 = vpop.permute.xlu0 %1528
      %1530 = vrot.lane.b32.xlu0 %v1453, 48
      %v1531 = vpop.permute.xlu0 %1530
      %1532 = vrot.lane.b32.xlu0 %v1454, 48
      %v1533 = vpop.permute.xlu0 %1532
      %1534 = vrot.lane.b32.xlu0 %v1455, 48
      %v1535 = vpop.permute.xlu0 %1534
      %1536 = vrot.lane.b32.xlu0 %v1456, 48
      %v1537 = vpop.permute.xlu0 %1536
      %1538 = vrot.lane.b32.xlu0 %v1457, 48
      %v1539 = vpop.permute.xlu0 %1538
      %1540 = vrot.lane.b32.xlu0 %v1458, 48
      %v1541 = vpop.permute.xlu0 %1540
      %1542 = vrot.lane.b32.xlu0 %v1459, 48
      %v1543 = vpop.permute.xlu0 %1542
      %1544 = vrot.lane.b32.xlu0 %v1460, 48
      %v1545 = vpop.permute.xlu0 %1544
      %1546 = vrot.lane.b32.xlu0 %v1461, 48
      %v1547 = vpop.permute.xlu0 %1546
      %1548 = vrot.lane.b32.xlu0 %v1462, 48
      %v1549 = vpop.permute.xlu0 %1548
      %1550 = vrot.lane.b32.xlu0 %v1463, 48
      %v1551 = vpop.permute.xlu0 %1550
      %1552 = vrot.lane.b32.xlu0 %v1464, 48
      %v1553 = vpop.permute.xlu0 %1552
      %1554 = vrot.lane.b32.xlu0 %v1465, 48
      %v1555 = vpop.permute.xlu0 %1554
      %1556 = vrot.lane.b32.xlu0 %v1466, 48
      %v1557 = vpop.permute.xlu0 %1556
      %1558 = vrot.lane.b32.xlu0 %v1467, 48
      %v1559 = vpop.permute.xlu0 %1558
      %1560 = vrot.lane.b32.xlu0 %v1468, 48
      %v1561 = vpop.permute.xlu0 %1560
      %1562 = vrot.lane.b32.xlu0 %v1469, 48
      %v1563 = vpop.permute.xlu0 %1562
      %1564 = vrot.lane.b32.xlu0 %v1470, 48
      %v1565 = vpop.permute.xlu0 %1564
      %1566 = vrot.lane.b32.xlu0 %v1471, 48
      %v1567 = vpop.permute.xlu0 %1566
      %vm1600 = vcmask 458112
      %1601 = vst.msk [vmem:[#allocation2] sm:$0xff] %vm1600, %v1505
      %1602 = vst.msk [vmem:[#allocation2 + $0x8] sm:$0xff] %vm1600, %v1507
      %1603 = vst.msk [vmem:[#allocation2 + $0x10] sm:$0xff] %vm1600, %v1509
      %1604 = vst.msk [vmem:[#allocation2 + $0x18] sm:$0xff] %vm1600, %v1511
      %1605 = vst.msk [vmem:[#allocation2 + $0x20] sm:$0xff] %vm1600, %v1513
      %1606 = vst.msk [vmem:[#allocation2 + $0x28] sm:$0xff] %vm1600, %v1515
      %1607 = vst.msk [vmem:[#allocation2 + $0x30] sm:$0xff] %vm1600, %v1517
      %1608 = vst.msk [vmem:[#allocation2 + $0x38] sm:$0xff] %vm1600, %v1519
      %1609 = vst.msk [vmem:[#allocation2 + $0x40] sm:$0xff] %vm1600, %v1521
      %1610 = vst.msk [vmem:[#allocation2 + $0x48] sm:$0xff] %vm1600, %v1523
      %1611 = vst.msk [vmem:[#allocation2 + $0x50] sm:$0xff] %vm1600, %v1525
      %1612 = vst.msk [vmem:[#allocation2 + $0x58] sm:$0xff] %vm1600, %v1527
      %1613 = vst.msk [vmem:[#allocation2 + $0x60] sm:$0xff] %vm1600, %v1529
      %1614 = vst.msk [vmem:[#allocation2 + $0x68] sm:$0xff] %vm1600, %v1531
      %1615 = vst.msk [vmem:[#allocation2 + $0x70] sm:$0xff] %vm1600, %v1533
      %1616 = vst.msk [vmem:[#allocation2 + $0x78] sm:$0xff] %vm1600, %v1535
      %1617 = vst.msk [vmem:[#allocation2 + $0x80] sm:$0xff] %vm1600, %v1537
      %1618 = vst.msk [vmem:[#allocation2 + $0x88] sm:$0xff] %vm1600, %v1539
      %1619 = vst.msk [vmem:[#allocation2 + $0x90] sm:$0xff] %vm1600, %v1541
      %1620 = vst.msk [vmem:[#allocation2 + $0x98] sm:$0xff] %vm1600, %v1543
      %1621 = vst.msk [vmem:[#allocation2 + $0xa0] sm:$0xff] %vm1600, %v1545
      %1622 = vst.msk [vmem:[#allocation2 + $0xa8] sm:$0xff] %vm1600, %v1547
      %1623 = vst.msk [vmem:[#allocation2 + $0xb0] sm:$0xff] %vm1600, %v1549
      %1624 = vst.msk [vmem:[#allocation2 + $0xb8] sm:$0xff] %vm1600, %v1551
      %1625 = vst.msk [vmem:[#allocation2 + $0xc0] sm:$0xff] %vm1600, %v1553
      %1626 = vst.msk [vmem:[#allocation2 + $0xc8] sm:$0xff] %vm1600, %v1555
      %1627 = vst.msk [vmem:[#allocation2 + $0xd0] sm:$0xff] %vm1600, %v1557
      %1628 = vst.msk [vmem:[#allocation2 + $0xd8] sm:$0xff] %vm1600, %v1559
      %1629 = vst.msk [vmem:[#allocation2 + $0xe0] sm:$0xff] %vm1600, %v1561
      %1630 = vst.msk [vmem:[#allocation2 + $0xe8] sm:$0xff] %vm1600, %v1563
      %1631 = vst.msk [vmem:[#allocation2 + $0xf0] sm:$0xff] %vm1600, %v1565
      %1632 = vst.msk [vmem:[#allocation2 + $0xf8] sm:$0xff] %vm1600, %v1567
      %v1633 = vld [vmem:[%s1439 + $0x1] sm:$0xff]
      %v1634 = vld [vmem:[%s1439 + $0x9] sm:$0xff]
      %v1635 = vld [vmem:[%s1439 + $0x19] sm:$0xff]
      %v1636 = vld [vmem:[%s1439 + $0x21] sm:$0xff]
      %v1637 = vld [vmem:[%s1439 + $0x31] sm:$0xff]
      %v1638 = vld [vmem:[%s1439 + $0x39] sm:$0xff]
      %v1639 = vld [vmem:[%s1439 + $0x49] sm:$0xff]
      %v1640 = vld [vmem:[%s1439 + $0x51] sm:$0xff]
      %v1641 = vld [vmem:[%s1439 + $0x61] sm:$0xff]
      %v1642 = vld [vmem:[%s1439 + $0x69] sm:$0xff]
      %v1643 = vld [vmem:[%s1439 + $0x79] sm:$0xff]
      %v1644 = vld [vmem:[%s1439 + $0x81] sm:$0xff]
      %v1645 = vld [vmem:[%s1439 + $0x91] sm:$0xff]
      %v1646 = vld [vmem:[%s1439 + $0x99] sm:$0xff]
      %v1647 = vld [vmem:[%s1439 + $0xa9] sm:$0xff]
      %v1648 = vld [vmem:[%s1439 + $0xb1] sm:$0xff]
      %v1649 = vld [vmem:[%s1439 + $0xc1] sm:$0xff]
      %v1650 = vld [vmem:[%s1439 + $0xc9] sm:$0xff]
      %v1651 = vld [vmem:[%s1439 + $0xd9] sm:$0xff]
      %v1652 = vld [vmem:[%s1439 + $0xe1] sm:$0xff]
      %v1653 = vld [vmem:[%s1439 + $0xf1] sm:$0xff]
      %v1654 = vld [vmem:[%s1439 + $0xf9] sm:$0xff]
      %v1655 = vld [vmem:[%s1439 + $0x109] sm:$0xff]
      %v1656 = vld [vmem:[%s1439 + $0x111] sm:$0xff]
      %v1657 = vld [vmem:[%s1439 + $0x121] sm:$0xff]
      %v1658 = vld [vmem:[%s1439 + $0x129] sm:$0xff]
      %v1659 = vld [vmem:[%s1439 + $0x139] sm:$0xff]
      %v1660 = vld [vmem:[%s1439 + $0x141] sm:$0xff]
      %v1661 = vld [vmem:[%s1439 + $0x151] sm:$0xff]
      %v1662 = vld [vmem:[%s1439 + $0x159] sm:$0xff]
      %v1663 = vld [vmem:[%s1439 + $0x169] sm:$0xff]
      %v1664 = vld [vmem:[%s1439 + $0x171] sm:$0xff]
      %1697 = vrot.lane.b32.xlu0 %v1633, 56
      %v1698 = vpop.permute.xlu0 %1697
      %1699 = vrot.lane.b32.xlu0 %v1634, 56
      %v1700 = vpop.permute.xlu0 %1699
      %1701 = vrot.lane.b32.xlu0 %v1635, 56
      %v1702 = vpop.permute.xlu0 %1701
      %1703 = vrot.lane.b32.xlu0 %v1636, 56
      %v1704 = vpop.permute.xlu0 %1703
      %1705 = vrot.lane.b32.xlu0 %v1637, 56
      %v1706 = vpop.permute.xlu0 %1705
      %1707 = vrot.lane.b32.xlu0 %v1638, 56
      %v1708 = vpop.permute.xlu0 %1707
      %1709 = vrot.lane.b32.xlu0 %v1639, 56
      %v1710 = vpop.permute.xlu0 %1709
      %1711 = vrot.lane.b32.xlu0 %v1640, 56
      %v1712 = vpop.permute.xlu0 %1711
      %1713 = vrot.lane.b32.xlu0 %v1641, 56
      %v1714 = vpop.permute.xlu0 %1713
      %1715 = vrot.lane.b32.xlu0 %v1642, 56
      %v1716 = vpop.permute.xlu0 %1715
      %1717 = vrot.lane.b32.xlu0 %v1643, 56
      %v1718 = vpop.permute.xlu0 %1717
      %1719 = vrot.lane.b32.xlu0 %v1644, 56
      %v1720 = vpop.permute.xlu0 %1719
      %1721 = vrot.lane.b32.xlu0 %v1645, 56
      %v1722 = vpop.permute.xlu0 %1721
      %1723 = vrot.lane.b32.xlu0 %v1646, 56
      %v1724 = vpop.permute.xlu0 %1723
      %1725 = vrot.lane.b32.xlu0 %v1647, 56
      %v1726 = vpop.permute.xlu0 %1725
      %1727 = vrot.lane.b32.xlu0 %v1648, 56
      %v1728 = vpop.permute.xlu0 %1727
      %1729 = vrot.lane.b32.xlu0 %v1649, 56
      %v1730 = vpop.permute.xlu0 %1729
      %1731 = vrot.lane.b32.xlu0 %v1650, 56
      %v1732 = vpop.permute.xlu0 %1731
      %1733 = vrot.lane.b32.xlu0 %v1651, 56
      %v1734 = vpop.permute.xlu0 %1733
      %1735 = vrot.lane.b32.xlu0 %v1652, 56
      %v1736 = vpop.permute.xlu0 %1735
      %1737 = vrot.lane.b32.xlu0 %v1653, 56
      %v1738 = vpop.permute.xlu0 %1737
      %1739 = vrot.lane.b32.xlu0 %v1654, 56
      %v1740 = vpop.permute.xlu0 %1739
      %1741 = vrot.lane.b32.xlu0 %v1655, 56
      %v1742 = vpop.permute.xlu0 %1741
      %1743 = vrot.lane.b32.xlu0 %v1656, 56
      %v1744 = vpop.permute.xlu0 %1743
      %1745 = vrot.lane.b32.xlu0 %v1657, 56
      %v1746 = vpop.permute.xlu0 %1745
      %1747 = vrot.lane.b32.xlu0 %v1658, 56
      %v1748 = vpop.permute.xlu0 %1747
      %1749 = vrot.lane.b32.xlu0 %v1659, 56
      %v1750 = vpop.permute.xlu0 %1749
      %1751 = vrot.lane.b32.xlu0 %v1660, 56
      %v1752 = vpop.permute.xlu0 %1751
      %1753 = vrot.lane.b32.xlu0 %v1661, 56
      %v1754 = vpop.permute.xlu0 %1753
      %1755 = vrot.lane.b32.xlu0 %v1662, 56
      %v1756 = vpop.permute.xlu0 %1755
      %1757 = vrot.lane.b32.xlu0 %v1663, 56
      %v1758 = vpop.permute.xlu0 %1757
      %1759 = vrot.lane.b32.xlu0 %v1664, 56
      %v1760 = vpop.permute.xlu0 %1759
      %vm1793 = vcmask 523712
      %1794 = vst.msk [vmem:[#allocation2] sm:$0xff] %vm1793, %v1698
      %1795 = vst.msk [vmem:[#allocation2 + $0x8] sm:$0xff] %vm1793, %v1700
      %1796 = vst.msk [vmem:[#allocation2 + $0x10] sm:$0xff] %vm1793, %v1702
      %1797 = vst.msk [vmem:[#allocation2 + $0x18] sm:$0xff] %vm1793, %v1704
      %1798 = vst.msk [vmem:[#allocation2 + $0x20] sm:$0xff] %vm1793, %v1706
      %1799 = vst.msk [vmem:[#allocation2 + $0x28] sm:$0xff] %vm1793, %v1708
      %1800 = vst.msk [vmem:[#allocation2 + $0x30] sm:$0xff] %vm1793, %v1710
      %1801 = vst.msk [vmem:[#allocation2 + $0x38] sm:$0xff] %vm1793, %v1712
      %1802 = vst.msk [vmem:[#allocation2 + $0x40] sm:$0xff] %vm1793, %v1714
      %1803 = vst.msk [vmem:[#allocation2 + $0x48] sm:$0xff] %vm1793, %v1716
      %1804 = vst.msk [vmem:[#allocation2 + $0x50] sm:$0xff] %vm1793, %v1718
      %1805 = vst.msk [vmem:[#allocation2 + $0x58] sm:$0xff] %vm1793, %v1720
      %1806 = vst.msk [vmem:[#allocation2 + $0x60] sm:$0xff] %vm1793, %v1722
      %1807 = vst.msk [vmem:[#allocation2 + $0x68] sm:$0xff] %vm1793, %v1724
      %1808 = vst.msk [vmem:[#allocation2 + $0x70] sm:$0xff] %vm1793, %v1726
      %1809 = vst.msk [vmem:[#allocation2 + $0x78] sm:$0xff] %vm1793, %v1728
      %1810 = vst.msk [vmem:[#allocation2 + $0x80] sm:$0xff] %vm1793, %v1730
      %1811 = vst.msk [vmem:[#allocation2 + $0x88] sm:$0xff] %vm1793, %v1732
      %1812 = vst.msk [vmem:[#allocation2 + $0x90] sm:$0xff] %vm1793, %v1734
      %1813 = vst.msk [vmem:[#allocation2 + $0x98] sm:$0xff] %vm1793, %v1736
      %1814 = vst.msk [vmem:[#allocation2 + $0xa0] sm:$0xff] %vm1793, %v1738
      %1815 = vst.msk [vmem:[#allocation2 + $0xa8] sm:$0xff] %vm1793, %v1740
      %1816 = vst.msk [vmem:[#allocation2 + $0xb0] sm:$0xff] %vm1793, %v1742
      %1817 = vst.msk [vmem:[#allocation2 + $0xb8] sm:$0xff] %vm1793, %v1744
      %1818 = vst.msk [vmem:[#allocation2 + $0xc0] sm:$0xff] %vm1793, %v1746
      %1819 = vst.msk [vmem:[#allocation2 + $0xc8] sm:$0xff] %vm1793, %v1748
      %1820 = vst.msk [vmem:[#allocation2 + $0xd0] sm:$0xff] %vm1793, %v1750
      %1821 = vst.msk [vmem:[#allocation2 + $0xd8] sm:$0xff] %vm1793, %v1752
      %1822 = vst.msk [vmem:[#allocation2 + $0xe0] sm:$0xff] %vm1793, %v1754
      %1823 = vst.msk [vmem:[#allocation2 + $0xe8] sm:$0xff] %vm1793, %v1756
      %1824 = vst.msk [vmem:[#allocation2 + $0xf0] sm:$0xff] %vm1793, %v1758
      %1825 = vst.msk [vmem:[#allocation2 + $0xf8] sm:$0xff] %vm1793, %v1760
      %v1826 = vld [vmem:[%s1439 + $0x2] sm:$0xff]
      %v1827 = vld [vmem:[%s1439 + $0xa] sm:$0xff]
      %v1828 = vld [vmem:[%s1439 + $0x1a] sm:$0xff]
      %v1829 = vld [vmem:[%s1439 + $0x22] sm:$0xff]
      %v1830 = vld [vmem:[%s1439 + $0x32] sm:$0xff]
      %v1831 = vld [vmem:[%s1439 + $0x3a] sm:$0xff]
      %v1832 = vld [vmem:[%s1439 + $0x4a] sm:$0xff]
      %v1833 = vld [vmem:[%s1439 + $0x52] sm:$0xff]
      %v1834 = vld [vmem:[%s1439 + $0x62] sm:$0xff]
      %v1835 = vld [vmem:[%s1439 + $0x6a] sm:$0xff]
      %v1836 = vld [vmem:[%s1439 + $0x7a] sm:$0xff]
      %v1837 = vld [vmem:[%s1439 + $0x82] sm:$0xff]
      %v1838 = vld [vmem:[%s1439 + $0x92] sm:$0xff]
      %v1839 = vld [vmem:[%s1439 + $0x9a] sm:$0xff]
      %v1840 = vld [vmem:[%s1439 + $0xaa] sm:$0xff]
      %v1841 = vld [vmem:[%s1439 + $0xb2] sm:$0xff]
      %v1842 = vld [vmem:[%s1439 + $0xc2] sm:$0xff]
      %v1843 = vld [vmem:[%s1439 + $0xca] sm:$0xff]
      %v1844 = vld [vmem:[%s1439 + $0xda] sm:$0xff]
      %v1845 = vld [vmem:[%s1439 + $0xe2] sm:$0xff]
      %v1846 = vld [vmem:[%s1439 + $0xf2] sm:$0xff]
      %v1847 = vld [vmem:[%s1439 + $0xfa] sm:$0xff]
      %v1848 = vld [vmem:[%s1439 + $0x10a] sm:$0xff]
      %v1849 = vld [vmem:[%s1439 + $0x112] sm:$0xff]
      %v1850 = vld [vmem:[%s1439 + $0x122] sm:$0xff]
      %v1851 = vld [vmem:[%s1439 + $0x12a] sm:$0xff]
      %v1852 = vld [vmem:[%s1439 + $0x13a] sm:$0xff]
      %v1853 = vld [vmem:[%s1439 + $0x142] sm:$0xff]
      %v1854 = vld [vmem:[%s1439 + $0x152] sm:$0xff]
      %v1855 = vld [vmem:[%s1439 + $0x15a] sm:$0xff]
      %v1856 = vld [vmem:[%s1439 + $0x16a] sm:$0xff]
      %v1857 = vld [vmem:[%s1439 + $0x172] sm:$0xff]
      %1890 = vrot.lane.b32.xlu0 %v1826, 64
      %v1891 = vpop.permute.xlu0 %1890
      %1892 = vrot.lane.b32.xlu0 %v1827, 64
      %v1893 = vpop.permute.xlu0 %1892
      %1894 = vrot.lane.b32.xlu0 %v1828, 64
      %v1895 = vpop.permute.xlu0 %1894
      %1896 = vrot.lane.b32.xlu0 %v1829, 64
      %v1897 = vpop.permute.xlu0 %1896
      %1898 = vrot.lane.b32.xlu0 %v1830, 64
      %v1899 = vpop.permute.xlu0 %1898
      %1900 = vrot.lane.b32.xlu0 %v1831, 64
      %v1901 = vpop.permute.xlu0 %1900
      %1902 = vrot.lane.b32.xlu0 %v1832, 64
      %v1903 = vpop.permute.xlu0 %1902
      %1904 = vrot.lane.b32.xlu0 %v1833, 64
      %v1905 = vpop.permute.xlu0 %1904
      %1906 = vrot.lane.b32.xlu0 %v1834, 64
      %v1907 = vpop.permute.xlu0 %1906
      %1908 = vrot.lane.b32.xlu0 %v1835, 64
      %v1909 = vpop.permute.xlu0 %1908
      %1910 = vrot.lane.b32.xlu0 %v1836, 64
      %v1911 = vpop.permute.xlu0 %1910
      %1912 = vrot.lane.b32.xlu0 %v1837, 64
      %v1913 = vpop.permute.xlu0 %1912
      %1914 = vrot.lane.b32.xlu0 %v1838, 64
      %v1915 = vpop.permute.xlu0 %1914
      %1916 = vrot.lane.b32.xlu0 %v1839, 64
      %v1917 = vpop.permute.xlu0 %1916
      %1918 = vrot.lane.b32.xlu0 %v1840, 64
      %v1919 = vpop.permute.xlu0 %1918
      %1920 = vrot.lane.b32.xlu0 %v1841, 64
      %v1921 = vpop.permute.xlu0 %1920
      %1922 = vrot.lane.b32.xlu0 %v1842, 64
      %v1923 = vpop.permute.xlu0 %1922
      %1924 = vrot.lane.b32.xlu0 %v1843, 64
      %v1925 = vpop.permute.xlu0 %1924
      %1926 = vrot.lane.b32.xlu0 %v1844, 64
      %v1927 = vpop.permute.xlu0 %1926
      %1928 = vrot.lane.b32.xlu0 %v1845, 64
      %v1929 = vpop.permute.xlu0 %1928
      %1930 = vrot.lane.b32.xlu0 %v1846, 64
      %v1931 = vpop.permute.xlu0 %1930
      %1932 = vrot.lane.b32.xlu0 %v1847, 64
      %v1933 = vpop.permute.xlu0 %1932
      %1934 = vrot.lane.b32.xlu0 %v1848, 64
      %v1935 = vpop.permute.xlu0 %1934
      %1936 = vrot.lane.b32.xlu0 %v1849, 64
      %v1937 = vpop.permute.xlu0 %1936
      %1938 = vrot.lane.b32.xlu0 %v1850, 64
      %v1939 = vpop.permute.xlu0 %1938
      %1940 = vrot.lane.b32.xlu0 %v1851, 64
      %v1941 = vpop.permute.xlu0 %1940
      %1942 = vrot.lane.b32.xlu0 %v1852, 64
      %v1943 = vpop.permute.xlu0 %1942
      %1944 = vrot.lane.b32.xlu0 %v1853, 64
      %v1945 = vpop.permute.xlu0 %1944
      %1946 = vrot.lane.b32.xlu0 %v1854, 64
      %v1947 = vpop.permute.xlu0 %1946
      %1948 = vrot.lane.b32.xlu0 %v1855, 64
      %v1949 = vpop.permute.xlu0 %1948
      %1950 = vrot.lane.b32.xlu0 %v1856, 64
      %v1951 = vpop.permute.xlu0 %1950
      %1952 = vrot.lane.b32.xlu0 %v1857, 64
      %v1953 = vpop.permute.xlu0 %1952
      %vm1986 = vcmask 589312
      %1987 = vst.msk [vmem:[#allocation2] sm:$0xff] %vm1986, %v1891
      %1988 = vst.msk [vmem:[#allocation2 + $0x8] sm:$0xff] %vm1986, %v1893
      %1989 = vst.msk [vmem:[#allocation2 + $0x10] sm:$0xff] %vm1986, %v1895
      %1990 = vst.msk [vmem:[#allocation2 + $0x18] sm:$0xff] %vm1986, %v1897
      %1991 = vst.msk [vmem:[#allocation2 + $0x20] sm:$0xff] %vm1986, %v1899
      %1992 = vst.msk [vmem:[#allocation2 + $0x28] sm:$0xff] %vm1986, %v1901
      %1993 = vst.msk [vmem:[#allocation2 + $0x30] sm:$0xff] %vm1986, %v1903
      %1994 = vst.msk [vmem:[#allocation2 + $0x38] sm:$0xff] %vm1986, %v1905
      %1995 = vst.msk [vmem:[#allocation2 + $0x40] sm:$0xff] %vm1986, %v1907
      %1996 = vst.msk [vmem:[#allocation2 + $0x48] sm:$0xff] %vm1986, %v1909
      %1997 = vst.msk [vmem:[#allocation2 + $0x50] sm:$0xff] %vm1986, %v1911
      %1998 = vst.msk [vmem:[#allocation2 + $0x58] sm:$0xff] %vm1986, %v1913
      %1999 = vst.msk [vmem:[#allocation2 + $0x60] sm:$0xff] %vm1986, %v1915
      %2000 = vst.msk [vmem:[#allocation2 + $0x68] sm:$0xff] %vm1986, %v1917
      %2001 = vst.msk [vmem:[#allocation2 + $0x70] sm:$0xff] %vm1986, %v1919
      %2002 = vst.msk [vmem:[#allocation2 + $0x78] sm:$0xff] %vm1986, %v1921
      %2003 = vst.msk [vmem:[#allocation2 + $0x80] sm:$0xff] %vm1986, %v1923
      %2004 = vst.msk [vmem:[#allocation2 + $0x88] sm:$0xff] %vm1986, %v1925
      %2005 = vst.msk [vmem:[#allocation2 + $0x90] sm:$0xff] %vm1986, %v1927
      %2006 = vst.msk [vmem:[#allocation2 + $0x98] sm:$0xff] %vm1986, %v1929
      %2007 = vst.msk [vmem:[#allocation2 + $0xa0] sm:$0xff] %vm1986, %v1931
      %2008 = vst.msk [vmem:[#allocation2 + $0xa8] sm:$0xff] %vm1986, %v1933
      %2009 = vst.msk [vmem:[#allocation2 + $0xb0] sm:$0xff] %vm1986, %v1935
      %2010 = vst.msk [vmem:[#allocation2 + $0xb8] sm:$0xff] %vm1986, %v1937
      %2011 = vst.msk [vmem:[#allocation2 + $0xc0] sm:$0xff] %vm1986, %v1939
      %2012 = vst.msk [vmem:[#allocation2 + $0xc8] sm:$0xff] %vm1986, %v1941
      %2013 = vst.msk [vmem:[#allocation2 + $0xd0] sm:$0xff] %vm1986, %v1943
      %2014 = vst.msk [vmem:[#allocation2 + $0xd8] sm:$0xff] %vm1986, %v1945
      %2015 = vst.msk [vmem:[#allocation2 + $0xe0] sm:$0xff] %vm1986, %v1947
      %2016 = vst.msk [vmem:[#allocation2 + $0xe8] sm:$0xff] %vm1986, %v1949
      %2017 = vst.msk [vmem:[#allocation2 + $0xf0] sm:$0xff] %vm1986, %v1951
      %2018 = vst.msk [vmem:[#allocation2 + $0xf8] sm:$0xff] %vm1986, %v1953
      %v2019 = vld [vmem:[#allocation2] sm:$0xff]
      %v2020 = vld [vmem:[#allocation2 + $0x8] sm:$0xff]
      %v2021 = vld [vmem:[#allocation2 + $0x10] sm:$0xff]
      %v2022 = vld [vmem:[#allocation2 + $0x18] sm:$0xff]
      %v2023 = vld [vmem:[#allocation2 + $0x20] sm:$0xff]
      %v2024 = vld [vmem:[#allocation2 + $0x28] sm:$0xff]
      %v2025 = vld [vmem:[#allocation2 + $0x30] sm:$0xff]
      %v2026 = vld [vmem:[#allocation2 + $0x38] sm:$0xff]
      %v2027 = vld [vmem:[#allocation2 + $0x40] sm:$0xff]
      %v2028 = vld [vmem:[#allocation2 + $0x48] sm:$0xff]
      %v2029 = vld [vmem:[#allocation2 + $0x50] sm:$0xff]
      %v2030 = vld [vmem:[#allocation2 + $0x58] sm:$0xff]
      %v2031 = vld [vmem:[#allocation2 + $0x60] sm:$0xff]
      %v2032 = vld [vmem:[#allocation2 + $0x68] sm:$0xff]
      %v2033 = vld [vmem:[#allocation2 + $0x70] sm:$0xff]
      %v2034 = vld [vmem:[#allocation2 + $0x78] sm:$0xff]
      %v2035 = vld [vmem:[#allocation2 + $0x80] sm:$0xff]
      %v2036 = vld [vmem:[#allocation2 + $0x88] sm:$0xff]
      %v2037 = vld [vmem:[#allocation2 + $0x90] sm:$0xff]
      %v2038 = vld [vmem:[#allocation2 + $0x98] sm:$0xff]
      %v2039 = vld [vmem:[#allocation2 + $0xa0] sm:$0xff]
      %v2040 = vld [vmem:[#allocation2 + $0xa8] sm:$0xff]
      %v2041 = vld [vmem:[#allocation2 + $0xb0] sm:$0xff]
      %v2042 = vld [vmem:[#allocation2 + $0xb8] sm:$0xff]
      %v2043 = vld [vmem:[#allocation2 + $0xc0] sm:$0xff]
      %v2044 = vld [vmem:[#allocation2 + $0xc8] sm:$0xff]
      %v2045 = vld [vmem:[#allocation2 + $0xd0] sm:$0xff]
      %v2046 = vld [vmem:[#allocation2 + $0xd8] sm:$0xff]
      %v2047 = vld [vmem:[#allocation2 + $0xe0] sm:$0xff]
      %v2048 = vld [vmem:[#allocation2 + $0xe8] sm:$0xff]
      %v2049 = vld [vmem:[#allocation2 + $0xf0] sm:$0xff]
      %v2050 = vld [vmem:[#allocation2 + $0xf8] sm:$0xff]
      %v2051 = vld [vmem:[%s1] sm:$0xff]
      %v2052 = vld [vmem:[%s1 + $0x8] sm:$0xff]
      %v2053 = vld [vmem:[%s1 + $0x10] sm:$0xff]
      %v2054 = vld [vmem:[%s1 + $0x18] sm:$0xff]
      %v2055 = vld [vmem:[%s1 + $0x20] sm:$0xff]
      %v2056 = vld [vmem:[%s1 + $0x28] sm:$0xff]
      %v2057 = vld [vmem:[%s1 + $0x30] sm:$0xff]
      %v2058 = vld [vmem:[%s1 + $0x38] sm:$0xff]
      %v2059 = vld [vmem:[%s1 + $0x40] sm:$0xff]
      %v2060 = vld [vmem:[%s2] sm:$0x1]
      %v2062 = vperm.slane %v2060, 0
      %vm2064 = vcmask 588800
      %v2066 = vsel %vm2064, %v2019, 0
      %v2069 = vsel %vm2064, %v2020, 0
      %v2072 = vsel %vm2064, %v2021, 0
      %v2075 = vsel %vm2064, %v2022, 0
      %v2078 = vsel %vm2064, %v2023, 0
      %v2081 = vsel %vm2064, %v2024, 0
      %v2084 = vsel %vm2064, %v2025, 0
      %v2087 = vsel %vm2064, %v2026, 0
      %v2090 = vsel %vm2064, %v2027, 0
      %v2093 = vsel %vm2064, %v2028, 0
      %v2096 = vsel %vm2064, %v2029, 0
      %v2099 = vsel %vm2064, %v2030, 0
      %v2102 = vsel %vm2064, %v2031, 0
      %v2105 = vsel %vm2064, %v2032, 0
      %v2108 = vsel %vm2064, %v2033, 0
      %v2111 = vsel %vm2064, %v2034, 0
      %v2114 = vsel %vm2064, %v2035, 0
      %v2117 = vsel %vm2064, %v2036, 0
      %v2120 = vsel %vm2064, %v2037, 0
      %v2123 = vsel %vm2064, %v2038, 0
      %v2126 = vsel %vm2064, %v2039, 0
      %v2129 = vsel %vm2064, %v2040, 0
      %v2132 = vsel %vm2064, %v2041, 0
      %v2135 = vsel %vm2064, %v2042, 0
      %v2138 = vsel %vm2064, %v2043, 0
      %v2141 = vsel %vm2064, %v2044, 0
      %v2144 = vsel %vm2064, %v2045, 0
      %v2147 = vsel %vm2064, %v2046, 0
      %v2150 = vsel %vm2064, %v2047, 0
      %v2153 = vsel %vm2064, %v2048, 0
      %v2156 = vsel %vm2064, %v2049, 0
      %v2159 = vsel %vm2064, %v2050, 0
      %2161 = vmatpush.msra.mxu0 0.0
      %2162 = vmatpush.msra.mxu0 0.0
      %2163 = vmatpush.msra.mxu0 0.0
      %2164 = vmatpush.msra.mxu0 0.0
      %2165 = vmatpush.msra.mxu0 0.0
      %2166 = vmatpush.msra.mxu0 0.0
      %2167 = vmatpush.msra.mxu0 0.0
      %2168 = vmatpush.msra.mxu0 %v2059
      %2169 = vmatpush.msra.mxu0 %v2058
      %2170 = vmatpush.msra.mxu0 %v2057
      %2171 = vmatpush.msra.mxu0 %v2056
      %2172 = vmatpush.msra.mxu0 %v2055
      %2173 = vmatpush.msra.mxu0 %v2054
      %2174 = vmatpush.msra.mxu0 %v2053
      %2175 = vmatpush.msra.mxu0 %v2052
      %2176 = vmatpush.msra.mxu0 %v2051
      %2177 = vmatmul.f32.gmra.mxu0 %v2066
      %v2178 = vpop.f32.mrf.mxu0
      %v2179 = vadd.f32 %v2062, %v2178
      %2180 = vmatmul.f32.gmra.mxu0 %v2069
      %v2181 = vpop.f32.mrf.mxu0
      %v2182 = vadd.f32 %v2062, %v2181
      %2183 = vmatmul.f32.gmra.mxu0 %v2072
      %v2184 = vpop.f32.mrf.mxu0
      %v2185 = vadd.f32 %v2062, %v2184
      %2186 = vmatmul.f32.gmra.mxu0 %v2075
      %v2187 = vpop.f32.mrf.mxu0
      %v2188 = vadd.f32 %v2062, %v2187
      %2189 = vmatmul.f32.gmra.mxu0 %v2078
      %v2190 = vpop.f32.mrf.mxu0
      %v2191 = vadd.f32 %v2062, %v2190
      %2192 = vmatmul.f32.gmra.mxu0 %v2081
      %v2193 = vpop.f32.mrf.mxu0
      %v2194 = vadd.f32 %v2062, %v2193
      %2195 = vmatmul.f32.gmra.mxu0 %v2084
      %v2196 = vpop.f32.mrf.mxu0
      %v2197 = vadd.f32 %v2062, %v2196
      %2198 = vmatmul.f32.gmra.mxu0 %v2087
      %v2199 = vpop.f32.mrf.mxu0
      %v2200 = vadd.f32 %v2062, %v2199
      %2201 = vmatmul.f32.gmra.mxu0 %v2090
      %v2202 = vpop.f32.mrf.mxu0
      %v2203 = vadd.f32 %v2062, %v2202
      %2204 = vmatmul.f32.gmra.mxu0 %v2093
      %v2205 = vpop.f32.mrf.mxu0
      %v2206 = vadd.f32 %v2062, %v2205
      %2207 = vmatmul.f32.gmra.mxu0 %v2096
      %v2208 = vpop.f32.mrf.mxu0
      %v2209 = vadd.f32 %v2062, %v2208
      %2210 = vmatmul.f32.gmra.mxu0 %v2099
      %v2211 = vpop.f32.mrf.mxu0
      %v2212 = vadd.f32 %v2062, %v2211
      %2213 = vmatmul.f32.gmra.mxu0 %v2102
      %v2214 = vpop.f32.mrf.mxu0
      %v2215 = vadd.f32 %v2062, %v2214
      %2216 = vmatmul.f32.gmra.mxu0 %v2105
      %v2217 = vpop.f32.mrf.mxu0
      %v2218 = vadd.f32 %v2062, %v2217
      %2219 = vmatmul.f32.gmra.mxu0 %v2108
      %v2220 = vpop.f32.mrf.mxu0
      %v2221 = vadd.f32 %v2062, %v2220
      %2222 = vmatmul.f32.gmra.mxu0 %v2111
      %v2223 = vpop.f32.mrf.mxu0
      %v2224 = vadd.f32 %v2062, %v2223
      %2225 = vmatmul.f32.gmra.mxu0 %v2114
      %v2226 = vpop.f32.mrf.mxu0
      %v2227 = vadd.f32 %v2062, %v2226
      %2228 = vmatmul.f32.gmra.mxu0 %v2117
      %v2229 = vpop.f32.mrf.mxu0
      %v2230 = vadd.f32 %v2062, %v2229
      %2231 = vmatmul.f32.gmra.mxu0 %v2120
      %v2232 = vpop.f32.mrf.mxu0
      %v2233 = vadd.f32 %v2062, %v2232
      %2234 = vmatmul.f32.gmra.mxu0 %v2123
      %v2235 = vpop.f32.mrf.mxu0
      %v2236 = vadd.f32 %v2062, %v2235
      %2237 = vmatmul.f32.gmra.mxu0 %v2126
      %v2238 = vpop.f32.mrf.mxu0
      %v2239 = vadd.f32 %v2062, %v2238
      %2240 = vmatmul.f32.gmra.mxu0 %v2129
      %v2241 = vpop.f32.mrf.mxu0
      %v2242 = vadd.f32 %v2062, %v2241
      %2243 = vmatmul.f32.gmra.mxu0 %v2132
      %v2244 = vpop.f32.mrf.mxu0
      %v2245 = vadd.f32 %v2062, %v2244
      %2246 = vmatmul.f32.gmra.mxu0 %v2135
      %v2247 = vpop.f32.mrf.mxu0
      %v2248 = vadd.f32 %v2062, %v2247
      %2249 = vmatmul.f32.gmra.mxu0 %v2138
      %v2250 = vpop.f32.mrf.mxu0
      %v2251 = vadd.f32 %v2062, %v2250
      %2252 = vmatmul.f32.gmra.mxu0 %v2141
      %v2253 = vpop.f32.mrf.mxu0
      %v2254 = vadd.f32 %v2062, %v2253
      %2255 = vmatmul.f32.gmra.mxu0 %v2144
      %v2256 = vpop.f32.mrf.mxu0
      %v2257 = vadd.f32 %v2062, %v2256
      %2258 = vmatmul.f32.gmra.mxu0 %v2147
      %v2259 = vpop.f32.mrf.mxu0
      %v2260 = vadd.f32 %v2062, %v2259
      %2261 = vmatmul.f32.gmra.mxu0 %v2150
      %v2262 = vpop.f32.mrf.mxu0
      %v2263 = vadd.f32 %v2062, %v2262
      %2264 = vmatmul.f32.gmra.mxu0 %v2153
      %v2265 = vpop.f32.mrf.mxu0
      %v2266 = vadd.f32 %v2062, %v2265
      %2267 = vmatmul.f32.gmra.mxu0 %v2156
      %v2268 = vpop.f32.mrf.mxu0
      %v2269 = vadd.f32 %v2062, %v2268
      %2270 = vmatmul.f32.gmra.mxu0 %v2159
      %v2271 = vpop.f32.mrf.mxu0
      %v2272 = vadd.f32 %v2062, %v2271
      %2273 = vdwg.mxu0
      %vm2274 = vcmask 130048
      %2275 = vst.msk [vmem:[%s267] sm:$0xff] %vm2274, %v2179
      %2276 = vst.msk [vmem:[%s267 + $0x8] sm:$0xff] %vm2274, %v2182
      %2277 = vst.msk [vmem:[%s267 + $0x10] sm:$0xff] %vm2274, %v2185
      %2278 = vst.msk [vmem:[%s267 + $0x18] sm:$0xff] %vm2274, %v2188
      %2279 = vst.msk [vmem:[%s267 + $0x20] sm:$0xff] %vm2274, %v2191
      %2280 = vst.msk [vmem:[%s267 + $0x28] sm:$0xff] %vm2274, %v2194
      %2281 = vst.msk [vmem:[%s267 + $0x30] sm:$0xff] %vm2274, %v2197
      %2282 = vst.msk [vmem:[%s267 + $0x38] sm:$0xff] %vm2274, %v2200
      %2283 = vst.msk [vmem:[%s267 + $0x40] sm:$0xff] %vm2274, %v2203
      %2284 = vst.msk [vmem:[%s267 + $0x48] sm:$0xff] %vm2274, %v2206
      %2285 = vst.msk [vmem:[%s267 + $0x50] sm:$0xff] %vm2274, %v2209
      %2286 = vst.msk [vmem:[%s267 + $0x58] sm:$0xff] %vm2274, %v2212
      %2287 = vst.msk [vmem:[%s267 + $0x60] sm:$0xff] %vm2274, %v2215
      %2288 = vst.msk [vmem:[%s267 + $0x68] sm:$0xff] %vm2274, %v2218
      %2289 = vst.msk [vmem:[%s267 + $0x70] sm:$0xff] %vm2274, %v2221
      %2290 = vst.msk [vmem:[%s267 + $0x78] sm:$0xff] %vm2274, %v2224
      %2291 = vst.msk [vmem:[%s267 + $0x80] sm:$0xff] %vm2274, %v2227
      %2292 = vst.msk [vmem:[%s267 + $0x88] sm:$0xff] %vm2274, %v2230
      %2293 = vst.msk [vmem:[%s267 + $0x90] sm:$0xff] %vm2274, %v2233
      %2294 = vst.msk [vmem:[%s267 + $0x98] sm:$0xff] %vm2274, %v2236
      %2295 = vst.msk [vmem:[%s267 + $0xa0] sm:$0xff] %vm2274, %v2239
      %2296 = vst.msk [vmem:[%s267 + $0xa8] sm:$0xff] %vm2274, %v2242
      %2297 = vst.msk [vmem:[%s267 + $0xb0] sm:$0xff] %vm2274, %v2245
      %2298 = vst.msk [vmem:[%s267 + $0xb8] sm:$0xff] %vm2274, %v2248
      %2299 = vst.msk [vmem:[%s267 + $0xc0] sm:$0xff] %vm2274, %v2251
      %2300 = vst.msk [vmem:[%s267 + $0xc8] sm:$0xff] %vm2274, %v2254
      %2301 = vst.msk [vmem:[%s267 + $0xd0] sm:$0xff] %vm2274, %v2257
      %2302 = vst.msk [vmem:[%s267 + $0xd8] sm:$0xff] %vm2274, %v2260
      %2303 = vst.msk [vmem:[%s267 + $0xe0] sm:$0xff] %vm2274, %v2263
      %2304 = vst.msk [vmem:[%s267 + $0xe8] sm:$0xff] %vm2274, %v2266
      %2305 = vst.msk [vmem:[%s267 + $0xf0] sm:$0xff] %vm2274, %v2269
      %2306 = vst.msk [vmem:[%s267 + $0xf8] sm:$0xff] %vm2274, %v2272
      %v2307 = vsel %vm2274, %v2179, 0.0
      %v2308 = vsel %vm2274, %v2182, 0.0
      %v2309 = vadd.f32 %v2307, %v2308
      %v2310 = vsel %vm2274, %v2185, 0.0
      %v2311 = vadd.f32 %v2309, %v2310
      %v2312 = vsel %vm2274, %v2188, 0.0
      %v2313 = vadd.f32 %v2311, %v2312
      %v2314 = vsel %vm2274, %v2191, 0.0
      %v2315 = vadd.f32 %v2313, %v2314
      %v2316 = vsel %vm2274, %v2194, 0.0
      %v2317 = vadd.f32 %v2315, %v2316
      %v2318 = vsel %vm2274, %v2197, 0.0
      %v2319 = vadd.f32 %v2317, %v2318
      %v2320 = vsel %vm2274, %v2200, 0.0
      %v2321 = vadd.f32 %v2319, %v2320
      %v2322 = vsel %vm2274, %v2203, 0.0
      %v2323 = vadd.f32 %v2321, %v2322
      %v2324 = vsel %vm2274, %v2206, 0.0
      %v2325 = vadd.f32 %v2323, %v2324
      %v2326 = vsel %vm2274, %v2209, 0.0
      %v2327 = vadd.f32 %v2325, %v2326
      %v2328 = vsel %vm2274, %v2212, 0.0
      %v2329 = vadd.f32 %v2327, %v2328
      %v2330 = vsel %vm2274, %v2215, 0.0
      %v2331 = vadd.f32 %v2329, %v2330
      %v2332 = vsel %vm2274, %v2218, 0.0
      %v2333 = vadd.f32 %v2331, %v2332
      %v2334 = vsel %vm2274, %v2221, 0.0
      %v2335 = vadd.f32 %v2333, %v2334
      %v2336 = vsel %vm2274, %v2224, 0.0
      %v2337 = vadd.f32 %v2335, %v2336
      %v2338 = vsel %vm2274, %v2227, 0.0
      %v2339 = vadd.f32 %v2337, %v2338
      %v2340 = vsel %vm2274, %v2230, 0.0
      %v2341 = vadd.f32 %v2339, %v2340
      %v2342 = vsel %vm2274, %v2233, 0.0
      %v2343 = vadd.f32 %v2341, %v2342
      %v2344 = vsel %vm2274, %v2236, 0.0
      %v2345 = vadd.f32 %v2343, %v2344
      %v2346 = vsel %vm2274, %v2239, 0.0
      %v2347 = vadd.f32 %v2345, %v2346
      %v2348 = vsel %vm2274, %v2242, 0.0
      %v2349 = vadd.f32 %v2347, %v2348
      %v2350 = vsel %vm2274, %v2245, 0.0
      %v2351 = vadd.f32 %v2349, %v2350
      %v2352 = vsel %vm2274, %v2248, 0.0
      %v2353 = vadd.f32 %v2351, %v2352
      %v2354 = vsel %vm2274, %v2251, 0.0
      %v2355 = vadd.f32 %v2353, %v2354
      %v2356 = vsel %vm2274, %v2254, 0.0
      %v2357 = vadd.f32 %v2355, %v2356
      %v2358 = vsel %vm2274, %v2257, 0.0
      %v2359 = vadd.f32 %v2357, %v2358
      %v2360 = vsel %vm2274, %v2260, 0.0
      %v2361 = vadd.f32 %v2359, %v2360
      %v2362 = vsel %vm2274, %v2263, 0.0
      %v2363 = vadd.f32 %v2361, %v2362
      %v2364 = vsel %vm2274, %v2266, 0.0
      %v2365 = vadd.f32 %v2363, %v2364
      %v2366 = vsel %vm2274, %v2269, 0.0
      %v2367 = vadd.f32 %v2365, %v2366
      %v2368 = vsel %vm2274, %v2272, 0.0
      %v2369 = vadd.f32 %v2367, %v2368
      %v2370 = vrot.slane %v2369, 4
      %v2371 = vadd.f32 %v2369, %v2370
      %v2372 = vrot.slane %v2371, 2
      %v2373 = vadd.f32 %v2371, %v2372
      %v2374 = vrot.slane %v2373, 1
      %v2375 = vadd.f32 %v2373, %v2374
      %vm2376 = vcmask 122880
      %2377 = vst.msk [vmem:[%s274] sm:$0x1] %vm2376, %v2375
      %v2378 = vmul.f32 %v2179, %v2179
      %v2379 = vmul.f32 %v2182, %v2182
      %v2380 = vmul.f32 %v2185, %v2185
      %v2381 = vmul.f32 %v2188, %v2188
      %v2382 = vmul.f32 %v2191, %v2191
      %v2383 = vmul.f32 %v2194, %v2194
      %v2384 = vmul.f32 %v2197, %v2197
      %v2385 = vmul.f32 %v2200, %v2200
      %v2386 = vmul.f32 %v2203, %v2203
      %v2387 = vmul.f32 %v2206, %v2206
      %v2388 = vmul.f32 %v2209, %v2209
      %v2389 = vmul.f32 %v2212, %v2212
      %v2390 = vmul.f32 %v2215, %v2215
      %v2391 = vmul.f32 %v2218, %v2218
      %v2392 = vmul.f32 %v2221, %v2221
      %v2393 = vmul.f32 %v2224, %v2224
      %v2394 = vmul.f32 %v2227, %v2227
      %v2395 = vmul.f32 %v2230, %v2230
      %v2396 = vmul.f32 %v2233, %v2233
      %v2397 = vmul.f32 %v2236, %v2236
      %v2398 = vmul.f32 %v2239, %v2239
      %v2399 = vmul.f32 %v2242, %v2242
      %v2400 = vmul.f32 %v2245, %v2245
      %v2401 = vmul.f32 %v2248, %v2248
      %v2402 = vmul.f32 %v2251, %v2251
      %v2403 = vmul.f32 %v2254, %v2254
      %v2404 = vmul.f32 %v2257, %v2257
      %v2405 = vmul.f32 %v2260, %v2260
      %v2406 = vmul.f32 %v2263, %v2263
      %v2407 = vmul.f32 %v2266, %v2266
      %v2408 = vmul.f32 %v2269, %v2269
      %v2409 = vmul.f32 %v2272, %v2272
      %v2410 = vsel %vm2274, %v2378, 0.0
      %v2411 = vsel %vm2274, %v2379, 0.0
      %v2412 = vadd.f32 %v2410, %v2411
      %v2413 = vsel %vm2274, %v2380, 0.0
      %v2414 = vadd.f32 %v2412, %v2413
      %v2415 = vsel %vm2274, %v2381, 0.0
      %v2416 = vadd.f32 %v2414, %v2415
      %v2417 = vsel %vm2274, %v2382, 0.0
      %v2418 = vadd.f32 %v2416, %v2417
      %v2419 = vsel %vm2274, %v2383, 0.0
      %v2420 = vadd.f32 %v2418, %v2419
      %v2421 = vsel %vm2274, %v2384, 0.0
      %v2422 = vadd.f32 %v2420, %v2421
      %v2423 = vsel %vm2274, %v2385, 0.0
      %v2424 = vadd.f32 %v2422, %v2423
      %v2425 = vsel %vm2274, %v2386, 0.0
      %v2426 = vadd.f32 %v2424, %v2425
      %v2427 = vsel %vm2274, %v2387, 0.0
      %v2428 = vadd.f32 %v2426, %v2427
      %v2429 = vsel %vm2274, %v2388, 0.0
      %v2430 = vadd.f32 %v2428, %v2429
      %v2431 = vsel %vm2274, %v2389, 0.0
      %v2432 = vadd.f32 %v2430, %v2431
      %v2433 = vsel %vm2274, %v2390, 0.0
      %v2434 = vadd.f32 %v2432, %v2433
      %v2435 = vsel %vm2274, %v2391, 0.0
      %v2436 = vadd.f32 %v2434, %v2435
      %v2437 = vsel %vm2274, %v2392, 0.0
      %v2438 = vadd.f32 %v2436, %v2437
      %v2439 = vsel %vm2274, %v2393, 0.0
      %v2440 = vadd.f32 %v2438, %v2439
      %v2441 = vsel %vm2274, %v2394, 0.0
      %v2442 = vadd.f32 %v2440, %v2441
      %v2443 = vsel %vm2274, %v2395, 0.0
      %v2444 = vadd.f32 %v2442, %v2443
      %v2445 = vsel %vm2274, %v2396, 0.0
      %v2446 = vadd.f32 %v2444, %v2445
      %v2447 = vsel %vm2274, %v2397, 0.0
      %v2448 = vadd.f32 %v2446, %v2447
      %v2449 = vsel %vm2274, %v2398, 0.0
      %v2450 = vadd.f32 %v2448, %v2449
      %v2451 = vsel %vm2274, %v2399, 0.0
      %v2452 = vadd.f32 %v2450, %v2451
      %v2453 = vsel %vm2274, %v2400, 0.0
      %v2454 = vadd.f32 %v2452, %v2453
      %v2455 = vsel %vm2274, %v2401, 0.0
      %v2456 = vadd.f32 %v2454, %v2455
      %v2457 = vsel %vm2274, %v2402, 0.0
      %v2458 = vadd.f32 %v2456, %v2457
      %v2459 = vsel %vm2274, %v2403, 0.0
      %v2460 = vadd.f32 %v2458, %v2459
      %v2461 = vsel %vm2274, %v2404, 0.0
      %v2462 = vadd.f32 %v2460, %v2461
      %v2463 = vsel %vm2274, %v2405, 0.0
      %v2464 = vadd.f32 %v2462, %v2463
      %v2465 = vsel %vm2274, %v2406, 0.0
      %v2466 = vadd.f32 %v2464, %v2465
      %v2467 = vsel %vm2274, %v2407, 0.0
      %v2468 = vadd.f32 %v2466, %v2467
      %v2469 = vsel %vm2274, %v2408, 0.0
      %v2470 = vadd.f32 %v2468, %v2469
      %v2471 = vsel %vm2274, %v2409, 0.0
      %v2472 = vadd.f32 %v2470, %v2471
      %v2473 = vrot.slane %v2472, 4
      %v2474 = vadd.f32 %v2472, %v2473
      %v2475 = vrot.slane %v2474, 2
      %v2476 = vadd.f32 %v2474, %v2475
      %v2477 = vrot.slane %v2476, 1
      %v2478 = vadd.f32 %v2476, %v2477
      %2479 = vst.msk [vmem:[%s280] sm:$0x1] %vm2376, %v2478
      %s2480 = smul.u32 32, %s22
      %p2481 = scmp.lt.s32.totalorder %s21, 1
      %s2482 = scalar_select %p2481, %s21, 1
      %p2483 = scmp.lt.s32.totalorder %s2480, 31
      %s2484 = scalar_select %p2483, %s2480, 31
      %s2485 = smul.addr %s2482, 32
      %s2486 = sadd.s32 %s2484, %s2485
      %s2487 = smul.addr %s2486, 8
      %s2488 = scalar_lea.vmem %s3, %s2487
      %p2489 = scmp.lt.s32.totalorder %s21, 1
      %s2490 = scalar_select %p2489, %s21, 1
      %p2491 = scmp.lt.s32.totalorder %s22, 0
      %s2492 = scalar_select %p2491, %s22, 0
      %s2493 = sadd.s32 %s2492, %s2490
      %s2494 = scalar_lea.vmem %s4, %s2493
      %p2495 = scmp.lt.s32.totalorder %s21, 1
      %s2496 = scalar_select %p2495, %s21, 1
      %p2497 = scmp.lt.s32.totalorder %s22, 0
      %s2498 = scalar_select %p2497, %s22, 0
      %s2499 = sadd.s32 %s2498, %s2496
      %s2500 = scalar_lea.vmem %s5, %s2499
      // Predicated region
      $region33: #{residual_block.5} parent=31 // pred_check
        %p2501 = pneg %p117
      $region34: #{residual_block.5} parent=31 // pred_check_branch
        %2503 = sbr.rel (%p2501) target = $region36
      $region35: #{residual_block.5} parent=31 // pred_region
        %s2504 = smul.u32 32, %s22
      $region36: #{residual_block.5} parent=31 // pred_fallthru
        _
      // Predicated region
      $region37: #{residual_block.5} parent=31 // pred_check
        %p2505 = pneg %p145
      $region38: #{residual_block.5} parent=31 // pred_check_branch
        %2507 = sbr.rel (%p2505) target = $region40
      $region39: #{residual_block.5} parent=31 // pred_region
        _
      $region40: #{residual_block.5} parent=31 // pred_fallthru
        _
      // Predicated region
      $region41: #{residual_block.5} parent=31 // pred_check
        %p2508 = pneg %p173
      $region42: #{residual_block.5} parent=31 // pred_check_branch
        %2510 = sbr.rel (%p2508) target = $region44
      $region43: #{residual_block.5} parent=31 // pred_region
        _
      $region44: #{residual_block.5} parent=31 // pred_fallthru
        _
    $region32: #{residual_block.5} parent=5 // pred_fallthru
      _
    %p2511 = scmp.le.s32.totalorder 2, %s12
    // Predicated region
    $region45: #{residual_block.5} parent=5 // pred_check
      %p2512 = pneg %p2511
    $region46: #{residual_block.5} parent=5 // pred_check_branch
      %2514 = sbr.rel (%p2512) target = $region48
    $region47: #{residual_block.5} parent=5 // pred_region
      %s2515 = ssub.s32 %s12, 2
      // Predicated region
      $region49: #{residual_block.5} parent=47 // pred_check
        %p2516 = pneg %p123
      $region50: #{residual_block.5} parent=47 // pred_check_branch
        %2518 = sbr.rel (%p2516) target = $region52
      $region51: #{residual_block.5} parent=47 // pred_region
        %s2519 = smul.u32 32, %s24
        %p2520 = scmp.lt.s32.totalorder %s23, 1
        %s2521 = scalar_select %p2520, %s23, 1
        %p2522 = scmp.lt.s32.totalorder %s2519, 31
        %s2523 = scalar_select %p2522, %s2519, 31
        %s2524 = smul.addr %s2521, 32
        %s2525 = sadd.s32 %s2523, %s2524
        %s2526 = smul.addr %s2525, 8
        %s2527 = scalar_lea.vmem %s3, %s2526
      $region52: #{residual_block.5} parent=47 // pred_fallthru
        _
      // Predicated region
      $region53: #{residual_block.5} parent=47 // pred_check
        %p2528 = pneg %p151
      $region54: #{residual_block.5} parent=47 // pred_check_branch
        %2530 = sbr.rel (%p2528) target = $region56
      $region55: #{residual_block.5} parent=47 // pred_region
        %p2531 = scmp.lt.s32.totalorder %s23, 1
        %s2532 = scalar_select %p2531, %s23, 1
        %p2533 = scmp.lt.s32.totalorder %s24, 0
        %s2534 = scalar_select %p2533, %s24, 0
        %s2535 = sadd.s32 %s2534, %s2532
        %s2536 = scalar_lea.vmem %s4, %s2535
      $region56: #{residual_block.5} parent=47 // pred_fallthru
        _
      // Predicated region
      $region57: #{residual_block.5} parent=47 // pred_check
        %p2537 = pneg %p179
      $region58: #{residual_block.5} parent=47 // pred_check_branch
        %2539 = sbr.rel (%p2537) target = $region60
      $region59: #{residual_block.5} parent=47 // pred_region
        %p2540 = scmp.lt.s32.totalorder %s23, 1
        %s2541 = scalar_select %p2540, %s23, 1
        %p2542 = scmp.lt.s32.totalorder %s24, 0
        %s2543 = scalar_select %p2542, %s24, 0
        %s2544 = sadd.s32 %s2543, %s2541
        %s2545 = scalar_lea.vmem %s5, %s2544
      $region60: #{residual_block.5} parent=47 // pred_fallthru
        _
    $region48: #{residual_block.5} parent=5 // pred_fallthru
      _
  $region6: #{residual_block.5} parent=0 // loop_footer
    %s16 = sadd.s32 1, %s12
  $region7: #{residual_block.5} parent=0 // loop_footer_branch
    %11 = sbr.rel target = $region3
  $region8: #{residual_block.5} parent=0 // loop_exit
    _

// kernel: residual_block.9
$region0: #{residual_block.9}
  #allocation0 [shape = 'u32[]', space=smem, size = 0x4, offset = 0x4, fixed_abs, tag = 'smem constant byte address 0x4 - core index']
  #allocation1 [shape = 'u32[72,128]{1,0:T(1,128)}', space=vmem, size = 0x9000, scoped, tag = 'internal scratch']
  %s0 = inlined_call_operand.vmem [shape: f32[2,256,16], index: 0, kind: input, shape index: {}]
  %s1 = inlined_call_operand.vmem [shape: f32[2,256,16], index: 1, kind: input, shape index: {}]
  %s2 = inlined_call_operand.vmem [shape: f32[1,16], index: 2, kind: input, shape index: {}]
  %s3 = inlined_call_operand.vmem [shape: f32[1,16], index: 3, kind: input, shape index: {}]
  %s4 = inlined_call_operand.vmem [shape: f32[1,16], index: 4, kind: input, shape index: {}]
  %s5 = inlined_call_operand.vmem [shape: f32[1,16], index: 5, kind: input, shape index: {}]
  %s6 = inlined_call_operand.vmem [shape: f32[2,256,16], index: 6, kind: output, shape index: {}]
  %s7 = sld [smem:[#allocation0]]
  $region57: #{residual_block.9} parent=0
    _
  %s9 = ssub.s32 1, %s7
  %s10 = scalar_select 0, %s9, %s7
  loop: start=0, step=1, limit=4
  $region2: #{residual_block.9} parent=0 // loop_pre_header
    _
  $region3: #{residual_block.9} parent=0 // loop_header
    %s12 = sphi 0, %s16
    %p13 = scmp.ge.s32.totalorder %s12, 4
    %s19 = sphi 0, %s31
    %s20 = sphi 0, %s27
    %s21 = sphi 0, %s19
    %s22 = sphi 0, %s20
    %s23 = sphi 0, %s21
    %s24 = sphi 0, %s22
    %s36 = sphi 0, %s38
    %s39 = sphi 0, %s36
    %s40 = sphi 0, %s39
    %s56 = sphi 0, %s40
    %s64 = sphi 0, %s66
    %s67 = sphi 0, %s64
    %s68 = sphi 0, %s67
    %s84 = sphi 0, %s68
    %s88 = sphi 0, %s88
    %s90 = sphi 0, %s88
    %s91 = sphi 0, %s90
    %s105 = sphi 0, %s91
    %s109 = sphi 0, %s109
    %s111 = sphi 0, %s109
    %s112 = sphi 0, %s111
    %s126 = sphi 0, %s112
    %s130 = sphi 0, %s130
    %s132 = sphi 0, %s130
    %s133 = sphi 0, %s132
    %s147 = sphi 0, %s133
    %s151 = sphi 0, %s151
    %s153 = sphi 0, %s151
    %s154 = sphi 0, %s153
    %s168 = sphi 0, %s154
    %s176 = sphi 0, %s178
    %s179 = sphi 0, %s176
    %s180 = sphi 0, %s179
    %s196 = sphi 0, %s180
  $region4: #{residual_block.9} parent=0 // loop_header_branch
    %15 = sbr.rel (%p13) target = $region8
  $region5: #{residual_block.9} parent=0 // loop_body
    %s17 = ssub.s32 %s12, 1
    %s18 = ssub.s32 %s12, 2
    %s25 = sadd.s32 1, %s20
    %p26 = scmp.ge.s32.totalorder %s25, 1
    %s27 = scalar_select %p26, 0, %s25
    %s28 = sadd.s32 1, %s19
    %s29 = scalar_select %p26, %s28, %s19
    %p30 = scmp.ge.s32.totalorder %s29, 2
    %s31 = scalar_select %p30, 0, %s29
    %s32 = ssub.s32 %s19, %s31
    %s33 = ssub.s32 %s20, %s27
    %s34 = sor.u32 %s32, %s33
    %p35 = scmp.eq.s32.totalorder %s34, 0
    %s37 = sadd.s32 %s36, 1
    %s38 = scalar_select %p35, %s36, %s37
    %p41 = pneg %p35
    %p42 = scmp.eq.s32.totalorder %s12, 1
    %p43 = por %p41, %p42
    %p44 = scmp.ne.s32.totalorder %s36, %s39
    %p45 = scmp.eq.s32.totalorder %s12, 0
    %p46 = por %p44, %p45
    %p47 = scmp.ne.s32.totalorder %s36, %s39
    %p48 = scmp.eq.s32.totalorder %s17, 1
    %p49 = por %p47, %p48
    %p50 = scmp.ne.s32.totalorder %s39, %s40
    %p51 = scmp.eq.s32.totalorder %s17, 0
    %p52 = por %p50, %p51
    %p53 = scmp.ne.s32.totalorder %s39, %s40
    %p54 = scmp.eq.s32.totalorder %s18, 1
    %p55 = por %p53, %p54
    %p57 = scmp.ne.s32.totalorder %s40, %s56
    %p58 = scmp.eq.s32.totalorder %s18, 0
    %p59 = por %p57, %p58
    %s60 = ssub.s32 %s19, %s31
    %s61 = ssub.s32 %s20, %s27
    %s62 = sor.u32 %s60, %s61
    %p63 = scmp.eq.s32.totalorder %s62, 0
    %s65 = sadd.s32 %s64, 1
    %s66 = scalar_select %p63, %s64, %s65
    %p69 = pneg %p63
    %p70 = scmp.eq.s32.totalorder %s12, 1
    %p71 = por %p69, %p70
    %p72 = scmp.ne.s32.totalorder %s64, %s67
    %p73 = scmp.eq.s32.totalorder %s12, 0
    %p74 = por %p72, %p73
    %p75 = scmp.ne.s32.totalorder %s64, %s67
    %p76 = scmp.eq.s32.totalorder %s17, 1
    %p77 = por %p75, %p76
    %p78 = scmp.ne.s32.totalorder %s67, %s68
    %p79 = scmp.eq.s32.totalorder %s17, 0
    %p80 = por %p78, %p79
    %p81 = scmp.ne.s32.totalorder %s67, %s68
    %p82 = scmp.eq.s32.totalorder %s18, 1
    %p83 = por %p81, %p82
    %p85 = scmp.ne.s32.totalorder %s68, %s84
    %p86 = scmp.eq.s32.totalorder %s18, 0
    %p87 = por %p85, %p86
    %s89 = sadd.s32 %s88, 1
    %p92 = scmp.eq.s32.totalorder %s12, 1
    %p93 = scmp.ne.s32.totalorder %s88, %s90
    %p94 = scmp.eq.s32.totalorder %s12, 0
    %p95 = por %p93, %p94
    %p96 = scmp.ne.s32.totalorder %s88, %s90
    %p97 = scmp.eq.s32.totalorder %s17, 1
    %p98 = por %p96, %p97
    %p99 = scmp.ne.s32.totalorder %s90, %s91
    %p100 = scmp.eq.s32.totalorder %s17, 0
    %p101 = por %p99, %p100
    %p102 = scmp.ne.s32.totalorder %s90, %s91
    %p103 = scmp.eq.s32.totalorder %s18, 1
    %p104 = por %p102, %p103
    %p106 = scmp.ne.s32.totalorder %s91, %s105
    %p107 = scmp.eq.s32.totalorder %s18, 0
    %p108 = por %p106, %p107
    %s110 = sadd.s32 %s109, 1
    %p113 = scmp.eq.s32.totalorder %s12, 1
    %p114 = scmp.ne.s32.totalorder %s109, %s111
    %p115 = scmp.eq.s32.totalorder %s12, 0
    %p116 = por %p114, %p115
    %p117 = scmp.ne.s32.totalorder %s109, %s111
    %p118 = scmp.eq.s32.totalorder %s17, 1
    %p119 = por %p117, %p118
    %p120 = scmp.ne.s32.totalorder %s111, %s112
    %p121 = scmp.eq.s32.totalorder %s17, 0
    %p122 = por %p120, %p121
    %p123 = scmp.ne.s32.totalorder %s111, %s112
    %p124 = scmp.eq.s32.totalorder %s18, 1
    %p125 = por %p123, %p124
    %p127 = scmp.ne.s32.totalorder %s112, %s126
    %p128 = scmp.eq.s32.totalorder %s18, 0
    %p129 = por %p127, %p128
    %s131 = sadd.s32 %s130, 1
    %p134 = scmp.eq.s32.totalorder %s12, 1
    %p135 = scmp.ne.s32.totalorder %s130, %s132
    %p136 = scmp.eq.s32.totalorder %s12, 0
    %p137 = por %p135, %p136
    %p138 = scmp.ne.s32.totalorder %s130, %s132
    %p139 = scmp.eq.s32.totalorder %s17, 1
    %p140 = por %p138, %p139
    %p141 = scmp.ne.s32.totalorder %s132, %s133
    %p142 = scmp.eq.s32.totalorder %s17, 0
    %p143 = por %p141, %p142
    %p144 = scmp.ne.s32.totalorder %s132, %s133
    %p145 = scmp.eq.s32.totalorder %s18, 1
    %p146 = por %p144, %p145
    %p148 = scmp.ne.s32.totalorder %s133, %s147
    %p149 = scmp.eq.s32.totalorder %s18, 0
    %p150 = por %p148, %p149
    %s152 = sadd.s32 %s151, 1
    %p155 = scmp.eq.s32.totalorder %s12, 1
    %p156 = scmp.ne.s32.totalorder %s151, %s153
    %p157 = scmp.eq.s32.totalorder %s12, 0
    %p158 = por %p156, %p157
    %p159 = scmp.ne.s32.totalorder %s151, %s153
    %p160 = scmp.eq.s32.totalorder %s17, 1
    %p161 = por %p159, %p160
    %p162 = scmp.ne.s32.totalorder %s153, %s154
    %p163 = scmp.eq.s32.totalorder %s17, 0
    %p164 = por %p162, %p163
    %p165 = scmp.ne.s32.totalorder %s153, %s154
    %p166 = scmp.eq.s32.totalorder %s18, 1
    %p167 = por %p165, %p166
    %p169 = scmp.ne.s32.totalorder %s154, %s168
    %p170 = scmp.eq.s32.totalorder %s18, 0
    %p171 = por %p169, %p170
    %s172 = ssub.s32 %s19, %s31
    %s173 = ssub.s32 %s20, %s27
    %s174 = sor.u32 %s172, %s173
    %p175 = scmp.eq.s32.totalorder %s174, 0
    %s177 = sadd.s32 %s176, 1
    %s178 = scalar_select %p175, %s176, %s177
    %p181 = pneg %p175
    %p182 = scmp.eq.s32.totalorder %s12, 1
    %p183 = por %p181, %p182
    %p184 = scmp.ne.s32.totalorder %s176, %s179
    %p185 = scmp.eq.s32.totalorder %s12, 0
    %p186 = por %p184, %p185
    %p187 = scmp.ne.s32.totalorder %s176, %s179
    %p188 = scmp.eq.s32.totalorder %s17, 1
    %p189 = por %p187, %p188
    %p190 = scmp.ne.s32.totalorder %s179, %s180
    %p191 = scmp.eq.s32.totalorder %s17, 0
    %p192 = por %p190, %p191
    %p193 = scmp.ne.s32.totalorder %s179, %s180
    %p194 = scmp.eq.s32.totalorder %s18, 1
    %p195 = por %p193, %p194
    %p197 = scmp.ne.s32.totalorder %s180, %s196
    %p198 = scmp.eq.s32.totalorder %s18, 0
    %p199 = por %p197, %p198
    %p200 = scmp.le.s32.totalorder 1, %s12
    %p201 = scmp.lt.s32.totalorder %s12, 3
    %p202 = pnand %p200, %p201
    %p203 = pneg %p202
    // Predicated region
    $region9: #{residual_block.9} parent=5 // pred_check
      _
    $region10: #{residual_block.9} parent=5 // pred_check_branch
      %205 = sbr.rel (%p202) target = $region12
    $region11: #{residual_block.9} parent=5 // pred_region
      %s206 = ssub.s32 %s12, 1
      // Predicated region
      $region13: #{residual_block.9} parent=11 // pred_check
        %p207 = pneg %p101
      $region14: #{residual_block.9} parent=11 // pred_check_branch
        %209 = sbr.rel (%p207) target = $region16
      $region15: #{residual_block.9} parent=11 // pred_region
        _
      $region16: #{residual_block.9} parent=11 // pred_fallthru
        _
      // Predicated region
      $region17: #{residual_block.9} parent=11 // pred_check
        %p210 = pneg %p122
      $region18: #{residual_block.9} parent=11 // pred_check_branch
        %212 = sbr.rel (%p210) target = $region20
      $region19: #{residual_block.9} parent=11 // pred_region
        _
      $region20: #{residual_block.9} parent=11 // pred_fallthru
        _
      // Predicated region
      $region21: #{residual_block.9} parent=11 // pred_check
        %p213 = pneg %p143
      $region22: #{residual_block.9} parent=11 // pred_check_branch
        %215 = sbr.rel (%p213) target = $region24
      $region23: #{residual_block.9} parent=11 // pred_region
        _
      $region24: #{residual_block.9} parent=11 // pred_fallthru
        _
      // Predicated region
      $region25: #{residual_block.9} parent=11 // pred_check
        %p216 = pneg %p164
      $region26: #{residual_block.9} parent=11 // pred_check_branch
        %218 = sbr.rel (%p216) target = $region28
      $region27: #{residual_block.9} parent=11 // pred_region
        _
      $region28: #{residual_block.9} parent=11 // pred_fallthru
        _
    $region12: #{residual_block.9} parent=5 // pred_fallthru
      _
    %p219 = scmp.lt.s32.totalorder %s12, 2
    // Predicated region
    $region29: #{residual_block.9} parent=5 // pred_check
      %p220 = pneg %p219
    $region30: #{residual_block.9} parent=5 // pred_check_branch
      %222 = sbr.rel (%p220) target = $region32
    $region31: #{residual_block.9} parent=5 // pred_region
      // Predicated region
      $region33: #{residual_block.9} parent=31 // pred_check
        %p223 = pneg %p46
      $region34: #{residual_block.9} parent=31 // pred_check_branch
        %225 = sbr.rel (%p223) target = $region36
      $region35: #{residual_block.9} parent=31 // pred_region
        %s226 = smul.u32 32, %s20
        %p227 = scmp.lt.s32.totalorder %s19, 1
        %s228 = scalar_select %p227, %s19, 1
        %p229 = scmp.lt.s32.totalorder %s226, 31
        %s230 = scalar_select %p229, %s226, 31
        %s231 = smul.addr %s228, 32
        %s232 = sadd.s32 %s230, %s231
        %s233 = smul.addr %s232, 8
        %s234 = scalar_lea.vmem %s0, %s233
        %s235 = smul.u32 32, %s20
      $region36: #{residual_block.9} parent=31 // pred_fallthru
        _
      // Predicated region
      $region37: #{residual_block.9} parent=31 // pred_check
        %p236 = pneg %p74
      $region38: #{residual_block.9} parent=31 // pred_check_branch
        %238 = sbr.rel (%p236) target = $region40
      $region39: #{residual_block.9} parent=31 // pred_region
        %s239 = smul.u32 32, %s20
        %p240 = scmp.lt.s32.totalorder %s19, 1
        %s241 = scalar_select %p240, %s19, 1
        %p242 = scmp.lt.s32.totalorder %s239, 31
        %s243 = scalar_select %p242, %s239, 31
        %s244 = smul.addr %s241, 32
        %s245 = sadd.s32 %s243, %s244
        %s246 = smul.addr %s245, 8
        %s247 = scalar_lea.vmem %s1, %s246
        %s248 = smul.u32 32, %s20
      $region40: #{residual_block.9} parent=31 // pred_fallthru
        _
    $region32: #{residual_block.9} parent=5 // pred_fallthru
      _
    %p249 = scmp.le.s32.totalorder 1, %s12
    %p250 = scmp.lt.s32.totalorder %s12, 3
    %p251 = pnand %p249, %p250
    %p252 = pneg %p251
    // Predicated region
    $region41: #{residual_block.9} parent=5 // pred_check
      _
    $region42: #{residual_block.9} parent=5 // pred_check_branch
      %254 = sbr.rel (%p251) target = $region44
    $region43: #{residual_block.9} parent=5 // pred_region
      %s255 = ssub.s32 %s12, 1
      %s256 = smul.u32 32, %s22
      %p257 = scmp.lt.s32.totalorder %s21, 1
      %s258 = scalar_select %p257, %s21, 1
      %p259 = scmp.lt.s32.totalorder %s256, 31
      %s260 = scalar_select %p259, %s256, 31
      %s261 = smul.addr %s258, 32
      %s262 = sadd.s32 %s260, %s261
      %s263 = smul.addr %s262, 8
      %s264 = scalar_lea.vmem %s0, %s263
      %p265 = pneg %p52
      %p266 = pneg %p49
      %s267 = smul.u32 32, %s22
      %p268 = scmp.lt.s32.totalorder %s21, 1
      %s269 = scalar_select %p268, %s21, 1
      %p270 = scmp.lt.s32.totalorder %s267, 31
      %s271 = scalar_select %p270, %s267, 31
      %s272 = smul.addr %s269, 32
      %s273 = sadd.s32 %s271, %s272
      %s274 = smul.addr %s273, 8
      %s275 = scalar_lea.vmem %s1, %s274
      %p276 = pneg %p80
      %p277 = pneg %p77
      %p278 = pneg %p101
      %p279 = pneg %p98
      %p280 = pneg %p122
      %p281 = pneg %p119
      %p282 = pneg %p143
      %p283 = pneg %p140
      %p284 = pneg %p164
      %p285 = pneg %p161
      %p286 = pneg %p192
      %p287 = pneg %p189
      %s288 = smul.u32 32, %s22
      %p289 = scmp.lt.s32.totalorder %s21, 1
      %s290 = scalar_select %p289, %s21, 1
      %p291 = scmp.lt.s32.totalorder %s288, 31
      %s292 = scalar_select %p291, %s288, 31
      %s293 = smul.addr %s290, 32
      %s294 = sadd.s32 %s292, %s293
      %s295 = smul.addr %s294, 8
      %s296 = scalar_lea.vmem %s6, %s295
      %s297 = smul.u32 32, %s22
      %p298 = scmp.lt.s32.totalorder %s21, 1
      %s299 = scalar_select %p298, %s21, 1
      %p300 = scmp.lt.s32.totalorder %s297, 31
      %s301 = scalar_select %p300, %s297, 31
      %s302 = smul.addr %s299, 32
      %s303 = sadd.s32 %s301, %s302
      %s304 = smul.addr %s303, 8
      %s305 = scalar_lea.vmem %s0, %s304
      %s306 = smul.u32 32, %s22
      %s307 = smul.u32 32, %s22
      %p308 = scmp.lt.s32.totalorder %s21, 1
      %s309 = scalar_select %p308, %s21, 1
      %p310 = scmp.lt.s32.totalorder %s307, 31
      %s311 = scalar_select %p310, %s307, 31
      %s312 = smul.addr %s309, 32
      %s313 = sadd.s32 %s311, %s312
      %s314 = smul.addr %s313, 8
      %s315 = scalar_lea.vmem %s1, %s314
      %s316 = smul.u32 32, %s22
      %s317 = smul.u32 32, %s22
      %p318 = scmp.lt.s32.totalorder %s21, 1
      %s319 = scalar_select %p318, %s21, 1
      %p320 = scmp.lt.s32.totalorder %s317, 31
      %s321 = scalar_select %p320, %s317, 31
      %s322 = smul.addr %s319, 32
      %s323 = sadd.s32 %s321, %s322
      %s324 = smul.addr %s323, 8
      %s325 = scalar_lea.vmem %s6, %s324
      %s326 = smul.u32 32, %s22
      %v327 = vld [vmem:[%s305] sm:$0xff]
      %v328 = vld [vmem:[%s305 + $0x8] sm:$0xff]
      %v329 = vld [vmem:[%s305 + $0x10] sm:$0xff]
      %v330 = vld [vmem:[%s305 + $0x18] sm:$0xff]
      %v331 = vld [vmem:[%s305 + $0x20] sm:$0xff]
      %v332 = vld [vmem:[%s305 + $0x28] sm:$0xff]
      %v333 = vld [vmem:[%s305 + $0x30] sm:$0xff]
      %v334 = vld [vmem:[%s305 + $0x38] sm:$0xff]
      %v335 = vld [vmem:[%s305 + $0x40] sm:$0xff]
      %v336 = vld [vmem:[%s305 + $0x48] sm:$0xff]
      %v337 = vld [vmem:[%s305 + $0x50] sm:$0xff]
      %v338 = vld [vmem:[%s305 + $0x58] sm:$0xff]
      %v339 = vld [vmem:[%s305 + $0x60] sm:$0xff]
      %v340 = vld [vmem:[%s305 + $0x68] sm:$0xff]
      %v341 = vld [vmem:[%s305 + $0x70] sm:$0xff]
      %v342 = vld [vmem:[%s305 + $0x78] sm:$0xff]
      %v343 = vld [vmem:[%s305 + $0x80] sm:$0xff]
      %v344 = vld [vmem:[%s305 + $0x88] sm:$0xff]
      %v345 = vld [vmem:[%s305 + $0x90] sm:$0xff]
      %v346 = vld [vmem:[%s305 + $0x98] sm:$0xff]
      %v347 = vld [vmem:[%s305 + $0xa0] sm:$0xff]
      %v348 = vld [vmem:[%s305 + $0xa8] sm:$0xff]
      %v349 = vld [vmem:[%s305 + $0xb0] sm:$0xff]
      %v350 = vld [vmem:[%s305 + $0xb8] sm:$0xff]
      %v351 = vld [vmem:[%s305 + $0xc0] sm:$0xff]
      %v352 = vld [vmem:[%s305 + $0xc8] sm:$0xff]
      %v353 = vld [vmem:[%s305 + $0xd0] sm:$0xff]
      %v354 = vld [vmem:[%s305 + $0xd8] sm:$0xff]
      %v355 = vld [vmem:[%s305 + $0xe0] sm:$0xff]
      %v356 = vld [vmem:[%s305 + $0xe8] sm:$0xff]
      %v357 = vld [vmem:[%s305 + $0xf0] sm:$0xff]
      %v358 = vld [vmem:[%s305 + $0xf8] sm:$0xff]
      %v359 = vld [vmem:[%s2] sm:$0x1]
      %v361 = vperm.slane %v359, 0
      %v363 = vmul.f32 %v327, %v361
      %v364 = vmul.f32 %v328, %v361
      %v365 = vmul.f32 %v329, %v361
      %v366 = vmul.f32 %v330, %v361
      %v367 = vmul.f32 %v331, %v361
      %v368 = vmul.f32 %v332, %v361
      %v369 = vmul.f32 %v333, %v361
      %v370 = vmul.f32 %v334, %v361
      %v371 = vmul.f32 %v335, %v361
      %v372 = vmul.f32 %v336, %v361
      %v373 = vmul.f32 %v337, %v361
      %v374 = vmul.f32 %v338, %v361
      %v375 = vmul.f32 %v339, %v361
      %v376 = vmul.f32 %v340, %v361
      %v377 = vmul.f32 %v341, %v361
      %v378 = vmul.f32 %v342, %v361
      %v379 = vmul.f32 %v343, %v361
      %v380 = vmul.f32 %v344, %v361
      %v381 = vmul.f32 %v345, %v361
      %v382 = vmul.f32 %v346, %v361
      %v383 = vmul.f32 %v347, %v361
      %v384 = vmul.f32 %v348, %v361
      %v385 = vmul.f32 %v349, %v361
      %v386 = vmul.f32 %v350, %v361
      %v387 = vmul.f32 %v351, %v361
      %v388 = vmul.f32 %v352, %v361
      %v389 = vmul.f32 %v353, %v361
      %v390 = vmul.f32 %v354, %v361
      %v391 = vmul.f32 %v355, %v361
      %v392 = vmul.f32 %v356, %v361
      %v393 = vmul.f32 %v357, %v361
      %v394 = vmul.f32 %v358, %v361
      %v395 = vld [vmem:[%s3] sm:$0x1]
      %v397 = vperm.slane %v395, 0
      %v399 = vadd.f32 %v363, %v397
      %v400 = vadd.f32 %v364, %v397
      %v401 = vadd.f32 %v365, %v397
      %v402 = vadd.f32 %v366, %v397
      %v403 = vadd.f32 %v367, %v397
      %v404 = vadd.f32 %v368, %v397
      %v405 = vadd.f32 %v369, %v397
      %v406 = vadd.f32 %v370, %v397
      %v407 = vadd.f32 %v371, %v397
      %v408 = vadd.f32 %v372, %v397
      %v409 = vadd.f32 %v373, %v397
      %v410 = vadd.f32 %v374, %v397
      %v411 = vadd.f32 %v375, %v397
      %v412 = vadd.f32 %v376, %v397
      %v413 = vadd.f32 %v377, %v397
      %v414 = vadd.f32 %v378, %v397
      %v415 = vadd.f32 %v379, %v397
      %v416 = vadd.f32 %v380, %v397
      %v417 = vadd.f32 %v381, %v397
      %v418 = vadd.f32 %v382, %v397
      %v419 = vadd.f32 %v383, %v397
      %v420 = vadd.f32 %v384, %v397
      %v421 = vadd.f32 %v385, %v397
      %v422 = vadd.f32 %v386, %v397
      %v423 = vadd.f32 %v387, %v397
      %v424 = vadd.f32 %v388, %v397
      %v425 = vadd.f32 %v389, %v397
      %v426 = vadd.f32 %v390, %v397
      %v427 = vadd.f32 %v391, %v397
      %v428 = vadd.f32 %v392, %v397
      %v429 = vadd.f32 %v393, %v397
      %v430 = vadd.f32 %v394, %v397
      %v431 = vld [vmem:[%s315] sm:$0xff]
      %v432 = vld [vmem:[%s315 + $0x8] sm:$0xff]
      %v433 = vld [vmem:[%s315 + $0x10] sm:$0xff]
      %v434 = vld [vmem:[%s315 + $0x18] sm:$0xff]
      %v435 = vld [vmem:[%s315 + $0x20] sm:$0xff]
      %v436 = vld [vmem:[%s315 + $0x28] sm:$0xff]
      %v437 = vld [vmem:[%s315 + $0x30] sm:$0xff]
      %v438 = vld [vmem:[%s315 + $0x38] sm:$0xff]
      %v439 = vld [vmem:[%s315 + $0x40] sm:$0xff]
      %v440 = vld [vmem:[%s315 + $0x48] sm:$0xff]
      %v441 = vld [vmem:[%s315 + $0x50] sm:$0xff]
      %v442 = vld [vmem:[%s315 + $0x58] sm:$0xff]
      %v443 = vld [vmem:[%s315 + $0x60] sm:$0xff]
      %v444 = vld [vmem:[%s315 + $0x68] sm:$0xff]
      %v445 = vld [vmem:[%s315 + $0x70] sm:$0xff]
      %v446 = vld [vmem:[%s315 + $0x78] sm:$0xff]
      %v447 = vld [vmem:[%s315 + $0x80] sm:$0xff]
      %v448 = vld [vmem:[%s315 + $0x88] sm:$0xff]
      %v449 = vld [vmem:[%s315 + $0x90] sm:$0xff]
      %v450 = vld [vmem:[%s315 + $0x98] sm:$0xff]
      %v451 = vld [vmem:[%s315 + $0xa0] sm:$0xff]
      %v452 = vld [vmem:[%s315 + $0xa8] sm:$0xff]
      %v453 = vld [vmem:[%s315 + $0xb0] sm:$0xff]
      %v454 = vld [vmem:[%s315 + $0xb8] sm:$0xff]
      %v455 = vld [vmem:[%s315 + $0xc0] sm:$0xff]
      %v456 = vld [vmem:[%s315 + $0xc8] sm:$0xff]
      %v457 = vld [vmem:[%s315 + $0xd0] sm:$0xff]
      %v458 = vld [vmem:[%s315 + $0xd8] sm:$0xff]
      %v459 = vld [vmem:[%s315 + $0xe0] sm:$0xff]
      %v460 = vld [vmem:[%s315 + $0xe8] sm:$0xff]
      %v461 = vld [vmem:[%s315 + $0xf0] sm:$0xff]
      %v462 = vld [vmem:[%s315 + $0xf8] sm:$0xff]
      %v463 = vld [vmem:[%s4] sm:$0x1]
      %v465 = vperm.slane %v463, 0
      %v467 = vmul.f32 %v431, %v465
      %v468 = vmul.f32 %v432, %v465
      %v469 = vmul.f32 %v433, %v465
      %v470 = vmul.f32 %v434, %v465
      %v471 = vmul.f32 %v435, %v465
      %v472 = vmul.f32 %v436, %v465
      %v473 = vmul.f32 %v437, %v465
      %v474 = vmul.f32 %v438, %v465
      %v475 = vmul.f32 %v439, %v465
      %v476 = vmul.f32 %v440, %v465
      %v477 = vmul.f32 %v441, %v465
      %v478 = vmul.f32 %v442, %v465
      %v479 = vmul.f32 %v443, %v465
      %v480 = vmul.f32 %v444, %v465
      %v481 = vmul.f32 %v445, %v465
      %v482 = vmul.f32 %v446, %v465
      %v483 = vmul.f32 %v447, %v465
      %v484 = vmul.f32 %v448, %v465
      %v485 = vmul.f32 %v449, %v465
      %v486 = vmul.f32 %v450, %v465
      %v487 = vmul.f32 %v451, %v465
      %v488 = vmul.f32 %v452, %v465
      %v489 = vmul.f32 %v453, %v465
      %v490 = vmul.f32 %v454, %v465
      %v491 = vmul.f32 %v455, %v465
      %v492 = vmul.f32 %v456, %v465
      %v493 = vmul.f32 %v457, %v465
      %v494 = vmul.f32 %v458, %v465
      %v495 = vmul.f32 %v459, %v465
      %v496 = vmul.f32 %v460, %v465
      %v497 = vmul.f32 %v461, %v465
      %v498 = vmul.f32 %v462, %v465
      %v499 = vadd.f32 %v399, %v467
      %v500 = vadd.f32 %v400, %v468
      %v501 = vadd.f32 %v401, %v469
      %v502 = vadd.f32 %v402, %v470
      %v503 = vadd.f32 %v403, %v471
      %v504 = vadd.f32 %v404, %v472
      %v505 = vadd.f32 %v405, %v473
      %v506 = vadd.f32 %v406, %v474
      %v507 = vadd.f32 %v407, %v475
      %v508 = vadd.f32 %v408, %v476
      %v509 = vadd.f32 %v409, %v477
      %v510 = vadd.f32 %v410, %v478
      %v511 = vadd.f32 %v411, %v479
      %v512 = vadd.f32 %v412, %v480
      %v513 = vadd.f32 %v413, %v481
      %v514 = vadd.f32 %v414, %v482
      %v515 = vadd.f32 %v415, %v483
      %v516 = vadd.f32 %v416, %v484
      %v517 = vadd.f32 %v417, %v485
      %v518 = vadd.f32 %v418, %v486
      %v519 = vadd.f32 %v419, %v487
      %v520 = vadd.f32 %v420, %v488
      %v521 = vadd.f32 %v421, %v489
      %v522 = vadd.f32 %v422, %v490
      %v523 = vadd.f32 %v423, %v491
      %v524 = vadd.f32 %v424, %v492
      %v525 = vadd.f32 %v425, %v493
      %v526 = vadd.f32 %v426, %v494
      %v527 = vadd.f32 %v427, %v495
      %v528 = vadd.f32 %v428, %v496
      %v529 = vadd.f32 %v429, %v497
      %v530 = vadd.f32 %v430, %v498
      %v531 = vld [vmem:[%s5] sm:$0x1]
      %v533 = vperm.slane %v531, 0
      %v535 = vadd.f32 %v499, %v533
      %v536 = vadd.f32 %v500, %v533
      %v537 = vadd.f32 %v501, %v533
      %v538 = vadd.f32 %v502, %v533
      %v539 = vadd.f32 %v503, %v533
      %v540 = vadd.f32 %v504, %v533
      %v541 = vadd.f32 %v505, %v533
      %v542 = vadd.f32 %v506, %v533
      %v543 = vadd.f32 %v507, %v533
      %v544 = vadd.f32 %v508, %v533
      %v545 = vadd.f32 %v509, %v533
      %v546 = vadd.f32 %v510, %v533
      %v547 = vadd.f32 %v511, %v533
      %v548 = vadd.f32 %v512, %v533
      %v549 = vadd.f32 %v513, %v533
      %v550 = vadd.f32 %v514, %v533
      %v551 = vadd.f32 %v515, %v533
      %v552 = vadd.f32 %v516, %v533
      %v553 = vadd.f32 %v517, %v533
      %v554 = vadd.f32 %v518, %v533
      %v555 = vadd.f32 %v519, %v533
      %v556 = vadd.f32 %v520, %v533
      %v557 = vadd.f32 %v521, %v533
      %v558 = vadd.f32 %v522, %v533
      %v559 = vadd.f32 %v523, %v533
      %v560 = vadd.f32 %v524, %v533
      %v561 = vadd.f32 %v525, %v533
      %v562 = vadd.f32 %v526, %v533
      %v563 = vadd.f32 %v527, %v533
      %v564 = vadd.f32 %v528, %v533
      %v565 = vadd.f32 %v529, %v533
      %v566 = vadd.f32 %v530, %v533
      %v567 = vmax.f32 %v535, 0.0
      %v568 = vmax.f32 %v536, 0.0
      %v569 = vmax.f32 %v537, 0.0
      %v570 = vmax.f32 %v538, 0.0
      %v571 = vmax.f32 %v539, 0.0
      %v572 = vmax.f32 %v540, 0.0
      %v573 = vmax.f32 %v541, 0.0
      %v574 = vmax.f32 %v542, 0.0
      %v575 = vmax.f32 %v543, 0.0
      %v576 = vmax.f32 %v544, 0.0
      %v577 = vmax.f32 %v545, 0.0
      %v578 = vmax.f32 %v546, 0.0
      %v579 = vmax.f32 %v547, 0.0
      %v580 = vmax.f32 %v548, 0.0
      %v581 = vmax.f32 %v549, 0.0
      %v582 = vmax.f32 %v550, 0.0
      %v583 = vmax.f32 %v551, 0.0
      %v584 = vmax.f32 %v552, 0.0
      %v585 = vmax.f32 %v553, 0.0
      %v586 = vmax.f32 %v554, 0.0
      %v587 = vmax.f32 %v555, 0.0
      %v588 = vmax.f32 %v556, 0.0
      %v589 = vmax.f32 %v557, 0.0
      %v590 = vmax.f32 %v558, 0.0
      %v591 = vmax.f32 %v559, 0.0
      %v592 = vmax.f32 %v560, 0.0
      %v593 = vmax.f32 %v561, 0.0
      %v594 = vmax.f32 %v562, 0.0
      %v595 = vmax.f32 %v563, 0.0
      %v596 = vmax.f32 %v564, 0.0
      %v597 = vmax.f32 %v565, 0.0
      %v598 = vmax.f32 %v566, 0.0
      %vm599 = vcmask 130048
      %600 = vst.msk [vmem:[%s325] sm:$0xff] %vm599, %v567
      %601 = vst.msk [vmem:[%s325 + $0x8] sm:$0xff] %vm599, %v568
      %602 = vst.msk [vmem:[%s325 + $0x10] sm:$0xff] %vm599, %v569
      %603 = vst.msk [vmem:[%s325 + $0x18] sm:$0xff] %vm599, %v570
      %604 = vst.msk [vmem:[%s325 + $0x20] sm:$0xff] %vm599, %v571
      %605 = vst.msk [vmem:[%s325 + $0x28] sm:$0xff] %vm599, %v572
      %606 = vst.msk [vmem:[%s325 + $0x30] sm:$0xff] %vm599, %v573
      %607 = vst.msk [vmem:[%s325 + $0x38] sm:$0xff] %vm599, %v574
      %608 = vst.msk [vmem:[%s325 + $0x40] sm:$0xff] %vm599, %v575
      %609 = vst.msk [vmem:[%s325 + $0x48] sm:$0xff] %vm599, %v576
      %610 = vst.msk [vmem:[%s325 + $0x50] sm:$0xff] %vm599, %v577
      %611 = vst.msk [vmem:[%s325 + $0x58] sm:$0xff] %vm599, %v578
      %612 = vst.msk [vmem:[%s325 + $0x60] sm:$0xff] %vm599, %v579
      %613 = vst.msk [vmem:[%s325 + $0x68] sm:$0xff] %vm599, %v580
      %614 = vst.msk [vmem:[%s325 + $0x70] sm:$0xff] %vm599, %v581
      %615 = vst.msk [vmem:[%s325 + $0x78] sm:$0xff] %vm599, %v582
      %616 = vst.msk [vmem:[%s325 + $0x80] sm:$0xff] %vm599, %v583
      %617 = vst.msk [vmem:[%s325 + $0x88] sm:$0xff] %vm599, %v584
      %618 = vst.msk [vmem:[%s325 + $0x90] sm:$0xff] %vm599, %v585
      %619 = vst.msk [vmem:[%s325 + $0x98] sm:$0xff] %vm599, %v586
      %620 = vst.msk [vmem:[%s325 + $0xa0] sm:$0xff] %vm599, %v587
      %621 = vst.msk [vmem:[%s325 + $0xa8] sm:$0xff] %vm599, %v588
      %622 = vst.msk [vmem:[%s325 + $0xb0] sm:$0xff] %vm599, %v589
      %623 = vst.msk [vmem:[%s325 + $0xb8] sm:$0xff] %vm599, %v590
      %624 = vst.msk [vmem:[%s325 + $0xc0] sm:$0xff] %vm599, %v591
      %625 = vst.msk [vmem:[%s325 + $0xc8] sm:$0xff] %vm599, %v592
      %626 = vst.msk [vmem:[%s325 + $0xd0] sm:$0xff] %vm599, %v593
      %627 = vst.msk [vmem:[%s325 + $0xd8] sm:$0xff] %vm599, %v594
      %628 = vst.msk [vmem:[%s325 + $0xe0] sm:$0xff] %vm599, %v595
      %629 = vst.msk [vmem:[%s325 + $0xe8] sm:$0xff] %vm599, %v596
      %630 = vst.msk [vmem:[%s325 + $0xf0] sm:$0xff] %vm599, %v597
      %631 = vst.msk [vmem:[%s325 + $0xf8] sm:$0xff] %vm599, %v598
      %s632 = smul.u32 32, %s22
      %p633 = scmp.lt.s32.totalorder %s21, 1
      %s634 = scalar_select %p633, %s21, 1
      %p635 = scmp.lt.s32.totalorder %s632, 31
      %s636 = scalar_select %p635, %s632, 31
      %s637 = smul.addr %s634, 32
      %s638 = sadd.s32 %s636, %s637
      %s639 = smul.addr %s638, 8
      %s640 = scalar_lea.vmem %s6, %s639
      // Predicated region
      $region45: #{residual_block.9} parent=43 // pred_check
        %p641 = pneg %p189
      $region46: #{residual_block.9} parent=43 // pred_check_branch
        %643 = sbr.rel (%p641) target = $region48
      $region47: #{residual_block.9} parent=43 // pred_region
        %s644 = smul.u32 32, %s22
      $region48: #{residual_block.9} parent=43 // pred_fallthru
        _
    $region44: #{residual_block.9} parent=5 // pred_fallthru
      _
    %p645 = scmp.le.s32.totalorder 2, %s12
    // Predicated region
    $region49: #{residual_block.9} parent=5 // pred_check
      %p646 = pneg %p645
    $region50: #{residual_block.9} parent=5 // pred_check_branch
      %648 = sbr.rel (%p646) target = $region52
    $region51: #{residual_block.9} parent=5 // pred_region
      %s649 = ssub.s32 %s12, 2
      // Predicated region
      $region53: #{residual_block.9} parent=51 // pred_check
        %p650 = pneg %p195
      $region54: #{residual_block.9} parent=51 // pred_check_branch
        %652 = sbr.rel (%p650) target = $region56
      $region55: #{residual_block.9} parent=51 // pred_region
        %s653 = smul.u32 32, %s24
        %p654 = scmp.lt.s32.totalorder %s23, 1
        %s655 = scalar_select %p654, %s23, 1
        %p656 = scmp.lt.s32.totalorder %s653, 31
        %s657 = scalar_select %p656, %s653, 31
        %s658 = smul.addr %s655, 32
        %s659 = sadd.s32 %s657, %s658
        %s660 = smul.addr %s659, 8
        %s661 = scalar_lea.vmem %s6, %s660
      $region56: #{residual_block.9} parent=51 // pred_fallthru
        _
    $region52: #{residual_block.9} parent=5 // pred_fallthru
      _
  $region6: #{residual_block.9} parent=0 // loop_footer
    %s16 = sadd.s32 1, %s12
  $region7: #{residual_block.9} parent=0 // loop_footer_branch
    %11 = sbr.rel target = $region3
  $region8: #{residual_block.9} parent=0 // loop_exit
    _

// kernel: residual_block.7
$region0: #{residual_block.7}
  #allocation0 [shape = 'u32[]', space=smem, size = 0x4, offset = 0x4, fixed_abs, tag = 'smem constant byte address 0x4 - core index']
  #allocation1 [shape = 'u32[72,128]{1,0:T(1,128)}', space=vmem, size = 0x9000, scoped, tag = 'internal scratch']
  #allocation2 [shape = 'f32[256,144]{1,0:T(8,128)}', space=vmem, size = 0x40000, scoped, tag = 'scratch operand']
  #allocation3 [shape = 'f32[18,18,16]{2,1,0:T(8,128)}', space=vmem, size = 0x36000, scoped, tag = 'scratch operand']
  %s0 = inlined_call_operand.vmem [shape: f32[2,16,16,16], index: 0, kind: input, shape index: {}]
  %s1 = inlined_call_operand.vmem [shape: f32[144,16], index: 1, kind: input, shape index: {}]
  %s2 = inlined_call_operand.vmem [shape: f32[1,16], index: 2, kind: input, shape index: {}]
  %s3 = inlined_call_operand.vmem [shape: f32[2,256,16], index: 3, kind: output, shape index: {0}]
  %s4 = inlined_call_operand.vmem [shape: f32[2,1,1,16], index: 4, kind: output, shape index: {1}]
  %s5 = inlined_call_operand.vmem [shape: f32[2,1,1,16], index: 5, kind: output, shape index: {2}]
  %6 = xla_tuple %s3, %s4, %s5
  %s7 = sld [smem:[#allocation0]]
  $region61: #{residual_block.7} parent=0
    _
  %s9 = ssub.s32 1, %s7
  %s10 = scalar_select 0, %s9, %s7
  loop: start=0, step=1, limit=4
  $region2: #{residual_block.7} parent=0 // loop_pre_header
    _
  $region3: #{residual_block.7} parent=0 // loop_header
    %s12 = sphi 0, %s16
    %p13 = scmp.ge.s32.totalorder %s12, 4
    %s19 = sphi 0, %s31
    %s20 = sphi 0, %s27
    %s21 = sphi 0, %s19
    %s22 = sphi 0, %s20
    %s23 = sphi 0, %s21
    %s24 = sphi 0, %s22
    %s34 = sphi 0, %s36
    %s37 = sphi 0, %s34
    %s38 = sphi 0, %s37
    %s54 = sphi 0, %s38
    %s58 = sphi 0, %s58
    %s60 = sphi 0, %s58
    %s61 = sphi 0, %s60
    %s75 = sphi 0, %s61
    %s79 = sphi 0, %s79
    %s81 = sphi 0, %s79
    %s82 = sphi 0, %s81
    %s96 = sphi 0, %s82
    %s104 = sphi 0, %s106
    %s107 = sphi 0, %s104
    %s108 = sphi 0, %s107
    %s124 = sphi 0, %s108
    %s132 = sphi 0, %s134
    %s135 = sphi 0, %s132
    %s136 = sphi 0, %s135
    %s152 = sphi 0, %s136
    %s160 = sphi 0, %s162
    %s163 = sphi 0, %s160
    %s164 = sphi 0, %s163
    %s180 = sphi 0, %s164
  $region4: #{residual_block.7} parent=0 // loop_header_branch
    %15 = sbr.rel (%p13) target = $region8
  $region5: #{residual_block.7} parent=0 // loop_body
    %s17 = ssub.s32 %s12, 1
    %s18 = ssub.s32 %s12, 2
    %s25 = sadd.s32 1, %s20
    %p26 = scmp.ge.s32.totalorder %s25, 1
    %s27 = scalar_select %p26, 0, %s25
    %s28 = sadd.s32 1, %s19
    %s29 = scalar_select %p26, %s28, %s19
    %p30 = scmp.ge.s32.totalorder %s29, 2
    %s31 = scalar_select %p30, 0, %s29
    %s32 = ssub.s32 %s19, %s31
    %p33 = scmp.eq.s32.totalorder %s32, 0
    %s35 = sadd.s32 %s34, 1
    %s36 = scalar_select %p33, %s34, %s35
    %p39 = pneg %p33
    %p40 = scmp.eq.s32.totalorder %s12, 1
    %p41 = por %p39, %p40
    %p42 = scmp.ne.s32.totalorder %s34, %s37
    %p43 = scmp.eq.s32.totalorder %s12, 0
    %p44 = por %p42, %p43
    %p45 = scmp.ne.s32.totalorder %s34, %s37
    %p46 = scmp.eq.s32.totalorder %s17, 1
    %p47 = por %p45, %p46
    %p48 = scmp.ne.s32.totalorder %s37, %s38
    %p49 = scmp.eq.s32.totalorder %s17, 0
    %p50 = por %p48, %p49
    %p51 = scmp.ne.s32.totalorder %s37, %s38
    %p52 = scmp.eq.s32.totalorder %s18, 1
    %p53 = por %p51, %p52
    %p55 = scmp.ne.s32.totalorder %s38, %s54
    %p56 = scmp.eq.s32.totalorder %s18, 0
    %p57 = por %p55, %p56
    %s59 = sadd.s32 %s58, 1
    %p62 = scmp.eq.s32.totalorder %s12, 1
    %p63 = scmp.ne.s32.totalorder %s58, %s60
    %p64 = scmp.eq.s32.totalorder %s12, 0
    %p65 = por %p63, %p64
    %p66 = scmp.ne.s32.totalorder %s58, %s60
    %p67 = scmp.eq.s32.totalorder %s17, 1
    %p68 = por %p66, %p67
    %p69 = scmp.ne.s32.totalorder %s60, %s61
    %p70 = scmp.eq.s32.totalorder %s17, 0
    %p71 = por %p69, %p70
    %p72 = scmp.ne.s32.totalorder %s60, %s61
    %p73 = scmp.eq.s32.totalorder %s18, 1
    %p74 = por %p72, %p73
    %p76 = scmp.ne.s32.totalorder %s61, %s75
    %p77 = scmp.eq.s32.totalorder %s18, 0
    %p78 = por %p76, %p77
    %s80 = sadd.s32 %s79, 1
    %p83 = scmp.eq.s32.totalorder %s12, 1
    %p84 = scmp.ne.s32.totalorder %s79, %s81
    %p85 = scmp.eq.s32.totalorder %s12, 0
    %p86 = por %p84, %p85
    %p87 = scmp.ne.s32.totalorder %s79, %s81
    %p88 = scmp.eq.s32.totalorder %s17, 1
    %p89 = por %p87, %p88
    %p90 = scmp.ne.s32.totalorder %s81, %s82
    %p91 = scmp.eq.s32.totalorder %s17, 0
    %p92 = por %p90, %p91
    %p93 = scmp.ne.s32.totalorder %s81, %s82
    %p94 = scmp.eq.s32.totalorder %s18, 1
    %p95 = por %p93, %p94
    %p97 = scmp.ne.s32.totalorder %s82, %s96
    %p98 = scmp.eq.s32.totalorder %s18, 0
    %p99 = por %p97, %p98
    %s100 = ssub.s32 %s19, %s31
    %s101 = ssub.s32 %s20, %s27
    %s102 = sor.u32 %s100, %s101
    %p103 = scmp.eq.s32.totalorder %s102, 0
    %s105 = sadd.s32 %s104, 1
    %s106 = scalar_select %p103, %s104, %s105
    %p109 = pneg %p103
    %p110 = scmp.eq.s32.totalorder %s12, 1
    %p111 = por %p109, %p110
    %p112 = scmp.ne.s32.totalorder %s104, %s107
    %p113 = scmp.eq.s32.totalorder %s12, 0
    %p114 = por %p112, %p113
    %p115 = scmp.ne.s32.totalorder %s104, %s107
    %p116 = scmp.eq.s32.totalorder %s17, 1
    %p117 = por %p115, %p116
    %p118 = scmp.ne.s32.totalorder %s107, %s108
    %p119 = scmp.eq.s32.totalorder %s17, 0
    %p120 = por %p118, %p119
    %p121 = scmp.ne.s32.totalorder %s107, %s108
    %p122 = scmp.eq.s32.totalorder %s18, 1
    %p123 = por %p121, %p122
    %p125 = scmp.ne.s32.totalorder %s108, %s124
    %p126 = scmp.eq.s32.totalorder %s18, 0
    %p127 = por %p125, %p126
    %s128 = ssub.s32 %s19, %s31
    %s129 = ssub.s32 %s20, %s27
    %s130 = sor.u32 %s128, %s129
    %p131 = scmp.eq.s32.totalorder %s130, 0
    %s133 = sadd.s32 %s132, 1
    %s134 = scalar_select %p131, %s132, %s133
    %p137 = pneg %p131
    %p138 = scmp.eq.s32.totalorder %s12, 1
    %p139 = por %p137, %p138
    %p140 = scmp.ne.s32.totalorder %s132, %s135
    %p141 = scmp.eq.s32.totalorder %s12, 0
    %p142 = por %p140, %p141
    %p143 = scmp.ne.s32.totalorder %s132, %s135
    %p144 = scmp.eq.s32.totalorder %s17, 1
    %p145 = por %p143, %p144
    %p146 = scmp.ne.s32.totalorder %s135, %s136
    %p147 = scmp.eq.s32.totalorder %s17, 0
    %p148 = por %p146, %p147
    %p149 = scmp.ne.s32.totalorder %s135, %s136
    %p150 = scmp.eq.s32.totalorder %s18, 1
    %p151 = por %p149, %p150
    %p153 = scmp.ne.s32.totalorder %s136, %s152
    %p154 = scmp.eq.s32.totalorder %s18, 0
    %p155 = por %p153, %p154
    %s156 = ssub.s32 %s19, %s31
    %s157 = ssub.s32 %s20, %s27
    %s158 = sor.u32 %s156, %s157
    %p159 = scmp.eq.s32.totalorder %s158, 0
    %s161 = sadd.s32 %s160, 1
    %s162 = scalar_select %p159, %s160, %s161
    %p165 = pneg %p159
    %p166 = scmp.eq.s32.totalorder %s12, 1
    %p167 = por %p165, %p166
    %p168 = scmp.ne.s32.totalorder %s160, %s163
    %p169 = scmp.eq.s32.totalorder %s12, 0
    %p170 = por %p168, %p169
    %p171 = scmp.ne.s32.totalorder %s160, %s163
    %p172 = scmp.eq.s32.totalorder %s17, 1
    %p173 = por %p171, %p172
    %p174 = scmp.ne.s32.totalorder %s163, %s164
    %p175 = scmp.eq.s32.totalorder %s17, 0
    %p176 = por %p174, %p175
    %p177 = scmp.ne.s32.totalorder %s163, %s164
    %p178 = scmp.eq.s32.totalorder %s18, 1
    %p179 = por %p177, %p178
    %p181 = scmp.ne.s32.totalorder %s164, %s180
    %p182 = scmp.eq.s32.totalorder %s18, 0
    %p183 = por %p181, %p182
    %p184 = scmp.le.s32.totalorder 1, %s12
    %p185 = scmp.lt.s32.totalorder %s12, 3
    %p186 = pnand %p184, %p185
    %p187 = pneg %p186
    // Predicated region
    $region9: #{residual_block.7} parent=5 // pred_check
      _
    $region10: #{residual_block.7} parent=5 // pred_check_branch
      %189 = sbr.rel (%p186) target = $region12
    $region11: #{residual_block.7} parent=5 // pred_region
      %s190 = ssub.s32 %s12, 1
      // Predicated region
      $region13: #{residual_block.7} parent=11 // pred_check
        %p191 = pneg %p71
      $region14: #{residual_block.7} parent=11 // pred_check_branch
        %193 = sbr.rel (%p191) target = $region16
      $region15: #{residual_block.7} parent=11 // pred_region
        _
      $region16: #{residual_block.7} parent=11 // pred_fallthru
        _
      // Predicated region
      $region17: #{residual_block.7} parent=11 // pred_check
        %p194 = pneg %p92
      $region18: #{residual_block.7} parent=11 // pred_check_branch
        %196 = sbr.rel (%p194) target = $region20
      $region19: #{residual_block.7} parent=11 // pred_region
        _
      $region20: #{residual_block.7} parent=11 // pred_fallthru
        _
    $region12: #{residual_block.7} parent=5 // pred_fallthru
      _
    %p197 = scmp.lt.s32.totalorder %s12, 2
    // Predicated region
    $region21: #{residual_block.7} parent=5 // pred_check
      %p198 = pneg %p197
    $region22: #{residual_block.7} parent=5 // pred_check_branch
      %200 = sbr.rel (%p198) target = $region24
    $region23: #{residual_block.7} parent=5 // pred_region
      // Predicated region
      $region25: #{residual_block.7} parent=23 // pred_check
        %p201 = pneg %p44
      $region26: #{residual_block.7} parent=23 // pred_check_branch
        %203 = sbr.rel (%p201) target = $region28
      $region27: #{residual_block.7} parent=23 // pred_region
        %p204 = scmp.lt.s32.totalorder %s19, 1
        %s205 = scalar_select %p204, %s19, 1
        %s206 = smul.addr %s205, 32
        %s207 = smul.addr %s206, 8
        %s208 = scalar_lea.vmem %s0, %s207
      $region28: #{residual_block.7} parent=23 // pred_fallthru
        _
    $region24: #{residual_block.7} parent=5 // pred_fallthru
      _
    %p209 = scmp.le.s32.totalorder 1, %s12
    %p210 = scmp.lt.s32.totalorder %s12, 3
    %p211 = pnand %p209, %p210
    %p212 = pneg %p211
    // Predicated region
    $region29: #{residual_block.7} parent=5 // pred_check
      _
    $region30: #{residual_block.7} parent=5 // pred_check_branch
      %214 = sbr.rel (%p211) target = $region32
    $region31: #{residual_block.7} parent=5 // pred_region
      %s215 = ssub.s32 %s12, 1
      %p216 = scmp.lt.s32.totalorder %s21, 1
      %s217 = scalar_select %p216, %s21, 1
      %s218 = smul.addr %s217, 32
      %s219 = smul.addr %s218, 8
      %s220 = scalar_lea.vmem %s0, %s219
      %p221 = pneg %p50
      %p222 = pneg %p47
      %p223 = pneg %p71
      %p224 = pneg %p68
      %p225 = pneg %p92
      %p226 = pneg %p89
      %p227 = pneg %p120
      %p228 = pneg %p117
      %s229 = smul.u32 32, %s22
      %p230 = scmp.lt.s32.totalorder %s21, 1
      %s231 = scalar_select %p230, %s21, 1
      %p232 = scmp.lt.s32.totalorder %s229, 31
      %s233 = scalar_select %p232, %s229, 31
      %s234 = smul.addr %s231, 32
      %s235 = sadd.s32 %s233, %s234
      %s236 = smul.addr %s235, 8
      %s237 = scalar_lea.vmem %s3, %s236
      %p238 = pneg %p148
      %p239 = pneg %p145
      %p240 = scmp.lt.s32.totalorder %s21, 1
      %s241 = scalar_select %p240, %s21, 1
      %p242 = scmp.lt.s32.totalorder %s22, 0
      %s243 = scalar_select %p242, %s22, 0
      %s244 = sadd.s32 %s243, %s241
      %s245 = scalar_lea.vmem %s4, %s244
      %p246 = pneg %p176
      %p247 = pneg %p173
      %p248 = scmp.lt.s32.totalorder %s21, 1
      %s249 = scalar_select %p248, %s21, 1
      %p250 = scmp.lt.s32.totalorder %s22, 0
      %s251 = scalar_select %p250, %s22, 0
      %s252 = sadd.s32 %s251, %s249
      %s253 = scalar_lea.vmem %s5, %s252
      %p254 = scmp.lt.s32.totalorder %s21, 1
      %s255 = scalar_select %p254, %s21, 1
      %s256 = smul.addr %s255, 32
      %s257 = smul.addr %s256, 8
      %s258 = scalar_lea.vmem %s0, %s257
      %s259 = smul.u32 32, %s22
      %p260 = scmp.lt.s32.totalorder %s21, 1
      %s261 = scalar_select %p260, %s21, 1
      %p262 = scmp.lt.s32.totalorder %s259, 31
      %s263 = scalar_select %p262, %s259, 31
      %s264 = smul.addr %s261, 32
      %s265 = sadd.s32 %s263, %s264
      %s266 = smul.addr %s265, 8
      %s267 = scalar_lea.vmem %s3, %s266
      %s268 = smul.u32 32, %s22
      %p269 = scmp.lt.s32.totalorder %s21, 1
      %s270 = scalar_select %p269, %s21, 1
      %p271 = scmp.lt.s32.totalorder %s22, 0
      %s272 = scalar_select %p271, %s22, 0
      %s273 = sadd.s32 %s272, %s270
      %s274 = scalar_lea.vmem %s4, %s273
      %p275 = scmp.lt.s32.totalorder %s21, 1
      %s276 = scalar_select %p275, %s21, 1
      %p277 = scmp.lt.s32.totalorder %s22, 0
      %s278 = scalar_select %p277, %s22, 0
      %s279 = sadd.s32 %s278, %s276
      %s280 = scalar_lea.vmem %s5, %s279
      %vm281 = vcmask 130048
      %282 = vst.msk [vmem:[#allocation3] sm:$0xff] %vm281, 0.0
      %283 = vst.msk [vmem:[#allocation3 + $0x8] sm:$0xff] %vm281, 0.0
      %vm284 = vcmask 123904
      %285 = vst.msk [vmem:[#allocation3 + $0x10] sm:$0x3] %vm284, 0.0
      %286 = vst.msk [vmem:[#allocation3 + $0x18] sm:$0xff] %vm281, 0.0
      %287 = vst.msk [vmem:[#allocation3 + $0x20] sm:$0xff] %vm281, 0.0
      %288 = vst.msk [vmem:[#allocation3 + $0x28] sm:$0x3] %vm284, 0.0
      %289 = vst.msk [vmem:[#allocation3 + $0x30] sm:$0xff] %vm281, 0.0
      %290 = vst.msk [vmem:[#allocation3 + $0x38] sm:$0xff] %vm281, 0.0
      %291 = vst.msk [vmem:[#allocation3 + $0x40] sm:$0x3] %vm284, 0.0
      %292 = vst.msk [vmem:[#allocation3 + $0x48] sm:$0xff] %vm281, 0.0
      %293 = vst.msk [vmem:[#allocation3 + $0x50] sm:$0xff] %vm281, 0.0
      %294 = vst.msk [vmem:[#allocation3 + $0x58] sm:$0x3] %vm284, 0.0
      %295 = vst.msk [vmem:[#allocation3 + $0x60] sm:$0xff] %vm281, 0.0
      %296 = vst.msk [vmem:[#allocation3 + $0x68] sm:$0xff] %vm281, 0.0
      %297 = vst.msk [vmem:[#allocation3 + $0x70] sm:$0x3] %vm284, 0.0
      %298 = vst.msk [vmem:[#allocation3 + $0x78] sm:$0xff] %vm281, 0.0
      %299 = vst.msk [vmem:[#allocation3 + $0x80] sm:$0xff] %vm281, 0.0
      %300 = vst.msk [vmem:[#allocation3 + $0x88] sm:$0x3] %vm284, 0.0
      %301 = vst.msk [vmem:[#allocation3 + $0x90] sm:$0xff] %vm281, 0.0
      %302 = vst.msk [vmem:[#allocation3 + $0x98] sm:$0xff] %vm281, 0.0
      %303 = vst.msk [vmem:[#allocation3 + $0xa0] sm:$0x3] %vm284, 0.0
      %304 = vst.msk [vmem:[#allocation3 + $0xa8] sm:$0xff] %vm281, 0.0
      %305 = vst.msk [vmem:[#allocation3 + $0xb0] sm:$0xff] %vm281, 0.0
      %306 = vst.msk [vmem:[#allocation3 + $0xb8] sm:$0x3] %vm284, 0.0
      %307 = vst.msk [vmem:[#allocation3 + $0xc0] sm:$0xff] %vm281, 0.0
      %308 = vst.msk [vmem:[#allocation3 + $0xc8] sm:$0xff] %vm281, 0.0
      %309 = vst.msk [vmem:[#allocation3 + $0xd0] sm:$0x3] %vm284, 0.0
      %310 = vst.msk [vmem:[#allocation3 + $0xd8] sm:$0xff] %vm281, 0.0
      %311 = vst.msk [vmem:[#allocation3 + $0xe0] sm:$0xff] %vm281, 0.0
      %312 = vst.msk [vmem:[#allocation3 + $0xe8] sm:$0x3] %vm284, 0.0
      %313 = vst.msk [vmem:[#allocation3 + $0xf0] sm:$0xff] %vm281, 0.0
      %314 = vst.msk [vmem:[#allocation3 + $0xf8] sm:$0xff] %vm281, 0.0
      %315 = vst.msk [vmem:[#allocation3 + $0x100] sm:$0x3] %vm284, 0.0
      %316 = vst.msk [vmem:[#allocation3 + $0x108] sm:$0xff] %vm281, 0.0
      %317 = vst.msk [vmem:[#allocation3 + $0x110] sm:$0xff] %vm281, 0.0
      %318 = vst.msk [vmem:[#allocation3 + $0x118] sm:$0x3] %vm284, 0.0
      %319 = vst.msk [vmem:[#allocation3 + $0x120] sm:$0xff] %vm281, 0.0
      %320 = vst.msk [vmem:[#allocation3 + $0x128] sm:$0xff] %vm281, 0.0
      %321 = vst.msk [vmem:[#allocation3 + $0x130] sm:$0x3] %vm284, 0.0
      %322 = vst.msk [vmem:[#allocation3 + $0x138] sm:$0xff] %vm281, 0.0
      %323 = vst.msk [vmem:[#allocation3 + $0x140] sm:$0xff] %vm281, 0.0
      %324 = vst.msk [vmem:[#allocation3 + $0x148] sm:$0x3] %vm284, 0.0
      %325 = vst.msk [vmem:[#allocation3 + $0x150] sm:$0xff] %vm281, 0.0
      %326 = vst.msk [vmem:[#allocation3 + $0x158] sm:$0xff] %vm281, 0.0
      %327 = vst.msk [vmem:[#allocation3 + $0x160] sm:$0x3] %vm284, 0.0
      %328 = vst.msk [vmem:[#allocation3 + $0x168] sm:$0xff] %vm281, 0.0
      %329 = vst.msk [vmem:[#allocation3 + $0x170] sm:$0xff] %vm281, 0.0
      %330 = vst.msk [vmem:[#allocation3 + $0x178] sm:$0x3] %vm284, 0.0
      %331 = vst.msk [vmem:[#allocation3 + $0x180] sm:$0xff] %vm281, 0.0
      %332 = vst.msk [vmem:[#allocation3 + $0x188] sm:$0xff] %vm281, 0.0
      %333 = vst.msk [vmem:[#allocation3 + $0x190] sm:$0x3] %vm284, 0.0
      %334 = vst.msk [vmem:[#allocation3 + $0x198] sm:$0xff] %vm281, 0.0
      %335 = vst.msk [vmem:[#allocation3 + $0x1a0] sm:$0xff] %vm281, 0.0
      %336 = vst.msk [vmem:[#allocation3 + $0x1a8] sm:$0x3] %vm284, 0.0
      %v337 = vld [vmem:[%s258] sm:$0xff]
      %v338 = vld [vmem:[%s258 + $0x8] sm:$0xff]
      %v339 = vld [vmem:[%s258 + $0x10] sm:$0xff]
      %v340 = vld [vmem:[%s258 + $0x18] sm:$0xff]
      %v341 = vld [vmem:[%s258 + $0x20] sm:$0xff]
      %v342 = vld [vmem:[%s258 + $0x28] sm:$0xff]
      %v343 = vld [vmem:[%s258 + $0x30] sm:$0xff]
      %v344 = vld [vmem:[%s258 + $0x38] sm:$0xff]
      %v345 = vld [vmem:[%s258 + $0x40] sm:$0xff]
      %v346 = vld [vmem:[%s258 + $0x48] sm:$0xff]
      %v347 = vld [vmem:[%s258 + $0x50] sm:$0xff]
      %v348 = vld [vmem:[%s258 + $0x58] sm:$0xff]
      %v349 = vld [vmem:[%s258 + $0x60] sm:$0xff]
      %v350 = vld [vmem:[%s258 + $0x68] sm:$0xff]
      %v351 = vld [vmem:[%s258 + $0x70] sm:$0xff]
      %v352 = vld [vmem:[%s258 + $0x78] sm:$0xff]
      %v353 = vld [vmem:[%s258 + $0x80] sm:$0xff]
      %v354 = vld [vmem:[%s258 + $0x88] sm:$0xff]
      %v355 = vld [vmem:[%s258 + $0x90] sm:$0xff]
      %v356 = vld [vmem:[%s258 + $0x98] sm:$0xff]
      %v357 = vld [vmem:[%s258 + $0xa0] sm:$0xff]
      %v358 = vld [vmem:[%s258 + $0xa8] sm:$0xff]
      %v359 = vld [vmem:[%s258 + $0xb0] sm:$0xff]
      %v360 = vld [vmem:[%s258 + $0xb8] sm:$0xff]
      %v361 = vld [vmem:[%s258 + $0xc0] sm:$0xff]
      %v362 = vld [vmem:[%s258 + $0xc8] sm:$0xff]
      %v363 = vld [vmem:[%s258 + $0xd0] sm:$0xff]
      %v364 = vld [vmem:[%s258 + $0xd8] sm:$0xff]
      %v365 = vld [vmem:[%s258 + $0xe0] sm:$0xff]
      %v366 = vld [vmem:[%s258 + $0xe8] sm:$0xff]
      %v367 = vld [vmem:[%s258 + $0xf0] sm:$0xff]
      %v368 = vld [vmem:[%s258 + $0xf8] sm:$0xff]
      %s369 = scalar_lea.vmem [#allocation3], 24
      %370 = vst.msk [vmem:[%s369 + $0x1] sm:$0xff] %vm281, %v337
      %371 = vst.msk [vmem:[%s369 + $0x9] sm:$0xff] %vm281, %v338
      %372 = vst.msk [vmem:[%s369 + $0x19] sm:$0xff] %vm281, %v339
      %373 = vst.msk [vmem:[%s369 + $0x21] sm:$0xff] %vm281, %v340
      %374 = vst.msk [vmem:[%s369 + $0x31] sm:$0xff] %vm281, %v341
      %375 = vst.msk [vmem:[%s369 + $0x39] sm:$0xff] %vm281, %v342
      %376 = vst.msk [vmem:[%s369 + $0x49] sm:$0xff] %vm281, %v343
      %377 = vst.msk [vmem:[%s369 + $0x51] sm:$0xff] %vm281, %v344
      %378 = vst.msk [vmem:[%s369 + $0x61] sm:$0xff] %vm281, %v345
      %379 = vst.msk [vmem:[%s369 + $0x69] sm:$0xff] %vm281, %v346
      %380 = vst.msk [vmem:[%s369 + $0x79] sm:$0xff] %vm281, %v347
      %381 = vst.msk [vmem:[%s369 + $0x81] sm:$0xff] %vm281, %v348
      %382 = vst.msk [vmem:[%s369 + $0x91] sm:$0xff] %vm281, %v349
      %383 = vst.msk [vmem:[%s369 + $0x99] sm:$0xff] %vm281, %v350
      %384 = vst.msk [vmem:[%s369 + $0xa9] sm:$0xff] %vm281, %v351
      %385 = vst.msk [vmem:[%s369 + $0xb1] sm:$0xff] %vm281, %v352
      %386 = vst.msk [vmem:[%s369 + $0xc1] sm:$0xff] %vm281, %v353
      %387 = vst.msk [vmem:[%s369 + $0xc9] sm:$0xff] %vm281, %v354
      %388 = vst.msk [vmem:[%s369 + $0xd9] sm:$0xff] %vm281, %v355
      %389 = vst.msk [vmem:[%s369 + $0xe1] sm:$0xff] %vm281, %v356
      %390 = vst.msk [vmem:[%s369 + $0xf1] sm:$0xff] %vm281, %v357
      %391 = vst.msk [vmem:[%s369 + $0xf9] sm:$0xff] %vm281, %v358
      %392 = vst.msk [vmem:[%s369 + $0x109] sm:$0xff] %vm281, %v359
      %393 = vst.msk [vmem:[%s369 + $0x111] sm:$0xff] %vm281, %v360
      %394 = vst.msk [vmem:[%s369 + $0x121] sm:$0xff] %vm281, %v361
      %395 = vst.msk [vmem:[%s369 + $0x129] sm:$0xff] %vm281, %v362
      %396 = vst.msk [vmem:[%s369 + $0x139] sm:$0xff] %vm281, %v363
      %397 = vst.msk [vmem:[%s369 + $0x141] sm:$0xff] %vm281, %v364
      %398 = vst.msk [vmem:[%s369 + $0x151] sm:$0xff] %vm281, %v365
      %399 = vst.msk [vmem:[%s369 + $0x159] sm:$0xff] %vm281, %v366
      %400 = vst.msk [vmem:[%s369 + $0x169] sm:$0xff] %vm281, %v367
      %401 = vst.msk [vmem:[%s369 + $0x171] sm:$0xff] %vm281, %v368
      %s402 = smul.u32 %s22, 16
      %s403 = smul.u32 %s402, 24
      %s404 = scalar_lea.vmem [#allocation3], %s403
      %v405 = vld [vmem:[%s404] sm:$0xff]
      %v406 = vld [vmem:[%s404 + $0x8] sm:$0xff]
      %v407 = vld [vmem:[%s404 + $0x18] sm:$0xff]
      %v408 = vld [vmem:[%s404 + $0x20] sm:$0xff]
      %v409 = vld [vmem:[%s404 + $0x30] sm:$0xff]
      %v410 = vld [vmem:[%s404 + $0x38] sm:$0xff]
      %v411 = vld [vmem:[%s404 + $0x48] sm:$0xff]
      %v412 = vld [vmem:[%s404 + $0x50] sm:$0xff]
      %v413 = vld [vmem:[%s404 + $0x60] sm:$0xff]
      %v414 = vld [vmem:[%s404 + $0x68] sm:$0xff]
      %v415 = vld [vmem:[%s404 + $0x78] sm:$0xff]
      %v416 = vld [vmem:[%s404 + $0x80] sm:$0xff]
      %v417 = vld [vmem:[%s404 + $0x90] sm:$0xff]
      %v418 = vld [vmem:[%s404 + $0x98] sm:$0xff]
      %v419 = vld [vmem:[%s404 + $0xa8] sm:$0xff]
      %v420 = vld [vmem:[%s404 + $0xb0] sm:$0xff]
      %v421 = vld [vmem:[%s404 + $0xc0] sm:$0xff]
      %v422 = vld [vmem:[%s404 + $0xc8] sm:$0xff]
      %v423 = vld [vmem:[%s404 + $0xd8] sm:$0xff]
      %v424 = vld [vmem:[%s404 + $0xe0] sm:$0xff]
      %v425 = vld [vmem:[%s404 + $0xf0] sm:$0xff]
      %v426 = vld [vmem:[%s404 + $0xf8] sm:$0xff]
      %v427 = vld [vmem:[%s404 + $0x108] sm:$0xff]
      %v428 = vld [vmem:[%s404 + $0x110] sm:$0xff]
      %v429 = vld [vmem:[%s404 + $0x120] sm:$0xff]
      %v430 = vld [vmem:[%s404 + $0x128] sm:$0xff]
      %v431 = vld [vmem:[%s404 + $0x138] sm:$0xff]
      %v432 = vld [vmem:[%s404 + $0x140] sm:$0xff]
      %v433 = vld [vmem:[%s404 + $0x150] sm:$0xff]
      %v434 = vld [vmem:[%s404 + $0x158] sm:$0xff]
      %v435 = vld [vmem:[%s404 + $0x168] sm:$0xff]
      %v436 = vld [vmem:[%s404 + $0x170] sm:$0xff]
      %437 = vst.msk [vmem:[#allocation2] sm:$0xff] %vm281, %v405
      %438 = vst.msk [vmem:[#allocation2 + $0x10] sm:$0xff] %vm281, %v406
      %439 = vst.msk [vmem:[#allocation2 + $0x20] sm:$0xff] %vm281, %v407
      %440 = vst.msk [vmem:[#allocation2 + $0x30] sm:$0xff] %vm281, %v408
      %441 = vst.msk [vmem:[#allocation2 + $0x40] sm:$0xff] %vm281, %v409
      %442 = vst.msk [vmem:[#allocation2 + $0x50] sm:$0xff] %vm281, %v410
      %443 = vst.msk [vmem:[#allocation2 + $0x60] sm:$0xff] %vm281, %v411
      %444 = vst.msk [vmem:[#allocation2 + $0x70] sm:$0xff] %vm281, %v412
      %445 = vst.msk [vmem:[#allocation2 + $0x80] sm:$0xff] %vm281, %v413
      %446 = vst.msk [vmem:[#allocation2 + $0x90] sm:$0xff] %vm281, %v414
      %447 = vst.msk [vmem:[#allocation2 + $0xa0] sm:$0xff] %vm281, %v415
      %448 = vst.msk [vmem:[#allocation2 + $0xb0] sm:$0xff] %vm281, %v416
      %449 = vst.msk [vmem:[#allocation2 + $0xc0] sm:$0xff] %vm281, %v417
      %450 = vst.msk [vmem:[#allocation2 + $0xd0] sm:$0xff] %vm281, %v418
      %451 = vst.msk [vmem:[#allocation2 + $0xe0] sm:$0xff] %vm281, %v419
      %452 = vst.msk [vmem:[#allocation2 + $0xf0] sm:$0xff] %vm281, %v420
      %453 = vst.msk [vmem:[#allocation2 + $0x100] sm:$0xff] %vm281, %v421
      %454 = vst.msk [vmem:[#allocation2 + $0x110] sm:$0xff] %vm281, %v422
      %455 = vst.msk [vmem:[#allocation2 + $0x120] sm:$0xff] %vm281, %v423
      %456 = vst.msk [vmem:[#allocation2 + $0x130] sm:$0xff] %vm281, %v424
      %457 = vst.msk [vmem:[#allocation2 + $0x140] sm:$0xff] %vm281, %v425
      %458 = vst.msk [vmem:[#allocation2 + $0x150] sm:$0xff] %vm281, %v426
      %459 = vst.msk [vmem:[#allocation2 + $0x160] sm:$0xff] %vm281, %v427
      %460 = vst.msk [vmem:[#allocation2 + $0x170] sm:$0xff] %vm281, %v428
      %461 = vst.msk [vmem:[#allocation2 + $0x180] sm:$0xff] %vm281, %v429
      %462 = vst.msk [vmem:[#allocation2 + $0x190] sm:$0xff] %vm281, %v430
      %463 = vst.msk [vmem:[#allocation2 + $0x1a0] sm:$0xff] %vm281, %v431
      %464 = vst.msk [vmem:[#allocation2 + $0x1b0] sm:$0xff] %vm281, %v432
      %465 = vst.msk [vmem:[#allocation2 + $0x1c0] sm:$0xff] %vm281, %v433
      %466 = vst.msk [vmem:[#allocation2 + $0x1d0] sm:$0xff] %vm281, %v434
      %467 = vst.msk [vmem:[#allocation2 + $0x1e0] sm:$0xff] %vm281, %v435
      %468 = vst.msk [vmem:[#allocation2 + $0x1f0] sm:$0xff] %vm281, %v436
      %v469 = vld [vmem:[%s404 + $0x1] sm:$0xff]
      %v470 = vld [vmem:[%s404 + $0x9] sm:$0xff]
      %v471 = vld [vmem:[%s404 + $0x19] sm:$0xff]
      %v472 = vld [vmem:[%s404 + $0x21] sm:$0xff]
      %v473 = vld [vmem:[%s404 + $0x31] sm:$0xff]
      %v474 = vld [vmem:[%s404 + $0x39] sm:$0xff]
      %v475 = vld [vmem:[%s404 + $0x49] sm:$0xff]
      %v476 = vld [vmem:[%s404 + $0x51] sm:$0xff]
      %v477 = vld [vmem:[%s404 + $0x61] sm:$0xff]
      %v478 = vld [vmem:[%s404 + $0x69] sm:$0xff]
      %v479 = vld [vmem:[%s404 + $0x79] sm:$0xff]
      %v480 = vld [vmem:[%s404 + $0x81] sm:$0xff]
      %v481 = vld [vmem:[%s404 + $0x91] sm:$0xff]
      %v482 = vld [vmem:[%s404 + $0x99] sm:$0xff]
      %v483 = vld [vmem:[%s404 + $0xa9] sm:$0xff]
      %v484 = vld [vmem:[%s404 + $0xb1] sm:$0xff]
      %v485 = vld [vmem:[%s404 + $0xc1] sm:$0xff]
      %v486 = vld [vmem:[%s404 + $0xc9] sm:$0xff]
      %v487 = vld [vmem:[%s404 + $0xd9] sm:$0xff]
      %v488 = vld [vmem:[%s404 + $0xe1] sm:$0xff]
      %v489 = vld [vmem:[%s404 + $0xf1] sm:$0xff]
      %v490 = vld [vmem:[%s404 + $0xf9] sm:$0xff]
      %v491 = vld [vmem:[%s404 + $0x109] sm:$0xff]
      %v492 = vld [vmem:[%s404 + $0x111] sm:$0xff]
      %v493 = vld [vmem:[%s404 + $0x121] sm:$0xff]
      %v494 = vld [vmem:[%s404 + $0x129] sm:$0xff]
      %v495 = vld [vmem:[%s404 + $0x139] sm:$0xff]
      %v496 = vld [vmem:[%s404 + $0x141] sm:$0xff]
      %v497 = vld [vmem:[%s404 + $0x151] sm:$0xff]
      %v498 = vld [vmem:[%s404 + $0x159] sm:$0xff]
      %v499 = vld [vmem:[%s404 + $0x169] sm:$0xff]
      %v500 = vld [vmem:[%s404 + $0x171] sm:$0xff]
      %533 = vrot.lane.b32.xlu0 %v469, 16
      %v534 = vpop.permute.xlu0 %533
      %535 = vrot.lane.b32.xlu0 %v470, 16
      %v536 = vpop.permute.xlu0 %535
      %537 = vrot.lane.b32.xlu0 %v471, 16
      %v538 = vpop.permute.xlu0 %537
      %539 = vrot.lane.b32.xlu0 %v472, 16
      %v540 = vpop.permute.xlu0 %539
      %541 = vrot.lane.b32.xlu0 %v473, 16
      %v542 = vpop.permute.xlu0 %541
      %543 = vrot.lane.b32.xlu0 %v474, 16
      %v544 = vpop.permute.xlu0 %543
      %545 = vrot.lane.b32.xlu0 %v475, 16
      %v546 = vpop.permute.xlu0 %545
      %547 = vrot.lane.b32.xlu0 %v476, 16
      %v548 = vpop.permute.xlu0 %547
      %549 = vrot.lane.b32.xlu0 %v477, 16
      %v550 = vpop.permute.xlu0 %549
      %551 = vrot.lane.b32.xlu0 %v478, 16
      %v552 = vpop.permute.xlu0 %551
      %553 = vrot.lane.b32.xlu0 %v479, 16
      %v554 = vpop.permute.xlu0 %553
      %555 = vrot.lane.b32.xlu0 %v480, 16
      %v556 = vpop.permute.xlu0 %555
      %557 = vrot.lane.b32.xlu0 %v481, 16
      %v558 = vpop.permute.xlu0 %557
      %559 = vrot.lane.b32.xlu0 %v482, 16
      %v560 = vpop.permute.xlu0 %559
      %561 = vrot.lane.b32.xlu0 %v483, 16
      %v562 = vpop.permute.xlu0 %561
      %563 = vrot.lane.b32.xlu0 %v484, 16
      %v564 = vpop.permute.xlu0 %563
      %565 = vrot.lane.b32.xlu0 %v485, 16
      %v566 = vpop.permute.xlu0 %565
      %567 = vrot.lane.b32.xlu0 %v486, 16
      %v568 = vpop.permute.xlu0 %567
      %569 = vrot.lane.b32.xlu0 %v487, 16
      %v570 = vpop.permute.xlu0 %569
      %571 = vrot.lane.b32.xlu0 %v488, 16
      %v572 = vpop.permute.xlu0 %571
      %573 = vrot.lane.b32.xlu0 %v489, 16
      %v574 = vpop.permute.xlu0 %573
      %575 = vrot.lane.b32.xlu0 %v490, 16
      %v576 = vpop.permute.xlu0 %575
      %577 = vrot.lane.b32.xlu0 %v491, 16
      %v578 = vpop.permute.xlu0 %577
      %579 = vrot.lane.b32.xlu0 %v492, 16
      %v580 = vpop.permute.xlu0 %579
      %581 = vrot.lane.b32.xlu0 %v493, 16
      %v582 = vpop.permute.xlu0 %581
      %583 = vrot.lane.b32.xlu0 %v494, 16
      %v584 = vpop.permute.xlu0 %583
      %585 = vrot.lane.b32.xlu0 %v495, 16
      %v586 = vpop.permute.xlu0 %585
      %587 = vrot.lane.b32.xlu0 %v496, 16
      %v588 = vpop.permute.xlu0 %587
      %589 = vrot.lane.b32.xlu0 %v497, 16
      %v590 = vpop.permute.xlu0 %589
      %591 = vrot.lane.b32.xlu0 %v498, 16
      %v592 = vpop.permute.xlu0 %591
      %593 = vrot.lane.b32.xlu0 %v499, 16
      %v594 = vpop.permute.xlu0 %593
      %595 = vrot.lane.b32.xlu0 %v500, 16
      %v596 = vpop.permute.xlu0 %595
      %vm629 = vcmask 261248
      %630 = vst.msk [vmem:[#allocation2] sm:$0xff] %vm629, %v534
      %631 = vst.msk [vmem:[#allocation2 + $0x10] sm:$0xff] %vm629, %v536
      %632 = vst.msk [vmem:[#allocation2 + $0x20] sm:$0xff] %vm629, %v538
      %633 = vst.msk [vmem:[#allocation2 + $0x30] sm:$0xff] %vm629, %v540
      %634 = vst.msk [vmem:[#allocation2 + $0x40] sm:$0xff] %vm629, %v542
      %635 = vst.msk [vmem:[#allocation2 + $0x50] sm:$0xff] %vm629, %v544
      %636 = vst.msk [vmem:[#allocation2 + $0x60] sm:$0xff] %vm629, %v546
      %637 = vst.msk [vmem:[#allocation2 + $0x70] sm:$0xff] %vm629, %v548
      %638 = vst.msk [vmem:[#allocation2 + $0x80] sm:$0xff] %vm629, %v550
      %639 = vst.msk [vmem:[#allocation2 + $0x90] sm:$0xff] %vm629, %v552
      %640 = vst.msk [vmem:[#allocation2 + $0xa0] sm:$0xff] %vm629, %v554
      %641 = vst.msk [vmem:[#allocation2 + $0xb0] sm:$0xff] %vm629, %v556
      %642 = vst.msk [vmem:[#allocation2 + $0xc0] sm:$0xff] %vm629, %v558
      %643 = vst.msk [vmem:[#allocation2 + $0xd0] sm:$0xff] %vm629, %v560
      %644 = vst.msk [vmem:[#allocation2 + $0xe0] sm:$0xff] %vm629, %v562
      %645 = vst.msk [vmem:[#allocation2 + $0xf0] sm:$0xff] %vm629, %v564
      %646 = vst.msk [vmem:[#allocation2 + $0x100] sm:$0xff] %vm629, %v566
      %647 = vst.msk [vmem:[#allocation2 + $0x110] sm:$0xff] %vm629, %v568
      %648 = vst.msk [vmem:[#allocation2 + $0x120] sm:$0xff] %vm629, %v570
      %649 = vst.msk [vmem:[#allocation2 + $0x130] sm:$0xff] %vm629, %v572
      %650 = vst.msk [vmem:[#allocation2 + $0x140] sm:$0xff] %vm629, %v574
      %651 = vst.msk [vmem:[#allocation2 + $0x150] sm:$0xff] %vm629, %v576
      %652 = vst.msk [vmem:[#allocation2 + $0x160] sm:$0xff] %vm629, %v578
      %653 = vst.msk [vmem:[#allocation2 + $0x170] sm:$0xff] %vm629, %v580
      %654 = vst.msk [vmem:[#allocation2 + $0x180] sm:$0xff] %vm629, %v582
      %655 = vst.msk [vmem:[#allocation2 + $0x190] sm:$0xff] %vm629, %v584
      %656 = vst.msk [vmem:[#allocation2 + $0x1a0] sm:$0xff] %vm629, %v586
      %657 = vst.msk [vmem:[#allocation2 + $0x1b0] sm:$0xff] %vm629, %v588
      %658 = vst.msk [vmem:[#allocation2 + $0x1c0] sm:$0xff] %vm629, %v590
      %659 = vst.msk [vmem:[#allocation2 + $0x1d0] sm:$0xff] %vm629, %v592
      %660 = vst.msk [vmem:[#allocation2 + $0x1e0] sm:$0xff] %vm629, %v594
      %661 = vst.msk [vmem:[#allocation2 + $0x1f0] sm:$0xff] %vm629, %v596
      %v662 = vld [vmem:[%s404 + $0x2] sm:$0xff]
      %v663 = vld [vmem:[%s404 + $0xa] sm:$0xff]
      %v664 = vld [vmem:[%s404 + $0x1a] sm:$0xff]
      %v665 = vld [vmem:[%s404 + $0x22] sm:$0xff]
      %v666 = vld [vmem:[%s404 + $0x32] sm:$0xff]
      %v667 = vld [vmem:[%s404 + $0x3a] sm:$0xff]
      %v668 = vld [vmem:[%s404 + $0x4a] sm:$0xff]
      %v669 = vld [vmem:[%s404 + $0x52] sm:$0xff]
      %v670 = vld [vmem:[%s404 + $0x62] sm:$0xff]
      %v671 = vld [vmem:[%s404 + $0x6a] sm:$0xff]
      %v672 = vld [vmem:[%s404 + $0x7a] sm:$0xff]
      %v673 = vld [vmem:[%s404 + $0x82] sm:$0xff]
      %v674 = vld [vmem:[%s404 + $0x92] sm:$0xff]
      %v675 = vld [vmem:[%s404 + $0x9a] sm:$0xff]
      %v676 = vld [vmem:[%s404 + $0xaa] sm:$0xff]
      %v677 = vld [vmem:[%s404 + $0xb2] sm:$0xff]
      %v678 = vld [vmem:[%s404 + $0xc2] sm:$0xff]
      %v679 = vld [vmem:[%s404 + $0xca] sm:$0xff]
      %v680 = vld [vmem:[%s404 + $0xda] sm:$0xff]
      %v681 = vld [vmem:[%s404 + $0xe2] sm:$0xff]
      %v682 = vld [vmem:[%s404 + $0xf2] sm:$0xff]
      %v683 = vld [vmem:[%s404 + $0xfa] sm:$0xff]
      %v684 = vld [vmem:[%s404 + $0x10a] sm:$0xff]
      %v685 = vld [vmem:[%s404 + $0x112] sm:$0xff]
      %v686 = vld [vmem:[%s404 + $0x122] sm:$0xff]
      %v687 = vld [vmem:[%s404 + $0x12a] sm:$0xff]
      %v688 = vld [vmem:[%s404 + $0x13a] sm:$0xff]
      %v689 = vld [vmem:[%s404 + $0x142] sm:$0xff]
      %v690 = vld [vmem:[%s404 + $0x152] sm:$0xff]
      %v691 = vld [vmem:[%s404 + $0x15a] sm:$0xff]
      %v692 = vld [vmem:[%s404 + $0x16a] sm:$0xff]
      %v693 = vld [vmem:[%s404 + $0x172] sm:$0xff]
      %726 = vrot.lane.b32.xlu0 %v662, 32
      %v727 = vpop.permute.xlu0 %726
      %728 = vrot.lane.b32.xlu0 %v663, 32
      %v729 = vpop.permute.xlu0 %728
      %730 = vrot.lane.b32.xlu0 %v664, 32
      %v731 = vpop.permute.xlu0 %730
      %732 = vrot.lane.b32.xlu0 %v665, 32
      %v733 = vpop.permute.xlu0 %732
      %734 = vrot.lane.b32.xlu0 %v666, 32
      %v735 = vpop.permute.xlu0 %734
      %736 = vrot.lane.b32.xlu0 %v667, 32
      %v737 = vpop.permute.xlu0 %736
      %738 = vrot.lane.b32.xlu0 %v668, 32
      %v739 = vpop.permute.xlu0 %738
      %740 = vrot.lane.b32.xlu0 %v669, 32
      %v741 = vpop.permute.xlu0 %740
      %742 = vrot.lane.b32.xlu0 %v670, 32
      %v743 = vpop.permute.xlu0 %742
      %744 = vrot.lane.b32.xlu0 %v671, 32
      %v745 = vpop.permute.xlu0 %744
      %746 = vrot.lane.b32.xlu0 %v672, 32
      %v747 = vpop.permute.xlu0 %746
      %748 = vrot.lane.b32.xlu0 %v673, 32
      %v749 = vpop.permute.xlu0 %748
      %750 = vrot.lane.b32.xlu0 %v674, 32
      %v751 = vpop.permute.xlu0 %750
      %752 = vrot.lane.b32.xlu0 %v675, 32
      %v753 = vpop.permute.xlu0 %752
      %754 = vrot.lane.b32.xlu0 %v676, 32
      %v755 = vpop.permute.xlu0 %754
      %756 = vrot.lane.b32.xlu0 %v677, 32
      %v757 = vpop.permute.xlu0 %756
      %758 = vrot.lane.b32.xlu0 %v678, 32
      %v759 = vpop.permute.xlu0 %758
      %760 = vrot.lane.b32.xlu0 %v679, 32
      %v761 = vpop.permute.xlu0 %760
      %762 = vrot.lane.b32.xlu0 %v680, 32
      %v763 = vpop.permute.xlu0 %762
      %764 = vrot.lane.b32.xlu0 %v681, 32
      %v765 = vpop.permute.xlu0 %764
      %766 = vrot.lane.b32.xlu0 %v682, 32
      %v767 = vpop.permute.xlu0 %766
      %768 = vrot.lane.b32.xlu0 %v683, 32
      %v769 = vpop.permute.xlu0 %768
      %770 = vrot.lane.b32.xlu0 %v684, 32
      %v771 = vpop.permute.xlu0 %770
      %772 = vrot.lane.b32.xlu0 %v685, 32
      %v773 = vpop.permute.xlu0 %772
      %774 = vrot.lane.b32.xlu0 %v686, 32
      %v775 = vpop.permute.xlu0 %774
      %776 = vrot.lane.b32.xlu0 %v687, 32
      %v777 = vpop.permute.xlu0 %776
      %778 = vrot.lane.b32.xlu0 %v688, 32
      %v779 = vpop.permute.xlu0 %778
      %780 = vrot.lane.b32.xlu0 %v689, 32
      %v781 = vpop.permute.xlu0 %780
      %782 = vrot.lane.b32.xlu0 %v690, 32
      %v783 = vpop.permute.xlu0 %782
      %784 = vrot.lane.b32.xlu0 %v691, 32
      %v785 = vpop.permute.xlu0 %784
      %786 = vrot.lane.b32.xlu0 %v692, 32
      %v787 = vpop.permute.xlu0 %786
      %788 = vrot.lane.b32.xlu0 %v693, 32
      %v789 = vpop.permute.xlu0 %788
      %vm822 = vcmask 392448
      %823 = vst.msk [vmem:[#allocation2] sm:$0xff] %vm822, %v727
      %824 = vst.msk [vmem:[#allocation2 + $0x10] sm:$0xff] %vm822, %v729
      %825 = vst.msk [vmem:[#allocation2 + $0x20] sm:$0xff] %vm822, %v731
      %826 = vst.msk [vmem:[#allocation2 + $0x30] sm:$0xff] %vm822, %v733
      %827 = vst.msk [vmem:[#allocation2 + $0x40] sm:$0xff] %vm822, %v735
      %828 = vst.msk [vmem:[#allocation2 + $0x50] sm:$0xff] %vm822, %v737
      %829 = vst.msk [vmem:[#allocation2 + $0x60] sm:$0xff] %vm822, %v739
      %830 = vst.msk [vmem:[#allocation2 + $0x70] sm:$0xff] %vm822, %v741
      %831 = vst.msk [vmem:[#allocation2 + $0x80] sm:$0xff] %vm822, %v743
      %832 = vst.msk [vmem:[#allocation2 + $0x90] sm:$0xff] %vm822, %v745
      %833 = vst.msk [vmem:[#allocation2 + $0xa0] sm:$0xff] %vm822, %v747
      %834 = vst.msk [vmem:[#allocation2 + $0xb0] sm:$0xff] %vm822, %v749
      %835 = vst.msk [vmem:[#allocation2 + $0xc0] sm:$0xff] %vm822, %v751
      %836 = vst.msk [vmem:[#allocation2 + $0xd0] sm:$0xff] %vm822, %v753
      %837 = vst.msk [vmem:[#allocation2 + $0xe0] sm:$0xff] %vm822, %v755
      %838 = vst.msk [vmem:[#allocation2 + $0xf0] sm:$0xff] %vm822, %v757
      %839 = vst.msk [vmem:[#allocation2 + $0x100] sm:$0xff] %vm822, %v759
      %840 = vst.msk [vmem:[#allocation2 + $0x110] sm:$0xff] %vm822, %v761
      %841 = vst.msk [vmem:[#allocation2 + $0x120] sm:$0xff] %vm822, %v763
      %842 = vst.msk [vmem:[#allocation2 + $0x130] sm:$0xff] %vm822, %v765
      %843 = vst.msk [vmem:[#allocation2 + $0x140] sm:$0xff] %vm822, %v767
      %844 = vst.msk [vmem:[#allocation2 + $0x150] sm:$0xff] %vm822, %v769
      %845 = vst.msk [vmem:[#allocation2 + $0x160] sm:$0xff] %vm822, %v771
      %846 = vst.msk [vmem:[#allocation2 + $0x170] sm:$0xff] %vm822, %v773
      %847 = vst.msk [vmem:[#allocation2 + $0x180] sm:$0xff] %vm822, %v775
      %848 = vst.msk [vmem:[#allocation2 + $0x190] sm:$0xff] %vm822, %v777
      %849 = vst.msk [vmem:[#allocation2 + $0x1a0] sm:$0xff] %vm822, %v779
      %850 = vst.msk [vmem:[#allocation2 + $0x1b0] sm:$0xff] %vm822, %v781
      %851 = vst.msk [vmem:[#allocation2 + $0x1c0] sm:$0xff] %vm822, %v783
      %852 = vst.msk [vmem:[#allocation2 + $0x1d0] sm:$0xff] %vm822, %v785
      %853 = vst.msk [vmem:[#allocation2 + $0x1e0] sm:$0xff] %vm822, %v787
      %854 = vst.msk [vmem:[#allocation2 + $0x1f0] sm:$0xff] %vm822, %v789
      %s855 = sadd.s32 %s402, 1
      %s856 = smul.u32 %s855, 24
      %s857 = scalar_lea.vmem [#allocation3], %s856
      %v858 = vld [vmem:[%s857] sm:$0xff]
      %v859 = vld [vmem:[%s857 + $0x8] sm:$0xff]
      %v860 = vld [vmem:[%s857 + $0x18] sm:$0xff]
      %v861 = vld [vmem:[%s857 + $0x20] sm:$0xff]
      %v862 = vld [vmem:[%s857 + $0x30] sm:$0xff]
      %v863 = vld [vmem:[%s857 + $0x38] sm:$0xff]
      %v864 = vld [vmem:[%s857 + $0x48] sm:$0xff]
      %v865 = vld [vmem:[%s857 + $0x50] sm:$0xff]
      %v866 = vld [vmem:[%s857 + $0x60] sm:$0xff]
      %v867 = vld [vmem:[%s857 + $0x68] sm:$0xff]
      %v868 = vld [vmem:[%s857 + $0x78] sm:$0xff]
      %v869 = vld [vmem:[%s857 + $0x80] sm:$0xff]
      %v870 = vld [vmem:[%s857 + $0x90] sm:$0xff]
      %v871 = vld [vmem:[%s857 + $0x98] sm:$0xff]
      %v872 = vld [vmem:[%s857 + $0xa8] sm:$0xff]
      %v873 = vld [vmem:[%s857 + $0xb0] sm:$0xff]
      %v874 = vld [vmem:[%s857 + $0xc0] sm:$0xff]
      %v875 = vld [vmem:[%s857 + $0xc8] sm:$0xff]
      %v876 = vld [vmem:[%s857 + $0xd8] sm:$0xff]
      %v877 = vld [vmem:[%s857 + $0xe0] sm:$0xff]
      %v878 = vld [vmem:[%s857 + $0xf0] sm:$0xff]
      %v879 = vld [vmem:[%s857 + $0xf8] sm:$0xff]
      %v880 = vld [vmem:[%s857 + $0x108] sm:$0xff]
      %v881 = vld [vmem:[%s857 + $0x110] sm:$0xff]
      %v882 = vld [vmem:[%s857 + $0x120] sm:$0xff]
      %v883 = vld [vmem:[%s857 + $0x128] sm:$0xff]
      %v884 = vld [vmem:[%s857 + $0x138] sm:$0xff]
      %v885 = vld [vmem:[%s857 + $0x140] sm:$0xff]
      %v886 = vld [vmem:[%s857 + $0x150] sm:$0xff]
      %v887 = vld [vmem:[%s857 + $0x158] sm:$0xff]
      %v888 = vld [vmem:[%s857 + $0x168] sm:$0xff]
      %v889 = vld [vmem:[%s857 + $0x170] sm:$0xff]
      %922 = vrot.lane.b32.xlu0 %v858, 48
      %v923 = vpop.permute.xlu0 %922
      %924 = vrot.lane.b32.xlu0 %v859, 48
      %v925 = vpop.permute.xlu0 %924
      %926 = vrot.lane.b32.xlu0 %v860, 48
      %v927 = vpop.permute.xlu0 %926
      %928 = vrot.lane.b32.xlu0 %v861, 48
      %v929 = vpop.permute.xlu0 %928
      %930 = vrot.lane.b32.xlu0 %v862, 48
      %v931 = vpop.permute.xlu0 %930
      %932 = vrot.lane.b32.xlu0 %v863, 48
      %v933 = vpop.permute.xlu0 %932
      %934 = vrot.lane.b32.xlu0 %v864, 48
      %v935 = vpop.permute.xlu0 %934
      %936 = vrot.lane.b32.xlu0 %v865, 48
      %v937 = vpop.permute.xlu0 %936
      %938 = vrot.lane.b32.xlu0 %v866, 48
      %v939 = vpop.permute.xlu0 %938
      %940 = vrot.lane.b32.xlu0 %v867, 48
      %v941 = vpop.permute.xlu0 %940
      %942 = vrot.lane.b32.xlu0 %v868, 48
      %v943 = vpop.permute.xlu0 %942
      %944 = vrot.lane.b32.xlu0 %v869, 48
      %v945 = vpop.permute.xlu0 %944
      %946 = vrot.lane.b32.xlu0 %v870, 48
      %v947 = vpop.permute.xlu0 %946
      %948 = vrot.lane.b32.xlu0 %v871, 48
      %v949 = vpop.permute.xlu0 %948
      %950 = vrot.lane.b32.xlu0 %v872, 48
      %v951 = vpop.permute.xlu0 %950
      %952 = vrot.lane.b32.xlu0 %v873, 48
      %v953 = vpop.permute.xlu0 %952
      %954 = vrot.lane.b32.xlu0 %v874, 48
      %v955 = vpop.permute.xlu0 %954
      %956 = vrot.lane.b32.xlu0 %v875, 48
      %v957 = vpop.permute.xlu0 %956
      %958 = vrot.lane.b32.xlu0 %v876, 48
      %v959 = vpop.permute.xlu0 %958
      %960 = vrot.lane.b32.xlu0 %v877, 48
      %v961 = vpop.permute.xlu0 %960
      %962 = vrot.lane.b32.xlu0 %v878, 48
      %v963 = vpop.permute.xlu0 %962
      %964 = vrot.lane.b32.xlu0 %v879, 48
      %v965 = vpop.permute.xlu0 %964
      %966 = vrot.lane.b32.xlu0 %v880, 48
      %v967 = vpop.permute.xlu0 %966
      %968 = vrot.lane.b32.xlu0 %v881, 48
      %v969 = vpop.permute.xlu0 %968
      %970 = vrot.lane.b32.xlu0 %v882, 48
      %v971 = vpop.permute.xlu0 %970
      %972 = vrot.lane.b32.xlu0 %v883, 48
      %v973 = vpop.permute.xlu0 %972
      %974 = vrot.lane.b32.xlu0 %v884, 48
      %v975 = vpop.permute.xlu0 %974
      %976 = vrot.lane.b32.xlu0 %v885, 48
      %v977 = vpop.permute.xlu0 %976
      %978 = vrot.lane.b32.xlu0 %v886, 48
      %v979 = vpop.permute.xlu0 %978
      %980 = vrot.lane.b32.xlu0 %v887, 48
      %v981 = vpop.permute.xlu0 %980
      %982 = vrot.lane.b32.xlu0 %v888, 48
      %v983 = vpop.permute.xlu0 %982
      %984 = vrot.lane.b32.xlu0 %v889, 48
      %v985 = vpop.permute.xlu0 %984
      %vm1018 = vcmask 523648
      %1019 = vst.msk [vmem:[#allocation2] sm:$0xff] %vm1018, %v923
      %1020 = vst.msk [vmem:[#allocation2 + $0x10] sm:$0xff] %vm1018, %v925
      %1021 = vst.msk [vmem:[#allocation2 + $0x20] sm:$0xff] %vm1018, %v927
      %1022 = vst.msk [vmem:[#allocation2 + $0x30] sm:$0xff] %vm1018, %v929
      %1023 = vst.msk [vmem:[#allocation2 + $0x40] sm:$0xff] %vm1018, %v931
      %1024 = vst.msk [vmem:[#allocation2 + $0x50] sm:$0xff] %vm1018, %v933
      %1025 = vst.msk [vmem:[#allocation2 + $0x60] sm:$0xff] %vm1018, %v935
      %1026 = vst.msk [vmem:[#allocation2 + $0x70] sm:$0xff] %vm1018, %v937
      %1027 = vst.msk [vmem:[#allocation2 + $0x80] sm:$0xff] %vm1018, %v939
      %1028 = vst.msk [vmem:[#allocation2 + $0x90] sm:$0xff] %vm1018, %v941
      %1029 = vst.msk [vmem:[#allocation2 + $0xa0] sm:$0xff] %vm1018, %v943
      %1030 = vst.msk [vmem:[#allocation2 + $0xb0] sm:$0xff] %vm1018, %v945
      %1031 = vst.msk [vmem:[#allocation2 + $0xc0] sm:$0xff] %vm1018, %v947
      %1032 = vst.msk [vmem:[#allocation2 + $0xd0] sm:$0xff] %vm1018, %v949
      %1033 = vst.msk [vmem:[#allocation2 + $0xe0] sm:$0xff] %vm1018, %v951
      %1034 = vst.msk [vmem:[#allocation2 + $0xf0] sm:$0xff] %vm1018, %v953
      %1035 = vst.msk [vmem:[#allocation2 + $0x100] sm:$0xff] %vm1018, %v955
      %1036 = vst.msk [vmem:[#allocation2 + $0x110] sm:$0xff] %vm1018, %v957
      %1037 = vst.msk [vmem:[#allocation2 + $0x120] sm:$0xff] %vm1018, %v959
      %1038 = vst.msk [vmem:[#allocation2 + $0x130] sm:$0xff] %vm1018, %v961
      %1039 = vst.msk [vmem:[#allocation2 + $0x140] sm:$0xff] %vm1018, %v963
      %1040 = vst.msk [vmem:[#allocation2 + $0x150] sm:$0xff] %vm1018, %v965
      %1041 = vst.msk [vmem:[#allocation2 + $0x160] sm:$0xff] %vm1018, %v967
      %1042 = vst.msk [vmem:[#allocation2 + $0x170] sm:$0xff] %vm1018, %v969
      %1043 = vst.msk [vmem:[#allocation2 + $0x180] sm:$0xff] %vm1018, %v971
      %1044 = vst.msk [vmem:[#allocation2 + $0x190] sm:$0xff] %vm1018, %v973
      %1045 = vst.msk [vmem:[#allocation2 + $0x1a0] sm:$0xff] %vm1018, %v975
      %1046 = vst.msk [vmem:[#allocation2 + $0x1b0] sm:$0xff] %vm1018, %v977
      %1047 = vst.msk [vmem:[#allocation2 + $0x1c0] sm:$0xff] %vm1018, %v979
      %1048 = vst.msk [vmem:[#allocation2 + $0x1d0] sm:$0xff] %vm1018, %v981
      %1049 = vst.msk [vmem:[#allocation2 + $0x1e0] sm:$0xff] %vm1018, %v983
      %1050 = vst.msk [vmem:[#allocation2 + $0x1f0] sm:$0xff] %vm1018, %v985
      %v1051 = vld [vmem:[%s857 + $0x1] sm:$0xff]
      %v1052 = vld [vmem:[%s857 + $0x9] sm:$0xff]
      %v1053 = vld [vmem:[%s857 + $0x19] sm:$0xff]
      %v1054 = vld [vmem:[%s857 + $0x21] sm:$0xff]
      %v1055 = vld [vmem:[%s857 + $0x31] sm:$0xff]
      %v1056 = vld [vmem:[%s857 + $0x39] sm:$0xff]
      %v1057 = vld [vmem:[%s857 + $0x49] sm:$0xff]
      %v1058 = vld [vmem:[%s857 + $0x51] sm:$0xff]
      %v1059 = vld [vmem:[%s857 + $0x61] sm:$0xff]
      %v1060 = vld [vmem:[%s857 + $0x69] sm:$0xff]
      %v1061 = vld [vmem:[%s857 + $0x79] sm:$0xff]
      %v1062 = vld [vmem:[%s857 + $0x81] sm:$0xff]
      %v1063 = vld [vmem:[%s857 + $0x91] sm:$0xff]
      %v1064 = vld [vmem:[%s857 + $0x99] sm:$0xff]
      %v1065 = vld [vmem:[%s857 + $0xa9] sm:$0xff]
      %v1066 = vld [vmem:[%s857 + $0xb1] sm:$0xff]
      %v1067 = vld [vmem:[%s857 + $0xc1] sm:$0xff]
      %v1068 = vld [vmem:[%s857 + $0xc9] sm:$0xff]
      %v1069 = vld [vmem:[%s857 + $0xd9] sm:$0xff]
      %v1070 = vld [vmem:[%s857 + $0xe1] sm:$0xff]
      %v1071 = vld [vmem:[%s857 + $0xf1] sm:$0xff]
      %v1072 = vld [vmem:[%s857 + $0xf9] sm:$0xff]
      %v1073 = vld [vmem:[%s857 + $0x109] sm:$0xff]
      %v1074 = vld [vmem:[%s857 + $0x111] sm:$0xff]
      %v1075 = vld [vmem:[%s857 + $0x121] sm:$0xff]
      %v1076 = vld [vmem:[%s857 + $0x129] sm:$0xff]
      %v1077 = vld [vmem:[%s857 + $0x139] sm:$0xff]
      %v1078 = vld [vmem:[%s857 + $0x141] sm:$0xff]
      %v1079 = vld [vmem:[%s857 + $0x151] sm:$0xff]
      %v1080 = vld [vmem:[%s857 + $0x159] sm:$0xff]
      %v1081 = vld [vmem:[%s857 + $0x169] sm:$0xff]
      %v1082 = vld [vmem:[%s857 + $0x171] sm:$0xff]
      %1115 = vrot.lane.b32.xlu0 %v1051, 64
      %v1116 = vpop.permute.xlu0 %1115
      %1117 = vrot.lane.b32.xlu0 %v1052, 64
      %v1118 = vpop.permute.xlu0 %1117
      %1119 = vrot.lane.b32.xlu0 %v1053, 64
      %v1120 = vpop.permute.xlu0 %1119
      %1121 = vrot.lane.b32.xlu0 %v1054, 64
      %v1122 = vpop.permute.xlu0 %1121
      %1123 = vrot.lane.b32.xlu0 %v1055, 64
      %v1124 = vpop.permute.xlu0 %1123
      %1125 = vrot.lane.b32.xlu0 %v1056, 64
      %v1126 = vpop.permute.xlu0 %1125
      %1127 = vrot.lane.b32.xlu0 %v1057, 64
      %v1128 = vpop.permute.xlu0 %1127
      %1129 = vrot.lane.b32.xlu0 %v1058, 64
      %v1130 = vpop.permute.xlu0 %1129
      %1131 = vrot.lane.b32.xlu0 %v1059, 64
      %v1132 = vpop.permute.xlu0 %1131
      %1133 = vrot.lane.b32.xlu0 %v1060, 64
      %v1134 = vpop.permute.xlu0 %1133
      %1135 = vrot.lane.b32.xlu0 %v1061, 64
      %v1136 = vpop.permute.xlu0 %1135
      %1137 = vrot.lane.b32.xlu0 %v1062, 64
      %v1138 = vpop.permute.xlu0 %1137
      %1139 = vrot.lane.b32.xlu0 %v1063, 64
      %v1140 = vpop.permute.xlu0 %1139
      %1141 = vrot.lane.b32.xlu0 %v1064, 64
      %v1142 = vpop.permute.xlu0 %1141
      %1143 = vrot.lane.b32.xlu0 %v1065, 64
      %v1144 = vpop.permute.xlu0 %1143
      %1145 = vrot.lane.b32.xlu0 %v1066, 64
      %v1146 = vpop.permute.xlu0 %1145
      %1147 = vrot.lane.b32.xlu0 %v1067, 64
      %v1148 = vpop.permute.xlu0 %1147
      %1149 = vrot.lane.b32.xlu0 %v1068, 64
      %v1150 = vpop.permute.xlu0 %1149
      %1151 = vrot.lane.b32.xlu0 %v1069, 64
      %v1152 = vpop.permute.xlu0 %1151
      %1153 = vrot.lane.b32.xlu0 %v1070, 64
      %v1154 = vpop.permute.xlu0 %1153
      %1155 = vrot.lane.b32.xlu0 %v1071, 64
      %v1156 = vpop.permute.xlu0 %1155
      %1157 = vrot.lane.b32.xlu0 %v1072, 64
      %v1158 = vpop.permute.xlu0 %1157
      %1159 = vrot.lane.b32.xlu0 %v1073, 64
      %v1160 = vpop.permute.xlu0 %1159
      %1161 = vrot.lane.b32.xlu0 %v1074, 64
      %v1162 = vpop.permute.xlu0 %1161
      %1163 = vrot.lane.b32.xlu0 %v1075, 64
      %v1164 = vpop.permute.xlu0 %1163
      %1165 = vrot.lane.b32.xlu0 %v1076, 64
      %v1166 = vpop.permute.xlu0 %1165
      %1167 = vrot.lane.b32.xlu0 %v1077, 64
      %v1168 = vpop.permute.xlu0 %1167
      %1169 = vrot.lane.b32.xlu0 %v1078, 64
      %v1170 = vpop.permute.xlu0 %1169
      %1171 = vrot.lane.b32.xlu0 %v1079, 64
      %v1172 = vpop.permute.xlu0 %1171
      %1173 = vrot.lane.b32.xlu0 %v1080, 64
      %v1174 = vpop.permute.xlu0 %1173
      %1175 = vrot.lane.b32.xlu0 %v1081, 64
      %v1176 = vpop.permute.xlu0 %1175
      %1177 = vrot.lane.b32.xlu0 %v1082, 64
      %v1178 = vpop.permute.xlu0 %1177
      %vm1211 = vcmask 654848
      %1212 = vst.msk [vmem:[#allocation2] sm:$0xff] %vm1211, %v1116
      %1213 = vst.msk [vmem:[#allocation2 + $0x10] sm:$0xff] %vm1211, %v1118
      %1214 = vst.msk [vmem:[#allocation2 + $0x20] sm:$0xff] %vm1211, %v1120
      %1215 = vst.msk [vmem:[#allocation2 + $0x30] sm:$0xff] %vm1211, %v1122
      %1216 = vst.msk [vmem:[#allocation2 + $0x40] sm:$0xff] %vm1211, %v1124
      %1217 = vst.msk [vmem:[#allocation2 + $0x50] sm:$0xff] %vm1211, %v1126
      %1218 = vst.msk [vmem:[#allocation2 + $0x60] sm:$0xff] %vm1211, %v1128
      %1219 = vst.msk [vmem:[#allocation2 + $0x70] sm:$0xff] %vm1211, %v1130
      %1220 = vst.msk [vmem:[#allocation2 + $0x80] sm:$0xff] %vm1211, %v1132
      %1221 = vst.msk [vmem:[#allocation2 + $0x90] sm:$0xff] %vm1211, %v1134
      %1222 = vst.msk [vmem:[#allocation2 + $0xa0] sm:$0xff] %vm1211, %v1136
      %1223 = vst.msk [vmem:[#allocation2 + $0xb0] sm:$0xff] %vm1211, %v1138
      %1224 = vst.msk [vmem:[#allocation2 + $0xc0] sm:$0xff] %vm1211, %v1140
      %1225 = vst.msk [vmem:[#allocation2 + $0xd0] sm:$0xff] %vm1211, %v1142
      %1226 = vst.msk [vmem:[#allocation2 + $0xe0] sm:$0xff] %vm1211, %v1144
      %1227 = vst.msk [vmem:[#allocation2 + $0xf0] sm:$0xff] %vm1211, %v1146
      %1228 = vst.msk [vmem:[#allocation2 + $0x100] sm:$0xff] %vm1211, %v1148
      %1229 = vst.msk [vmem:[#allocation2 + $0x110] sm:$0xff] %vm1211, %v1150
      %1230 = vst.msk [vmem:[#allocation2 + $0x120] sm:$0xff] %vm1211, %v1152
      %1231 = vst.msk [vmem:[#allocation2 + $0x130] sm:$0xff] %vm1211, %v1154
      %1232 = vst.msk [vmem:[#allocation2 + $0x140] sm:$0xff] %vm1211, %v1156
      %1233 = vst.msk [vmem:[#allocation2 + $0x150] sm:$0xff] %vm1211, %v1158
      %1234 = vst.msk [vmem:[#allocation2 + $0x160] sm:$0xff] %vm1211, %v1160
      %1235 = vst.msk [vmem:[#allocation2 + $0x170] sm:$0xff] %vm1211, %v1162
      %1236 = vst.msk [vmem:[#allocation2 + $0x180] sm:$0xff] %vm1211, %v1164
      %1237 = vst.msk [vmem:[#allocation2 + $0x190] sm:$0xff] %vm1211, %v1166
      %1238 = vst.msk [vmem:[#allocation2 + $0x1a0] sm:$0xff] %vm1211, %v1168
      %1239 = vst.msk [vmem:[#allocation2 + $0x1b0] sm:$0xff] %vm1211, %v1170
      %1240 = vst.msk [vmem:[#allocation2 + $0x1c0] sm:$0xff] %vm1211, %v1172
      %1241 = vst.msk [vmem:[#allocation2 + $0x1d0] sm:$0xff] %vm1211, %v1174
      %1242 = vst.msk [vmem:[#allocation2 + $0x1e0] sm:$0xff] %vm1211, %v1176
      %1243 = vst.msk [vmem:[#allocation2 + $0x1f0] sm:$0xff] %vm1211, %v1178
      %v1244 = vld [vmem:[%s857 + $0x2] sm:$0xff]
      %v1245 = vld [vmem:[%s857 + $0xa] sm:$0xff]
      %v1246 = vld [vmem:[%s857 + $0x1a] sm:$0xff]
      %v1247 = vld [vmem:[%s857 + $0x22] sm:$0xff]
      %v1248 = vld [vmem:[%s857 + $0x32] sm:$0xff]
      %v1249 = vld [vmem:[%s857 + $0x3a] sm:$0xff]
      %v1250 = vld [vmem:[%s857 + $0x4a] sm:$0xff]
      %v1251 = vld [vmem:[%s857 + $0x52] sm:$0xff]
      %v1252 = vld [vmem:[%s857 + $0x62] sm:$0xff]
      %v1253 = vld [vmem:[%s857 + $0x6a] sm:$0xff]
      %v1254 = vld [vmem:[%s857 + $0x7a] sm:$0xff]
      %v1255 = vld [vmem:[%s857 + $0x82] sm:$0xff]
      %v1256 = vld [vmem:[%s857 + $0x92] sm:$0xff]
      %v1257 = vld [vmem:[%s857 + $0x9a] sm:$0xff]
      %v1258 = vld [vmem:[%s857 + $0xaa] sm:$0xff]
      %v1259 = vld [vmem:[%s857 + $0xb2] sm:$0xff]
      %v1260 = vld [vmem:[%s857 + $0xc2] sm:$0xff]
      %v1261 = vld [vmem:[%s857 + $0xca] sm:$0xff]
      %v1262 = vld [vmem:[%s857 + $0xda] sm:$0xff]
      %v1263 = vld [vmem:[%s857 + $0xe2] sm:$0xff]
      %v1264 = vld [vmem:[%s857 + $0xf2] sm:$0xff]
      %v1265 = vld [vmem:[%s857 + $0xfa] sm:$0xff]
      %v1266 = vld [vmem:[%s857 + $0x10a] sm:$0xff]
      %v1267 = vld [vmem:[%s857 + $0x112] sm:$0xff]
      %v1268 = vld [vmem:[%s857 + $0x122] sm:$0xff]
      %v1269 = vld [vmem:[%s857 + $0x12a] sm:$0xff]
      %v1270 = vld [vmem:[%s857 + $0x13a] sm:$0xff]
      %v1271 = vld [vmem:[%s857 + $0x142] sm:$0xff]
      %v1272 = vld [vmem:[%s857 + $0x152] sm:$0xff]
      %v1273 = vld [vmem:[%s857 + $0x15a] sm:$0xff]
      %v1274 = vld [vmem:[%s857 + $0x16a] sm:$0xff]
      %v1275 = vld [vmem:[%s857 + $0x172] sm:$0xff]
      %1308 = vrot.lane.b32.xlu0 %v1244, 80
      %v1309 = vpop.permute.xlu0 %1308
      %1310 = vrot.lane.b32.xlu0 %v1245, 80
      %v1311 = vpop.permute.xlu0 %1310
      %1312 = vrot.lane.b32.xlu0 %v1246, 80
      %v1313 = vpop.permute.xlu0 %1312
      %1314 = vrot.lane.b32.xlu0 %v1247, 80
      %v1315 = vpop.permute.xlu0 %1314
      %1316 = vrot.lane.b32.xlu0 %v1248, 80
      %v1317 = vpop.permute.xlu0 %1316
      %1318 = vrot.lane.b32.xlu0 %v1249, 80
      %v1319 = vpop.permute.xlu0 %1318
      %1320 = vrot.lane.b32.xlu0 %v1250, 80
      %v1321 = vpop.permute.xlu0 %1320
      %1322 = vrot.lane.b32.xlu0 %v1251, 80
      %v1323 = vpop.permute.xlu0 %1322
      %1324 = vrot.lane.b32.xlu0 %v1252, 80
      %v1325 = vpop.permute.xlu0 %1324
      %1326 = vrot.lane.b32.xlu0 %v1253, 80
      %v1327 = vpop.permute.xlu0 %1326
      %1328 = vrot.lane.b32.xlu0 %v1254, 80
      %v1329 = vpop.permute.xlu0 %1328
      %1330 = vrot.lane.b32.xlu0 %v1255, 80
      %v1331 = vpop.permute.xlu0 %1330
      %1332 = vrot.lane.b32.xlu0 %v1256, 80
      %v1333 = vpop.permute.xlu0 %1332
      %1334 = vrot.lane.b32.xlu0 %v1257, 80
      %v1335 = vpop.permute.xlu0 %1334
      %1336 = vrot.lane.b32.xlu0 %v1258, 80
      %v1337 = vpop.permute.xlu0 %1336
      %1338 = vrot.lane.b32.xlu0 %v1259, 80
      %v1339 = vpop.permute.xlu0 %1338
      %1340 = vrot.lane.b32.xlu0 %v1260, 80
      %v1341 = vpop.permute.xlu0 %1340
      %1342 = vrot.lane.b32.xlu0 %v1261, 80
      %v1343 = vpop.permute.xlu0 %1342
      %1344 = vrot.lane.b32.xlu0 %v1262, 80
      %v1345 = vpop.permute.xlu0 %1344
      %1346 = vrot.lane.b32.xlu0 %v1263, 80
      %v1347 = vpop.permute.xlu0 %1346
      %1348 = vrot.lane.b32.xlu0 %v1264, 80
      %v1349 = vpop.permute.xlu0 %1348
      %1350 = vrot.lane.b32.xlu0 %v1265, 80
      %v1351 = vpop.permute.xlu0 %1350
      %1352 = vrot.lane.b32.xlu0 %v1266, 80
      %v1353 = vpop.permute.xlu0 %1352
      %1354 = vrot.lane.b32.xlu0 %v1267, 80
      %v1355 = vpop.permute.xlu0 %1354
      %1356 = vrot.lane.b32.xlu0 %v1268, 80
      %v1357 = vpop.permute.xlu0 %1356
      %1358 = vrot.lane.b32.xlu0 %v1269, 80
      %v1359 = vpop.permute.xlu0 %1358
      %1360 = vrot.lane.b32.xlu0 %v1270, 80
      %v1361 = vpop.permute.xlu0 %1360
      %1362 = vrot.lane.b32.xlu0 %v1271, 80
      %v1363 = vpop.permute.xlu0 %1362
      %1364 = vrot.lane.b32.xlu0 %v1272, 80
      %v1365 = vpop.permute.xlu0 %1364
      %1366 = vrot.lane.b32.xlu0 %v1273, 80
      %v1367 = vpop.permute.xlu0 %1366
      %1368 = vrot.lane.b32.xlu0 %v1274, 80
      %v1369 = vpop.permute.xlu0 %1368
      %1370 = vrot.lane.b32.xlu0 %v1275, 80
      %v1371 = vpop.permute.xlu0 %1370
      %vm1404 = vcmask 786048
      %1405 = vst.msk [vmem:[#allocation2] sm:$0xff] %vm1404, %v1309
      %1406 = vst.msk [vmem:[#allocation2 + $0x10] sm:$0xff] %vm1404, %v1311
      %1407 = vst.msk [vmem:[#allocation2 + $0x20] sm:$0xff] %vm1404, %v1313
      %1408 = vst.msk [vmem:[#allocation2 + $0x30] sm:$0xff] %vm1404, %v1315
      %1409 = vst.msk [vmem:[#allocation2 + $0x40] sm:$0xff] %vm1404, %v1317
      %1410 = vst.msk [vmem:[#allocation2 + $0x50] sm:$0xff] %vm1404, %v1319
      %1411 = vst.msk [vmem:[#allocation2 + $0x60] sm:$0xff] %vm1404, %v1321
      %1412 = vst.msk [vmem:[#allocation2 + $0x70] sm:$0xff] %vm1404, %v1323
      %1413 = vst.msk [vmem:[#allocation2 + $0x80] sm:$0xff] %vm1404, %v1325
      %1414 = vst.msk [vmem:[#allocation2 + $0x90] sm:$0xff] %vm1404, %v1327
      %1415 = vst.msk [vmem:[#allocation2 + $0xa0] sm:$0xff] %vm1404, %v1329
      %1416 = vst.msk [vmem:[#allocation2 + $0xb0] sm:$0xff] %vm1404, %v1331
      %1417 = vst.msk [vmem:[#allocation2 + $0xc0] sm:$0xff] %vm1404, %v1333
      %1418 = vst.msk [vmem:[#allocation2 + $0xd0] sm:$0xff] %vm1404, %v1335
      %1419 = vst.msk [vmem:[#allocation2 + $0xe0] sm:$0xff] %vm1404, %v1337
      %1420 = vst.msk [vmem:[#allocation2 + $0xf0] sm:$0xff] %vm1404, %v1339
      %1421 = vst.msk [vmem:[#allocation2 + $0x100] sm:$0xff] %vm1404, %v1341
      %1422 = vst.msk [vmem:[#allocation2 + $0x110] sm:$0xff] %vm1404, %v1343
      %1423 = vst.msk [vmem:[#allocation2 + $0x120] sm:$0xff] %vm1404, %v1345
      %1424 = vst.msk [vmem:[#allocation2 + $0x130] sm:$0xff] %vm1404, %v1347
      %1425 = vst.msk [vmem:[#allocation2 + $0x140] sm:$0xff] %vm1404, %v1349
      %1426 = vst.msk [vmem:[#allocation2 + $0x150] sm:$0xff] %vm1404, %v1351
      %1427 = vst.msk [vmem:[#allocation2 + $0x160] sm:$0xff] %vm1404, %v1353
      %1428 = vst.msk [vmem:[#allocation2 + $0x170] sm:$0xff] %vm1404, %v1355
      %1429 = vst.msk [vmem:[#allocation2 + $0x180] sm:$0xff] %vm1404, %v1357
      %1430 = vst.msk [vmem:[#allocation2 + $0x190] sm:$0xff] %vm1404, %v1359
      %1431 = vst.msk [vmem:[#allocation2 + $0x1a0] sm:$0xff] %vm1404, %v1361
      %1432 = vst.msk [vmem:[#allocation2 + $0x1b0] sm:$0xff] %vm1404, %v1363
      %1433 = vst.msk [vmem:[#allocation2 + $0x1c0] sm:$0xff] %vm1404, %v1365
      %1434 = vst.msk [vmem:[#allocation2 + $0x1d0] sm:$0xff] %vm1404, %v1367
      %1435 = vst.msk [vmem:[#allocation2 + $0x1e0] sm:$0xff] %vm1404, %v1369
      %1436 = vst.msk [vmem:[#allocation2 + $0x1f0] sm:$0xff] %vm1404, %v1371
      %s1437 = sadd.s32 %s402, 2
      %s1438 = smul.u32 %s1437, 24
      %s1439 = scalar_lea.vmem [#allocation3], %s1438
      %v1440 = vld [vmem:[%s1439] sm:$0xff]
      %v1441 = vld [vmem:[%s1439 + $0x8] sm:$0xff]
      %v1442 = vld [vmem:[%s1439 + $0x18] sm:$0xff]
      %v1443 = vld [vmem:[%s1439 + $0x20] sm:$0xff]
      %v1444 = vld [vmem:[%s1439 + $0x30] sm:$0xff]
      %v1445 = vld [vmem:[%s1439 + $0x38] sm:$0xff]
      %v1446 = vld [vmem:[%s1439 + $0x48] sm:$0xff]
      %v1447 = vld [vmem:[%s1439 + $0x50] sm:$0xff]
      %v1448 = vld [vmem:[%s1439 + $0x60] sm:$0xff]
      %v1449 = vld [vmem:[%s1439 + $0x68] sm:$0xff]
      %v1450 = vld [vmem:[%s1439 + $0x78] sm:$0xff]
      %v1451 = vld [vmem:[%s1439 + $0x80] sm:$0xff]
      %v1452 = vld [vmem:[%s1439 + $0x90] sm:$0xff]
      %v1453 = vld [vmem:[%s1439 + $0x98] sm:$0xff]
      %v1454 = vld [vmem:[%s1439 + $0xa8] sm:$0xff]
      %v1455 = vld [vmem:[%s1439 + $0xb0] sm:$0xff]
      %v1456 = vld [vmem:[%s1439 + $0xc0] sm:$0xff]
      %v1457 = vld [vmem:[%s1439 + $0xc8] sm:$0xff]
      %v1458 = vld [vmem:[%s1439 + $0xd8] sm:$0xff]
      %v1459 = vld [vmem:[%s1439 + $0xe0] sm:$0xff]
      %v1460 = vld [vmem:[%s1439 + $0xf0] sm:$0xff]
      %v1461 = vld [vmem:[%s1439 + $0xf8] sm:$0xff]
      %v1462 = vld [vmem:[%s1439 + $0x108] sm:$0xff]
      %v1463 = vld [vmem:[%s1439 + $0x110] sm:$0xff]
      %v1464 = vld [vmem:[%s1439 + $0x120] sm:$0xff]
      %v1465 = vld [vmem:[%s1439 + $0x128] sm:$0xff]
      %v1466 = vld [vmem:[%s1439 + $0x138] sm:$0xff]
      %v1467 = vld [vmem:[%s1439 + $0x140] sm:$0xff]
      %v1468 = vld [vmem:[%s1439 + $0x150] sm:$0xff]
      %v1469 = vld [vmem:[%s1439 + $0x158] sm:$0xff]
      %v1470 = vld [vmem:[%s1439 + $0x168] sm:$0xff]
      %v1471 = vld [vmem:[%s1439 + $0x170] sm:$0xff]
      %1504 = vrot.lane.b32.xlu0 %v1440, 96
      %v1505 = vpop.permute.xlu0 %1504
      %1506 = vrot.lane.b32.xlu0 %v1441, 96
      %v1507 = vpop.permute.xlu0 %1506
      %1508 = vrot.lane.b32.xlu0 %v1442, 96
      %v1509 = vpop.permute.xlu0 %1508
      %1510 = vrot.lane.b32.xlu0 %v1443, 96
      %v1511 = vpop.permute.xlu0 %1510
      %1512 = vrot.lane.b32.xlu0 %v1444, 96
      %v1513 = vpop.permute.xlu0 %1512
      %1514 = vrot.lane.b32.xlu0 %v1445, 96
      %v1515 = vpop.permute.xlu0 %1514
      %1516 = vrot.lane.b32.xlu0 %v1446, 96
      %v1517 = vpop.permute.xlu0 %1516
      %1518 = vrot.lane.b32.xlu0 %v1447, 96
      %v1519 = vpop.permute.xlu0 %1518
      %1520 = vrot.lane.b32.xlu0 %v1448, 96
      %v1521 = vpop.permute.xlu0 %1520
      %1522 = vrot.lane.b32.xlu0 %v1449, 96
      %v1523 = vpop.permute.xlu0 %1522
      %1524 = vrot.lane.b32.xlu0 %v1450, 96
      %v1525 = vpop.permute.xlu0 %1524
      %1526 = vrot.lane.b32.xlu0 %v1451, 96
      %v1527 = vpop.permute.xlu0 %1526
      %1528 = vrot.lane.b32.xlu0 %v1452, 96
      %v1529 = vpop.permute.xlu0 %1528
      %1530 = vrot.lane.b32.xlu0 %v1453, 96
      %v1531 = vpop.permute.xlu0 %1530
      %1532 = vrot.lane.b32.xlu0 %v1454, 96
      %v1533 = vpop.permute.xlu0 %1532
      %1534 = vrot.lane.b32.xlu0 %v1455, 96
      %v1535 = vpop.permute.xlu0 %1534
      %1536 = vrot.lane.b32.xlu0 %v1456, 96
      %v1537 = vpop.permute.xlu0 %1536
      %1538 = vrot.lane.b32.xlu0 %v1457, 96
      %v1539 = vpop.permute.xlu0 %1538
      %1540 = vrot.lane.b32.xlu0 %v1458, 96
      %v1541 = vpop.permute.xlu0 %1540
      %1542 = vrot.lane.b32.xlu0 %v1459, 96
      %v1543 = vpop.permute.xlu0 %1542
      %1544 = vrot.lane.b32.xlu0 %v1460, 96
      %v1545 = vpop.permute.xlu0 %1544
      %1546 = vrot.lane.b32.xlu0 %v1461, 96
      %v1547 = vpop.permute.xlu0 %1546
      %1548 = vrot.lane.b32.xlu0 %v1462, 96
      %v1549 = vpop.permute.xlu0 %1548
      %1550 = vrot.lane.b32.xlu0 %v1463, 96
      %v1551 = vpop.permute.xlu0 %1550
      %1552 = vrot.lane.b32.xlu0 %v1464, 96
      %v1553 = vpop.permute.xlu0 %1552
      %1554 = vrot.lane.b32.xlu0 %v1465, 96
      %v1555 = vpop.permute.xlu0 %1554
      %1556 = vrot.lane.b32.xlu0 %v1466, 96
      %v1557 = vpop.permute.xlu0 %1556
      %1558 = vrot.lane.b32.xlu0 %v1467, 96
      %v1559 = vpop.permute.xlu0 %1558
      %1560 = vrot.lane.b32.xlu0 %v1468, 96
      %v1561 = vpop.permute.xlu0 %1560
      %1562 = vrot.lane.b32.xlu0 %v1469, 96
      %v1563 = vpop.permute.xlu0 %1562
      %1564 = vrot.lane.b32.xlu0 %v1470, 96
      %v1565 = vpop.permute.xlu0 %1564
      %1566 = vrot.lane.b32.xlu0 %v1471, 96
      %v1567 = vpop.permute.xlu0 %1566
      %vm1600 = vcmask 917248
      %1601 = vst.msk [vmem:[#allocation2] sm:$0xff] %vm1600, %v1505
      %1602 = vst.msk [vmem:[#allocation2 + $0x10] sm:$0xff] %vm1600, %v1507
      %1603 = vst.msk [vmem:[#allocation2 + $0x20] sm:$0xff] %vm1600, %v1509
      %1604 = vst.msk [vmem:[#allocation2 + $0x30] sm:$0xff] %vm1600, %v1511
      %1605 = vst.msk [vmem:[#allocation2 + $0x40] sm:$0xff] %vm1600, %v1513
      %1606 = vst.msk [vmem:[#allocation2 + $0x50] sm:$0xff] %vm1600, %v1515
      %1607 = vst.msk [vmem:[#allocation2 + $0x60] sm:$0xff] %vm1600, %v1517
      %1608 = vst.msk [vmem:[#allocation2 + $0x70] sm:$0xff] %vm1600, %v1519
      %1609 = vst.msk [vmem:[#allocation2 + $0x80] sm:$0xff] %vm1600, %v1521
      %1610 = vst.msk [vmem:[#allocation2 + $0x90] sm:$0xff] %vm1600, %v1523
      %1611 = vst.msk [vmem:[#allocation2 + $0xa0] sm:$0xff] %vm1600, %v1525
      %1612 = vst.msk [vmem:[#allocation2 + $0xb0] sm:$0xff] %vm1600, %v1527
      %1613 = vst.msk [vmem:[#allocation2 + $0xc0] sm:$0xff] %vm1600, %v1529
      %1614 = vst.msk [vmem:[#allocation2 + $0xd0] sm:$0xff] %vm1600, %v1531
      %1615 = vst.msk [vmem:[#allocation2 + $0xe0] sm:$0xff] %vm1600, %v1533
      %1616 = vst.msk [vmem:[#allocation2 + $0xf0] sm:$0xff] %vm1600, %v1535
      %1617 = vst.msk [vmem:[#allocation2 + $0x100] sm:$0xff] %vm1600, %v1537
      %1618 = vst.msk [vmem:[#allocation2 + $0x110] sm:$0xff] %vm1600, %v1539
      %1619 = vst.msk [vmem:[#allocation2 + $0x120] sm:$0xff] %vm1600, %v1541
      %1620 = vst.msk [vmem:[#allocation2 + $0x130] sm:$0xff] %vm1600, %v1543
      %1621 = vst.msk [vmem:[#allocation2 + $0x140] sm:$0xff] %vm1600, %v1545
      %1622 = vst.msk [vmem:[#allocation2 + $0x150] sm:$0xff] %vm1600, %v1547
      %1623 = vst.msk [vmem:[#allocation2 + $0x160] sm:$0xff] %vm1600, %v1549
      %1624 = vst.msk [vmem:[#allocation2 + $0x170] sm:$0xff] %vm1600, %v1551
      %1625 = vst.msk [vmem:[#allocation2 + $0x180] sm:$0xff] %vm1600, %v1553
      %1626 = vst.msk [vmem:[#allocation2 + $0x190] sm:$0xff] %vm1600, %v1555
      %1627 = vst.msk [vmem:[#allocation2 + $0x1a0] sm:$0xff] %vm1600, %v1557
      %1628 = vst.msk [vmem:[#allocation2 + $0x1b0] sm:$0xff] %vm1600, %v1559
      %1629 = vst.msk [vmem:[#allocation2 + $0x1c0] sm:$0xff] %vm1600, %v1561
      %1630 = vst.msk [vmem:[#allocation2 + $0x1d0] sm:$0xff] %vm1600, %v1563
      %1631 = vst.msk [vmem:[#allocation2 + $0x1e0] sm:$0xff] %vm1600, %v1565
      %1632 = vst.msk [vmem:[#allocation2 + $0x1f0] sm:$0xff] %vm1600, %v1567
      %v1633 = vld [vmem:[%s1439 + $0x1] sm:$0xff]
      %v1634 = vld [vmem:[%s1439 + $0x9] sm:$0xff]
      %v1635 = vld [vmem:[%s1439 + $0x19] sm:$0xff]
      %v1636 = vld [vmem:[%s1439 + $0x21] sm:$0xff]
      %v1637 = vld [vmem:[%s1439 + $0x31] sm:$0xff]
      %v1638 = vld [vmem:[%s1439 + $0x39] sm:$0xff]
      %v1639 = vld [vmem:[%s1439 + $0x49] sm:$0xff]
      %v1640 = vld [vmem:[%s1439 + $0x51] sm:$0xff]
      %v1641 = vld [vmem:[%s1439 + $0x61] sm:$0xff]
      %v1642 = vld [vmem:[%s1439 + $0x69] sm:$0xff]
      %v1643 = vld [vmem:[%s1439 + $0x79] sm:$0xff]
      %v1644 = vld [vmem:[%s1439 + $0x81] sm:$0xff]
      %v1645 = vld [vmem:[%s1439 + $0x91] sm:$0xff]
      %v1646 = vld [vmem:[%s1439 + $0x99] sm:$0xff]
      %v1647 = vld [vmem:[%s1439 + $0xa9] sm:$0xff]
      %v1648 = vld [vmem:[%s1439 + $0xb1] sm:$0xff]
      %v1649 = vld [vmem:[%s1439 + $0xc1] sm:$0xff]
      %v1650 = vld [vmem:[%s1439 + $0xc9] sm:$0xff]
      %v1651 = vld [vmem:[%s1439 + $0xd9] sm:$0xff]
      %v1652 = vld [vmem:[%s1439 + $0xe1] sm:$0xff]
      %v1653 = vld [vmem:[%s1439 + $0xf1] sm:$0xff]
      %v1654 = vld [vmem:[%s1439 + $0xf9] sm:$0xff]
      %v1655 = vld [vmem:[%s1439 + $0x109] sm:$0xff]
      %v1656 = vld [vmem:[%s1439 + $0x111] sm:$0xff]
      %v1657 = vld [vmem:[%s1439 + $0x121] sm:$0xff]
      %v1658 = vld [vmem:[%s1439 + $0x129] sm:$0xff]
      %v1659 = vld [vmem:[%s1439 + $0x139] sm:$0xff]
      %v1660 = vld [vmem:[%s1439 + $0x141] sm:$0xff]
      %v1661 = vld [vmem:[%s1439 + $0x151] sm:$0xff]
      %v1662 = vld [vmem:[%s1439 + $0x159] sm:$0xff]
      %v1663 = vld [vmem:[%s1439 + $0x169] sm:$0xff]
      %v1664 = vld [vmem:[%s1439 + $0x171] sm:$0xff]
      %1697 = vrot.lane.b32.xlu0 %v1633, 112
      %v1698 = vpop.permute.xlu0 %1697
      %1699 = vrot.lane.b32.xlu0 %v1634, 112
      %v1700 = vpop.permute.xlu0 %1699
      %1701 = vrot.lane.b32.xlu0 %v1635, 112
      %v1702 = vpop.permute.xlu0 %1701
      %1703 = vrot.lane.b32.xlu0 %v1636, 112
      %v1704 = vpop.permute.xlu0 %1703
      %1705 = vrot.lane.b32.xlu0 %v1637, 112
      %v1706 = vpop.permute.xlu0 %1705
      %1707 = vrot.lane.b32.xlu0 %v1638, 112
      %v1708 = vpop.permute.xlu0 %1707
      %1709 = vrot.lane.b32.xlu0 %v1639, 112
      %v1710 = vpop.permute.xlu0 %1709
      %1711 = vrot.lane.b32.xlu0 %v1640, 112
      %v1712 = vpop.permute.xlu0 %1711
      %1713 = vrot.lane.b32.xlu0 %v1641, 112
      %v1714 = vpop.permute.xlu0 %1713
      %1715 = vrot.lane.b32.xlu0 %v1642, 112
      %v1716 = vpop.permute.xlu0 %1715
      %1717 = vrot.lane.b32.xlu0 %v1643, 112
      %v1718 = vpop.permute.xlu0 %1717
      %1719 = vrot.lane.b32.xlu0 %v1644, 112
      %v1720 = vpop.permute.xlu0 %1719
      %1721 = vrot.lane.b32.xlu0 %v1645, 112
      %v1722 = vpop.permute.xlu0 %1721
      %1723 = vrot.lane.b32.xlu0 %v1646, 112
      %v1724 = vpop.permute.xlu0 %1723
      %1725 = vrot.lane.b32.xlu0 %v1647, 112
      %v1726 = vpop.permute.xlu0 %1725
      %1727 = vrot.lane.b32.xlu0 %v1648, 112
      %v1728 = vpop.permute.xlu0 %1727
      %1729 = vrot.lane.b32.xlu0 %v1649, 112
      %v1730 = vpop.permute.xlu0 %1729
      %1731 = vrot.lane.b32.xlu0 %v1650, 112
      %v1732 = vpop.permute.xlu0 %1731
      %1733 = vrot.lane.b32.xlu0 %v1651, 112
      %v1734 = vpop.permute.xlu0 %1733
      %1735 = vrot.lane.b32.xlu0 %v1652, 112
      %v1736 = vpop.permute.xlu0 %1735
      %1737 = vrot.lane.b32.xlu0 %v1653, 112
      %v1738 = vpop.permute.xlu0 %1737
      %1739 = vrot.lane.b32.xlu0 %v1654, 112
      %v1740 = vpop.permute.xlu0 %1739
      %1741 = vrot.lane.b32.xlu0 %v1655, 112
      %v1742 = vpop.permute.xlu0 %1741
      %1743 = vrot.lane.b32.xlu0 %v1656, 112
      %v1744 = vpop.permute.xlu0 %1743
      %1745 = vrot.lane.b32.xlu0 %v1657, 112
      %v1746 = vpop.permute.xlu0 %1745
      %1747 = vrot.lane.b32.xlu0 %v1658, 112
      %v1748 = vpop.permute.xlu0 %1747
      %1749 = vrot.lane.b32.xlu0 %v1659, 112
      %v1750 = vpop.permute.xlu0 %1749
      %1751 = vrot.lane.b32.xlu0 %v1660, 112
      %v1752 = vpop.permute.xlu0 %1751
      %1753 = vrot.lane.b32.xlu0 %v1661, 112
      %v1754 = vpop.permute.xlu0 %1753
      %1755 = vrot.lane.b32.xlu0 %v1662, 112
      %v1756 = vpop.permute.xlu0 %1755
      %1757 = vrot.lane.b32.xlu0 %v1663, 112
      %v1758 = vpop.permute.xlu0 %1757
      %1759 = vrot.lane.b32.xlu0 %v1664, 112
      %v1760 = vpop.permute.xlu0 %1759
      %vm1793 = vcmask 1048448
      %1794 = vst.msk [vmem:[#allocation2] sm:$0xff] %vm1793, %v1698
      %1795 = vst.msk [vmem:[#allocation2 + $0x10] sm:$0xff] %vm1793, %v1700
      %1796 = vst.msk [vmem:[#allocation2 + $0x20] sm:$0xff] %vm1793, %v1702
      %1797 = vst.msk [vmem:[#allocation2 + $0x30] sm:$0xff] %vm1793, %v1704
      %1798 = vst.msk [vmem:[#allocation2 + $0x40] sm:$0xff] %vm1793, %v1706
      %1799 = vst.msk [vmem:[#allocation2 + $0x50] sm:$0xff] %vm1793, %v1708
      %1800 = vst.msk [vmem:[#allocation2 + $0x60] sm:$0xff] %vm1793, %v1710
      %1801 = vst.msk [vmem:[#allocation2 + $0x70] sm:$0xff] %vm1793, %v1712
      %1802 = vst.msk [vmem:[#allocation2 + $0x80] sm:$0xff] %vm1793, %v1714
      %1803 = vst.msk [vmem:[#allocation2 + $0x90] sm:$0xff] %vm1793, %v1716
      %1804 = vst.msk [vmem:[#allocation2 + $0xa0] sm:$0xff] %vm1793, %v1718
      %1805 = vst.msk [vmem:[#allocation2 + $0xb0] sm:$0xff] %vm1793, %v1720
      %1806 = vst.msk [vmem:[#allocation2 + $0xc0] sm:$0xff] %vm1793, %v1722
      %1807 = vst.msk [vmem:[#allocation2 + $0xd0] sm:$0xff] %vm1793, %v1724
      %1808 = vst.msk [vmem:[#allocation2 + $0xe0] sm:$0xff] %vm1793, %v1726
      %1809 = vst.msk [vmem:[#allocation2 + $0xf0] sm:$0xff] %vm1793, %v1728
      %1810 = vst.msk [vmem:[#allocation2 + $0x100] sm:$0xff] %vm1793, %v1730
      %1811 = vst.msk [vmem:[#allocation2 + $0x110] sm:$0xff] %vm1793, %v1732
      %1812 = vst.msk [vmem:[#allocation2 + $0x120] sm:$0xff] %vm1793, %v1734
      %1813 = vst.msk [vmem:[#allocation2 + $0x130] sm:$0xff] %vm1793, %v1736
      %1814 = vst.msk [vmem:[#allocation2 + $0x140] sm:$0xff] %vm1793, %v1738
      %1815 = vst.msk [vmem:[#allocation2 + $0x150] sm:$0xff] %vm1793, %v1740
      %1816 = vst.msk [vmem:[#allocation2 + $0x160] sm:$0xff] %vm1793, %v1742
      %1817 = vst.msk [vmem:[#allocation2 + $0x170] sm:$0xff] %vm1793, %v1744
      %1818 = vst.msk [vmem:[#allocation2 + $0x180] sm:$0xff] %vm1793, %v1746
      %1819 = vst.msk [vmem:[#allocation2 + $0x190] sm:$0xff] %vm1793, %v1748
      %1820 = vst.msk [vmem:[#allocation2 + $0x1a0] sm:$0xff] %vm1793, %v1750
      %1821 = vst.msk [vmem:[#allocation2 + $0x1b0] sm:$0xff] %vm1793, %v1752
      %1822 = vst.msk [vmem:[#allocation2 + $0x1c0] sm:$0xff] %vm1793, %v1754
      %1823 = vst.msk [vmem:[#allocation2 + $0x1d0] sm:$0xff] %vm1793, %v1756
      %1824 = vst.msk [vmem:[#allocation2 + $0x1e0] sm:$0xff] %vm1793, %v1758
      %1825 = vst.msk [vmem:[#allocation2 + $0x1f0] sm:$0xff] %vm1793, %v1760
      %v1826 = vld [vmem:[%s1439 + $0x2] sm:$0xff]
      %v1827 = vld [vmem:[%s1439 + $0xa] sm:$0xff]
      %v1828 = vld [vmem:[%s1439 + $0x1a] sm:$0xff]
      %v1829 = vld [vmem:[%s1439 + $0x22] sm:$0xff]
      %v1830 = vld [vmem:[%s1439 + $0x32] sm:$0xff]
      %v1831 = vld [vmem:[%s1439 + $0x3a] sm:$0xff]
      %v1832 = vld [vmem:[%s1439 + $0x4a] sm:$0xff]
      %v1833 = vld [vmem:[%s1439 + $0x52] sm:$0xff]
      %v1834 = vld [vmem:[%s1439 + $0x62] sm:$0xff]
      %v1835 = vld [vmem:[%s1439 + $0x6a] sm:$0xff]
      %v1836 = vld [vmem:[%s1439 + $0x7a] sm:$0xff]
      %v1837 = vld [vmem:[%s1439 + $0x82] sm:$0xff]
      %v1838 = vld [vmem:[%s1439 + $0x92] sm:$0xff]
      %v1839 = vld [vmem:[%s1439 + $0x9a] sm:$0xff]
      %v1840 = vld [vmem:[%s1439 + $0xaa] sm:$0xff]
      %v1841 = vld [vmem:[%s1439 + $0xb2] sm:$0xff]
      %v1842 = vld [vmem:[%s1439 + $0xc2] sm:$0xff]
      %v1843 = vld [vmem:[%s1439 + $0xca] sm:$0xff]
      %v1844 = vld [vmem:[%s1439 + $0xda] sm:$0xff]
      %v1845 = vld [vmem:[%s1439 + $0xe2] sm:$0xff]
      %v1846 = vld [vmem:[%s1439 + $0xf2] sm:$0xff]
      %v1847 = vld [vmem:[%s1439 + $0xfa] sm:$0xff]
      %v1848 = vld [vmem:[%s1439 + $0x10a] sm:$0xff]
      %v1849 = vld [vmem:[%s1439 + $0x112] sm:$0xff]
      %v1850 = vld [vmem:[%s1439 + $0x122] sm:$0xff]
      %v1851 = vld [vmem:[%s1439 + $0x12a] sm:$0xff]
      %v1852 = vld [vmem:[%s1439 + $0x13a] sm:$0xff]
      %v1853 = vld [vmem:[%s1439 + $0x142] sm:$0xff]
      %v1854 = vld [vmem:[%s1439 + $0x152] sm:$0xff]
      %v1855 = vld [vmem:[%s1439 + $0x15a] sm:$0xff]
      %v1856 = vld [vmem:[%s1439 + $0x16a] sm:$0xff]
      %v1857 = vld [vmem:[%s1439 + $0x172] sm:$0xff]
      %1858 = vst.msk [vmem:[#allocation2 + $0x8] sm:$0xff] %vm281, %v1826
      %1859 = vst.msk [vmem:[#allocation2 + $0x18] sm:$0xff] %vm281, %v1827
      %1860 = vst.msk [vmem:[#allocation2 + $0x28] sm:$0xff] %vm281, %v1828
      %1861 = vst.msk [vmem:[#allocation2 + $0x38] sm:$0xff] %vm281, %v1829
      %1862 = vst.msk [vmem:[#allocation2 + $0x48] sm:$0xff] %vm281, %v1830
      %1863 = vst.msk [vmem:[#allocation2 + $0x58] sm:$0xff] %vm281, %v1831
      %1864 = vst.msk [vmem:[#allocation2 + $0x68] sm:$0xff] %vm281, %v1832
      %1865 = vst.msk [vmem:[#allocation2 + $0x78] sm:$0xff] %vm281, %v1833
      %1866 = vst.msk [vmem:[#allocation2 + $0x88] sm:$0xff] %vm281, %v1834
      %1867 = vst.msk [vmem:[#allocation2 + $0x98] sm:$0xff] %vm281, %v1835
      %1868 = vst.msk [vmem:[#allocation2 + $0xa8] sm:$0xff] %vm281, %v1836
      %1869 = vst.msk [vmem:[#allocation2 + $0xb8] sm:$0xff] %vm281, %v1837
      %1870 = vst.msk [vmem:[#allocation2 + $0xc8] sm:$0xff] %vm281, %v1838
      %1871 = vst.msk [vmem:[#allocation2 + $0xd8] sm:$0xff] %vm281, %v1839
      %1872 = vst.msk [vmem:[#allocation2 + $0xe8] sm:$0xff] %vm281, %v1840
      %1873 = vst.msk [vmem:[#allocation2 + $0xf8] sm:$0xff] %vm281, %v1841
      %1874 = vst.msk [vmem:[#allocation2 + $0x108] sm:$0xff] %vm281, %v1842
      %1875 = vst.msk [vmem:[#allocation2 + $0x118] sm:$0xff] %vm281, %v1843
      %1876 = vst.msk [vmem:[#allocation2 + $0x128] sm:$0xff] %vm281, %v1844
      %1877 = vst.msk [vmem:[#allocation2 + $0x138] sm:$0xff] %vm281, %v1845
      %1878 = vst.msk [vmem:[#allocation2 + $0x148] sm:$0xff] %vm281, %v1846
      %1879 = vst.msk [vmem:[#allocation2 + $0x158] sm:$0xff] %vm281, %v1847
      %1880 = vst.msk [vmem:[#allocation2 + $0x168] sm:$0xff] %vm281, %v1848
      %1881 = vst.msk [vmem:[#allocation2 + $0x178] sm:$0xff] %vm281, %v1849
      %1882 = vst.msk [vmem:[#allocation2 + $0x188] sm:$0xff] %vm281, %v1850
      %1883 = vst.msk [vmem:[#allocation2 + $0x198] sm:$0xff] %vm281, %v1851
      %1884 = vst.msk [vmem:[#allocation2 + $0x1a8] sm:$0xff] %vm281, %v1852
      %1885 = vst.msk [vmem:[#allocation2 + $0x1b8] sm:$0xff] %vm281, %v1853
      %1886 = vst.msk [vmem:[#allocation2 + $0x1c8] sm:$0xff] %vm281, %v1854
      %1887 = vst.msk [vmem:[#allocation2 + $0x1d8] sm:$0xff] %vm281, %v1855
      %1888 = vst.msk [vmem:[#allocation2 + $0x1e8] sm:$0xff] %vm281, %v1856
      %1889 = vst.msk [vmem:[#allocation2 + $0x1f8] sm:$0xff] %vm281, %v1857
      %v1890 = vld [vmem:[#allocation2] sm:$0xff]
      %v1891 = vld [vmem:[#allocation2 + $0x8] sm:$0xff]
      %v1892 = vld [vmem:[#allocation2 + $0x10] sm:$0xff]
      %v1893 = vld [vmem:[#allocation2 + $0x18] sm:$0xff]
      %v1894 = vld [vmem:[#allocation2 + $0x20] sm:$0xff]
      %v1895 = vld [vmem:[#allocation2 + $0x28] sm:$0xff]
      %v1896 = vld [vmem:[#allocation2 + $0x30] sm:$0xff]
      %v1897 = vld [vmem:[#allocation2 + $0x38] sm:$0xff]
      %v1898 = vld [vmem:[#allocation2 + $0x40] sm:$0xff]
      %v1899 = vld [vmem:[#allocation2 + $0x48] sm:$0xff]
      %v1900 = vld [vmem:[#allocation2 + $0x50] sm:$0xff]
      %v1901 = vld [vmem:[#allocation2 + $0x58] sm:$0xff]
      %v1902 = vld [vmem:[#allocation2 + $0x60] sm:$0xff]
      %v1903 = vld [vmem:[#allocation2 + $0x68] sm:$0xff]
      %v1904 = vld [vmem:[#allocation2 + $0x70] sm:$0xff]
      %v1905 = vld [vmem:[#allocation2 + $0x78] sm:$0xff]
      %v1906 = vld [vmem:[#allocation2 + $0x80] sm:$0xff]
      %v1907 = vld [vmem:[#allocation2 + $0x88] sm:$0xff]
      %v1908 = vld [vmem:[#allocation2 + $0x90] sm:$0xff]
      %v1909 = vld [vmem:[#allocation2 + $0x98] sm:$0xff]
      %v1910 = vld [vmem:[#allocation2 + $0xa0] sm:$0xff]
      %v1911 = vld [vmem:[#allocation2 + $0xa8] sm:$0xff]
      %v1912 = vld [vmem:[#allocation2 + $0xb0] sm:$0xff]
      %v1913 = vld [vmem:[#allocation2 + $0xb8] sm:$0xff]
      %v1914 = vld [vmem:[#allocation2 + $0xc0] sm:$0xff]
      %v1915 = vld [vmem:[#allocation2 + $0xc8] sm:$0xff]
      %v1916 = vld [vmem:[#allocation2 + $0xd0] sm:$0xff]
      %v1917 = vld [vmem:[#allocation2 + $0xd8] sm:$0xff]
      %v1918 = vld [vmem:[#allocation2 + $0xe0] sm:$0xff]
      %v1919 = vld [vmem:[#allocation2 + $0xe8] sm:$0xff]
      %v1920 = vld [vmem:[#allocation2 + $0xf0] sm:$0xff]
      %v1921 = vld [vmem:[#allocation2 + $0xf8] sm:$0xff]
      %v1922 = vld [vmem:[#allocation2 + $0x100] sm:$0xff]
      %v1923 = vld [vmem:[#allocation2 + $0x108] sm:$0xff]
      %v1924 = vld [vmem:[#allocation2 + $0x110] sm:$0xff]
      %v1925 = vld [vmem:[#allocation2 + $0x118] sm:$0xff]
      %v1926 = vld [vmem:[#allocation2 + $0x120] sm:$0xff]
      %v1927 = vld [vmem:[#allocation2 + $0x128] sm:$0xff]
      %v1928 = vld [vmem:[#allocation2 + $0x130] sm:$0xff]
      %v1929 = vld [vmem:[#allocation2 + $0x138] sm:$0xff]
      %v1930 = vld [vmem:[#allocation2 + $0x140] sm:$0xff]
      %v1931 = vld [vmem:[#allocation2 + $0x148] sm:$0xff]
      %v1932 = vld [vmem:[#allocation2 + $0x150] sm:$0xff]
      %v1933 = vld [vmem:[#allocation2 + $0x158] sm:$0xff]
      %v1934 = vld [vmem:[#allocation2 + $0x160] sm:$0xff]
      %v1935 = vld [vmem:[#allocation2 + $0x168] sm:$0xff]
      %v1936 = vld [vmem:[#allocation2 + $0x170] sm:$0xff]
      %v1937 = vld [vmem:[#allocation2 + $0x178] sm:$0xff]
      %v1938 = vld [vmem:[#allocation2 + $0x180] sm:$0xff]
      %v1939 = vld [vmem:[#allocation2 + $0x188] sm:$0xff]
      %v1940 = vld [vmem:[#allocation2 + $0x190] sm:$0xff]
      %v1941 = vld [vmem:[#allocation2 + $0x198] sm:$0xff]
      %v1942 = vld [vmem:[#allocation2 + $0x1a0] sm:$0xff]
      %v1943 = vld [vmem:[#allocation2 + $0x1a8] sm:$0xff]
      %v1944 = vld [vmem:[#allocation2 + $0x1b0] sm:$0xff]
      %v1945 = vld [vmem:[#allocation2 + $0x1b8] sm:$0xff]
      %v1946 = vld [vmem:[#allocation2 + $0x1c0] sm:$0xff]
      %v1947 = vld [vmem:[#allocation2 + $0x1c8] sm:$0xff]
      %v1948 = vld [vmem:[#allocation2 + $0x1d0] sm:$0xff]
      %v1949 = vld [vmem:[#allocation2 + $0x1d8] sm:$0xff]
      %v1950 = vld [vmem:[#allocation2 + $0x1e0] sm:$0xff]
      %v1951 = vld [vmem:[#allocation2 + $0x1e8] sm:$0xff]
      %v1952 = vld [vmem:[#allocation2 + $0x1f0] sm:$0xff]
      %v1953 = vld [vmem:[#allocation2 + $0x1f8] sm:$0xff]
      %v1954 = vld [vmem:[%s1] sm:$0xff]
      %v1955 = vld [vmem:[%s1 + $0x8] sm:$0xff]
      %v1956 = vld [vmem:[%s1 + $0x10] sm:$0xff]
      %v1957 = vld [vmem:[%s1 + $0x18] sm:$0xff]
      %v1958 = vld [vmem:[%s1 + $0x20] sm:$0xff]
      %v1959 = vld [vmem:[%s1 + $0x28] sm:$0xff]
      %v1960 = vld [vmem:[%s1 + $0x30] sm:$0xff]
      %v1961 = vld [vmem:[%s1 + $0x38] sm:$0xff]
      %v1962 = vld [vmem:[%s1 + $0x40] sm:$0xff]
      %v1963 = vld [vmem:[%s1 + $0x48] sm:$0xff]
      %v1964 = vld [vmem:[%s1 + $0x50] sm:$0xff]
      %v1965 = vld [vmem:[%s1 + $0x58] sm:$0xff]
      %v1966 = vld [vmem:[%s1 + $0x60] sm:$0xff]
      %v1967 = vld [vmem:[%s1 + $0x68] sm:$0xff]
      %v1968 = vld [vmem:[%s1 + $0x70] sm:$0xff]
      %v1969 = vld [vmem:[%s1 + $0x78] sm:$0xff]
      %v1970 = vld [vmem:[%s1 + $0x80] sm:$0xff]
      %v1971 = vld [vmem:[%s1 + $0x88] sm:$0xff]
      %v1972 = vld [vmem:[%s2] sm:$0x1]
      %v1974 = vperm.slane %v1972, 0
      %v1977 = vsel %vm281, %v1891, 0
      %v1980 = vsel %vm281, %v1893, 0
      %v1983 = vsel %vm281, %v1895, 0
      %v1986 = vsel %vm281, %v1897, 0
      %v1989 = vsel %vm281, %v1899, 0
      %v1992 = vsel %vm281, %v1901, 0
      %v1995 = vsel %vm281, %v1903, 0
      %v1998 = vsel %vm281, %v1905, 0
      %v2001 = vsel %vm281, %v1907, 0
      %v2004 = vsel %vm281, %v1909, 0
      %v2007 = vsel %vm281, %v1911, 0
      %v2010 = vsel %vm281, %v1913, 0
      %v2013 = vsel %vm281, %v1915, 0
      %v2016 = vsel %vm281, %v1917, 0
      %v2019 = vsel %vm281, %v1919, 0
      %v2022 = vsel %vm281, %v1921, 0
      %v2025 = vsel %vm281, %v1923, 0
      %v2028 = vsel %vm281, %v1925, 0
      %v2031 = vsel %vm281, %v1927, 0
      %v2034 = vsel %vm281, %v1929, 0
      %v2037 = vsel %vm281, %v1931, 0
      %v2040 = vsel %vm281, %v1933, 0
      %v2043 = vsel %vm281, %v1935, 0
      %v2046 = vsel %vm281, %v1937, 0
      %v2049 = vsel %vm281, %v1939, 0
      %v2052 = vsel %vm281, %v1941, 0
      %v2055 = vsel %vm281, %v1943, 0
      %v2058 = vsel %vm281, %v1945, 0
      %v2061 = vsel %vm281, %v1947, 0
      %v2064 = vsel %vm281, %v1949, 0
      %v2067 = vsel %vm281, %v1951, 0
      %v2070 = vsel %vm281, %v1953, 0
      %2072 = vmatpush.msra.mxu0 %v1969
      %2073 = vmatpush.msra.mxu0 %v1968
      %2074 = vmatpush.msra.mxu0 %v1967
      %2075 = vmatpush.msra.mxu0 %v1966
      %2076 = vmatpush.msra.mxu0 %v1965
      %2077 = vmatpush.msra.mxu0 %v1964
      %2078 = vmatpush.msra.mxu0 %v1963
      %2079 = vmatpush.msra.mxu0 %v1962
      %2080 = vmatpush.msra.mxu0 %v1961
      %2081 = vmatpush.msra.mxu0 %v1960
      %2082 = vmatpush.msra.mxu0 %v1959
      %2083 = vmatpush.msra.mxu0 %v1958
      %2084 = vmatpush.msra.mxu0 %v1957
      %2085 = vmatpush.msra.mxu0 %v1956
      %2086 = vmatpush.msra.mxu0 %v1955
      %2087 = vmatpush.msra.mxu0 %v1954
      %2088 = vmatmul.f32.gmra.mxu0 %v1890
      %v2089 = vpop.f32.mrf.mxu0
      %v2090 = vadd.f32 %v1974, %v2089
      %2091 = vmatmul.f32.gmra.mxu0 %v1892
      %v2092 = vpop.f32.mrf.mxu0
      %v2093 = vadd.f32 %v1974, %v2092
      %2094 = vmatmul.f32.gmra.mxu0 %v1894
      %v2095 = vpop.f32.mrf.mxu0
      %v2096 = vadd.f32 %v1974, %v2095
      %2097 = vmatmul.f32.gmra.mxu0 %v1896
      %v2098 = vpop.f32.mrf.mxu0
      %v2099 = vadd.f32 %v1974, %v2098
      %2100 = vmatmul.f32.gmra.mxu0 %v1898
      %v2101 = vpop.f32.mrf.mxu0
      %v2102 = vadd.f32 %v1974, %v2101
      %2103 = vmatmul.f32.gmra.mxu0 %v1900
      %v2104 = vpop.f32.mrf.mxu0
      %v2105 = vadd.f32 %v1974, %v2104
      %2106 = vmatmul.f32.gmra.mxu0 %v1902
      %v2107 = vpop.f32.mrf.mxu0
      %v2108 = vadd.f32 %v1974, %v2107
      %2109 = vmatmul.f32.gmra.mxu0 %v1904
      %v2110 = vpop.f32.mrf.mxu0
      %v2111 = vadd.f32 %v1974, %v2110
      %2112 = vmatmul.f32.gmra.mxu0 %v1906
      %v2113 = vpop.f32.mrf.mxu0
      %v2114 = vadd.f32 %v1974, %v2113
      %2115 = vmatmul.f32.gmra.mxu0 %v1908
      %v2116 = vpop.f32.mrf.mxu0
      %v2117 = vadd.f32 %v1974, %v2116
      %2118 = vmatmul.f32.gmra.mxu0 %v1910
      %v2119 = vpop.f32.mrf.mxu0
      %v2120 = vadd.f32 %v1974, %v2119
      %2121 = vmatmul.f32.gmra.mxu0 %v1912
      %v2122 = vpop.f32.mrf.mxu0
      %v2123 = vadd.f32 %v1974, %v2122
      %2124 = vmatmul.f32.gmra.mxu0 %v1914
      %v2125 = vpop.f32.mrf.mxu0
      %v2126 = vadd.f32 %v1974, %v2125
      %2127 = vmatmul.f32.gmra.mxu0 %v1916
      %v2128 = vpop.f32.mrf.mxu0
      %v2129 = vadd.f32 %v1974, %v2128
      %2130 = vmatmul.f32.gmra.mxu0 %v1918
      %v2131 = vpop.f32.mrf.mxu0
      %v2132 = vadd.f32 %v1974, %v2131
      %2133 = vmatmul.f32.gmra.mxu0 %v1920
      %v2134 = vpop.f32.mrf.mxu0
      %v2135 = vadd.f32 %v1974, %v2134
      %2136 = vmatmul.f32.gmra.mxu0 %v1922
      %v2137 = vpop.f32.mrf.mxu0
      %v2138 = vadd.f32 %v1974, %v2137
      %2139 = vmatmul.f32.gmra.mxu0 %v1924
      %v2140 = vpop.f32.mrf.mxu0
      %v2141 = vadd.f32 %v1974, %v2140
      %2142 = vmatmul.f32.gmra.mxu0 %v1926
      %v2143 = vpop.f32.mrf.mxu0
      %v2144 = vadd.f32 %v1974, %v2143
      %2145 = vmatmul.f32.gmra.mxu0 %v1928
      %v2146 = vpop.f32.mrf.mxu0
      %v2147 = vadd.f32 %v1974, %v2146
      %2148 = vmatmul.f32.gmra.mxu0 %v1930
      %v2149 = vpop.f32.mrf.mxu0
      %v2150 = vadd.f32 %v1974, %v2149
      %2151 = vmatmul.f32.gmra.mxu0 %v1932
      %v2152 = vpop.f32.mrf.mxu0
      %v2153 = vadd.f32 %v1974, %v2152
      %2154 = vmatmul.f32.gmra.mxu0 %v1934
      %v2155 = vpop.f32.mrf.mxu0
      %v2156 = vadd.f32 %v1974, %v2155
      %2157 = vmatmul.f32.gmra.mxu0 %v1936
      %v2158 = vpop.f32.mrf.mxu0
      %v2159 = vadd.f32 %v1974, %v2158
      %2160 = vmatmul.f32.gmra.mxu0 %v1938
      %v2161 = vpop.f32.mrf.mxu0
      %v2162 = vadd.f32 %v1974, %v2161
      %2163 = vmatmul.f32.gmra.mxu0 %v1940
      %v2164 = vpop.f32.mrf.mxu0
      %v2165 = vadd.f32 %v1974, %v2164
      %2166 = vmatmul.f32.gmra.mxu0 %v1942
      %v2167 = vpop.f32.mrf.mxu0
      %v2168 = vadd.f32 %v1974, %v2167
      %2169 = vmatmul.f32.gmra.mxu0 %v1944
      %v2170 = vpop.f32.mrf.mxu0
      %v2171 = vadd.f32 %v1974, %v2170
      %2172 = vmatmul.f32.gmra.mxu0 %v1946
      %v2173 = vpop.f32.mrf.mxu0
      %v2174 = vadd.f32 %v1974, %v2173
      %2175 = vmatmul.f32.gmra.mxu0 %v1948
      %v2176 = vpop.f32.mrf.mxu0
      %v2177 = vadd.f32 %v1974, %v2176
      %2178 = vmatmul.f32.gmra.mxu0 %v1950
      %v2179 = vpop.f32.mrf.mxu0
      %v2180 = vadd.f32 %v1974, %v2179
      %2181 = vmatmul.f32.gmra.mxu0 %v1952
      %v2182 = vpop.f32.mrf.mxu0
      %v2183 = vadd.f32 %v1974, %v2182
      %2184 = vdwg.mxu0
      %2185 = vmatpush.msra.mxu0 0.0
      %2186 = vmatpush.msra.mxu0 0.0
      %2187 = vmatpush.msra.mxu0 0.0
      %2188 = vmatpush.msra.mxu0 0.0
      %2189 = vmatpush.msra.mxu0 0.0
      %2190 = vmatpush.msra.mxu0 0.0
      %2191 = vmatpush.msra.mxu0 0.0
      %2192 = vmatpush.msra.mxu0 0.0
      %2193 = vmatpush.msra.mxu0 0.0
      %2194 = vmatpush.msra.mxu0 0.0
      %2195 = vmatpush.msra.mxu0 0.0
      %2196 = vmatpush.msra.mxu0 0.0
      %2197 = vmatpush.msra.mxu0 0.0
      %2198 = vmatpush.msra.mxu0 0.0
      %2199 = vmatpush.msra.mxu0 %v1971
      %2200 = vmatpush.msra.mxu0 %v1970
      %2201 = vmatmul.f32.gmra.mxu0 %v1977
      %v2202 = vpop.f32.mrf.mxu0
      %v2203 = vadd.f32 %v2090, %v2202
      %2204 = vmatmul.f32.gmra.mxu0 %v1980
      %v2205 = vpop.f32.mrf.mxu0
      %v2206 = vadd.f32 %v2093, %v2205
      %2207 = vmatmul.f32.gmra.mxu0 %v1983
      %v2208 = vpop.f32.mrf.mxu0
      %v2209 = vadd.f32 %v2096, %v2208
      %2210 = vmatmul.f32.gmra.mxu0 %v1986
      %v2211 = vpop.f32.mrf.mxu0
      %v2212 = vadd.f32 %v2099, %v2211
      %2213 = vmatmul.f32.gmra.mxu0 %v1989
      %v2214 = vpop.f32.mrf.mxu0
      %v2215 = vadd.f32 %v2102, %v2214
      %2216 = vmatmul.f32.gmra.mxu0 %v1992
      %v2217 = vpop.f32.mrf.mxu0
      %v2218 = vadd.f32 %v2105, %v2217
      %2219 = vmatmul.f32.gmra.mxu0 %v1995
      %v2220 = vpop.f32.mrf.mxu0
      %v2221 = vadd.f32 %v2108, %v2220
      %2222 = vmatmul.f32.gmra.mxu0 %v1998
      %v2223 = vpop.f32.mrf.mxu0
      %v2224 = vadd.f32 %v2111, %v2223
      %2225 = vmatmul.f32.gmra.mxu0 %v2001
      %v2226 = vpop.f32.mrf.mxu0
      %v2227 = vadd.f32 %v2114, %v2226
      %2228 = vmatmul.f32.gmra.mxu0 %v2004
      %v2229 = vpop.f32.mrf.mxu0
      %v2230 = vadd.f32 %v2117, %v2229
      %2231 = vmatmul.f32.gmra.mxu0 %v2007
      %v2232 = vpop.f32.mrf.mxu0
      %v2233 = vadd.f32 %v2120, %v2232
      %2234 = vmatmul.f32.gmra.mxu0 %v2010
      %v2235 = vpop.f32.mrf.mxu0
      %v2236 = vadd.f32 %v2123, %v2235
      %2237 = vmatmul.f32.gmra.mxu0 %v2013
      %v2238 = vpop.f32.mrf.mxu0
      %v2239 = vadd.f32 %v2126, %v2238
      %2240 = vmatmul.f32.gmra.mxu0 %v2016
      %v2241 = vpop.f32.mrf.mxu0
      %v2242 = vadd.f32 %v2129, %v2241
      %2243 = vmatmul.f32.gmra.mxu0 %v2019
      %v2244 = vpop.f32.mrf.mxu0
      %v2245 = vadd.f32 %v2132, %v2244
      %2246 = vmatmul.f32.gmra.mxu0 %v2022
      %v2247 = vpop.f32.mrf.mxu0
      %v2248 = vadd.f32 %v2135, %v2247
      %2249 = vmatmul.f32.gmra.mxu0 %v2025
      %v2250 = vpop.f32.mrf.mxu0
      %v2251 = vadd.f32 %v2138, %v2250
      %2252 = vmatmul.f32.gmra.mxu0 %v2028
      %v2253 = vpop.f32.mrf.mxu0
      %v2254 = vadd.f32 %v2141, %v2253
      %2255 = vmatmul.f32.gmra.mxu0 %v2031
      %v2256 = vpop.f32.mrf.mxu0
      %v2257 = vadd.f32 %v2144, %v2256
      %2258 = vmatmul.f32.gmra.mxu0 %v2034
      %v2259 = vpop.f32.mrf.mxu0
      %v2260 = vadd.f32 %v2147, %v2259
      %2261 = vmatmul.f32.gmra.mxu0 %v2037
      %v2262 = vpop.f32.mrf.mxu0
      %v2263 = vadd.f32 %v2150, %v2262
      %2264 = vmatmul.f32.gmra.mxu0 %v2040
      %v2265 = vpop.f32.mrf.mxu0
      %v2266 = vadd.f32 %v2153, %v2265
      %2267 = vmatmul.f32.gmra.mxu0 %v2043
      %v2268 = vpop.f32.mrf.mxu0
      %v2269 = vadd.f32 %v2156, %v2268
      %2270 = vmatmul.f32.gmra.mxu0 %v2046
      %v2271 = vpop.f32.mrf.mxu0
      %v2272 = vadd.f32 %v2159, %v2271
      %2273 = vmatmul.f32.gmra.mxu0 %v2049
      %v2274 = vpop.f32.mrf.mxu0
      %v2275 = vadd.f32 %v2162, %v2274
      %2276 = vmatmul.f32.gmra.mxu0 %v2052
      %v2277 = vpop.f32.mrf.mxu0
      %v2278 = vadd.f32 %v2165, %v2277
      %2279 = vmatmul.f32.gmra.mxu0 %v2055
      %v2280 = vpop.f32.mrf.mxu0
      %v2281 = vadd.f32 %v2168, %v2280
      %2282 = vmatmul.f32.gmra.mxu0 %v2058
      %v2283 = vpop.f32.mrf.mxu0
      %v2284 = vadd.f32 %v2171, %v2283
      %2285 = vmatmul.f32.gmra.mxu0 %v2061
      %v2286 = vpop.f32.mrf.mxu0
      %v2287 = vadd.f32 %v2174, %v2286
      %2288 = vmatmul.f32.gmra.mxu0 %v2064
      %v2289 = vpop.f32.mrf.mxu0
      %v2290 = vadd.f32 %v2177, %v2289
      %2291 = vmatmul.f32.gmra.mxu0 %v2067
      %v2292 = vpop.f32.mrf.mxu0
      %v2293 = vadd.f32 %v2180, %v2292
      %2294 = vmatmul.f32.gmra.mxu0 %v2070
      %v2295 = vpop.f32.mrf.mxu0
      %v2296 = vadd.f32 %v2183, %v2295
      %2297 = vdwg.mxu0
      %2298 = vst.msk [vmem:[%s267] sm:$0xff] %vm281, %v2203
      %2299 = vst.msk [vmem:[%s267 + $0x8] sm:$0xff] %vm281, %v2206
      %2300 = vst.msk [vmem:[%s267 + $0x10] sm:$0xff] %vm281, %v2209
      %2301 = vst.msk [vmem:[%s267 + $0x18] sm:$0xff] %vm281, %v2212
      %2302 = vst.msk [vmem:[%s267 + $0x20] sm:$0xff] %vm281, %v2215
      %2303 = vst.msk [vmem:[%s267 + $0x28] sm:$0xff] %vm281, %v2218
      %2304 = vst.msk [vmem:[%s267 + $0x30] sm:$0xff] %vm281, %v2221
      %2305 = vst.msk [vmem:[%s267 + $0x38] sm:$0xff] %vm281, %v2224
      %2306 = vst.msk [vmem:[%s267 + $0x40] sm:$0xff] %vm281, %v2227
      %2307 = vst.msk [vmem:[%s267 + $0x48] sm:$0xff] %vm281, %v2230
      %2308 = vst.msk [vmem:[%s267 + $0x50] sm:$0xff] %vm281, %v2233
      %2309 = vst.msk [vmem:[%s267 + $0x58] sm:$0xff] %vm281, %v2236
      %2310 = vst.msk [vmem:[%s267 + $0x60] sm:$0xff] %vm281, %v2239
      %2311 = vst.msk [vmem:[%s267 + $0x68] sm:$0xff] %vm281, %v2242
      %2312 = vst.msk [vmem:[%s267 + $0x70] sm:$0xff] %vm281, %v2245
      %2313 = vst.msk [vmem:[%s267 + $0x78] sm:$0xff] %vm281, %v2248
      %2314 = vst.msk [vmem:[%s267 + $0x80] sm:$0xff] %vm281, %v2251
      %2315 = vst.msk [vmem:[%s267 + $0x88] sm:$0xff] %vm281, %v2254
      %2316 = vst.msk [vmem:[%s267 + $0x90] sm:$0xff] %vm281, %v2257
      %2317 = vst.msk [vmem:[%s267 + $0x98] sm:$0xff] %vm281, %v2260
      %2318 = vst.msk [vmem:[%s267 + $0xa0] sm:$0xff] %vm281, %v2263
      %2319 = vst.msk [vmem:[%s267 + $0xa8] sm:$0xff] %vm281, %v2266
      %2320 = vst.msk [vmem:[%s267 + $0xb0] sm:$0xff] %vm281, %v2269
      %2321 = vst.msk [vmem:[%s267 + $0xb8] sm:$0xff] %vm281, %v2272
      %2322 = vst.msk [vmem:[%s267 + $0xc0] sm:$0xff] %vm281, %v2275
      %2323 = vst.msk [vmem:[%s267 + $0xc8] sm:$0xff] %vm281, %v2278
      %2324 = vst.msk [vmem:[%s267 + $0xd0] sm:$0xff] %vm281, %v2281
      %2325 = vst.msk [vmem:[%s267 + $0xd8] sm:$0xff] %vm281, %v2284
      %2326 = vst.msk [vmem:[%s267 + $0xe0] sm:$0xff] %vm281, %v2287
      %2327 = vst.msk [vmem:[%s267 + $0xe8] sm:$0xff] %vm281, %v2290
      %2328 = vst.msk [vmem:[%s267 + $0xf0] sm:$0xff] %vm281, %v2293
      %2329 = vst.msk [vmem:[%s267 + $0xf8] sm:$0xff] %vm281, %v2296
      %v2330 = vsel %vm281, %v2203, 0.0
      %v2331 = vsel %vm281, %v2206, 0.0
      %v2332 = vadd.f32 %v2330, %v2331
      %v2333 = vsel %vm281, %v2209, 0.0
      %v2334 = vadd.f32 %v2332, %v2333
      %v2335 = vsel %vm281, %v2212, 0.0
      %v2336 = vadd.f32 %v2334, %v2335
      %v2337 = vsel %vm281, %v2215, 0.0
      %v2338 = vadd.f32 %v2336, %v2337
      %v2339 = vsel %vm281, %v2218, 0.0
      %v2340 = vadd.f32 %v2338, %v2339
      %v2341 = vsel %vm281, %v2221, 0.0
      %v2342 = vadd.f32 %v2340, %v2341
      %v2343 = vsel %vm281, %v2224, 0.0
      %v2344 = vadd.f32 %v2342, %v2343
      %v2345 = vsel %vm281, %v2227, 0.0
      %v2346 = vadd.f32 %v2344, %v2345
      %v2347 = vsel %vm281, %v2230, 0.0
      %v2348 = vadd.f32 %v2346, %v2347
      %v2349 = vsel %vm281, %v2233, 0.0
      %v2350 = vadd.f32 %v2348, %v2349
      %v2351 = vsel %vm281, %v2236, 0.0
      %v2352 = vadd.f32 %v2350, %v2351
      %v2353 = vsel %vm281, %v2239, 0.0
      %v2354 = vadd.f32 %v2352, %v2353
      %v2355 = vsel %vm281, %v2242, 0.0
      %v2356 = vadd.f32 %v2354, %v2355
      %v2357 = vsel %vm281, %v2245, 0.0
      %v2358 = vadd.f32 %v2356, %v2357
      %v2359 = vsel %vm281, %v2248, 0.0
      %v2360 = vadd.f32 %v2358, %v2359
      %v2361 = vsel %vm281, %v2251, 0.0
      %v2362 = vadd.f32 %v2360, %v2361
      %v2363 = vsel %vm281, %v2254, 0.0
      %v2364 = vadd.f32 %v2362, %v2363
      %v2365 = vsel %vm281, %v2257, 0.0
      %v2366 = vadd.f32 %v2364, %v2365
      %v2367 = vsel %vm281, %v2260, 0.0
      %v2368 = vadd.f32 %v2366, %v2367
      %v2369 = vsel %vm281, %v2263, 0.0
      %v2370 = vadd.f32 %v2368, %v2369
      %v2371 = vsel %vm281, %v2266, 0.0
      %v2372 = vadd.f32 %v2370, %v2371
      %v2373 = vsel %vm281, %v2269, 0.0
      %v2374 = vadd.f32 %v2372, %v2373
      %v2375 = vsel %vm281, %v2272, 0.0
      %v2376 = vadd.f32 %v2374, %v2375
      %v2377 = vsel %vm281, %v2275, 0.0
      %v2378 = vadd.f32 %v2376, %v2377
      %v2379 = vsel %vm281, %v2278, 0.0
      %v2380 = vadd.f32 %v2378, %v2379
      %v2381 = vsel %vm281, %v2281, 0.0
      %v2382 = vadd.f32 %v2380, %v2381
      %v2383 = vsel %vm281, %v2284, 0.0
      %v2384 = vadd.f32 %v2382, %v2383
      %v2385 = vsel %vm281, %v2287, 0.0
      %v2386 = vadd.f32 %v2384, %v2385
      %v2387 = vsel %vm281, %v2290, 0.0
      %v2388 = vadd.f32 %v2386, %v2387
      %v2389 = vsel %vm281, %v2293, 0.0
      %v2390 = vadd.f32 %v2388, %v2389
      %v2391 = vsel %vm281, %v2296, 0.0
      %v2392 = vadd.f32 %v2390, %v2391
      %v2393 = vrot.slane %v2392, 4
      %v2394 = vadd.f32 %v2392, %v2393
      %v2395 = vrot.slane %v2394, 2
      %v2396 = vadd.f32 %v2394, %v2395
      %v2397 = vrot.slane %v2396, 1
      %v2398 = vadd.f32 %v2396, %v2397
      %vm2399 = vcmask 122880
      %2400 = vst.msk [vmem:[%s274] sm:$0x1] %vm2399, %v2398
      %v2401 = vmul.f32 %v2203, %v2203
      %v2402 = vmul.f32 %v2206, %v2206
      %v2403 = vmul.f32 %v2209, %v2209
      %v2404 = vmul.f32 %v2212, %v2212
      %v2405 = vmul.f32 %v2215, %v2215
      %v2406 = vmul.f32 %v2218, %v2218
      %v2407 = vmul.f32 %v2221, %v2221
      %v2408 = vmul.f32 %v2224, %v2224
      %v2409 = vmul.f32 %v2227, %v2227
      %v2410 = vmul.f32 %v2230, %v2230
      %v2411 = vmul.f32 %v2233, %v2233
      %v2412 = vmul.f32 %v2236, %v2236
      %v2413 = vmul.f32 %v2239, %v2239
      %v2414 = vmul.f32 %v2242, %v2242
      %v2415 = vmul.f32 %v2245, %v2245
      %v2416 = vmul.f32 %v2248, %v2248
      %v2417 = vmul.f32 %v2251, %v2251
      %v2418 = vmul.f32 %v2254, %v2254
      %v2419 = vmul.f32 %v2257, %v2257
      %v2420 = vmul.f32 %v2260, %v2260
      %v2421 = vmul.f32 %v2263, %v2263
      %v2422 = vmul.f32 %v2266, %v2266
      %v2423 = vmul.f32 %v2269, %v2269
      %v2424 = vmul.f32 %v2272, %v2272
      %v2425 = vmul.f32 %v2275, %v2275
      %v2426 = vmul.f32 %v2278, %v2278
      %v2427 = vmul.f32 %v2281, %v2281
      %v2428 = vmul.f32 %v2284, %v2284
      %v2429 = vmul.f32 %v2287, %v2287
      %v2430 = vmul.f32 %v2290, %v2290
      %v2431 = vmul.f32 %v2293, %v2293
      %v2432 = vmul.f32 %v2296, %v2296
      %v2433 = vsel %vm281, %v2401, 0.0
      %v2434 = vsel %vm281, %v2402, 0.0
      %v2435 = vadd.f32 %v2433, %v2434
      %v2436 = vsel %vm281, %v2403, 0.0
      %v2437 = vadd.f32 %v2435, %v2436
      %v2438 = vsel %vm281, %v2404, 0.0
      %v2439 = vadd.f32 %v2437, %v2438
      %v2440 = vsel %vm281, %v2405, 0.0
      %v2441 = vadd.f32 %v2439, %v2440
      %v2442 = vsel %vm281, %v2406, 0.0
      %v2443 = vadd.f32 %v2441, %v2442
      %v2444 = vsel %vm281, %v2407, 0.0
      %v2445 = vadd.f32 %v2443, %v2444
      %v2446 = vsel %vm281, %v2408, 0.0
      %v2447 = vadd.f32 %v2445, %v2446
      %v2448 = vsel %vm281, %v2409, 0.0
      %v2449 = vadd.f32 %v2447, %v2448
      %v2450 = vsel %vm281, %v2410, 0.0
      %v2451 = vadd.f32 %v2449, %v2450
      %v2452 = vsel %vm281, %v2411, 0.0
      %v2453 = vadd.f32 %v2451, %v2452
      %v2454 = vsel %vm281, %v2412, 0.0
      %v2455 = vadd.f32 %v2453, %v2454
      %v2456 = vsel %vm281, %v2413, 0.0
      %v2457 = vadd.f32 %v2455, %v2456
      %v2458 = vsel %vm281, %v2414, 0.0
      %v2459 = vadd.f32 %v2457, %v2458
      %v2460 = vsel %vm281, %v2415, 0.0
      %v2461 = vadd.f32 %v2459, %v2460
      %v2462 = vsel %vm281, %v2416, 0.0
      %v2463 = vadd.f32 %v2461, %v2462
      %v2464 = vsel %vm281, %v2417, 0.0
      %v2465 = vadd.f32 %v2463, %v2464
      %v2466 = vsel %vm281, %v2418, 0.0
      %v2467 = vadd.f32 %v2465, %v2466
      %v2468 = vsel %vm281, %v2419, 0.0
      %v2469 = vadd.f32 %v2467, %v2468
      %v2470 = vsel %vm281, %v2420, 0.0
      %v2471 = vadd.f32 %v2469, %v2470
      %v2472 = vsel %vm281, %v2421, 0.0
      %v2473 = vadd.f32 %v2471, %v2472
      %v2474 = vsel %vm281, %v2422, 0.0
      %v2475 = vadd.f32 %v2473, %v2474
      %v2476 = vsel %vm281, %v2423, 0.0
      %v2477 = vadd.f32 %v2475, %v2476
      %v2478 = vsel %vm281, %v2424, 0.0
      %v2479 = vadd.f32 %v2477, %v2478
      %v2480 = vsel %vm281, %v2425, 0.0
      %v2481 = vadd.f32 %v2479, %v2480
      %v2482 = vsel %vm281, %v2426, 0.0
      %v2483 = vadd.f32 %v2481, %v2482
      %v2484 = vsel %vm281, %v2427, 0.0
      %v2485 = vadd.f32 %v2483, %v2484
      %v2486 = vsel %vm281, %v2428, 0.0
      %v2487 = vadd.f32 %v2485, %v2486
      %v2488 = vsel %vm281, %v2429, 0.0
      %v2489 = vadd.f32 %v2487, %v2488
      %v2490 = vsel %vm281, %v2430, 0.0
      %v2491 = vadd.f32 %v2489, %v2490
      %v2492 = vsel %vm281, %v2431, 0.0
      %v2493 = vadd.f32 %v2491, %v2492
      %v2494 = vsel %vm281, %v2432, 0.0
      %v2495 = vadd.f32 %v2493, %v2494
      %v2496 = vrot.slane %v2495, 4
      %v2497 = vadd.f32 %v2495, %v2496
      %v2498 = vrot.slane %v2497, 2
      %v2499 = vadd.f32 %v2497, %v2498
      %v2500 = vrot.slane %v2499, 1
      %v2501 = vadd.f32 %v2499, %v2500
      %2502 = vst.msk [vmem:[%s280] sm:$0x1] %vm2399, %v2501
      %s2503 = smul.u32 32, %s22
      %p2504 = scmp.lt.s32.totalorder %s21, 1
      %s2505 = scalar_select %p2504, %s21, 1
      %p2506 = scmp.lt.s32.totalorder %s2503, 31
      %s2507 = scalar_select %p2506, %s2503, 31
      %s2508 = smul.addr %s2505, 32
      %s2509 = sadd.s32 %s2507, %s2508
      %s2510 = smul.addr %s2509, 8
      %s2511 = scalar_lea.vmem %s3, %s2510
      %p2512 = scmp.lt.s32.totalorder %s21, 1
      %s2513 = scalar_select %p2512, %s21, 1
      %p2514 = scmp.lt.s32.totalorder %s22, 0
      %s2515 = scalar_select %p2514, %s22, 0
      %s2516 = sadd.s32 %s2515, %s2513
      %s2517 = scalar_lea.vmem %s4, %s2516
      %p2518 = scmp.lt.s32.totalorder %s21, 1
      %s2519 = scalar_select %p2518, %s21, 1
      %p2520 = scmp.lt.s32.totalorder %s22, 0
      %s2521 = scalar_select %p2520, %s22, 0
      %s2522 = sadd.s32 %s2521, %s2519
      %s2523 = scalar_lea.vmem %s5, %s2522
      // Predicated region
      $region33: #{residual_block.7} parent=31 // pred_check
        %p2524 = pneg %p117
      $region34: #{residual_block.7} parent=31 // pred_check_branch
        %2526 = sbr.rel (%p2524) target = $region36
      $region35: #{residual_block.7} parent=31 // pred_region
        %s2527 = smul.u32 32, %s22
      $region36: #{residual_block.7} parent=31 // pred_fallthru
        _
      // Predicated region
      $region37: #{residual_block.7} parent=31 // pred_check
        %p2528 = pneg %p145
      $region38: #{residual_block.7} parent=31 // pred_check_branch
        %2530 = sbr.rel (%p2528) target = $region40
      $region39: #{residual_block.7} parent=31 // pred_region
        _
      $region40: #{residual_block.7} parent=31 // pred_fallthru
        _
      // Predicated region
      $region41: #{residual_block.7} parent=31 // pred_check
        %p2531 = pneg %p173
      $region42: #{residual_block.7} parent=31 // pred_check_branch
        %2533 = sbr.rel (%p2531) target = $region44
      $region43: #{residual_block.7} parent=31 // pred_region
        _
      $region44: #{residual_block.7} parent=31 // pred_fallthru
        _
    $region32: #{residual_block.7} parent=5 // pred_fallthru
      _
    %p2534 = scmp.le.s32.totalorder 2, %s12
    // Predicated region
    $region45: #{residual_block.7} parent=5 // pred_check
      %p2535 = pneg %p2534
    $region46: #{residual_block.7} parent=5 // pred_check_branch
      %2537 = sbr.rel (%p2535) target = $region48
    $region47: #{residual_block.7} parent=5 // pred_region
      %s2538 = ssub.s32 %s12, 2
      // Predicated region
      $region49: #{residual_block.7} parent=47 // pred_check
        %p2539 = pneg %p123
      $region50: #{residual_block.7} parent=47 // pred_check_branch
        %2541 = sbr.rel (%p2539) target = $region52
      $region51: #{residual_block.7} parent=47 // pred_region
        %s2542 = smul.u32 32, %s24
        %p2543 = scmp.lt.s32.totalorder %s23, 1
        %s2544 = scalar_select %p2543, %s23, 1
        %p2545 = scmp.lt.s32.totalorder %s2542, 31
        %s2546 = scalar_select %p2545, %s2542, 31
        %s2547 = smul.addr %s2544, 32
        %s2548 = sadd.s32 %s2546, %s2547
        %s2549 = smul.addr %s2548, 8
        %s2550 = scalar_lea.vmem %s3, %s2549
      $region52: #{residual_block.7} parent=47 // pred_fallthru
        _
      // Predicated region
      $region53: #{residual_block.7} parent=47 // pred_check
        %p2551 = pneg %p151
      $region54: #{residual_block.7} parent=47 // pred_check_branch
        %2553 = sbr.rel (%p2551) target = $region56
      $region55: #{residual_block.7} parent=47 // pred_region
        %p2554 = scmp.lt.s32.totalorder %s23, 1
        %s2555 = scalar_select %p2554, %s23, 1
        %p2556 = scmp.lt.s32.totalorder %s24, 0
        %s2557 = scalar_select %p2556, %s24, 0
        %s2558 = sadd.s32 %s2557, %s2555
        %s2559 = scalar_lea.vmem %s4, %s2558
      $region56: #{residual_block.7} parent=47 // pred_fallthru
        _
      // Predicated region
      $region57: #{residual_block.7} parent=47 // pred_check
        %p2560 = pneg %p179
      $region58: #{residual_block.7} parent=47 // pred_check_branch
        %2562 = sbr.rel (%p2560) target = $region60
      $region59: #{residual_block.7} parent=47 // pred_region
        %p2563 = scmp.lt.s32.totalorder %s23, 1
        %s2564 = scalar_select %p2563, %s23, 1
        %p2565 = scmp.lt.s32.totalorder %s24, 0
        %s2566 = scalar_select %p2565, %s24, 0
        %s2567 = sadd.s32 %s2566, %s2564
        %s2568 = scalar_lea.vmem %s5, %s2567
      $region60: #{residual_block.7} parent=47 // pred_fallthru
        _
    $region48: #{residual_block.7} parent=5 // pred_fallthru
      _
  $region6: #{residual_block.7} parent=0 // loop_footer
    %s16 = sadd.s32 1, %s12
  $region7: #{residual_block.7} parent=0 // loop_footer_branch
    %11 = sbr.rel target = $region3
  $region8: #{residual_block.7} parent=0 // loop_exit
    _

</llo_original>
